<compile_context>
chip_gen: v7x
topology: tpu7x:2x2x1
jax: 0.10.0
libtpu: 0.0.40
codegen_flags: <defaults>
</compile_context>

<pallas_src>
import functools
import math

import jax
import jax.numpy as jnp
from jax import lax
from jax.experimental import pallas as pl
from jax.experimental.pallas import tpu as pltpu

MAX_LENGTH = 256
LN_EPS = 1e-5
VMEM_LIMIT_BYTES = 32 * 1024 * 1024


# ------------------------- in-kernel helpers -------------------------

def _full_spec(a):
    """BlockSpec for a whole (grid-invariant) array."""
    zeros = (0,) * a.ndim
    return pl.BlockSpec(a.shape, lambda *_: zeros)


def _layernorm(y, g, b):
    mu = jnp.mean(y, axis=-1, keepdims=True)
    var = jnp.mean(jnp.square(y - mu), axis=-1, keepdims=True)
    return (y - mu) * lax.rsqrt(var + LN_EPS) * g + b


def _mha(x_q, x_kv, wqkv, bqkv, wo, bo, scale):
    """Batched-head MHA.

    x_q: [Sq, E] f32, x_kv: [Sk, E] f32
    wqkv: [3, H, E, Dh] bf16, bqkv: [3, H, 1, Dh] f32
    wo:   [H, Dh, E]    bf16, bo:   [1, E]        f32
    Returns [Sq, E] f32 (pre-residual, pre-LN).
    """
    H = wqkv.shape[1]
    Sq, E = x_q.shape
    Sk = x_kv.shape[0]
    cdt = wqkv.dtype  # bf16 MXU inputs, f32 accumulation

    xq_b = jnp.broadcast_to(x_q.astype(cdt), (H, Sq, E))
    xkv_b = jnp.broadcast_to(x_kv.astype(cdt), (H, Sk, E))

    q = jnp.einsum('hse,hed->hsd', xq_b, wqkv[0],
                   preferred_element_type=jnp.float32) + bqkv[0]
    k = jnp.einsum('hse,hed->hsd', xkv_b, wqkv[1],
                   preferred_element_type=jnp.float32) + bqkv[1]
    v = jnp.einsum('hse,hed->hsd', xkv_b, wqkv[2],
                   preferred_element_type=jnp.float32) + bqkv[2]
    q = q * scale                                            # fold 1/sqrt(Dh) into Q once

    s = jnp.einsum('hqd,hkd->hqk', q.astype(cdt), k.astype(cdt),
                   preferred_element_type=jnp.float32)        # [H, Sq, Sk]
    s = s - jnp.max(s, axis=-1, keepdims=True)
    p = jnp.exp(s)
    p = p * pl.reciprocal(jnp.sum(p, axis=-1, keepdims=True), approx=False)

    ctx = jnp.einsum('hqk,hkd->hqd', p.astype(cdt), v.astype(cdt),
                     preferred_element_type=jnp.float32)      # [H, Sq, Dh]
    out = jnp.einsum('hqd,hde->hqe', ctx.astype(cdt), wo,
                     preferred_element_type=jnp.float32)      # [H, Sq, E]
    return jnp.sum(out, axis=0) + bo                          # [Sq, E]


def _ffn(x, w1, b1, w2, b2):
    h = jnp.dot(x.astype(w1.dtype), w1, preferred_element_type=jnp.float32) + b1
    h = jnp.maximum(h, 0.0)
    return jnp.dot(h.astype(w2.dtype), w2, preferred_element_type=jnp.float32) + b2


# ------------------------- fused per-layer kernels -------------------------

def _enc_layer_kernel(x_ref, wqkv_ref, bqkv_ref, wo_ref, bo_ref,
                      w1_ref, b1_ref, w2_ref, b2_ref, lng_ref, lnb_ref,
                      o_ref, *, scale):
    x = x_ref[0].astype(jnp.float32)                          # [S, E]
    attn = _mha(x, x, wqkv_ref[...], bqkv_ref[...], wo_ref[...], bo_ref[...], scale)
    h1 = _layernorm(x + attn, lng_ref[0:1, :], lnb_ref[0:1, :])
    ff = _ffn(h1, w1_ref[...], b1_ref[...], w2_ref[...], b2_ref[...])
    o_ref[0] = _layernorm(h1 + ff, lng_ref[1:2, :], lnb_ref[1:2, :]).astype(o_ref.dtype)


def _dec_layer_kernel(x_ref, mem_ref,
                      sa_wqkv_ref, sa_bqkv_ref, sa_wo_ref, sa_bo_ref,
                      ca_wqkv_ref, ca_bqkv_ref, ca_wo_ref, ca_bo_ref,
                      w1_ref, b1_ref, w2_ref, b2_ref, lng_ref, lnb_ref,
                      o_ref, *, scale):
    x = x_ref[0].astype(jnp.float32)                          # [St, E]
    mem = mem_ref[0].astype(jnp.float32)                      # [Ss, E]
    sa = _mha(x, x, sa_wqkv_ref[...], sa_bqkv_ref[...],
              sa_wo_ref[...], sa_bo_ref[...], scale)
    h1 = _layernorm(x + sa, lng_ref[0:1, :], lnb_ref[0:1, :])
    ca = _mha(h1, mem, ca_wqkv_ref[...], ca_bqkv_ref[...],
              ca_wo_ref[...], ca_bo_ref[...], scale)
    h2 = _layernorm(h1 + ca, lng_ref[1:2, :], lnb_ref[1:2, :])
    ff = _ffn(h2, w1_ref[...], b1_ref[...], w2_ref[...], b2_ref[...])
    o_ref[0] = _layernorm(h2 + ff, lng_ref[2:3, :], lnb_ref[2:3, :]).astype(o_ref.dtype)


# ------------------------- wrappers -------------------------

def encoder_layer(x, p, num_heads):
    B, S, E = x.shape
    scale = 1.0 / math.sqrt(E // num_heads)
    a = p["attn"]
    operands = [x, a["wqkv"], a["bqkv"], a["wo"], a["bo"],
                p["w1"], p["b1"], p["w2"], p["b2"], p["ln_g"], p["ln_b"]]
    in_specs = ([pl.BlockSpec((1, S, E), lambda b: (b, 0, 0))]
                + [_full_spec(o) for o in operands[1:]])
    return pl.pallas_call(
        functools.partial(_enc_layer_kernel, scale=scale),
        out_shape=jax.ShapeDtypeStruct((B, S, E), x.dtype),
        grid=(B,),
        in_specs=in_specs,
        out_specs=pl.BlockSpec((1, S, E), lambda b: (b, 0, 0)),
        compiler_params=pltpu.CompilerParams(
            dimension_semantics=("parallel",),
            vmem_limit_bytes=VMEM_LIMIT_BYTES),
    )(*operands)


def decoder_layer(x, memory, p, num_heads):
    B, St, E = x.shape
    Ss = memory.shape[1]
    scale = 1.0 / math.sqrt(E // num_heads)
    sa, ca = p["self_attn"], p["cross_attn"]
    operands = [x, memory,
                sa["wqkv"], sa["bqkv"], sa["wo"], sa["bo"],
                ca["wqkv"], ca["bqkv"], ca["wo"], ca["bo"],
                p["w1"], p["b1"], p["w2"], p["b2"], p["ln_g"], p["ln_b"]]
    in_specs = ([pl.BlockSpec((1, St, E), lambda b: (b, 0, 0)),
                 pl.BlockSpec((1, Ss, E), lambda b: (b, 0, 0))]
                + [_full_spec(o) for o in operands[2:]])
    return pl.pallas_call(
        functools.partial(_dec_layer_kernel, scale=scale),
        out_shape=jax.ShapeDtypeStruct((B, St, E), x.dtype),
        grid=(B,),
        in_specs=in_specs,
        out_specs=pl.BlockSpec((1, St, E), lambda b: (b, 0, 0)),
        compiler_params=pltpu.CompilerParams(
            dimension_semantics=("parallel",),
            vmem_limit_bytes=VMEM_LIMIT_BYTES),
    )(*operands)


def _linear_kernel(x_ref, w_ref, b_ref, o_ref):
    o_ref[...] = (
        jnp.dot(x_ref[...].astype(w_ref.dtype), w_ref[...],
                preferred_element_type=jnp.float32) + b_ref[...]
    ).astype(o_ref.dtype)


def linear_tiled(x, w, b, *, tm=256, tn=1024):
    """x: [M, K] @ w: [K, N] (bf16) + b: [1, N] -> [M, N] f32, tiled over (M, N)."""
    M, K = x.shape
    N = w.shape[1]
    tm = min(tm, M)
    tn = min(tn, N)
    return pl.pallas_call(
        _linear_kernel,
        out_shape=jax.ShapeDtypeStruct((M, N), x.dtype),
        grid=(pl.cdiv(M, tm), pl.cdiv(N, tn)),
        in_specs=[
            pl.BlockSpec((tm, K), lambda i, j: (i, 0)),
            pl.BlockSpec((K, tn), lambda i, j: (0, j)),
            pl.BlockSpec((1, tn), lambda i, j: (0, j)),
        ],
        out_specs=pl.BlockSpec((tm, tn), lambda i, j: (i, j)),
        compiler_params=pltpu.CompilerParams(
            dimension_semantics=("parallel", "parallel"),
            vmem_limit_bytes=VMEM_LIMIT_BYTES),
    )(x, w, b)


# ------------------------- model glue (plain JAX) -------------------------

def transformer_forward(params, src, tgt, *, num_heads):
    src = src[:, :MAX_LENGTH]
    tgt = tgt[:, :MAX_LENGTH]
    Ss, St = src.shape[1], tgt.shape[1]
    tok, pos = params["tok_emb"], params["pos_emb"]
    # TODO(synk): embedding gather kept in plain JAX (data-dependent row gather).
    src_e = jnp.take(tok, src, axis=0) + pos[:Ss][None, :, :]
    tgt_e = jnp.take(tok, tgt, axis=0) + pos[:St][None, :, :]
    # dropout(0.1) is identity at inference.
    mem = src_e
    for lp in params["enc_layers"]:
        mem = encoder_layer(mem, lp, num_heads)
    out = tgt_e
    for lp in params["dec_layers"]:
        out = decoder_layer(out, mem, lp, num_heads)
    B, St, E = out.shape
    logits = linear_tiled(out.reshape(B * St, E), params["fc_w"], params["fc_b"])
    return logits.reshape(B, St, -1)


# ------------------------- deterministic parameter init -------------------------

def _attn_params(key, embed, num_heads):
    dh = embed // num_heads
    ks = jax.random.split(key, 4)
    wq_t, wk_t, wv_t, wo_t = (
        0.02 * jax.random.normal(k, (embed, embed), jnp.float32) for k in ks)
    # Per-head packing done once at init (plain JAX): [E,E] -> [H, E, Dh] / [H, Dh, E].
    split_in = lambda w: w.reshape(embed, num_heads, dh).transpose(1, 0, 2)
    return {
        "wqkv": jnp.stack([split_in(wq_t), split_in(wk_t), split_in(wv_t)]
                          ).astype(jnp.bfloat16),                     # [3, H, E, Dh]
        "bqkv": jnp.zeros((3, num_heads, 1, dh), jnp.float32),
        "wo": wo_t.reshape(num_heads, dh, embed).astype(jnp.bfloat16),  # [H, Dh, E]
        "bo": jnp.zeros((1, embed), jnp.float32),
    }


def _ffn_params(k1, k2, embed, ff):
    return {
        "w1": (0.02 * jax.random.normal(k1, (embed, ff), jnp.float32)).astype(jnp.bfloat16),
        "b1": jnp.zeros((1, ff), jnp.float32),
        "w2": (0.02 * jax.random.normal(k2, (ff, embed), jnp.float32)).astype(jnp.bfloat16),
        "b2": jnp.zeros((1, embed), jnp.float32),
    }


def _enc_layer_params(key, embed, ff, num_heads):
    ks = jax.random.split(key, 3)
    p = {"attn": _attn_params(ks[0], embed, num_heads)}
    p.update(_ffn_params(ks[1], ks[2], embed, ff))
    p["ln_g"] = jnp.ones((2, embed), jnp.float32)
    p["ln_b"] = jnp.zeros((2, embed), jnp.float32)
    return p


def _dec_layer_params(key, embed, ff, num_heads):
    ks = jax.random.split(key, 4)
    p = {"self_attn": _attn_params(ks[0], embed, num_heads),
         "cross_attn": _attn_params(ks[1], embed, num_heads)}
    p.update(_ffn_params(ks[2], ks[3], embed, ff))
    p["ln_g"] = jnp.ones((3, embed), jnp.float32)
    p["ln_b"] = jnp.zeros((3, embed), jnp.float32)
    return p


def init_params(key, vocab, embed, ff, num_heads, num_layers, max_length):
    keys = jax.random.split(key, 4 + 2 * num_layers)
    return {
        "tok_emb": 0.02 * jax.random.normal(keys[0], (vocab, embed), jnp.float32),
        "pos_emb": 0.02 * jax.random.normal(keys[1], (max_length, embed), jnp.float32),
        "fc_w": (0.02 * jax.random.normal(keys[2], (embed, vocab), jnp.float32)
                 ).astype(jnp.bfloat16),
        "fc_b": jnp.zeros((1, vocab), jnp.float32),
        "enc_layers": [_enc_layer_params(keys[4 + i], embed, ff, num_heads)
                       for i in range(num_layers)],
        "dec_layers": [_dec_layer_params(keys[4 + num_layers + i], embed, ff, num_heads)
                       for i in range(num_layers)],
    }


# ------------------------- main -------------------------

if __name__ == "__main__":
    vocab_size = 128
    embed_size = 32
    num_heads = 4
    ff_size = 64
    num_layers = 2
    max_length = 16
    batch = 2
    src_len = 8
    tgt_len = 8

    params = init_params(jax.random.PRNGKey(42), vocab_size, embed_size,
                         ff_size, num_heads, num_layers, max_length)

    key = jax.random.PRNGKey(0)
    k_src, k_tgt = jax.random.split(key)
    src = jax.random.randint(k_src, (batch, src_len), 0, vocab_size, dtype=jnp.int32)
    tgt = jax.random.randint(k_tgt, (batch, tgt_len), 0, vocab_size, dtype=jnp.int32)

    fwd = jax.jit(functools.partial(transformer_forward, num_heads=num_heads))
    logits = fwd(params, src, tgt)
    jax.block_until_ready(logits)
    assert logits.shape == (batch, tgt_len, vocab_size), logits.shape
    print("KERNEL_OK")
</pallas_src>

<mosaic_0001>
module attributes {stable_mosaic.version = 11 : i64} {
  func.func @_linear_kernel(%arg0: i32, %arg1: i32, %arg2: memref<16x32xf32, #tpu.memory_space<vmem>>, %arg3: memref<32x128xbf16, #tpu.memory_space<vmem>>, %arg4: memref<1x128xf32, #tpu.memory_space<vmem>>, %arg5: memref<16x128xf32, #tpu.memory_space<vmem>>) attributes {dimension_semantics = [#tpu.dimension_semantics<parallel>, #tpu.dimension_semantics<parallel>], iteration_bounds = array<i64: 1, 1>, scalar_prefetch = 0 : i64, scratch_operands = 0 : i64, tpu.core_type = #tpu.core_type<tc>, window_params = [{transform_indices = @transform_0, window_bounds = array<i64: 16, 32>}, {transform_indices = @transform_1, window_bounds = array<i64: 32, 128>}, {transform_indices = @transform_2, window_bounds = array<i64: 1, 128>}, {transform_indices = @transform_3, window_bounds = array<i64: 16, 128>}]} {
    %c0 = arith.constant 0 : index
    %c0_0 = arith.constant 0 : index
    %0 = vector.load %arg2[%c0, %c0_0] : memref<16x32xf32, #tpu.memory_space<vmem>>, vector<16x32xf32>
    %1 = arith.truncf %0 : vector<16x32xf32> to vector<16x32xbf16>
    %c0_1 = arith.constant 0 : index
    %c0_2 = arith.constant 0 : index
    %2 = vector.load %arg3[%c0_1, %c0_2] : memref<32x128xbf16, #tpu.memory_space<vmem>>, vector<32x128xbf16>
    %cst = arith.constant dense<0.000000e+00> : vector<16x128xf32>
    %3 = tpu.matmul %1, %2, %cst {dimension_numbers = #tpu.dot_dimension_numbers<[1], [0], [0], [1], [0, 0, 1, 1], [], []>} : vector<16x32xbf16>, vector<32x128xbf16>, vector<16x128xf32> -> vector<16x128xf32>
    %c0_3 = arith.constant 0 : index
    %c0_4 = arith.constant 0 : index
    %4 = vector.load %arg4[%c0_3, %c0_4] : memref<1x128xf32, #tpu.memory_space<vmem>>, vector<1x128xf32>
    %5 = vector.broadcast %4 : vector<1x128xf32> to vector<16x128xf32>
    %6 = arith.addf %3, %5 : vector<16x128xf32>
    %c0_5 = arith.constant 0 : index
    %c0_6 = arith.constant 0 : index
    %7 = vector.load %arg5[%c0_5, %c0_6] : memref<16x128xf32, #tpu.memory_space<vmem>>, vector<16x128xf32>
    tpu.vector_store %arg5[%c0_5, %c0_6], %6 {strides = array<i32>} : memref<16x128xf32, #tpu.memory_space<vmem>>, vector<16x128xf32>,
    return
  }
  func.func @transform_0(%arg0: i32, %arg1: i32) -> (i32, i32) {
    %c0_i32 = arith.constant 0 : i32
    %c0_i32_0 = arith.constant 0 : i32
    return %arg0, %c0_i32 : i32, i32
  }
  func.func @transform_1(%arg0: i32, %arg1: i32) -> (i32, i32) {
    %c0_i32 = arith.constant 0 : i32
    %c0_i32_0 = arith.constant 0 : i32
    return %c0_i32, %arg1 : i32, i32
  }
  func.func @transform_2(%arg0: i32, %arg1: i32) -> (i32, i32) {
    %c0_i32 = arith.constant 0 : i32
    %c0_i32_0 = arith.constant 0 : i32
    return %c0_i32, %arg1 : i32, i32
  }
  func.func @transform_3(%arg0: i32, %arg1: i32) -> (i32, i32) {
    %c0_i32 = arith.constant 0 : i32
    return %arg0, %arg1 : i32, i32
  }
}

module attributes {stable_mosaic.version = 11 : i64} {
  func.func @_enc_layer_kernel(%arg0: i32, %arg1: memref<1x8x32xf32, #tpu.memory_space<vmem>>, %arg2: memref<3x4x32x8xbf16, #tpu.memory_space<vmem>>, %arg3: memref<3x4x1x8xf32, #tpu.memory_space<vmem>>, %arg4: memref<4x8x32xbf16, #tpu.memory_space<vmem>>, %arg5: memref<1x32xf32, #tpu.memory_space<vmem>>, %arg6: memref<32x64xbf16, #tpu.memory_space<vmem>>, %arg7: memref<1x64xf32, #tpu.memory_space<vmem>>, %arg8: memref<64x32xbf16, #tpu.memory_space<vmem>>, %arg9: memref<1x32xf32, #tpu.memory_space<vmem>>, %arg10: memref<2x32xf32, #tpu.memory_space<vmem>>, %arg11: memref<2x32xf32, #tpu.memory_space<vmem>>, %arg12: memref<1x8x32xf32, #tpu.memory_space<vmem>>) attributes {dimension_semantics = [#tpu.dimension_semantics<parallel>], iteration_bounds = array<i64: 2>, scalar_prefetch = 0 : i64, scratch_operands = 0 : i64, tpu.core_type = #tpu.core_type<tc>, window_params = [{transform_indices = @transform_0, window_bounds = array<i64: 1, 8, 32>}, {pipeline_mode = #tpu.pipeline_mode<synchronous>, transform_indices = @transform_1, window_bounds = array<i64: 3, 4, 32, 8>}, {pipeline_mode = #tpu.pipeline_mode<synchronous>, transform_indices = @transform_2, window_bounds = array<i64: 3, 4, 1, 8>}, {pipeline_mode = #tpu.pipeline_mode<synchronous>, transform_indices = @transform_3, window_bounds = array<i64: 4, 8, 32>}, {pipeline_mode = #tpu.pipeline_mode<synchronous>, transform_indices = @transform_4, window_bounds = array<i64: 1, 32>}, {pipeline_mode = #tpu.pipeline_mode<synchronous>, transform_indices = @transform_5, window_bounds = array<i64: 32, 64>}, {pipeline_mode = #tpu.pipeline_mode<synchronous>, transform_indices = @transform_6, window_bounds = array<i64: 1, 64>}, {pipeline_mode = #tpu.pipeline_mode<synchronous>, transform_indices = @transform_7, window_bounds = array<i64: 64, 32>}, {pipeline_mode = #tpu.pipeline_mode<synchronous>, transform_indices = @transform_8, window_bounds = array<i64: 1, 32>}, {pipeline_mode = #tpu.pipeline_mode<synchronous>, transform_indices = @transform_9, window_bounds = array<i64: 2, 32>}, {pipeline_mode = #tpu.pipeline_mode<synchronous>, transform_indices = @transform_10, window_bounds = array<i64: 2, 32>}, {transform_indices = @transform_11, window_bounds = array<i64: 1, 8, 32>}]} {
    %c0 = arith.constant 0 : index
    %c0_0 = arith.constant 0 : index
    %c0_1 = arith.constant 0 : index
    %0 = vector.load %arg1[%c0, %c0_0, %c0_1] : memref<1x8x32xf32, #tpu.memory_space<vmem>>, vector<1x8x32xf32>
    %1 = vector.shape_cast %0 : vector<1x8x32xf32> to vector<8x32xf32>
    %c0_2 = arith.constant 0 : index
    %c0_3 = arith.constant 0 : index
    %c0_4 = arith.constant 0 : index
    %c0_5 = arith.constant 0 : index
    %2 = vector.load %arg2[%c0_2, %c0_3, %c0_4, %c0_5] : memref<3x4x32x8xbf16, #tpu.memory_space<vmem>>, vector<3x4x32x8xbf16>
    %c0_6 = arith.constant 0 : index
    %c0_7 = arith.constant 0 : index
    %c0_8 = arith.constant 0 : index
    %c0_9 = arith.constant 0 : index
    %3 = vector.load %arg3[%c0_6, %c0_7, %c0_8, %c0_9] : memref<3x4x1x8xf32, #tpu.memory_space<vmem>>, vector<3x4x1x8xf32>
    %c0_10 = arith.constant 0 : index
    %c0_11 = arith.constant 0 : index
    %c0_12 = arith.constant 0 : index
    %4 = vector.load %arg4[%c0_10, %c0_11, %c0_12] : memref<4x8x32xbf16, #tpu.memory_space<vmem>>, vector<4x8x32xbf16>
    %c0_13 = arith.constant 0 : index
    %c0_14 = arith.constant 0 : index
    %5 = vector.load %arg5[%c0_13, %c0_14] : memref<1x32xf32, #tpu.memory_space<vmem>>, vector<1x32xf32>
    %6 = arith.truncf %1 : vector<8x32xf32> to vector<8x32xbf16>
    %7 = vector.shape_cast %6 : vector<8x32xbf16> to vector<1x8x32xbf16>
    %8 = vector.broadcast %7 : vector<1x8x32xbf16> to vector<4x8x32xbf16>
    %9 = arith.truncf %1 : vector<8x32xf32> to vector<8x32xbf16>
    %10 = vector.shape_cast %9 : vector<8x32xbf16> to vector<1x8x32xbf16>
    %11 = vector.broadcast %10 : vector<1x8x32xbf16> to vector<4x8x32xbf16>
    %12 = vector.extract_strided_slice %2 {offsets = [0, 0, 0, 0], sizes = [1, 4, 32, 8], strides = [1, 1, 1, 1]} : vector<3x4x32x8xbf16> to vector<1x4x32x8xbf16>
    %13 = vector.shape_cast %12 : vector<1x4x32x8xbf16> to vector<4x32x8xbf16>
    "tpu.trace_start"() <{level = 10 : i32, message = "hse,hed->hsd"}> : () -> ()
    %cst = arith.constant dense<0.000000e+00> : vector<4x8x8xf32>
    %14 = tpu.matmul %8, %13, %cst {dimension_numbers = #tpu.dot_dimension_numbers<[2], [1], [1], [2], [0, 0, 0, 1, 1, 2], [0], [0]>} : vector<4x8x32xbf16>, vector<4x32x8xbf16>, vector<4x8x8xf32> -> vector<4x8x8xf32>
    "tpu.trace_stop"() : () -> ()
    %15 = vector.extract_strided_slice %3 {offsets = [0, 0, 0, 0], sizes = [1, 4, 1, 8], strides = [1, 1, 1, 1]} : vector<3x4x1x8xf32> to vector<1x4x1x8xf32>
    %16 = vector.shape_cast %15 : vector<1x4x1x8xf32> to vector<4x1x8xf32>
    %17 = vector.broadcast %16 : vector<4x1x8xf32> to vector<4x8x8xf32>
    %18 = arith.addf %14, %17 : vector<4x8x8xf32>
    %19 = vector.extract_strided_slice %2 {offsets = [1, 0, 0, 0], sizes = [1, 4, 32, 8], strides = [1, 1, 1, 1]} : vector<3x4x32x8xbf16> to vector<1x4x32x8xbf16>
    %20 = vector.shape_cast %19 : vector<1x4x32x8xbf16> to vector<4x32x8xbf16>
    "tpu.trace_start"() <{level = 10 : i32, message = "hse,hed->hsd"}> : () -> ()
    %cst_15 = arith.constant dense<0.000000e+00> : vector<4x8x8xf32>
    %21 = tpu.matmul %11, %20, %cst_15 {dimension_numbers = #tpu.dot_dimension_numbers<[2], [1], [1], [2], [0, 0, 0, 1, 1, 2], [0], [0]>} : vector<4x8x32xbf16>, vector<4x32x8xbf16>, vector<4x8x8xf32> -> vector<4x8x8xf32>
    "tpu.trace_stop"() : () -> ()
    %22 = vector.extract_strided_slice %3 {offsets = [1, 0, 0, 0], sizes = [1, 4, 1, 8], strides = [1, 1, 1, 1]} : vector<3x4x1x8xf32> to vector<1x4x1x8xf32>
    %23 = vector.shape_cast %22 : vector<1x4x1x8xf32> to vector<4x1x8xf32>
    %24 = vector.broadcast %23 : vector<4x1x8xf32> to vector<4x8x8xf32>
    %25 = arith.addf %21, %24 : vector<4x8x8xf32>
    %26 = vector.extract_strided_slice %2 {offsets = [2, 0, 0, 0], sizes = [1, 4, 32, 8], strides = [1, 1, 1, 1]} : vector<3x4x32x8xbf16> to vector<1x4x32x8xbf16>
    %27 = vector.shape_cast %26 : vector<1x4x32x8xbf16> to vector<4x32x8xbf16>
    "tpu.trace_start"() <{level = 10 : i32, message = "hse,hed->hsd"}> : () -> ()
    %cst_16 = arith.constant dense<0.000000e+00> : vector<4x8x8xf32>
    %28 = tpu.matmul %11, %27, %cst_16 {dimension_numbers = #tpu.dot_dimension_numbers<[2], [1], [1], [2], [0, 0, 0, 1, 1, 2], [0], [0]>} : vector<4x8x32xbf16>, vector<4x32x8xbf16>, vector<4x8x8xf32> -> vector<4x8x8xf32>
    "tpu.trace_stop"() : () -> ()
    %29 = vector.extract_strided_slice %3 {offsets = [2, 0, 0, 0], sizes = [1, 4, 1, 8], strides = [1, 1, 1, 1]} : vector<3x4x1x8xf32> to vector<1x4x1x8xf32>
    %30 = vector.shape_cast %29 : vector<1x4x1x8xf32> to vector<4x1x8xf32>
    %31 = vector.broadcast %30 : vector<4x1x8xf32> to vector<4x8x8xf32>
    %32 = arith.addf %28, %31 : vector<4x8x8xf32>
    %cst_17 = arith.constant 0.353553385 : f32
    %33 = vector.broadcast %cst_17 : f32 to vector<4x8x8xf32>
    %34 = arith.mulf %18, %33 : vector<4x8x8xf32>
    %35 = arith.truncf %34 : vector<4x8x8xf32> to vector<4x8x8xbf16>
    %36 = arith.truncf %25 : vector<4x8x8xf32> to vector<4x8x8xbf16>
    "tpu.trace_start"() <{level = 10 : i32, message = "hqd,hkd->hqk"}> : () -> ()
    %cst_18 = arith.constant dense<0.000000e+00> : vector<4x8x8xf32>
    %37 = tpu.matmul %35, %36, %cst_18 {dimension_numbers = #tpu.dot_dimension_numbers<[2], [2], [1], [1], [0, 0, 0, 1, 1, 1], [0], [0]>} : vector<4x8x8xbf16>, vector<4x8x8xbf16>, vector<4x8x8xf32> -> vector<4x8x8xf32>
    "tpu.trace_stop"() : () -> ()
    %cst_19 = arith.constant dense<0xFF800000> : vector<4x8xf32>
    %38 = vector.multi_reduction <maximumf>, %37, %cst_19 [2] : vector<4x8x8xf32> to vector<4x8xf32>
    %39 = vector.shape_cast %38 : vector<4x8xf32> to vector<4x8x1xf32>
    %40 = vector.broadcast %39 : vector<4x8x1xf32> to vector<4x8x8xf32>
    %41 = arith.subf %37, %40 : vector<4x8x8xf32>
    %42 = math.exp %41 : vector<4x8x8xf32>
    %cst_20 = arith.constant dense<0.000000e+00> : vector<4x8xf32>
    %43 = vector.multi_reduction <add>, %42, %cst_20 [2] : vector<4x8x8xf32> to vector<4x8xf32>
    %44 = vector.shape_cast %43 : vector<4x8xf32> to vector<4x8x1xf32>
    %45 = tpu.reciprocal %44 : vector<4x8x1xf32> -> vector<4x8x1xf32>
    %46 = vector.broadcast %45 : vector<4x8x1xf32> to vector<4x8x8xf32>
    %47 = arith.mulf %42, %46 : vector<4x8x8xf32>
    %48 = arith.truncf %47 : vector<4x8x8xf32> to vector<4x8x8xbf16>
    %49 = arith.truncf %32 : vector<4x8x8xf32> to vector<4x8x8xbf16>
    "tpu.trace_start"() <{level = 10 : i32, message = "hqk,hkd->hqd"}> : () -> ()
    %cst_21 = arith.constant dense<0.000000e+00> : vector<4x8x8xf32>
    %50 = tpu.matmul %48, %49, %cst_21 {dimension_numbers = #tpu.dot_dimension_numbers<[2], [1], [1], [2], [0, 0, 0, 1, 1, 2], [0], [0]>} : vector<4x8x8xbf16>, vector<4x8x8xbf16>, vector<4x8x8xf32> -> vector<4x8x8xf32>
    "tpu.trace_stop"() : () -> ()
    %51 = arith.truncf %50 : vector<4x8x8xf32> to vector<4x8x8xbf16>
    "tpu.trace_start"() <{level = 10 : i32, message = "hqd,hde->hqe"}> : () -> ()
    %cst_22 = arith.constant dense<0.000000e+00> : vector<4x8x32xf32>
    %52 = tpu.matmul %51, %4, %cst_22 {dimension_numbers = #tpu.dot_dimension_numbers<[2], [1], [1], [2], [0, 0, 0, 1, 1, 2], [0], [0]>} : vector<4x8x8xbf16>, vector<4x8x32xbf16>, vector<4x8x32xf32> -> vector<4x8x32xf32>
    "tpu.trace_stop"() : () -> ()
    %cst_23 = arith.constant dense<0.000000e+00> : vector<8x32xf32>
    %53 = vector.multi_reduction <add>, %52, %cst_23 [0] : vector<4x8x32xf32> to vector<8x32xf32>
    %54 = vector.broadcast %5 : vector<1x32xf32> to vector<8x32xf32>
    %55 = arith.addf %53, %54 : vector<8x32xf32>
    %56 = arith.addf %1, %55 : vector<8x32xf32>
    %c0_24 = arith.constant 0 : index
    %c0_25 = arith.constant 0 : index
    %57 = vector.load %arg10[%c0_24, %c0_25] : memref<2x32xf32, #tpu.memory_space<vmem>>, vector<1x32xf32>
    %c0_26 = arith.constant 0 : index
    %c0_27 = arith.constant 0 : index
    %58 = vector.load %arg11[%c0_26, %c0_27] : memref<2x32xf32, #tpu.memory_space<vmem>>, vector<1x32xf32>
    %cst_28 = arith.constant dense<0.000000e+00> : vector<8xf32>
    %59 = vector.multi_reduction <add>, %56, %cst_28 [1] : vector<8x32xf32> to vector<8xf32>
    %60 = vector.shape_cast %59 : vector<8xf32> to vector<8x1xf32>
    %cst_29 = arith.constant 3.200000e+01 : f32
    %61 = vector.broadcast %cst_29 : f32 to vector<8x1xf32>
    %62 = arith.divf %60, %61 : vector<8x1xf32>
    %63 = vector.broadcast %62 : vector<8x1xf32> to vector<8x32xf32>
    %64 = arith.subf %56, %63 : vector<8x32xf32>
    %65 = arith.mulf %64, %64 : vector<8x32xf32>
    %cst_30 = arith.constant dense<0.000000e+00> : vector<8xf32>
    %66 = vector.multi_reduction <add>, %65, %cst_30 [1] : vector<8x32xf32> to vector<8xf32>
    %67 = vector.shape_cast %66 : vector<8xf32> to vector<8x1xf32>
    %cst_31 = arith.constant 3.200000e+01 : f32
    %68 = vector.broadcast %cst_31 : f32 to vector<8x1xf32>
    %69 = arith.divf %67, %68 : vector<8x1xf32>
    %70 = vector.broadcast %62 : vector<8x1xf32> to vector<8x32xf32>
    %71 = arith.subf %56, %70 : vector<8x32xf32>
    %cst_32 = arith.constant 9.99999974E-6 : f32
    %72 = vector.broadcast %cst_32 : f32 to vector<8x1xf32>
    %73 = arith.addf %69, %72 : vector<8x1xf32>
    %74 = math.rsqrt %73 : vector<8x1xf32>
    %75 = vector.broadcast %74 : vector<8x1xf32> to vector<8x32xf32>
    %76 = arith.mulf %71, %75 : vector<8x32xf32>
    %77 = vector.broadcast %57 : vector<1x32xf32> to vector<8x32xf32>
    %78 = arith.mulf %76, %77 : vector<8x32xf32>
    %79 = vector.broadcast %58 : vector<1x32xf32> to vector<8x32xf32>
    %80 = arith.addf %78, %79 : vector<8x32xf32>
    %c0_33 = arith.constant 0 : index
    %c0_34 = arith.constant 0 : index
    %81 = vector.load %arg6[%c0_33, %c0_34] : memref<32x64xbf16, #tpu.memory_space<vmem>>, vector<32x64xbf16>
    %c0_35 = arith.constant 0 : index
    %c0_36 = arith.constant 0 : index
    %82 = vector.load %arg7[%c0_35, %c0_36] : memref<1x64xf32, #tpu.memory_space<vmem>>, vector<1x64xf32>
    %c0_37 = arith.constant 0 : index
    %c0_38 = arith.constant 0 : index
    %83 = vector.load %arg8[%c0_37, %c0_38] : memref<64x32xbf16, #tpu.memory_space<vmem>>, vector<64x32xbf16>
    %c0_39 = arith.constant 0 : index
    %c0_40 = arith.constant 0 : index
    %84 = vector.load %arg9[%c0_39, %c0_40] : memref<1x32xf32, #tpu.memory_space<vmem>>, vector<1x32xf32>
    %85 = arith.truncf %80 : vector<8x32xf32> to vector<8x32xbf16>
    %cst_41 = arith.constant dense<0.000000e+00> : vector<8x64xf32>
    %86 = tpu.matmul %85, %81, %cst_41 {dimension_numbers = #tpu.dot_dimension_numbers<[1], [0], [0], [1], [0, 0, 1, 1], [], []>} : vector<8x32xbf16>, vector<32x64xbf16>, vector<8x64xf32> -> vector<8x64xf32>
    %87 = vector.broadcast %82 : vector<1x64xf32> to vector<8x64xf32>
    %88 = arith.addf %86, %87 : vector<8x64xf32>
    %cst_42 = arith.constant 0.000000e+00 : f32
    %89 = vector.broadcast %cst_42 : f32 to vector<8x64xf32>
    %90 = arith.maximumf %88, %89 : vector<8x64xf32>
    %91 = arith.truncf %90 : vector<8x64xf32> to vector<8x64xbf16>
    %cst_43 = arith.constant dense<0.000000e+00> : vector<8x32xf32>
    %92 = tpu.matmul %91, %83, %cst_43 {dimension_numbers = #tpu.dot_dimension_numbers<[1], [0], [0], [1], [0, 0, 1, 1], [], []>} : vector<8x64xbf16>, vector<64x32xbf16>, vector<8x32xf32> -> vector<8x32xf32>
    %93 = vector.broadcast %84 : vector<1x32xf32> to vector<8x32xf32>
    %94 = arith.addf %92, %93 : vector<8x32xf32>
    %95 = arith.addf %80, %94 : vector<8x32xf32>
    %c1 = arith.constant 1 : index
    %c0_44 = arith.constant 0 : index
    %96 = vector.load %arg10[%c1, %c0_44] : memref<2x32xf32, #tpu.memory_space<vmem>>, vector<1x32xf32>
    %c1_45 = arith.constant 1 : index
    %c0_46 = arith.constant 0 : index
    %97 = vector.load %arg11[%c1_45, %c0_46] : memref<2x32xf32, #tpu.memory_space<vmem>>, vector<1x32xf32>
    %cst_47 = arith.constant dense<0.000000e+00> : vector<8xf32>
    %98 = vector.multi_reduction <add>, %95, %cst_47 [1] : vector<8x32xf32> to vector<8xf32>
    %99 = vector.shape_cast %98 : vector<8xf32> to vector<8x1xf32>
    %cst_48 = arith.constant 3.200000e+01 : f32
    %100 = vector.broadcast %cst_48 : f32 to vector<8x1xf32>
    %101 = arith.divf %99, %100 : vector<8x1xf32>
    %102 = vector.broadcast %101 : vector<8x1xf32> to vector<8x32xf32>
    %103 = arith.subf %95, %102 : vector<8x32xf32>
    %104 = arith.mulf %103, %103 : vector<8x32xf32>
    %cst_49 = arith.constant dense<0.000000e+00> : vector<8xf32>
    %105 = vector.multi_reduction <add>, %104, %cst_49 [1] : vector<8x32xf32> to vector<8xf32>
    %106 = vector.shape_cast %105 : vector<8xf32> to vector<8x1xf32>
    %cst_50 = arith.constant 3.200000e+01 : f32
    %107 = vector.broadcast %cst_50 : f32 to vector<8x1xf32>
    %108 = arith.divf %106, %107 : vector<8x1xf32>
    %109 = vector.broadcast %101 : vector<8x1xf32> to vector<8x32xf32>
    %110 = arith.subf %95, %109 : vector<8x32xf32>
    %cst_51 = arith.constant 9.99999974E-6 : f32
    %111 = vector.broadcast %cst_51 : f32 to vector<8x1xf32>
    %112 = arith.addf %108, %111 : vector<8x1xf32>
    %113 = math.rsqrt %112 : vector<8x1xf32>
    %114 = vector.broadcast %113 : vector<8x1xf32> to vector<8x32xf32>
    %115 = arith.mulf %110, %114 : vector<8x32xf32>
    %116 = vector.broadcast %96 : vector<1x32xf32> to vector<8x32xf32>
    %117 = arith.mulf %115, %116 : vector<8x32xf32>
    %118 = vector.broadcast %97 : vector<1x32xf32> to vector<8x32xf32>
    %119 = arith.addf %117, %118 : vector<8x32xf32>
    %c0_52 = arith.constant 0 : index
    %c0_53 = arith.constant 0 : index
    %c0_54 = arith.constant 0 : index
    %120 = vector.load %arg12[%c0_52, %c0_53, %c0_54] : memref<1x8x32xf32, #tpu.memory_space<vmem>>, vector<1x8x32xf32>
    %121 = vector.shape_cast %120 : vector<1x8x32xf32> to vector<8x32xf32>
    %122 = vector.shape_cast %119 : vector<8x32xf32> to vector<1x8x32xf32>
    tpu.vector_store %arg12[%c0_52, %c0_53, %c0_54], %122 {strides = array<i32>} : memref<1x8x32xf32, #tpu.memory_space<vmem>>, vector<1x8x32xf32>,
    return
  }
  func.func @transform_0(%arg0: i32) -> (i32, i32, i32) {
    %c0_i32 = arith.constant 0 : i32
    %c0_i32_0 = arith.constant 0 : i32
    %c0_i32_1 = arith.constant 0 : i32
    return %arg0, %c0_i32, %c0_i32_0 : i32, i32, i32
  }
  func.func @transform_1(%arg0: i32) -> (i32, i32, i32, i32) {
    %c0_i32 = arith.constant 0 : i32
    %c0_i32_0 = arith.constant 0 : i32
    %c0_i32_1 = arith.constant 0 : i32
    %c0_i32_2 = arith.constant 0 : i32
    %c0_i32_3 = arith.constant 0 : i32
    return %c0_i32, %c0_i32_0, %c0_i32_1, %c0_i32_2 : i32, i32, i32, i32
  }
  func.func @transform_2(%arg0: i32) -> (i32, i32, i32, i32) {
    %c0_i32 = arith.constant 0 : i32
    %c0_i32_0 = arith.constant 0 : i32
    %c0_i32_1 = arith.constant 0 : i32
    %c0_i32_2 = arith.constant 0 : i32
    %c0_i32_3 = arith.constant 0 : i32
    return %c0_i32, %c0_i32_0, %c0_i32_1, %c0_i32_2 : i32, i32, i32, i32
  }
  func.func @transform_3(%arg0: i32) -> (i32, i32, i32) {
    %c0_i32 = arith.constant 0 : i32
    %c0_i32_0 = arith.constant 0 : i32
    %c0_i32_1 = arith.constant 0 : i32
    %c0_i32_2 = arith.constant 0 : i32
    return %c0_i32, %c0_i32_0, %c0_i32_1 : i32, i32, i32
  }
  func.func @transform_4(%arg0: i32) -> (i32, i32) {
    %c0_i32 = arith.constant 0 : i32
    %c0_i32_0 = arith.constant 0 : i32
    %c0_i32_1 = arith.constant 0 : i32
    return %c0_i32, %c0_i32_0 : i32, i32
  }
  func.func @transform_5(%arg0: i32) -> (i32, i32) {
    %c0_i32 = arith.constant 0 : i32
    %c0_i32_0 = arith.constant 0 : i32
    %c0_i32_1 = arith.constant 0 : i32
    return %c0_i32, %c0_i32_0 : i32, i32
  }
  func.func @transform_6(%arg0: i32) -> (i32, i32) {
    %c0_i32 = arith.constant 0 : i32
    %c0_i32_0 = arith.constant 0 : i32
    %c0_i32_1 = arith.constant 0 : i32
    return %c0_i32, %c0_i32_0 : i32, i32
  }
  func.func @transform_7(%arg0: i32) -> (i32, i32) {
    %c0_i32 = arith.constant 0 : i32
    %c0_i32_0 = arith.constant 0 : i32
    %c0_i32_1 = arith.constant 0 : i32
    return %c0_i32, %c0_i32_0 : i32, i32
  }
  func.func @transform_8(%arg0: i32) -> (i32, i32) {
    %c0_i32 = arith.constant 0 : i32
    %c0_i32_0 = arith.constant 0 : i32
    %c0_i32_1 = arith.constant 0 : i32
    return %c0_i32, %c0_i32_0 : i32, i32
  }
  func.func @transform_9(%arg0: i32) -> (i32, i32) {
    %c0_i32 = arith.constant 0 : i32
    %c0_i32_0 = arith.constant 0 : i32
    %c0_i32_1 = arith.constant 0 : i32
    return %c0_i32, %c0_i32_0 : i32, i32
  }
  func.func @transform_10(%arg0: i32) -> (i32, i32) {
    %c0_i32 = arith.constant 0 : i32
    %c0_i32_0 = arith.constant 0 : i32
    %c0_i32_1 = arith.constant 0 : i32
    return %c0_i32, %c0_i32_0 : i32, i32
  }
  func.func @transform_11(%arg0: i32) -> (i32, i32, i32) {
    %c0_i32 = arith.constant 0 : i32
    %c0_i32_0 = arith.constant 0 : i32
    %c0_i32_1 = arith.constant 0 : i32
    return %arg0, %c0_i32, %c0_i32_0 : i32, i32, i32
  }
}

module attributes {stable_mosaic.version = 11 : i64} {
  func.func @_dec_layer_kernel(%arg0: i32, %arg1: memref<1x8x32xf32, #tpu.memory_space<vmem>>, %arg2: memref<1x8x32xf32, #tpu.memory_space<vmem>>, %arg3: memref<3x4x32x8xbf16, #tpu.memory_space<vmem>>, %arg4: memref<3x4x1x8xf32, #tpu.memory_space<vmem>>, %arg5: memref<4x8x32xbf16, #tpu.memory_space<vmem>>, %arg6: memref<1x32xf32, #tpu.memory_space<vmem>>, %arg7: memref<3x4x32x8xbf16, #tpu.memory_space<vmem>>, %arg8: memref<3x4x1x8xf32, #tpu.memory_space<vmem>>, %arg9: memref<4x8x32xbf16, #tpu.memory_space<vmem>>, %arg10: memref<1x32xf32, #tpu.memory_space<vmem>>, %arg11: memref<32x64xbf16, #tpu.memory_space<vmem>>, %arg12: memref<1x64xf32, #tpu.memory_space<vmem>>, %arg13: memref<64x32xbf16, #tpu.memory_space<vmem>>, %arg14: memref<1x32xf32, #tpu.memory_space<vmem>>, %arg15: memref<3x32xf32, #tpu.memory_space<vmem>>, %arg16: memref<3x32xf32, #tpu.memory_space<vmem>>, %arg17: memref<1x8x32xf32, #tpu.memory_space<vmem>>) attributes {dimension_semantics = [#tpu.dimension_semantics<parallel>], iteration_bounds = array<i64: 2>, scalar_prefetch = 0 : i64, scratch_operands = 0 : i64, tpu.core_type = #tpu.core_type<tc>, window_params = [{transform_indices = @transform_0, window_bounds = array<i64: 1, 8, 32>}, {transform_indices = @transform_1, window_bounds = array<i64: 1, 8, 32>}, {pipeline_mode = #tpu.pipeline_mode<synchronous>, transform_indices = @transform_2, window_bounds = array<i64: 3, 4, 32, 8>}, {pipeline_mode = #tpu.pipeline_mode<synchronous>, transform_indices = @transform_3, window_bounds = array<i64: 3, 4, 1, 8>}, {pipeline_mode = #tpu.pipeline_mode<synchronous>, transform_indices = @transform_4, window_bounds = array<i64: 4, 8, 32>}, {pipeline_mode = #tpu.pipeline_mode<synchronous>, transform_indices = @transform_5, window_bounds = array<i64: 1, 32>}, {pipeline_mode = #tpu.pipeline_mode<synchronous>, transform_indices = @transform_6, window_bounds = array<i64: 3, 4, 32, 8>}, {pipeline_mode = #tpu.pipeline_mode<synchronous>, transform_indices = @transform_7, window_bounds = array<i64: 3, 4, 1, 8>}, {pipeline_mode = #tpu.pipeline_mode<synchronous>, transform_indices = @transform_8, window_bounds = array<i64: 4, 8, 32>}, {pipeline_mode = #tpu.pipeline_mode<synchronous>, transform_indices = @transform_9, window_bounds = array<i64: 1, 32>}, {pipeline_mode = #tpu.pipeline_mode<synchronous>, transform_indices = @transform_10, window_bounds = array<i64: 32, 64>}, {pipeline_mode = #tpu.pipeline_mode<synchronous>, transform_indices = @transform_11, window_bounds = array<i64: 1, 64>}, {pipeline_mode = #tpu.pipeline_mode<synchronous>, transform_indices = @transform_12, window_bounds = array<i64: 64, 32>}, {pipeline_mode = #tpu.pipeline_mode<synchronous>, transform_indices = @transform_13, window_bounds = array<i64: 1, 32>}, {pipeline_mode = #tpu.pipeline_mode<synchronous>, transform_indices = @transform_14, window_bounds = array<i64: 3, 32>}, {pipeline_mode = #tpu.pipeline_mode<synchronous>, transform_indices = @transform_15, window_bounds = array<i64: 3, 32>}, {transform_indices = @transform_16, window_bounds = array<i64: 1, 8, 32>}]} {
    %c0 = arith.constant 0 : index
    %c0_0 = arith.constant 0 : index
    %c0_1 = arith.constant 0 : index
    %0 = vector.load %arg1[%c0, %c0_0, %c0_1] : memref<1x8x32xf32, #tpu.memory_space<vmem>>, vector<1x8x32xf32>
    %1 = vector.shape_cast %0 : vector<1x8x32xf32> to vector<8x32xf32>
    %c0_2 = arith.constant 0 : index
    %c0_3 = arith.constant 0 : index
    %c0_4 = arith.constant 0 : index
    %2 = vector.load %arg2[%c0_2, %c0_3, %c0_4] : memref<1x8x32xf32, #tpu.memory_space<vmem>>, vector<1x8x32xf32>
    %3 = vector.shape_cast %2 : vector<1x8x32xf32> to vector<8x32xf32>
    %c0_5 = arith.constant 0 : index
    %c0_6 = arith.constant 0 : index
    %c0_7 = arith.constant 0 : index
    %c0_8 = arith.constant 0 : index
    %4 = vector.load %arg3[%c0_5, %c0_6, %c0_7, %c0_8] : memref<3x4x32x8xbf16, #tpu.memory_space<vmem>>, vector<3x4x32x8xbf16>
    %c0_9 = arith.constant 0 : index
    %c0_10 = arith.constant 0 : index
    %c0_11 = arith.constant 0 : index
    %c0_12 = arith.constant 0 : index
    %5 = vector.load %arg4[%c0_9, %c0_10, %c0_11, %c0_12] : memref<3x4x1x8xf32, #tpu.memory_space<vmem>>, vector<3x4x1x8xf32>
    %c0_13 = arith.constant 0 : index
    %c0_14 = arith.constant 0 : index
    %c0_15 = arith.constant 0 : index
    %6 = vector.load %arg5[%c0_13, %c0_14, %c0_15] : memref<4x8x32xbf16, #tpu.memory_space<vmem>>, vector<4x8x32xbf16>
    %c0_16 = arith.constant 0 : index
    %c0_17 = arith.constant 0 : index
    %7 = vector.load %arg6[%c0_16, %c0_17] : memref<1x32xf32, #tpu.memory_space<vmem>>, vector<1x32xf32>
    %8 = arith.truncf %1 : vector<8x32xf32> to vector<8x32xbf16>
    %9 = vector.shape_cast %8 : vector<8x32xbf16> to vector<1x8x32xbf16>
    %10 = vector.broadcast %9 : vector<1x8x32xbf16> to vector<4x8x32xbf16>
    %11 = arith.truncf %1 : vector<8x32xf32> to vector<8x32xbf16>
    %12 = vector.shape_cast %11 : vector<8x32xbf16> to vector<1x8x32xbf16>
    %13 = vector.broadcast %12 : vector<1x8x32xbf16> to vector<4x8x32xbf16>
    %14 = vector.extract_strided_slice %4 {offsets = [0, 0, 0, 0], sizes = [1, 4, 32, 8], strides = [1, 1, 1, 1]} : vector<3x4x32x8xbf16> to vector<1x4x32x8xbf16>
    %15 = vector.shape_cast %14 : vector<1x4x32x8xbf16> to vector<4x32x8xbf16>
    "tpu.trace_start"() <{level = 10 : i32, message = "hse,hed->hsd"}> : () -> ()
    %cst = arith.constant dense<0.000000e+00> : vector<4x8x8xf32>
    %16 = tpu.matmul %10, %15, %cst {dimension_numbers = #tpu.dot_dimension_numbers<[2], [1], [1], [2], [0, 0, 0, 1, 1, 2], [0], [0]>} : vector<4x8x32xbf16>, vector<4x32x8xbf16>, vector<4x8x8xf32> -> vector<4x8x8xf32>
    "tpu.trace_stop"() : () -> ()
    %17 = vector.extract_strided_slice %5 {offsets = [0, 0, 0, 0], sizes = [1, 4, 1, 8], strides = [1, 1, 1, 1]} : vector<3x4x1x8xf32> to vector<1x4x1x8xf32>
    %18 = vector.shape_cast %17 : vector<1x4x1x8xf32> to vector<4x1x8xf32>
    %19 = vector.broadcast %18 : vector<4x1x8xf32> to vector<4x8x8xf32>
    %20 = arith.addf %16, %19 : vector<4x8x8xf32>
    %21 = vector.extract_strided_slice %4 {offsets = [1, 0, 0, 0], sizes = [1, 4, 32, 8], strides = [1, 1, 1, 1]} : vector<3x4x32x8xbf16> to vector<1x4x32x8xbf16>
    %22 = vector.shape_cast %21 : vector<1x4x32x8xbf16> to vector<4x32x8xbf16>
    "tpu.trace_start"() <{level = 10 : i32, message = "hse,hed->hsd"}> : () -> ()
    %cst_18 = arith.constant dense<0.000000e+00> : vector<4x8x8xf32>
    %23 = tpu.matmul %13, %22, %cst_18 {dimension_numbers = #tpu.dot_dimension_numbers<[2], [1], [1], [2], [0, 0, 0, 1, 1, 2], [0], [0]>} : vector<4x8x32xbf16>, vector<4x32x8xbf16>, vector<4x8x8xf32> -> vector<4x8x8xf32>
    "tpu.trace_stop"() : () -> ()
    %24 = vector.extract_strided_slice %5 {offsets = [1, 0, 0, 0], sizes = [1, 4, 1, 8], strides = [1, 1, 1, 1]} : vector<3x4x1x8xf32> to vector<1x4x1x8xf32>
    %25 = vector.shape_cast %24 : vector<1x4x1x8xf32> to vector<4x1x8xf32>
    %26 = vector.broadcast %25 : vector<4x1x8xf32> to vector<4x8x8xf32>
    %27 = arith.addf %23, %26 : vector<4x8x8xf32>
    %28 = vector.extract_strided_slice %4 {offsets = [2, 0, 0, 0], sizes = [1, 4, 32, 8], strides = [1, 1, 1, 1]} : vector<3x4x32x8xbf16> to vector<1x4x32x8xbf16>
    %29 = vector.shape_cast %28 : vector<1x4x32x8xbf16> to vector<4x32x8xbf16>
    "tpu.trace_start"() <{level = 10 : i32, message = "hse,hed->hsd"}> : () -> ()
    %cst_19 = arith.constant dense<0.000000e+00> : vector<4x8x8xf32>
    %30 = tpu.matmul %13, %29, %cst_19 {dimension_numbers = #tpu.dot_dimension_numbers<[2], [1], [1], [2], [0, 0, 0, 1, 1, 2], [0], [0]>} : vector<4x8x32xbf16>, vector<4x32x8xbf16>, vector<4x8x8xf32> -> vector<4x8x8xf32>
    "tpu.trace_stop"() : () -> ()
    %31 = vector.extract_strided_slice %5 {offsets = [2, 0, 0, 0], sizes = [1, 4, 1, 8], strides = [1, 1, 1, 1]} : vector<3x4x1x8xf32> to vector<1x4x1x8xf32>
    %32 = vector.shape_cast %31 : vector<1x4x1x8xf32> to vector<4x1x8xf32>
    %33 = vector.broadcast %32 : vector<4x1x8xf32> to vector<4x8x8xf32>
    %34 = arith.addf %30, %33 : vector<4x8x8xf32>
    %cst_20 = arith.constant 0.353553385 : f32
    %35 = vector.broadcast %cst_20 : f32 to vector<4x8x8xf32>
    %36 = arith.mulf %20, %35 : vector<4x8x8xf32>
    %37 = arith.truncf %36 : vector<4x8x8xf32> to vector<4x8x8xbf16>
    %38 = arith.truncf %27 : vector<4x8x8xf32> to vector<4x8x8xbf16>
    "tpu.trace_start"() <{level = 10 : i32, message = "hqd,hkd->hqk"}> : () -> ()
    %cst_21 = arith.constant dense<0.000000e+00> : vector<4x8x8xf32>
    %39 = tpu.matmul %37, %38, %cst_21 {dimension_numbers = #tpu.dot_dimension_numbers<[2], [2], [1], [1], [0, 0, 0, 1, 1, 1], [0], [0]>} : vector<4x8x8xbf16>, vector<4x8x8xbf16>, vector<4x8x8xf32> -> vector<4x8x8xf32>
    "tpu.trace_stop"() : () -> ()
    %cst_22 = arith.constant dense<0xFF800000> : vector<4x8xf32>
    %40 = vector.multi_reduction <maximumf>, %39, %cst_22 [2] : vector<4x8x8xf32> to vector<4x8xf32>
    %41 = vector.shape_cast %40 : vector<4x8xf32> to vector<4x8x1xf32>
    %42 = vector.broadcast %41 : vector<4x8x1xf32> to vector<4x8x8xf32>
    %43 = arith.subf %39, %42 : vector<4x8x8xf32>
    %44 = math.exp %43 : vector<4x8x8xf32>
    %cst_23 = arith.constant dense<0.000000e+00> : vector<4x8xf32>
    %45 = vector.multi_reduction <add>, %44, %cst_23 [2] : vector<4x8x8xf32> to vector<4x8xf32>
    %46 = vector.shape_cast %45 : vector<4x8xf32> to vector<4x8x1xf32>
    %47 = tpu.reciprocal %46 : vector<4x8x1xf32> -> vector<4x8x1xf32>
    %48 = vector.broadcast %47 : vector<4x8x1xf32> to vector<4x8x8xf32>
    %49 = arith.mulf %44, %48 : vector<4x8x8xf32>
    %50 = arith.truncf %49 : vector<4x8x8xf32> to vector<4x8x8xbf16>
    %51 = arith.truncf %34 : vector<4x8x8xf32> to vector<4x8x8xbf16>
    "tpu.trace_start"() <{level = 10 : i32, message = "hqk,hkd->hqd"}> : () -> ()
    %cst_24 = arith.constant dense<0.000000e+00> : vector<4x8x8xf32>
    %52 = tpu.matmul %50, %51, %cst_24 {dimension_numbers = #tpu.dot_dimension_numbers<[2], [1], [1], [2], [0, 0, 0, 1, 1, 2], [0], [0]>} : vector<4x8x8xbf16>, vector<4x8x8xbf16>, vector<4x8x8xf32> -> vector<4x8x8xf32>
    "tpu.trace_stop"() : () -> ()
    %53 = arith.truncf %52 : vector<4x8x8xf32> to vector<4x8x8xbf16>
    "tpu.trace_start"() <{level = 10 : i32, message = "hqd,hde->hqe"}> : () -> ()
    %cst_25 = arith.constant dense<0.000000e+00> : vector<4x8x32xf32>
    %54 = tpu.matmul %53, %6, %cst_25 {dimension_numbers = #tpu.dot_dimension_numbers<[2], [1], [1], [2], [0, 0, 0, 1, 1, 2], [0], [0]>} : vector<4x8x8xbf16>, vector<4x8x32xbf16>, vector<4x8x32xf32> -> vector<4x8x32xf32>
    "tpu.trace_stop"() : () -> ()
    %cst_26 = arith.constant dense<0.000000e+00> : vector<8x32xf32>
    %55 = vector.multi_reduction <add>, %54, %cst_26 [0] : vector<4x8x32xf32> to vector<8x32xf32>
    %56 = vector.broadcast %7 : vector<1x32xf32> to vector<8x32xf32>
    %57 = arith.addf %55, %56 : vector<8x32xf32>
    %58 = arith.addf %1, %57 : vector<8x32xf32>
    %c0_27 = arith.constant 0 : index
    %c0_28 = arith.constant 0 : index
    %59 = vector.load %arg15[%c0_27, %c0_28] : memref<3x32xf32, #tpu.memory_space<vmem>>, vector<1x32xf32>
    %c0_29 = arith.constant 0 : index
    %c0_30 = arith.constant 0 : index
    %60 = vector.load %arg16[%c0_29, %c0_30] : memref<3x32xf32, #tpu.memory_space<vmem>>, vector<1x32xf32>
    %cst_31 = arith.constant dense<0.000000e+00> : vector<8xf32>
    %61 = vector.multi_reduction <add>, %58, %cst_31 [1] : vector<8x32xf32> to vector<8xf32>
    %62 = vector.shape_cast %61 : vector<8xf32> to vector<8x1xf32>
    %cst_32 = arith.constant 3.200000e+01 : f32
    %63 = vector.broadcast %cst_32 : f32 to vector<8x1xf32>
    %64 = arith.divf %62, %63 : vector<8x1xf32>
    %65 = vector.broadcast %64 : vector<8x1xf32> to vector<8x32xf32>
    %66 = arith.subf %58, %65 : vector<8x32xf32>
    %67 = arith.mulf %66, %66 : vector<8x32xf32>
    %cst_33 = arith.constant dense<0.000000e+00> : vector<8xf32>
    %68 = vector.multi_reduction <add>, %67, %cst_33 [1] : vector<8x32xf32> to vector<8xf32>
    %69 = vector.shape_cast %68 : vector<8xf32> to vector<8x1xf32>
    %cst_34 = arith.constant 3.200000e+01 : f32
    %70 = vector.broadcast %cst_34 : f32 to vector<8x1xf32>
    %71 = arith.divf %69, %70 : vector<8x1xf32>
    %72 = vector.broadcast %64 : vector<8x1xf32> to vector<8x32xf32>
    %73 = arith.subf %58, %72 : vector<8x32xf32>
    %cst_35 = arith.constant 9.99999974E-6 : f32
    %74 = vector.broadcast %cst_35 : f32 to vector<8x1xf32>
    %75 = arith.addf %71, %74 : vector<8x1xf32>
    %76 = math.rsqrt %75 : vector<8x1xf32>
    %77 = vector.broadcast %76 : vector<8x1xf32> to vector<8x32xf32>
    %78 = arith.mulf %73, %77 : vector<8x32xf32>
    %79 = vector.broadcast %59 : vector<1x32xf32> to vector<8x32xf32>
    %80 = arith.mulf %78, %79 : vector<8x32xf32>
    %81 = vector.broadcast %60 : vector<1x32xf32> to vector<8x32xf32>
    %82 = arith.addf %80, %81 : vector<8x32xf32>
    %c0_36 = arith.constant 0 : index
    %c0_37 = arith.constant 0 : index
    %c0_38 = arith.constant 0 : index
    %c0_39 = arith.constant 0 : index
    %83 = vector.load %arg7[%c0_36, %c0_37, %c0_38, %c0_39] : memref<3x4x32x8xbf16, #tpu.memory_space<vmem>>, vector<3x4x32x8xbf16>
    %c0_40 = arith.constant 0 : index
    %c0_41 = arith.constant 0 : index
    %c0_42 = arith.constant 0 : index
    %c0_43 = arith.constant 0 : index
    %84 = vector.load %arg8[%c0_40, %c0_41, %c0_42, %c0_43] : memref<3x4x1x8xf32, #tpu.memory_space<vmem>>, vector<3x4x1x8xf32>
    %c0_44 = arith.constant 0 : index
    %c0_45 = arith.constant 0 : index
    %c0_46 = arith.constant 0 : index
    %85 = vector.load %arg9[%c0_44, %c0_45, %c0_46] : memref<4x8x32xbf16, #tpu.memory_space<vmem>>, vector<4x8x32xbf16>
    %c0_47 = arith.constant 0 : index
    %c0_48 = arith.constant 0 : index
    %86 = vector.load %arg10[%c0_47, %c0_48] : memref<1x32xf32, #tpu.memory_space<vmem>>, vector<1x32xf32>
    %87 = arith.truncf %82 : vector<8x32xf32> to vector<8x32xbf16>
    %88 = vector.shape_cast %87 : vector<8x32xbf16> to vector<1x8x32xbf16>
    %89 = vector.broadcast %88 : vector<1x8x32xbf16> to vector<4x8x32xbf16>
    %90 = arith.truncf %3 : vector<8x32xf32> to vector<8x32xbf16>
    %91 = vector.shape_cast %90 : vector<8x32xbf16> to vector<1x8x32xbf16>
    %92 = vector.broadcast %91 : vector<1x8x32xbf16> to vector<4x8x32xbf16>
    %93 = vector.extract_strided_slice %83 {offsets = [0, 0, 0, 0], sizes = [1, 4, 32, 8], strides = [1, 1, 1, 1]} : vector<3x4x32x8xbf16> to vector<1x4x32x8xbf16>
    %94 = vector.shape_cast %93 : vector<1x4x32x8xbf16> to vector<4x32x8xbf16>
    "tpu.trace_start"() <{level = 10 : i32, message = "hse,hed->hsd"}> : () -> ()
    %cst_49 = arith.constant dense<0.000000e+00> : vector<4x8x8xf32>
    %95 = tpu.matmul %89, %94, %cst_49 {dimension_numbers = #tpu.dot_dimension_numbers<[2], [1], [1], [2], [0, 0, 0, 1, 1, 2], [0], [0]>} : vector<4x8x32xbf16>, vector<4x32x8xbf16>, vector<4x8x8xf32> -> vector<4x8x8xf32>
    "tpu.trace_stop"() : () -> ()
    %96 = vector.extract_strided_slice %84 {offsets = [0, 0, 0, 0], sizes = [1, 4, 1, 8], strides = [1, 1, 1, 1]} : vector<3x4x1x8xf32> to vector<1x4x1x8xf32>
    %97 = vector.shape_cast %96 : vector<1x4x1x8xf32> to vector<4x1x8xf32>
    %98 = vector.broadcast %97 : vector<4x1x8xf32> to vector<4x8x8xf32>
    %99 = arith.addf %95, %98 : vector<4x8x8xf32>
    %100 = vector.extract_strided_slice %83 {offsets = [1, 0, 0, 0], sizes = [1, 4, 32, 8], strides = [1, 1, 1, 1]} : vector<3x4x32x8xbf16> to vector<1x4x32x8xbf16>
    %101 = vector.shape_cast %100 : vector<1x4x32x8xbf16> to vector<4x32x8xbf16>
    "tpu.trace_start"() <{level = 10 : i32, message = "hse,hed->hsd"}> : () -> ()
    %cst_50 = arith.constant dense<0.000000e+00> : vector<4x8x8xf32>
    %102 = tpu.matmul %92, %101, %cst_50 {dimension_numbers = #tpu.dot_dimension_numbers<[2], [1], [1], [2], [0, 0, 0, 1, 1, 2], [0], [0]>} : vector<4x8x32xbf16>, vector<4x32x8xbf16>, vector<4x8x8xf32> -> vector<4x8x8xf32>
    "tpu.trace_stop"() : () -> ()
    %103 = vector.extract_strided_slice %84 {offsets = [1, 0, 0, 0], sizes = [1, 4, 1, 8], strides = [1, 1, 1, 1]} : vector<3x4x1x8xf32> to vector<1x4x1x8xf32>
    %104 = vector.shape_cast %103 : vector<1x4x1x8xf32> to vector<4x1x8xf32>
    %105 = vector.broadcast %104 : vector<4x1x8xf32> to vector<4x8x8xf32>
    %106 = arith.addf %102, %105 : vector<4x8x8xf32>
    %107 = vector.extract_strided_slice %83 {offsets = [2, 0, 0, 0], sizes = [1, 4, 32, 8], strides = [1, 1, 1, 1]} : vector<3x4x32x8xbf16> to vector<1x4x32x8xbf16>
    %108 = vector.shape_cast %107 : vector<1x4x32x8xbf16> to vector<4x32x8xbf16>
    "tpu.trace_start"() <{level = 10 : i32, message = "hse,hed->hsd"}> : () -> ()
    %cst_51 = arith.constant dense<0.000000e+00> : vector<4x8x8xf32>
    %109 = tpu.matmul %92, %108, %cst_51 {dimension_numbers = #tpu.dot_dimension_numbers<[2], [1], [1], [2], [0, 0, 0, 1, 1, 2], [0], [0]>} : vector<4x8x32xbf16>, vector<4x32x8xbf16>, vector<4x8x8xf32> -> vector<4x8x8xf32>
    "tpu.trace_stop"() : () -> ()
    %110 = vector.extract_strided_slice %84 {offsets = [2, 0, 0, 0], sizes = [1, 4, 1, 8], strides = [1, 1, 1, 1]} : vector<3x4x1x8xf32> to vector<1x4x1x8xf32>
    %111 = vector.shape_cast %110 : vector<1x4x1x8xf32> to vector<4x1x8xf32>
    %112 = vector.broadcast %111 : vector<4x1x8xf32> to vector<4x8x8xf32>
    %113 = arith.addf %109, %112 : vector<4x8x8xf32>
    %cst_52 = arith.constant 0.353553385 : f32
    %114 = vector.broadcast %cst_52 : f32 to vector<4x8x8xf32>
    %115 = arith.mulf %99, %114 : vector<4x8x8xf32>
    %116 = arith.truncf %115 : vector<4x8x8xf32> to vector<4x8x8xbf16>
    %117 = arith.truncf %106 : vector<4x8x8xf32> to vector<4x8x8xbf16>
    "tpu.trace_start"() <{level = 10 : i32, message = "hqd,hkd->hqk"}> : () -> ()
    %cst_53 = arith.constant dense<0.000000e+00> : vector<4x8x8xf32>
    %118 = tpu.matmul %116, %117, %cst_53 {dimension_numbers = #tpu.dot_dimension_numbers<[2], [2], [1], [1], [0, 0, 0, 1, 1, 1], [0], [0]>} : vector<4x8x8xbf16>, vector<4x8x8xbf16>, vector<4x8x8xf32> -> vector<4x8x8xf32>
    "tpu.trace_stop"() : () -> ()
    %cst_54 = arith.constant dense<0xFF800000> : vector<4x8xf32>
    %119 = vector.multi_reduction <maximumf>, %118, %cst_54 [2] : vector<4x8x8xf32> to vector<4x8xf32>
    %120 = vector.shape_cast %119 : vector<4x8xf32> to vector<4x8x1xf32>
    %121 = vector.broadcast %120 : vector<4x8x1xf32> to vector<4x8x8xf32>
    %122 = arith.subf %118, %121 : vector<4x8x8xf32>
    %123 = math.exp %122 : vector<4x8x8xf32>
    %cst_55 = arith.constant dense<0.000000e+00> : vector<4x8xf32>
    %124 = vector.multi_reduction <add>, %123, %cst_55 [2] : vector<4x8x8xf32> to vector<4x8xf32>
    %125 = vector.shape_cast %124 : vector<4x8xf32> to vector<4x8x1xf32>
    %126 = tpu.reciprocal %125 : vector<4x8x1xf32> -> vector<4x8x1xf32>
    %127 = vector.broadcast %126 : vector<4x8x1xf32> to vector<4x8x8xf32>
    %128 = arith.mulf %123, %127 : vector<4x8x8xf32>
    %129 = arith.truncf %128 : vector<4x8x8xf32> to vector<4x8x8xbf16>
    %130 = arith.truncf %113 : vector<4x8x8xf32> to vector<4x8x8xbf16>
    "tpu.trace_start"() <{level = 10 : i32, message = "hqk,hkd->hqd"}> : () -> ()
    %cst_56 = arith.constant dense<0.000000e+00> : vector<4x8x8xf32>
    %131 = tpu.matmul %129, %130, %cst_56 {dimension_numbers = #tpu.dot_dimension_numbers<[2], [1], [1], [2], [0, 0, 0, 1, 1, 2], [0], [0]>} : vector<4x8x8xbf16>, vector<4x8x8xbf16>, vector<4x8x8xf32> -> vector<4x8x8xf32>
    "tpu.trace_stop"() : () -> ()
    %132 = arith.truncf %131 : vector<4x8x8xf32> to vector<4x8x8xbf16>
    "tpu.trace_start"() <{level = 10 : i32, message = "hqd,hde->hqe"}> : () -> ()
    %cst_57 = arith.constant dense<0.000000e+00> : vector<4x8x32xf32>
    %133 = tpu.matmul %132, %85, %cst_57 {dimension_numbers = #tpu.dot_dimension_numbers<[2], [1], [1], [2], [0, 0, 0, 1, 1, 2], [0], [0]>} : vector<4x8x8xbf16>, vector<4x8x32xbf16>, vector<4x8x32xf32> -> vector<4x8x32xf32>
    "tpu.trace_stop"() : () -> ()
    %cst_58 = arith.constant dense<0.000000e+00> : vector<8x32xf32>
    %134 = vector.multi_reduction <add>, %133, %cst_58 [0] : vector<4x8x32xf32> to vector<8x32xf32>
    %135 = vector.broadcast %86 : vector<1x32xf32> to vector<8x32xf32>
    %136 = arith.addf %134, %135 : vector<8x32xf32>
    %137 = arith.addf %82, %136 : vector<8x32xf32>
    %c1 = arith.constant 1 : index
    %c0_59 = arith.constant 0 : index
    %138 = vector.load %arg15[%c1, %c0_59] : memref<3x32xf32, #tpu.memory_space<vmem>>, vector<1x32xf32>
    %c1_60 = arith.constant 1 : index
    %c0_61 = arith.constant 0 : index
    %139 = vector.load %arg16[%c1_60, %c0_61] : memref<3x32xf32, #tpu.memory_space<vmem>>, vector<1x32xf32>
    %cst_62 = arith.constant dense<0.000000e+00> : vector<8xf32>
    %140 = vector.multi_reduction <add>, %137, %cst_62 [1] : vector<8x32xf32> to vector<8xf32>
    %141 = vector.shape_cast %140 : vector<8xf32> to vector<8x1xf32>
    %cst_63 = arith.constant 3.200000e+01 : f32
    %142 = vector.broadcast %cst_63 : f32 to vector<8x1xf32>
    %143 = arith.divf %141, %142 : vector<8x1xf32>
    %144 = vector.broadcast %143 : vector<8x1xf32> to vector<8x32xf32>
    %145 = arith.subf %137, %144 : vector<8x32xf32>
    %146 = arith.mulf %145, %145 : vector<8x32xf32>
    %cst_64 = arith.constant dense<0.000000e+00> : vector<8xf32>
    %147 = vector.multi_reduction <add>, %146, %cst_64 [1] : vector<8x32xf32> to vector<8xf32>
    %148 = vector.shape_cast %147 : vector<8xf32> to vector<8x1xf32>
    %cst_65 = arith.constant 3.200000e+01 : f32
    %149 = vector.broadcast %cst_65 : f32 to vector<8x1xf32>
    %150 = arith.divf %148, %149 : vector<8x1xf32>
    %151 = vector.broadcast %143 : vector<8x1xf32> to vector<8x32xf32>
    %152 = arith.subf %137, %151 : vector<8x32xf32>
    %cst_66 = arith.constant 9.99999974E-6 : f32
    %153 = vector.broadcast %cst_66 : f32 to vector<8x1xf32>
    %154 = arith.addf %150, %153 : vector<8x1xf32>
    %155 = math.rsqrt %154 : vector<8x1xf32>
    %156 = vector.broadcast %155 : vector<8x1xf32> to vector<8x32xf32>
    %157 = arith.mulf %152, %156 : vector<8x32xf32>
    %158 = vector.broadcast %138 : vector<1x32xf32> to vector<8x32xf32>
    %159 = arith.mulf %157, %158 : vector<8x32xf32>
    %160 = vector.broadcast %139 : vector<1x32xf32> to vector<8x32xf32>
    %161 = arith.addf %159, %160 : vector<8x32xf32>
    %c0_67 = arith.constant 0 : index
    %c0_68 = arith.constant 0 : index
    %162 = vector.load %arg11[%c0_67, %c0_68] : memref<32x64xbf16, #tpu.memory_space<vmem>>, vector<32x64xbf16>
    %c0_69 = arith.constant 0 : index
    %c0_70 = arith.constant 0 : index
    %163 = vector.load %arg12[%c0_69, %c0_70] : memref<1x64xf32, #tpu.memory_space<vmem>>, vector<1x64xf32>
    %c0_71 = arith.constant 0 : index
    %c0_72 = arith.constant 0 : index
    %164 = vector.load %arg13[%c0_71, %c0_72] : memref<64x32xbf16, #tpu.memory_space<vmem>>, vector<64x32xbf16>
    %c0_73 = arith.constant 0 : index
    %c0_74 = arith.constant 0 : index
    %165 = vector.load %arg14[%c0_73, %c0_74] : memref<1x32xf32, #tpu.memory_space<vmem>>, vector<1x32xf32>
    %166 = arith.truncf %161 : vector<8x32xf32> to vector<8x32xbf16>
    %cst_75 = arith.constant dense<0.000000e+00> : vector<8x64xf32>
    %167 = tpu.matmul %166, %162, %cst_75 {dimension_numbers = #tpu.dot_dimension_numbers<[1], [0], [0], [1], [0, 0, 1, 1], [], []>} : vector<8x32xbf16>, vector<32x64xbf16>, vector<8x64xf32> -> vector<8x64xf32>
    %168 = vector.broadcast %163 : vector<1x64xf32> to vector<8x64xf32>
    %169 = arith.addf %167, %168 : vector<8x64xf32>
    %cst_76 = arith.constant 0.000000e+00 : f32
    %170 = vector.broadcast %cst_76 : f32 to vector<8x64xf32>
    %171 = arith.maximumf %169, %170 : vector<8x64xf32>
    %172 = arith.truncf %171 : vector<8x64xf32> to vector<8x64xbf16>
    %cst_77 = arith.constant dense<0.000000e+00> : vector<8x32xf32>
    %173 = tpu.matmul %172, %164, %cst_77 {dimension_numbers = #tpu.dot_dimension_numbers<[1], [0], [0], [1], [0, 0, 1, 1], [], []>} : vector<8x64xbf16>, vector<64x32xbf16>, vector<8x32xf32> -> vector<8x32xf32>
    %174 = vector.broadcast %165 : vector<1x32xf32> to vector<8x32xf32>
    %175 = arith.addf %173, %174 : vector<8x32xf32>
    %176 = arith.addf %161, %175 : vector<8x32xf32>
    %c2 = arith.constant 2 : index
    %c0_78 = arith.constant 0 : index
    %177 = vector.load %arg15[%c2, %c0_78] : memref<3x32xf32, #tpu.memory_space<vmem>>, vector<1x32xf32>
    %c2_79 = arith.constant 2 : index
    %c0_80 = arith.constant 0 : index
    %178 = vector.load %arg16[%c2_79, %c0_80] : memref<3x32xf32, #tpu.memory_space<vmem>>, vector<1x32xf32>
    %cst_81 = arith.constant dense<0.000000e+00> : vector<8xf32>
    %179 = vector.multi_reduction <add>, %176, %cst_81 [1] : vector<8x32xf32> to vector<8xf32>
    %180 = vector.shape_cast %179 : vector<8xf32> to vector<8x1xf32>
    %cst_82 = arith.constant 3.200000e+01 : f32
    %181 = vector.broadcast %cst_82 : f32 to vector<8x1xf32>
    %182 = arith.divf %180, %181 : vector<8x1xf32>
    %183 = vector.broadcast %182 : vector<8x1xf32> to vector<8x32xf32>
    %184 = arith.subf %176, %183 : vector<8x32xf32>
    %185 = arith.mulf %184, %184 : vector<8x32xf32>
    %cst_83 = arith.constant dense<0.000000e+00> : vector<8xf32>
    %186 = vector.multi_reduction <add>, %185, %cst_83 [1] : vector<8x32xf32> to vector<8xf32>
    %187 = vector.shape_cast %186 : vector<8xf32> to vector<8x1xf32>
    %cst_84 = arith.constant 3.200000e+01 : f32
    %188 = vector.broadcast %cst_84 : f32 to vector<8x1xf32>
    %189 = arith.divf %187, %188 : vector<8x1xf32>
    %190 = vector.broadcast %182 : vector<8x1xf32> to vector<8x32xf32>
    %191 = arith.subf %176, %190 : vector<8x32xf32>
    %cst_85 = arith.constant 9.99999974E-6 : f32
    %192 = vector.broadcast %cst_85 : f32 to vector<8x1xf32>
    %193 = arith.addf %189, %192 : vector<8x1xf32>
    %194 = math.rsqrt %193 : vector<8x1xf32>
    %195 = vector.broadcast %194 : vector<8x1xf32> to vector<8x32xf32>
    %196 = arith.mulf %191, %195 : vector<8x32xf32>
    %197 = vector.broadcast %177 : vector<1x32xf32> to vector<8x32xf32>
    %198 = arith.mulf %196, %197 : vector<8x32xf32>
    %199 = vector.broadcast %178 : vector<1x32xf32> to vector<8x32xf32>
    %200 = arith.addf %198, %199 : vector<8x32xf32>
    %c0_86 = arith.constant 0 : index
    %c0_87 = arith.constant 0 : index
    %c0_88 = arith.constant 0 : index
    %201 = vector.load %arg17[%c0_86, %c0_87, %c0_88] : memref<1x8x32xf32, #tpu.memory_space<vmem>>, vector<1x8x32xf32>
    %202 = vector.shape_cast %201 : vector<1x8x32xf32> to vector<8x32xf32>
    %203 = vector.shape_cast %200 : vector<8x32xf32> to vector<1x8x32xf32>
    tpu.vector_store %arg17[%c0_86, %c0_87, %c0_88], %203 {strides = array<i32>} : memref<1x8x32xf32, #tpu.memory_space<vmem>>, vector<1x8x32xf32>,
    return
  }
  func.func @transform_0(%arg0: i32) -> (i32, i32, i32) {
    %c0_i32 = arith.constant 0 : i32
    %c0_i32_0 = arith.constant 0 : i32
    %c0_i32_1 = arith.constant 0 : i32
    return %arg0, %c0_i32, %c0_i32_0 : i32, i32, i32
  }
  func.func @transform_1(%arg0: i32) -> (i32, i32, i32) {
    %c0_i32 = arith.constant 0 : i32
    %c0_i32_0 = arith.constant 0 : i32
    %c0_i32_1 = arith.constant 0 : i32
    return %arg0, %c0_i32, %c0_i32_0 : i32, i32, i32
  }
  func.func @transform_2(%arg0: i32) -> (i32, i32, i32, i32) {
    %c0_i32 = arith.constant 0 : i32
    %c0_i32_0 = arith.constant 0 : i32
    %c0_i32_1 = arith.constant 0 : i32
    %c0_i32_2 = arith.constant 0 : i32
    %c0_i32_3 = arith.constant 0 : i32
    return %c0_i32, %c0_i32_0, %c0_i32_1, %c0_i32_2 : i32, i32, i32, i32
  }
  func.func @transform_3(%arg0: i32) -> (i32, i32, i32, i32) {
    %c0_i32 = arith.constant 0 : i32
    %c0_i32_0 = arith.constant 0 : i32
    %c0_i32_1 = arith.constant 0 : i32
    %c0_i32_2 = arith.constant 0 : i32
    %c0_i32_3 = arith.constant 0 : i32
    return %c0_i32, %c0_i32_0, %c0_i32_1, %c0_i32_2 : i32, i32, i32, i32
  }
  func.func @transform_4(%arg0: i32) -> (i32, i32, i32) {
    %c0_i32 = arith.constant 0 : i32
    %c0_i32_0 = arith.constant 0 : i32
    %c0_i32_1 = arith.constant 0 : i32
    %c0_i32_2 = arith.constant 0 : i32
    return %c0_i32, %c0_i32_0, %c0_i32_1 : i32, i32, i32
  }
  func.func @transform_5(%arg0: i32) -> (i32, i32) {
    %c0_i32 = arith.constant 0 : i32
    %c0_i32_0 = arith.constant 0 : i32
    %c0_i32_1 = arith.constant 0 : i32
    return %c0_i32, %c0_i32_0 : i32, i32
  }
  func.func @transform_6(%arg0: i32) -> (i32, i32, i32, i32) {
    %c0_i32 = arith.constant 0 : i32
    %c0_i32_0 = arith.constant 0 : i32
    %c0_i32_1 = arith.constant 0 : i32
    %c0_i32_2 = arith.constant 0 : i32
    %c0_i32_3 = arith.constant 0 : i32
    return %c0_i32, %c0_i32_0, %c0_i32_1, %c0_i32_2 : i32, i32, i32, i32
  }
  func.func @transform_7(%arg0: i32) -> (i32, i32, i32, i32) {
    %c0_i32 = arith.constant 0 : i32
    %c0_i32_0 = arith.constant 0 : i32
    %c0_i32_1 = arith.constant 0 : i32
    %c0_i32_2 = arith.constant 0 : i32
    %c0_i32_3 = arith.constant 0 : i32
    return %c0_i32, %c0_i32_0, %c0_i32_1, %c0_i32_2 : i32, i32, i32, i32
  }
  func.func @transform_8(%arg0: i32) -> (i32, i32, i32) {
    %c0_i32 = arith.constant 0 : i32
    %c0_i32_0 = arith.constant 0 : i32
    %c0_i32_1 = arith.constant 0 : i32
    %c0_i32_2 = arith.constant 0 : i32
    return %c0_i32, %c0_i32_0, %c0_i32_1 : i32, i32, i32
  }
  func.func @transform_9(%arg0: i32) -> (i32, i32) {
    %c0_i32 = arith.constant 0 : i32
    %c0_i32_0 = arith.constant 0 : i32
    %c0_i32_1 = arith.constant 0 : i32
    return %c0_i32, %c0_i32_0 : i32, i32
  }
  func.func @transform_10(%arg0: i32) -> (i32, i32) {
    %c0_i32 = arith.constant 0 : i32
    %c0_i32_0 = arith.constant 0 : i32
    %c0_i32_1 = arith.constant 0 : i32
    return %c0_i32, %c0_i32_0 : i32, i32
  }
  func.func @transform_11(%arg0: i32) -> (i32, i32) {
    %c0_i32 = arith.constant 0 : i32
    %c0_i32_0 = arith.constant 0 : i32
    %c0_i32_1 = arith.constant 0 : i32
    return %c0_i32, %c0_i32_0 : i32, i32
  }
  func.func @transform_12(%arg0: i32) -> (i32, i32) {
    %c0_i32 = arith.constant 0 : i32
    %c0_i32_0 = arith.constant 0 : i32
    %c0_i32_1 = arith.constant 0 : i32
    return %c0_i32, %c0_i32_0 : i32, i32
  }
  func.func @transform_13(%arg0: i32) -> (i32, i32) {
    %c0_i32 = arith.constant 0 : i32
    %c0_i32_0 = arith.constant 0 : i32
    %c0_i32_1 = arith.constant 0 : i32
    return %c0_i32, %c0_i32_0 : i32, i32
  }
  func.func @transform_14(%arg0: i32) -> (i32, i32) {
    %c0_i32 = arith.constant 0 : i32
    %c0_i32_0 = arith.constant 0 : i32
    %c0_i32_1 = arith.constant 0 : i32
    return %c0_i32, %c0_i32_0 : i32, i32
  }
  func.func @transform_15(%arg0: i32) -> (i32, i32) {
    %c0_i32 = arith.constant 0 : i32
    %c0_i32_0 = arith.constant 0 : i32
    %c0_i32_1 = arith.constant 0 : i32
    return %c0_i32, %c0_i32_0 : i32, i32
  }
  func.func @transform_16(%arg0: i32) -> (i32, i32, i32) {
    %c0_i32 = arith.constant 0 : i32
    %c0_i32_0 = arith.constant 0 : i32
    %c0_i32_1 = arith.constant 0 : i32
    return %arg0, %c0_i32, %c0_i32_0 : i32, i32, i32
  }
}

</mosaic_0001>

<llo_original>
// kernel: transformer_forward.9
$region0: #{transformer_forward.9}
  #allocation0 [shape = 'u32[]', space=smem, size = 0x4, offset = 0x4, fixed_abs, tag = 'smem constant byte address 0x4 - core index']
  #allocation1 [shape = 'u32[144,128]{1,0:T(1,128)}', space=vmem, size = 0x12000, scoped, tag = 'internal scratch']
  %s0 = inlined_call_operand.vmem [shape: f32[16,32], index: 0, kind: input, shape index: {}]
  %s1 = inlined_call_operand.vmem [shape: bf16[32,128], index: 1, kind: input, shape index: {}]
  %s2 = inlined_call_operand.vmem [shape: f32[1,128], index: 2, kind: input, shape index: {}]
  %s3 = inlined_call_operand.hbm [shape: f32[16,128], index: 3, kind: output, shape index: {}]
  %s4 = sld [smem:[#allocation0]]
  $region22: #{transformer_forward.9} parent=0
    _
  %s6 = ssub.s32 1, %s4
  %s7 = scalar_select 0, %s6, %s4
  $region1: #{transformer_forward.9} parent=0
    #allocation2 [shape = 'u8[8192]{0}', space=vmem, size = 0x2000, scoped, tag = 'output window, operand 0, single buffered']
    #allocation3 [shape = 's32[1]{0}', space=sflag, size = 0x4, scoped, tag = 'scoped memory for transformer_forward.9']
    %8 = vsyncpa [#allocation3], 0
    // Predicated region
    $region2: #{transformer_forward.9} parent=1 // pred_check
      _
    $region3: #{transformer_forward.9} parent=1 // pred_check_branch
      %10 = sbr.rel (0) target = $region5
    $region4: #{transformer_forward.9} parent=1 // pred_region
      _
    $region5: #{transformer_forward.9} parent=1 // pred_fallthru
      _
    // Predicated region
    $region6: #{transformer_forward.9} parent=1 // pred_check
      _
    $region7: #{transformer_forward.9} parent=1 // pred_check_branch
      %12 = sbr.rel (0) target = $region9
    $region8: #{transformer_forward.9} parent=1 // pred_region
      _
    $region9: #{transformer_forward.9} parent=1 // pred_fallthru
      _
    // Predicated region
    $region10: #{transformer_forward.9} parent=1 // pred_check
      _
    $region11: #{transformer_forward.9} parent=1 // pred_check_branch
      %14 = sbr.rel (0) target = $region13
    $region12: #{transformer_forward.9} parent=1 // pred_region
      _
    $region13: #{transformer_forward.9} parent=1 // pred_fallthru
      _
    %v16 = vld [vmem:[%s0] sm:$0xff]
    %v17 = vld [vmem:[%s0 + $0x8] sm:$0xff]
    %v18 = vpack.c.bf16 %v17, %v16
    %v19 = vld [vmem:[%s1] sm:$0xf]
    %v20 = vld [vmem:[%s1 + $0x4] sm:$0xf]
    %v21 = vld [vmem:[%s1 + $0x8] sm:$0xf]
    %v22 = vld [vmem:[%s1 + $0xc] sm:$0xf]
    %v23 = vld [vmem:[%s2] sm:$0x1]
    %v25 = vlaneseq
    %v26 = vshrl.u32 %v25, 7
    %v27 = vsub.s32 0, %v26
    %v28 = vrot.slane %v23, %v27
    %v34 = vunpack.c.l.b16 %v19
    %v35 = vunpack.c.l.b16 %v20
    %v36 = vunpack.c.l.b16 %v21
    %v37 = vunpack.c.l.b16 %v22
    %v38 = vpack.c.b16 %v35, %v34
    %v39 = vpack.c.b16 %v37, %v36
    %vm42 = vcmask 261120
    %v44 = vsel %vm42, %v18, 0
    %46 = vmatprep.subr.bf16.mxu0 0
    %47 = vmatpush1.bf16.msra.mxu0 %v38
    %48 = vmatprep.subr.bf16.mxu0 0
    %49 = vmatpush1.bf16.msra.mxu0 %v39
    %50 = vmatprep.subr.bf16.mxu0 0
    %51 = vmatpush1.bf16.msra.mxu0 0
    %52 = vmatprep.subr.bf16.mxu0 0
    %53 = vmatpush1.bf16.msra.mxu0 0
    %54 = vmatprep.subr.bf16.mxu0 0
    %55 = vmatpush1.bf16.msra.mxu0 0
    %56 = vmatprep.subr.bf16.mxu0 0
    %57 = vmatpush1.bf16.msra.mxu0 0
    %58 = vmatprep.subr.bf16.mxu0 0
    %59 = vmatpush1.bf16.msra.mxu0 0
    %60 = vmatprep.subr.bf16.mxu0 0
    %61 = vmatpush1.bf16.msra.mxu0 0
    %62 = vmatprep.subr.bf16.mxu0 0
    %63 = vmatpush1.bf16.msra.mxu0 0
    %64 = vmatprep.subr.bf16.mxu0 0
    %65 = vmatpush1.bf16.msra.mxu0 0
    %66 = vmatprep.subr.bf16.mxu0 0
    %67 = vmatpush1.bf16.msra.mxu0 0
    %68 = vmatprep.subr.bf16.mxu0 0
    %69 = vmatpush1.bf16.msra.mxu0 0
    %70 = vmatprep.subr.bf16.mxu0 0
    %71 = vmatpush1.bf16.msra.mxu0 0
    %72 = vmatprep.subr.bf16.mxu0 0
    %73 = vmatpush1.bf16.msra.mxu0 0
    %74 = vmatprep.subr.bf16.mxu0 0
    %75 = vmatpush1.bf16.msra.mxu0 0
    %76 = vmatprep.subr.bf16.mxu0 0
    %77 = vmatpush1.bf16.msra.mxu0 0
    %78 = vmatprep.mubr.bf16.mxu0 0
    %79 = vmatmul.mubr.bf16.gmra.mrb[0].mxu0 %v44
    %v80 = vpop.f32.mrb[0].mxu0
    %v81 = vadd.f32 %v28, %v80
    %v82 = vpop.f32.mrb[0].mxu0
    %v83 = vpop.f32.mrb[0].mxu0
    %v84 = vadd.f32 %v28, %v83
    %v85 = vpop.f32.mrb[0].mxu0
    %86 = vdwg.mxu0
    %87 = vst [vmem:[#allocation2] sm:$0xff] %v81
    %88 = vst [vmem:[#allocation2 + $0x8] sm:$0xff] %v84
    // Predicated region
    $region14: #{transformer_forward.9} parent=1 // pred_check
      _
    $region15: #{transformer_forward.9} parent=1 // pred_check_branch
      %90 = sbr.rel (0) target = $region17
    $region16: #{transformer_forward.9} parent=1 // pred_region
      %s92 = ssub.s32 256, 256
      %93 = vsyncadd [#allocation3], %s92
      %s94 = sshll.u32 [#allocation2], 4
      %s95 = int_to_ptr.vmem [resolvable:$true] %s94
      %100 = dma.vmem_to_hbm [thread:$0]  %s95, 256, %s3, [#allocation3], 128, 128, 8
    $region17: #{transformer_forward.9} parent=1 // pred_fallthru
      _
    // Predicated region
    $region18: #{transformer_forward.9} parent=1 // pred_check
      _
    $region19: #{transformer_forward.9} parent=1 // pred_check_branch
      %102 = sbr.rel (0) target = $region21
    $region20: #{transformer_forward.9} parent=1 // pred_region
      %103 = dma.done [#allocation3], 256
    $region21: #{transformer_forward.9} parent=1 // pred_fallthru
      _
    %104 = vsyncpa [#allocation3], 1

// kernel: transformer_forward.5
$region0: #{transformer_forward.5}
  #allocation0 [shape = 'u32[]', space=smem, size = 0x4, offset = 0x4, fixed_abs, tag = 'smem constant byte address 0x4 - core index']
  #allocation1 [shape = 'u32[144,128]{1,0:T(1,128)}', space=vmem, size = 0x12000, scoped, tag = 'internal scratch']
  %s0 = inlined_call_operand.vmem [shape: f32[2,8,32], index: 0, kind: input, shape index: {}]
  %s1 = inlined_call_operand.vmem [shape: bf16[3,4,32,8], index: 1, kind: input, shape index: {}]
  %s2 = inlined_call_operand.vmem [shape: f32[3,4,1,8], index: 2, kind: input, shape index: {}]
  %s3 = inlined_call_operand.vmem [shape: bf16[4,8,32], index: 3, kind: input, shape index: {}]
  %s4 = inlined_call_operand.vmem [shape: f32[1,32], index: 4, kind: input, shape index: {}]
  %s5 = inlined_call_operand.vmem [shape: bf16[32,64], index: 5, kind: input, shape index: {}]
  %s6 = inlined_call_operand.vmem [shape: f32[1,64], index: 6, kind: input, shape index: {}]
  %s7 = inlined_call_operand.vmem [shape: bf16[64,32], index: 7, kind: input, shape index: {}]
  %s8 = inlined_call_operand.vmem [shape: f32[1,32], index: 8, kind: input, shape index: {}]
  %s9 = inlined_call_operand.vmem [shape: f32[2,32], index: 9, kind: input, shape index: {}]
  %s10 = inlined_call_operand.vmem [shape: f32[2,32], index: 10, kind: input, shape index: {}]
  %s11 = inlined_call_operand.vmem [shape: f32[2,8,32], index: 11, kind: output, shape index: {}]
  %s12 = sld [smem:[#allocation0]]
  $region77: #{transformer_forward.5} parent=0
    _
  %s14 = ssub.s32 1, %s12
  %s15 = scalar_select 0, %s14, %s12
  loop: start=0, step=1, limit=4
  $region2: #{transformer_forward.5} parent=0 // loop_pre_header
    _
  $region3: #{transformer_forward.5} parent=0 // loop_header
    %s17 = sphi 0, %s21
    %p18 = scmp.ge.s32.totalorder %s17, 4
    %s27 = sphi 0, %s29
    %s30 = sphi 0, %s27
    %s31 = sphi 0, %s30
    %s47 = sphi 0, %s31
    %s51 = sphi 0, %s51
    %s53 = sphi 0, %s51
    %s54 = sphi 0, %s53
    %s68 = sphi 0, %s54
    %s72 = sphi 0, %s72
    %s74 = sphi 0, %s72
    %s75 = sphi 0, %s74
    %s89 = sphi 0, %s75
    %s93 = sphi 0, %s93
    %s95 = sphi 0, %s93
    %s96 = sphi 0, %s95
    %s110 = sphi 0, %s96
    %s114 = sphi 0, %s114
    %s116 = sphi 0, %s114
    %s117 = sphi 0, %s116
    %s131 = sphi 0, %s117
    %s135 = sphi 0, %s135
    %s137 = sphi 0, %s135
    %s138 = sphi 0, %s137
    %s152 = sphi 0, %s138
    %s156 = sphi 0, %s156
    %s158 = sphi 0, %s156
    %s159 = sphi 0, %s158
    %s173 = sphi 0, %s159
    %s177 = sphi 0, %s177
    %s179 = sphi 0, %s177
    %s180 = sphi 0, %s179
    %s194 = sphi 0, %s180
    %s198 = sphi 0, %s198
    %s200 = sphi 0, %s198
    %s201 = sphi 0, %s200
    %s215 = sphi 0, %s201
    %s219 = sphi 0, %s219
    %s221 = sphi 0, %s219
    %s222 = sphi 0, %s221
    %s236 = sphi 0, %s222
    %s240 = sphi 0, %s240
    %s242 = sphi 0, %s240
    %s243 = sphi 0, %s242
    %s257 = sphi 0, %s243
    %s263 = sphi 0, %s265
    %s266 = sphi 0, %s263
    %s267 = sphi 0, %s266
    %s283 = sphi 0, %s267
  $region4: #{transformer_forward.5} parent=0 // loop_header_branch
    %20 = sbr.rel (%p18) target = $region8
  $region5: #{transformer_forward.5} parent=0 // loop_body
    %s22 = ssub.s32 %s17, 1
    %s23 = ssub.s32 %s17, 2
    %s24 = sadd.s32 %s17, 1
    %s25 = ssub.s32 %s17, %s24
    %p26 = scmp.eq.s32.totalorder %s25, 0
    %s28 = sadd.s32 %s27, 1
    %s29 = scalar_select %p26, %s27, %s28
    %p32 = pneg %p26
    %p33 = scmp.eq.s32.totalorder %s17, 1
    %p34 = por %p32, %p33
    %p35 = scmp.ne.s32.totalorder %s27, %s30
    %p36 = scmp.eq.s32.totalorder %s17, 0
    %p37 = por %p35, %p36
    %p38 = scmp.ne.s32.totalorder %s27, %s30
    %p39 = scmp.eq.s32.totalorder %s22, 1
    %p40 = por %p38, %p39
    %p41 = scmp.ne.s32.totalorder %s30, %s31
    %p42 = scmp.eq.s32.totalorder %s22, 0
    %p43 = por %p41, %p42
    %p44 = scmp.ne.s32.totalorder %s30, %s31
    %p45 = scmp.eq.s32.totalorder %s23, 1
    %p46 = por %p44, %p45
    %p48 = scmp.ne.s32.totalorder %s31, %s47
    %p49 = scmp.eq.s32.totalorder %s23, 0
    %p50 = por %p48, %p49
    %s52 = sadd.s32 %s51, 1
    %p55 = scmp.eq.s32.totalorder %s17, 1
    %p56 = scmp.ne.s32.totalorder %s51, %s53
    %p57 = scmp.eq.s32.totalorder %s17, 0
    %p58 = por %p56, %p57
    %p59 = scmp.ne.s32.totalorder %s51, %s53
    %p60 = scmp.eq.s32.totalorder %s22, 1
    %p61 = por %p59, %p60
    %p62 = scmp.ne.s32.totalorder %s53, %s54
    %p63 = scmp.eq.s32.totalorder %s22, 0
    %p64 = por %p62, %p63
    %p65 = scmp.ne.s32.totalorder %s53, %s54
    %p66 = scmp.eq.s32.totalorder %s23, 1
    %p67 = por %p65, %p66
    %p69 = scmp.ne.s32.totalorder %s54, %s68
    %p70 = scmp.eq.s32.totalorder %s23, 0
    %p71 = por %p69, %p70
    %s73 = sadd.s32 %s72, 1
    %p76 = scmp.eq.s32.totalorder %s17, 1
    %p77 = scmp.ne.s32.totalorder %s72, %s74
    %p78 = scmp.eq.s32.totalorder %s17, 0
    %p79 = por %p77, %p78
    %p80 = scmp.ne.s32.totalorder %s72, %s74
    %p81 = scmp.eq.s32.totalorder %s22, 1
    %p82 = por %p80, %p81
    %p83 = scmp.ne.s32.totalorder %s74, %s75
    %p84 = scmp.eq.s32.totalorder %s22, 0
    %p85 = por %p83, %p84
    %p86 = scmp.ne.s32.totalorder %s74, %s75
    %p87 = scmp.eq.s32.totalorder %s23, 1
    %p88 = por %p86, %p87
    %p90 = scmp.ne.s32.totalorder %s75, %s89
    %p91 = scmp.eq.s32.totalorder %s23, 0
    %p92 = por %p90, %p91
    %s94 = sadd.s32 %s93, 1
    %p97 = scmp.eq.s32.totalorder %s17, 1
    %p98 = scmp.ne.s32.totalorder %s93, %s95
    %p99 = scmp.eq.s32.totalorder %s17, 0
    %p100 = por %p98, %p99
    %p101 = scmp.ne.s32.totalorder %s93, %s95
    %p102 = scmp.eq.s32.totalorder %s22, 1
    %p103 = por %p101, %p102
    %p104 = scmp.ne.s32.totalorder %s95, %s96
    %p105 = scmp.eq.s32.totalorder %s22, 0
    %p106 = por %p104, %p105
    %p107 = scmp.ne.s32.totalorder %s95, %s96
    %p108 = scmp.eq.s32.totalorder %s23, 1
    %p109 = por %p107, %p108
    %p111 = scmp.ne.s32.totalorder %s96, %s110
    %p112 = scmp.eq.s32.totalorder %s23, 0
    %p113 = por %p111, %p112
    %s115 = sadd.s32 %s114, 1
    %p118 = scmp.eq.s32.totalorder %s17, 1
    %p119 = scmp.ne.s32.totalorder %s114, %s116
    %p120 = scmp.eq.s32.totalorder %s17, 0
    %p121 = por %p119, %p120
    %p122 = scmp.ne.s32.totalorder %s114, %s116
    %p123 = scmp.eq.s32.totalorder %s22, 1
    %p124 = por %p122, %p123
    %p125 = scmp.ne.s32.totalorder %s116, %s117
    %p126 = scmp.eq.s32.totalorder %s22, 0
    %p127 = por %p125, %p126
    %p128 = scmp.ne.s32.totalorder %s116, %s117
    %p129 = scmp.eq.s32.totalorder %s23, 1
    %p130 = por %p128, %p129
    %p132 = scmp.ne.s32.totalorder %s117, %s131
    %p133 = scmp.eq.s32.totalorder %s23, 0
    %p134 = por %p132, %p133
    %s136 = sadd.s32 %s135, 1
    %p139 = scmp.eq.s32.totalorder %s17, 1
    %p140 = scmp.ne.s32.totalorder %s135, %s137
    %p141 = scmp.eq.s32.totalorder %s17, 0
    %p142 = por %p140, %p141
    %p143 = scmp.ne.s32.totalorder %s135, %s137
    %p144 = scmp.eq.s32.totalorder %s22, 1
    %p145 = por %p143, %p144
    %p146 = scmp.ne.s32.totalorder %s137, %s138
    %p147 = scmp.eq.s32.totalorder %s22, 0
    %p148 = por %p146, %p147
    %p149 = scmp.ne.s32.totalorder %s137, %s138
    %p150 = scmp.eq.s32.totalorder %s23, 1
    %p151 = por %p149, %p150
    %p153 = scmp.ne.s32.totalorder %s138, %s152
    %p154 = scmp.eq.s32.totalorder %s23, 0
    %p155 = por %p153, %p154
    %s157 = sadd.s32 %s156, 1
    %p160 = scmp.eq.s32.totalorder %s17, 1
    %p161 = scmp.ne.s32.totalorder %s156, %s158
    %p162 = scmp.eq.s32.totalorder %s17, 0
    %p163 = por %p161, %p162
    %p164 = scmp.ne.s32.totalorder %s156, %s158
    %p165 = scmp.eq.s32.totalorder %s22, 1
    %p166 = por %p164, %p165
    %p167 = scmp.ne.s32.totalorder %s158, %s159
    %p168 = scmp.eq.s32.totalorder %s22, 0
    %p169 = por %p167, %p168
    %p170 = scmp.ne.s32.totalorder %s158, %s159
    %p171 = scmp.eq.s32.totalorder %s23, 1
    %p172 = por %p170, %p171
    %p174 = scmp.ne.s32.totalorder %s159, %s173
    %p175 = scmp.eq.s32.totalorder %s23, 0
    %p176 = por %p174, %p175
    %s178 = sadd.s32 %s177, 1
    %p181 = scmp.eq.s32.totalorder %s17, 1
    %p182 = scmp.ne.s32.totalorder %s177, %s179
    %p183 = scmp.eq.s32.totalorder %s17, 0
    %p184 = por %p182, %p183
    %p185 = scmp.ne.s32.totalorder %s177, %s179
    %p186 = scmp.eq.s32.totalorder %s22, 1
    %p187 = por %p185, %p186
    %p188 = scmp.ne.s32.totalorder %s179, %s180
    %p189 = scmp.eq.s32.totalorder %s22, 0
    %p190 = por %p188, %p189
    %p191 = scmp.ne.s32.totalorder %s179, %s180
    %p192 = scmp.eq.s32.totalorder %s23, 1
    %p193 = por %p191, %p192
    %p195 = scmp.ne.s32.totalorder %s180, %s194
    %p196 = scmp.eq.s32.totalorder %s23, 0
    %p197 = por %p195, %p196
    %s199 = sadd.s32 %s198, 1
    %p202 = scmp.eq.s32.totalorder %s17, 1
    %p203 = scmp.ne.s32.totalorder %s198, %s200
    %p204 = scmp.eq.s32.totalorder %s17, 0
    %p205 = por %p203, %p204
    %p206 = scmp.ne.s32.totalorder %s198, %s200
    %p207 = scmp.eq.s32.totalorder %s22, 1
    %p208 = por %p206, %p207
    %p209 = scmp.ne.s32.totalorder %s200, %s201
    %p210 = scmp.eq.s32.totalorder %s22, 0
    %p211 = por %p209, %p210
    %p212 = scmp.ne.s32.totalorder %s200, %s201
    %p213 = scmp.eq.s32.totalorder %s23, 1
    %p214 = por %p212, %p213
    %p216 = scmp.ne.s32.totalorder %s201, %s215
    %p217 = scmp.eq.s32.totalorder %s23, 0
    %p218 = por %p216, %p217
    %s220 = sadd.s32 %s219, 1
    %p223 = scmp.eq.s32.totalorder %s17, 1
    %p224 = scmp.ne.s32.totalorder %s219, %s221
    %p225 = scmp.eq.s32.totalorder %s17, 0
    %p226 = por %p224, %p225
    %p227 = scmp.ne.s32.totalorder %s219, %s221
    %p228 = scmp.eq.s32.totalorder %s22, 1
    %p229 = por %p227, %p228
    %p230 = scmp.ne.s32.totalorder %s221, %s222
    %p231 = scmp.eq.s32.totalorder %s22, 0
    %p232 = por %p230, %p231
    %p233 = scmp.ne.s32.totalorder %s221, %s222
    %p234 = scmp.eq.s32.totalorder %s23, 1
    %p235 = por %p233, %p234
    %p237 = scmp.ne.s32.totalorder %s222, %s236
    %p238 = scmp.eq.s32.totalorder %s23, 0
    %p239 = por %p237, %p238
    %s241 = sadd.s32 %s240, 1
    %p244 = scmp.eq.s32.totalorder %s17, 1
    %p245 = scmp.ne.s32.totalorder %s240, %s242
    %p246 = scmp.eq.s32.totalorder %s17, 0
    %p247 = por %p245, %p246
    %p248 = scmp.ne.s32.totalorder %s240, %s242
    %p249 = scmp.eq.s32.totalorder %s22, 1
    %p250 = por %p248, %p249
    %p251 = scmp.ne.s32.totalorder %s242, %s243
    %p252 = scmp.eq.s32.totalorder %s22, 0
    %p253 = por %p251, %p252
    %p254 = scmp.ne.s32.totalorder %s242, %s243
    %p255 = scmp.eq.s32.totalorder %s23, 1
    %p256 = por %p254, %p255
    %p258 = scmp.ne.s32.totalorder %s243, %s257
    %p259 = scmp.eq.s32.totalorder %s23, 0
    %p260 = por %p258, %p259
    %s261 = ssub.s32 %s17, %s24
    %p262 = scmp.eq.s32.totalorder %s261, 0
    %s264 = sadd.s32 %s263, 1
    %s265 = scalar_select %p262, %s263, %s264
    %p268 = pneg %p262
    %p269 = scmp.eq.s32.totalorder %s17, 1
    %p270 = por %p268, %p269
    %p271 = scmp.ne.s32.totalorder %s263, %s266
    %p272 = scmp.eq.s32.totalorder %s17, 0
    %p273 = por %p271, %p272
    %p274 = scmp.ne.s32.totalorder %s263, %s266
    %p275 = scmp.eq.s32.totalorder %s22, 1
    %p276 = por %p274, %p275
    %p277 = scmp.ne.s32.totalorder %s266, %s267
    %p278 = scmp.eq.s32.totalorder %s22, 0
    %p279 = por %p277, %p278
    %p280 = scmp.ne.s32.totalorder %s266, %s267
    %p281 = scmp.eq.s32.totalorder %s23, 1
    %p282 = por %p280, %p281
    %p284 = scmp.ne.s32.totalorder %s267, %s283
    %p285 = scmp.eq.s32.totalorder %s23, 0
    %p286 = por %p284, %p285
    %p287 = scmp.le.s32.totalorder 1, %s17
    %p288 = scmp.lt.s32.totalorder %s17, 3
    %p289 = pnand %p287, %p288
    %p290 = pneg %p289
    // Predicated region
    $region9: #{transformer_forward.5} parent=5 // pred_check
      _
    $region10: #{transformer_forward.5} parent=5 // pred_check_branch
      %292 = sbr.rel (%p289) target = $region12
    $region11: #{transformer_forward.5} parent=5 // pred_region
      %s293 = ssub.s32 %s17, 1
      // Predicated region
      $region13: #{transformer_forward.5} parent=11 // pred_check
        %p294 = pneg %p64
      $region14: #{transformer_forward.5} parent=11 // pred_check_branch
        %296 = sbr.rel (%p294) target = $region16
      $region15: #{transformer_forward.5} parent=11 // pred_region
        _
      $region16: #{transformer_forward.5} parent=11 // pred_fallthru
        _
      // Predicated region
      $region17: #{transformer_forward.5} parent=11 // pred_check
        %p297 = pneg %p85
      $region18: #{transformer_forward.5} parent=11 // pred_check_branch
        %299 = sbr.rel (%p297) target = $region20
      $region19: #{transformer_forward.5} parent=11 // pred_region
        _
      $region20: #{transformer_forward.5} parent=11 // pred_fallthru
        _
      // Predicated region
      $region21: #{transformer_forward.5} parent=11 // pred_check
        %p300 = pneg %p106
      $region22: #{transformer_forward.5} parent=11 // pred_check_branch
        %302 = sbr.rel (%p300) target = $region24
      $region23: #{transformer_forward.5} parent=11 // pred_region
        _
      $region24: #{transformer_forward.5} parent=11 // pred_fallthru
        _
      // Predicated region
      $region25: #{transformer_forward.5} parent=11 // pred_check
        %p303 = pneg %p127
      $region26: #{transformer_forward.5} parent=11 // pred_check_branch
        %305 = sbr.rel (%p303) target = $region28
      $region27: #{transformer_forward.5} parent=11 // pred_region
        _
      $region28: #{transformer_forward.5} parent=11 // pred_fallthru
        _
      // Predicated region
      $region29: #{transformer_forward.5} parent=11 // pred_check
        %p306 = pneg %p148
      $region30: #{transformer_forward.5} parent=11 // pred_check_branch
        %308 = sbr.rel (%p306) target = $region32
      $region31: #{transformer_forward.5} parent=11 // pred_region
        _
      $region32: #{transformer_forward.5} parent=11 // pred_fallthru
        _
      // Predicated region
      $region33: #{transformer_forward.5} parent=11 // pred_check
        %p309 = pneg %p169
      $region34: #{transformer_forward.5} parent=11 // pred_check_branch
        %311 = sbr.rel (%p309) target = $region36
      $region35: #{transformer_forward.5} parent=11 // pred_region
        _
      $region36: #{transformer_forward.5} parent=11 // pred_fallthru
        _
      // Predicated region
      $region37: #{transformer_forward.5} parent=11 // pred_check
        %p312 = pneg %p190
      $region38: #{transformer_forward.5} parent=11 // pred_check_branch
        %314 = sbr.rel (%p312) target = $region40
      $region39: #{transformer_forward.5} parent=11 // pred_region
        _
      $region40: #{transformer_forward.5} parent=11 // pred_fallthru
        _
      // Predicated region
      $region41: #{transformer_forward.5} parent=11 // pred_check
        %p315 = pneg %p211
      $region42: #{transformer_forward.5} parent=11 // pred_check_branch
        %317 = sbr.rel (%p315) target = $region44
      $region43: #{transformer_forward.5} parent=11 // pred_region
        _
      $region44: #{transformer_forward.5} parent=11 // pred_fallthru
        _
      // Predicated region
      $region45: #{transformer_forward.5} parent=11 // pred_check
        %p318 = pneg %p232
      $region46: #{transformer_forward.5} parent=11 // pred_check_branch
        %320 = sbr.rel (%p318) target = $region48
      $region47: #{transformer_forward.5} parent=11 // pred_region
        _
      $region48: #{transformer_forward.5} parent=11 // pred_fallthru
        _
      // Predicated region
      $region49: #{transformer_forward.5} parent=11 // pred_check
        %p321 = pneg %p253
      $region50: #{transformer_forward.5} parent=11 // pred_check_branch
        %323 = sbr.rel (%p321) target = $region52
      $region51: #{transformer_forward.5} parent=11 // pred_region
        _
      $region52: #{transformer_forward.5} parent=11 // pred_fallthru
        _
    $region12: #{transformer_forward.5} parent=5 // pred_fallthru
      _
    %p324 = scmp.lt.s32.totalorder %s17, 2
    // Predicated region
    $region53: #{transformer_forward.5} parent=5 // pred_check
      %p325 = pneg %p324
    $region54: #{transformer_forward.5} parent=5 // pred_check_branch
      %327 = sbr.rel (%p325) target = $region56
    $region55: #{transformer_forward.5} parent=5 // pred_region
      // Predicated region
      $region57: #{transformer_forward.5} parent=55 // pred_check
        %p328 = pneg %p37
      $region58: #{transformer_forward.5} parent=55 // pred_check_branch
        %330 = sbr.rel (%p328) target = $region60
      $region59: #{transformer_forward.5} parent=55 // pred_region
        %p331 = scmp.lt.s32.totalorder %s17, 1
        %s332 = scalar_select %p331, %s17, 1
        %s333 = smul.addr %s332, 8
        %s334 = scalar_lea.vmem %s0, %s333
      $region60: #{transformer_forward.5} parent=55 // pred_fallthru
        _
    $region56: #{transformer_forward.5} parent=5 // pred_fallthru
      _
    %p335 = scmp.le.s32.totalorder 1, %s17
    %p336 = scmp.lt.s32.totalorder %s17, 3
    %p337 = pnand %p335, %p336
    %p338 = pneg %p337
    // Predicated region
    $region61: #{transformer_forward.5} parent=5 // pred_check
      _
    $region62: #{transformer_forward.5} parent=5 // pred_check_branch
      %340 = sbr.rel (%p337) target = $region64
    $region63: #{transformer_forward.5} parent=5 // pred_region
      %s341 = ssub.s32 %s17, 1
      %p342 = scmp.lt.s32.totalorder %s22, 1
      %s343 = scalar_select %p342, %s22, 1
      %s344 = smul.addr %s343, 8
      %s345 = scalar_lea.vmem %s0, %s344
      %p346 = pneg %p43
      %p347 = pneg %p40
      %p348 = pneg %p64
      %p349 = pneg %p61
      %p350 = pneg %p85
      %p351 = pneg %p82
      %p352 = pneg %p106
      %p353 = pneg %p103
      %p354 = pneg %p127
      %p355 = pneg %p124
      %p356 = pneg %p148
      %p357 = pneg %p145
      %p358 = pneg %p169
      %p359 = pneg %p166
      %p360 = pneg %p190
      %p361 = pneg %p187
      %p362 = pneg %p211
      %p363 = pneg %p208
      %p364 = pneg %p232
      %p365 = pneg %p229
      %p366 = pneg %p253
      %p367 = pneg %p250
      %p368 = pneg %p279
      %p369 = pneg %p276
      %p370 = scmp.lt.s32.totalorder %s22, 1
      %s371 = scalar_select %p370, %s22, 1
      %s372 = smul.addr %s371, 8
      %s373 = scalar_lea.vmem %s11, %s372
      %p374 = scmp.lt.s32.totalorder %s22, 1
      %s375 = scalar_select %p374, %s22, 1
      %s376 = smul.addr %s375, 8
      %s377 = scalar_lea.vmem %s0, %s376
      %p378 = scmp.lt.s32.totalorder %s22, 1
      %s379 = scalar_select %p378, %s22, 1
      %s380 = smul.addr %s379, 8
      %s381 = scalar_lea.vmem %s11, %s380
      %v383 = vld [vmem:[%s377] sm:$0xff]
      %v384 = vld [vmem:[%s1] sm:$0xf]
      %v385 = vld [vmem:[%s1 + $0x4] sm:$0xf]
      %v386 = vld [vmem:[%s1 + $0x8] sm:$0xf]
      %v387 = vld [vmem:[%s1 + $0xc] sm:$0xf]
      %v388 = vld [vmem:[%s1 + $0x10] sm:$0xf]
      %v389 = vld [vmem:[%s1 + $0x14] sm:$0xf]
      %v390 = vld [vmem:[%s1 + $0x18] sm:$0xf]
      %v391 = vld [vmem:[%s1 + $0x1c] sm:$0xf]
      %v392 = vld [vmem:[%s1 + $0x20] sm:$0xf]
      %v393 = vld [vmem:[%s1 + $0x24] sm:$0xf]
      %v394 = vld [vmem:[%s1 + $0x28] sm:$0xf]
      %v395 = vld [vmem:[%s1 + $0x2c] sm:$0xf]
      %v396 = vld [vmem:[%s1 + $0x30] sm:$0xf]
      %v397 = vld [vmem:[%s1 + $0x34] sm:$0xf]
      %v398 = vld [vmem:[%s1 + $0x38] sm:$0xf]
      %v399 = vld [vmem:[%s1 + $0x3c] sm:$0xf]
      %v400 = vld [vmem:[%s1 + $0x40] sm:$0xf]
      %v401 = vld [vmem:[%s1 + $0x44] sm:$0xf]
      %v402 = vld [vmem:[%s1 + $0x48] sm:$0xf]
      %v403 = vld [vmem:[%s1 + $0x4c] sm:$0xf]
      %v404 = vld [vmem:[%s1 + $0x50] sm:$0xf]
      %v405 = vld [vmem:[%s1 + $0x54] sm:$0xf]
      %v406 = vld [vmem:[%s1 + $0x58] sm:$0xf]
      %v407 = vld [vmem:[%s1 + $0x5c] sm:$0xf]
      %v408 = vld [vmem:[%s1 + $0x60] sm:$0xf]
      %v409 = vld [vmem:[%s1 + $0x64] sm:$0xf]
      %v410 = vld [vmem:[%s1 + $0x68] sm:$0xf]
      %v411 = vld [vmem:[%s1 + $0x6c] sm:$0xf]
      %v412 = vld [vmem:[%s1 + $0x70] sm:$0xf]
      %v413 = vld [vmem:[%s1 + $0x74] sm:$0xf]
      %v414 = vld [vmem:[%s1 + $0x78] sm:$0xf]
      %v415 = vld [vmem:[%s1 + $0x7c] sm:$0xf]
      %v416 = vld [vmem:[%s1 + $0x80] sm:$0xf]
      %v417 = vld [vmem:[%s1 + $0x84] sm:$0xf]
      %v418 = vld [vmem:[%s1 + $0x88] sm:$0xf]
      %v419 = vld [vmem:[%s1 + $0x8c] sm:$0xf]
      %v420 = vld [vmem:[%s1 + $0x90] sm:$0xf]
      %v421 = vld [vmem:[%s1 + $0x94] sm:$0xf]
      %v422 = vld [vmem:[%s1 + $0x98] sm:$0xf]
      %v423 = vld [vmem:[%s1 + $0x9c] sm:$0xf]
      %v424 = vld [vmem:[%s1 + $0xa0] sm:$0xf]
      %v425 = vld [vmem:[%s1 + $0xa4] sm:$0xf]
      %v426 = vld [vmem:[%s1 + $0xa8] sm:$0xf]
      %v427 = vld [vmem:[%s1 + $0xac] sm:$0xf]
      %v428 = vld [vmem:[%s1 + $0xb0] sm:$0xf]
      %v429 = vld [vmem:[%s1 + $0xb4] sm:$0xf]
      %v430 = vld [vmem:[%s1 + $0xb8] sm:$0xf]
      %v431 = vld [vmem:[%s1 + $0xbc] sm:$0xf]
      %v432 = vld [vmem:[%s2] sm:$0x1]
      %v433 = vld [vmem:[%s2 + $0x1] sm:$0x1]
      %v434 = vld [vmem:[%s2 + $0x2] sm:$0x1]
      %v435 = vld [vmem:[%s2 + $0x3] sm:$0x1]
      %v436 = vld [vmem:[%s2 + $0x4] sm:$0x1]
      %v437 = vld [vmem:[%s2 + $0x5] sm:$0x1]
      %v438 = vld [vmem:[%s2 + $0x6] sm:$0x1]
      %v439 = vld [vmem:[%s2 + $0x7] sm:$0x1]
      %v440 = vld [vmem:[%s2 + $0x8] sm:$0x1]
      %v441 = vld [vmem:[%s2 + $0x9] sm:$0x1]
      %v442 = vld [vmem:[%s2 + $0xa] sm:$0x1]
      %v443 = vld [vmem:[%s2 + $0xb] sm:$0x1]
      %v444 = vld [vmem:[%s3] sm:$0xf]
      %v445 = vld [vmem:[%s3 + $0x4] sm:$0xf]
      %v446 = vld [vmem:[%s3 + $0x8] sm:$0xf]
      %v447 = vld [vmem:[%s3 + $0xc] sm:$0xf]
      %v448 = vld [vmem:[%s4] sm:$0x1]
      %v449 = vpack.c.bf16 %v383, %v383
      %v454 = vlaneseq
      %v455 = vshrl.u32 %v454, 7
      %v456 = vsub.s32 0, %v455
      %v457 = vrot.slane %v432, %v456
      %v458 = vlaneseq
      %v459 = vshrl.u32 %v458, 7
      %v460 = vsub.s32 0, %v459
      %v461 = vrot.slane %v433, %v460
      %v462 = vlaneseq
      %v463 = vshrl.u32 %v462, 7
      %v464 = vsub.s32 0, %v463
      %v465 = vrot.slane %v434, %v464
      %v466 = vlaneseq
      %v467 = vshrl.u32 %v466, 7
      %v468 = vsub.s32 0, %v467
      %v469 = vrot.slane %v435, %v468
      %v478 = vunpack.c.l.b16 %v384
      %v479 = vunpack.c.l.b16 %v385
      %v480 = vunpack.c.l.b16 %v386
      %v481 = vunpack.c.l.b16 %v387
      %v482 = vpack.c.b16 %v479, %v478
      %v483 = vpack.c.b16 %v481, %v480
      %vm486 = vcmask 261120
      %v488 = vsel %vm486, %v449, 0
      %490 = vmatprep.subr.bf16.mxu0 0
      %491 = vmatpush1.bf16.msra.mxu0 %v482
      %492 = vmatprep.subr.bf16.mxu0 0
      %493 = vmatpush1.bf16.msra.mxu0 %v483
      %494 = vmatprep.subr.bf16.mxu0 0
      %495 = vmatpush1.bf16.msra.mxu0 0
      %496 = vmatprep.subr.bf16.mxu0 0
      %497 = vmatpush1.bf16.msra.mxu0 0
      %498 = vmatprep.subr.bf16.mxu0 0
      %499 = vmatpush1.bf16.msra.mxu0 0
      %500 = vmatprep.subr.bf16.mxu0 0
      %501 = vmatpush1.bf16.msra.mxu0 0
      %502 = vmatprep.subr.bf16.mxu0 0
      %503 = vmatpush1.bf16.msra.mxu0 0
      %504 = vmatprep.subr.bf16.mxu0 0
      %505 = vmatpush1.bf16.msra.mxu0 0
      %506 = vmatprep.subr.bf16.mxu0 0
      %507 = vmatpush1.bf16.msra.mxu0 0
      %508 = vmatprep.subr.bf16.mxu0 0
      %509 = vmatpush1.bf16.msra.mxu0 0
      %510 = vmatprep.subr.bf16.mxu0 0
      %511 = vmatpush1.bf16.msra.mxu0 0
      %512 = vmatprep.subr.bf16.mxu0 0
      %513 = vmatpush1.bf16.msra.mxu0 0
      %514 = vmatprep.subr.bf16.mxu0 0
      %515 = vmatpush1.bf16.msra.mxu0 0
      %516 = vmatprep.subr.bf16.mxu0 0
      %517 = vmatpush1.bf16.msra.mxu0 0
      %518 = vmatprep.subr.bf16.mxu0 0
      %519 = vmatpush1.bf16.msra.mxu0 0
      %520 = vmatprep.subr.bf16.mxu0 0
      %521 = vmatpush1.bf16.msra.mxu0 0
      %522 = vmatprep.mubr.bf16.mxu0 0
      %523 = vmatmul.mubr.bf16.gmra.mrb[0].mxu0 %v488
      %v524 = vpop.f32.mrb[0].mxu0
      %v525 = vadd.f32 %v457, %v524
      %v526 = vpop.f32.mrb[0].mxu0
      %v527 = vpop.f32.mrb[0].mxu0
      %v528 = vpop.f32.mrb[0].mxu0
      %529 = vdwg.mxu0
      %v534 = vunpack.c.l.b16 %v388
      %v535 = vunpack.c.l.b16 %v389
      %v536 = vunpack.c.l.b16 %v390
      %v537 = vunpack.c.l.b16 %v391
      %v538 = vpack.c.b16 %v535, %v534
      %v539 = vpack.c.b16 %v537, %v536
      %542 = vmatprep.subr.bf16.mxu0 0
      %543 = vmatpush1.bf16.msra.mxu0 %v538
      %544 = vmatprep.subr.bf16.mxu0 0
      %545 = vmatpush1.bf16.msra.mxu0 %v539
      %546 = vmatprep.subr.bf16.mxu0 0
      %547 = vmatpush1.bf16.msra.mxu0 0
      %548 = vmatprep.subr.bf16.mxu0 0
      %549 = vmatpush1.bf16.msra.mxu0 0
      %550 = vmatprep.subr.bf16.mxu0 0
      %551 = vmatpush1.bf16.msra.mxu0 0
      %552 = vmatprep.subr.bf16.mxu0 0
      %553 = vmatpush1.bf16.msra.mxu0 0
      %554 = vmatprep.subr.bf16.mxu0 0
      %555 = vmatpush1.bf16.msra.mxu0 0
      %556 = vmatprep.subr.bf16.mxu0 0
      %557 = vmatpush1.bf16.msra.mxu0 0
      %558 = vmatprep.subr.bf16.mxu0 0
      %559 = vmatpush1.bf16.msra.mxu0 0
      %560 = vmatprep.subr.bf16.mxu0 0
      %561 = vmatpush1.bf16.msra.mxu0 0
      %562 = vmatprep.subr.bf16.mxu0 0
      %563 = vmatpush1.bf16.msra.mxu0 0
      %564 = vmatprep.subr.bf16.mxu0 0
      %565 = vmatpush1.bf16.msra.mxu0 0
      %566 = vmatprep.subr.bf16.mxu0 0
      %567 = vmatpush1.bf16.msra.mxu0 0
      %568 = vmatprep.subr.bf16.mxu0 0
      %569 = vmatpush1.bf16.msra.mxu0 0
      %570 = vmatprep.subr.bf16.mxu0 0
      %571 = vmatpush1.bf16.msra.mxu0 0
      %572 = vmatprep.subr.bf16.mxu0 0
      %573 = vmatpush1.bf16.msra.mxu0 0
      %574 = vmatprep.mubr.bf16.mxu0 0
      %575 = vmatmul.mubr.bf16.gmra.mrb[0].mxu0 %v488
      %v576 = vpop.f32.mrb[0].mxu0
      %v577 = vadd.f32 %v461, %v576
      %v578 = vpop.f32.mrb[0].mxu0
      %v579 = vpop.f32.mrb[0].mxu0
      %v580 = vpop.f32.mrb[0].mxu0
      %581 = vdwg.mxu0
      %v586 = vunpack.c.l.b16 %v392
      %v587 = vunpack.c.l.b16 %v393
      %v588 = vunpack.c.l.b16 %v394
      %v589 = vunpack.c.l.b16 %v395
      %v590 = vpack.c.b16 %v587, %v586
      %v591 = vpack.c.b16 %v589, %v588
      %594 = vmatprep.subr.bf16.mxu0 0
      %595 = vmatpush1.bf16.msra.mxu0 %v590
      %596 = vmatprep.subr.bf16.mxu0 0
      %597 = vmatpush1.bf16.msra.mxu0 %v591
      %598 = vmatprep.subr.bf16.mxu0 0
      %599 = vmatpush1.bf16.msra.mxu0 0
      %600 = vmatprep.subr.bf16.mxu0 0
      %601 = vmatpush1.bf16.msra.mxu0 0
      %602 = vmatprep.subr.bf16.mxu0 0
      %603 = vmatpush1.bf16.msra.mxu0 0
      %604 = vmatprep.subr.bf16.mxu0 0
      %605 = vmatpush1.bf16.msra.mxu0 0
      %606 = vmatprep.subr.bf16.mxu0 0
      %607 = vmatpush1.bf16.msra.mxu0 0
      %608 = vmatprep.subr.bf16.mxu0 0
      %609 = vmatpush1.bf16.msra.mxu0 0
      %610 = vmatprep.subr.bf16.mxu0 0
      %611 = vmatpush1.bf16.msra.mxu0 0
      %612 = vmatprep.subr.bf16.mxu0 0
      %613 = vmatpush1.bf16.msra.mxu0 0
      %614 = vmatprep.subr.bf16.mxu0 0
      %615 = vmatpush1.bf16.msra.mxu0 0
      %616 = vmatprep.subr.bf16.mxu0 0
      %617 = vmatpush1.bf16.msra.mxu0 0
      %618 = vmatprep.subr.bf16.mxu0 0
      %619 = vmatpush1.bf16.msra.mxu0 0
      %620 = vmatprep.subr.bf16.mxu0 0
      %621 = vmatpush1.bf16.msra.mxu0 0
      %622 = vmatprep.subr.bf16.mxu0 0
      %623 = vmatpush1.bf16.msra.mxu0 0
      %624 = vmatprep.subr.bf16.mxu0 0
      %625 = vmatpush1.bf16.msra.mxu0 0
      %626 = vmatprep.mubr.bf16.mxu0 0
      %627 = vmatmul.mubr.bf16.gmra.mrb[0].mxu0 %v488
      %v628 = vpop.f32.mrb[0].mxu0
      %v629 = vadd.f32 %v465, %v628
      %v630 = vpop.f32.mrb[0].mxu0
      %v631 = vpop.f32.mrb[0].mxu0
      %v632 = vpop.f32.mrb[0].mxu0
      %633 = vdwg.mxu0
      %v638 = vunpack.c.l.b16 %v396
      %v639 = vunpack.c.l.b16 %v397
      %v640 = vunpack.c.l.b16 %v398
      %v641 = vunpack.c.l.b16 %v399
      %v642 = vpack.c.b16 %v639, %v638
      %v643 = vpack.c.b16 %v641, %v640
      %646 = vmatprep.subr.bf16.mxu0 0
      %647 = vmatpush1.bf16.msra.mxu0 %v642
      %648 = vmatprep.subr.bf16.mxu0 0
      %649 = vmatpush1.bf16.msra.mxu0 %v643
      %650 = vmatprep.subr.bf16.mxu0 0
      %651 = vmatpush1.bf16.msra.mxu0 0
      %652 = vmatprep.subr.bf16.mxu0 0
      %653 = vmatpush1.bf16.msra.mxu0 0
      %654 = vmatprep.subr.bf16.mxu0 0
      %655 = vmatpush1.bf16.msra.mxu0 0
      %656 = vmatprep.subr.bf16.mxu0 0
      %657 = vmatpush1.bf16.msra.mxu0 0
      %658 = vmatprep.subr.bf16.mxu0 0
      %659 = vmatpush1.bf16.msra.mxu0 0
      %660 = vmatprep.subr.bf16.mxu0 0
      %661 = vmatpush1.bf16.msra.mxu0 0
      %662 = vmatprep.subr.bf16.mxu0 0
      %663 = vmatpush1.bf16.msra.mxu0 0
      %664 = vmatprep.subr.bf16.mxu0 0
      %665 = vmatpush1.bf16.msra.mxu0 0
      %666 = vmatprep.subr.bf16.mxu0 0
      %667 = vmatpush1.bf16.msra.mxu0 0
      %668 = vmatprep.subr.bf16.mxu0 0
      %669 = vmatpush1.bf16.msra.mxu0 0
      %670 = vmatprep.subr.bf16.mxu0 0
      %671 = vmatpush1.bf16.msra.mxu0 0
      %672 = vmatprep.subr.bf16.mxu0 0
      %673 = vmatpush1.bf16.msra.mxu0 0
      %674 = vmatprep.subr.bf16.mxu0 0
      %675 = vmatpush1.bf16.msra.mxu0 0
      %676 = vmatprep.subr.bf16.mxu0 0
      %677 = vmatpush1.bf16.msra.mxu0 0
      %678 = vmatprep.mubr.bf16.mxu0 0
      %679 = vmatmul.mubr.bf16.gmra.mrb[0].mxu0 %v488
      %v680 = vpop.f32.mrb[0].mxu0
      %v681 = vadd.f32 %v469, %v680
      %v682 = vpop.f32.mrb[0].mxu0
      %v683 = vpop.f32.mrb[0].mxu0
      %v684 = vpop.f32.mrb[0].mxu0
      %685 = vdwg.mxu0
      %v690 = vlaneseq
      %v691 = vshrl.u32 %v690, 7
      %v692 = vsub.s32 0, %v691
      %v693 = vrot.slane %v436, %v692
      %v694 = vlaneseq
      %v695 = vshrl.u32 %v694, 7
      %v696 = vsub.s32 0, %v695
      %v697 = vrot.slane %v437, %v696
      %v698 = vlaneseq
      %v699 = vshrl.u32 %v698, 7
      %v700 = vsub.s32 0, %v699
      %v701 = vrot.slane %v438, %v700
      %v702 = vlaneseq
      %v703 = vshrl.u32 %v702, 7
      %v704 = vsub.s32 0, %v703
      %v705 = vrot.slane %v439, %v704
      %v714 = vunpack.c.l.b16 %v400
      %v715 = vunpack.c.l.b16 %v401
      %v716 = vunpack.c.l.b16 %v402
      %v717 = vunpack.c.l.b16 %v403
      %v718 = vpack.c.b16 %v715, %v714
      %v719 = vpack.c.b16 %v717, %v716
      %722 = vmatprep.subr.bf16.mxu0 0
      %723 = vmatpush1.bf16.msra.mxu0 %v718
      %724 = vmatprep.subr.bf16.mxu0 0
      %725 = vmatpush1.bf16.msra.mxu0 %v719
      %726 = vmatprep.subr.bf16.mxu0 0
      %727 = vmatpush1.bf16.msra.mxu0 0
      %728 = vmatprep.subr.bf16.mxu0 0
      %729 = vmatpush1.bf16.msra.mxu0 0
      %730 = vmatprep.subr.bf16.mxu0 0
      %731 = vmatpush1.bf16.msra.mxu0 0
      %732 = vmatprep.subr.bf16.mxu0 0
      %733 = vmatpush1.bf16.msra.mxu0 0
      %734 = vmatprep.subr.bf16.mxu0 0
      %735 = vmatpush1.bf16.msra.mxu0 0
      %736 = vmatprep.subr.bf16.mxu0 0
      %737 = vmatpush1.bf16.msra.mxu0 0
      %738 = vmatprep.subr.bf16.mxu0 0
      %739 = vmatpush1.bf16.msra.mxu0 0
      %740 = vmatprep.subr.bf16.mxu0 0
      %741 = vmatpush1.bf16.msra.mxu0 0
      %742 = vmatprep.subr.bf16.mxu0 0
      %743 = vmatpush1.bf16.msra.mxu0 0
      %744 = vmatprep.subr.bf16.mxu0 0
      %745 = vmatpush1.bf16.msra.mxu0 0
      %746 = vmatprep.subr.bf16.mxu0 0
      %747 = vmatpush1.bf16.msra.mxu0 0
      %748 = vmatprep.subr.bf16.mxu0 0
      %749 = vmatpush1.bf16.msra.mxu0 0
      %750 = vmatprep.subr.bf16.mxu0 0
      %751 = vmatpush1.bf16.msra.mxu0 0
      %752 = vmatprep.subr.bf16.mxu0 0
      %753 = vmatpush1.bf16.msra.mxu0 0
      %754 = vmatprep.mubr.bf16.mxu0 0
      %755 = vmatmul.mubr.bf16.gmra.mrb[0].mxu0 %v488
      %v756 = vpop.f32.mrb[0].mxu0
      %v757 = vadd.f32 %v693, %v756
      %v758 = vpop.f32.mrb[0].mxu0
      %v759 = vpop.f32.mrb[0].mxu0
      %v760 = vpop.f32.mrb[0].mxu0
      %761 = vdwg.mxu0
      %v766 = vunpack.c.l.b16 %v404
      %v767 = vunpack.c.l.b16 %v405
      %v768 = vunpack.c.l.b16 %v406
      %v769 = vunpack.c.l.b16 %v407
      %v770 = vpack.c.b16 %v767, %v766
      %v771 = vpack.c.b16 %v769, %v768
      %774 = vmatprep.subr.bf16.mxu0 0
      %775 = vmatpush1.bf16.msra.mxu0 %v770
      %776 = vmatprep.subr.bf16.mxu0 0
      %777 = vmatpush1.bf16.msra.mxu0 %v771
      %778 = vmatprep.subr.bf16.mxu0 0
      %779 = vmatpush1.bf16.msra.mxu0 0
      %780 = vmatprep.subr.bf16.mxu0 0
      %781 = vmatpush1.bf16.msra.mxu0 0
      %782 = vmatprep.subr.bf16.mxu0 0
      %783 = vmatpush1.bf16.msra.mxu0 0
      %784 = vmatprep.subr.bf16.mxu0 0
      %785 = vmatpush1.bf16.msra.mxu0 0
      %786 = vmatprep.subr.bf16.mxu0 0
      %787 = vmatpush1.bf16.msra.mxu0 0
      %788 = vmatprep.subr.bf16.mxu0 0
      %789 = vmatpush1.bf16.msra.mxu0 0
      %790 = vmatprep.subr.bf16.mxu0 0
      %791 = vmatpush1.bf16.msra.mxu0 0
      %792 = vmatprep.subr.bf16.mxu0 0
      %793 = vmatpush1.bf16.msra.mxu0 0
      %794 = vmatprep.subr.bf16.mxu0 0
      %795 = vmatpush1.bf16.msra.mxu0 0
      %796 = vmatprep.subr.bf16.mxu0 0
      %797 = vmatpush1.bf16.msra.mxu0 0
      %798 = vmatprep.subr.bf16.mxu0 0
      %799 = vmatpush1.bf16.msra.mxu0 0
      %800 = vmatprep.subr.bf16.mxu0 0
      %801 = vmatpush1.bf16.msra.mxu0 0
      %802 = vmatprep.subr.bf16.mxu0 0
      %803 = vmatpush1.bf16.msra.mxu0 0
      %804 = vmatprep.subr.bf16.mxu0 0
      %805 = vmatpush1.bf16.msra.mxu0 0
      %806 = vmatprep.mubr.bf16.mxu0 0
      %807 = vmatmul.mubr.bf16.gmra.mrb[0].mxu0 %v488
      %v808 = vpop.f32.mrb[0].mxu0
      %v809 = vadd.f32 %v697, %v808
      %v810 = vpop.f32.mrb[0].mxu0
      %v811 = vpop.f32.mrb[0].mxu0
      %v812 = vpop.f32.mrb[0].mxu0
      %813 = vdwg.mxu0
      %v818 = vunpack.c.l.b16 %v408
      %v819 = vunpack.c.l.b16 %v409
      %v820 = vunpack.c.l.b16 %v410
      %v821 = vunpack.c.l.b16 %v411
      %v822 = vpack.c.b16 %v819, %v818
      %v823 = vpack.c.b16 %v821, %v820
      %826 = vmatprep.subr.bf16.mxu0 0
      %827 = vmatpush1.bf16.msra.mxu0 %v822
      %828 = vmatprep.subr.bf16.mxu0 0
      %829 = vmatpush1.bf16.msra.mxu0 %v823
      %830 = vmatprep.subr.bf16.mxu0 0
      %831 = vmatpush1.bf16.msra.mxu0 0
      %832 = vmatprep.subr.bf16.mxu0 0
      %833 = vmatpush1.bf16.msra.mxu0 0
      %834 = vmatprep.subr.bf16.mxu0 0
      %835 = vmatpush1.bf16.msra.mxu0 0
      %836 = vmatprep.subr.bf16.mxu0 0
      %837 = vmatpush1.bf16.msra.mxu0 0
      %838 = vmatprep.subr.bf16.mxu0 0
      %839 = vmatpush1.bf16.msra.mxu0 0
      %840 = vmatprep.subr.bf16.mxu0 0
      %841 = vmatpush1.bf16.msra.mxu0 0
      %842 = vmatprep.subr.bf16.mxu0 0
      %843 = vmatpush1.bf16.msra.mxu0 0
      %844 = vmatprep.subr.bf16.mxu0 0
      %845 = vmatpush1.bf16.msra.mxu0 0
      %846 = vmatprep.subr.bf16.mxu0 0
      %847 = vmatpush1.bf16.msra.mxu0 0
      %848 = vmatprep.subr.bf16.mxu0 0
      %849 = vmatpush1.bf16.msra.mxu0 0
      %850 = vmatprep.subr.bf16.mxu0 0
      %851 = vmatpush1.bf16.msra.mxu0 0
      %852 = vmatprep.subr.bf16.mxu0 0
      %853 = vmatpush1.bf16.msra.mxu0 0
      %854 = vmatprep.subr.bf16.mxu0 0
      %855 = vmatpush1.bf16.msra.mxu0 0
      %856 = vmatprep.subr.bf16.mxu0 0
      %857 = vmatpush1.bf16.msra.mxu0 0
      %858 = vmatprep.mubr.bf16.mxu0 0
      %859 = vmatmul.mubr.bf16.gmra.mrb[0].mxu0 %v488
      %v860 = vpop.f32.mrb[0].mxu0
      %v861 = vadd.f32 %v701, %v860
      %v862 = vpop.f32.mrb[0].mxu0
      %v863 = vpop.f32.mrb[0].mxu0
      %v864 = vpop.f32.mrb[0].mxu0
      %865 = vdwg.mxu0
      %v870 = vunpack.c.l.b16 %v412
      %v871 = vunpack.c.l.b16 %v413
      %v872 = vunpack.c.l.b16 %v414
      %v873 = vunpack.c.l.b16 %v415
      %v874 = vpack.c.b16 %v871, %v870
      %v875 = vpack.c.b16 %v873, %v872
      %878 = vmatprep.subr.bf16.mxu0 0
      %879 = vmatpush1.bf16.msra.mxu0 %v874
      %880 = vmatprep.subr.bf16.mxu0 0
      %881 = vmatpush1.bf16.msra.mxu0 %v875
      %882 = vmatprep.subr.bf16.mxu0 0
      %883 = vmatpush1.bf16.msra.mxu0 0
      %884 = vmatprep.subr.bf16.mxu0 0
      %885 = vmatpush1.bf16.msra.mxu0 0
      %886 = vmatprep.subr.bf16.mxu0 0
      %887 = vmatpush1.bf16.msra.mxu0 0
      %888 = vmatprep.subr.bf16.mxu0 0
      %889 = vmatpush1.bf16.msra.mxu0 0
      %890 = vmatprep.subr.bf16.mxu0 0
      %891 = vmatpush1.bf16.msra.mxu0 0
      %892 = vmatprep.subr.bf16.mxu0 0
      %893 = vmatpush1.bf16.msra.mxu0 0
      %894 = vmatprep.subr.bf16.mxu0 0
      %895 = vmatpush1.bf16.msra.mxu0 0
      %896 = vmatprep.subr.bf16.mxu0 0
      %897 = vmatpush1.bf16.msra.mxu0 0
      %898 = vmatprep.subr.bf16.mxu0 0
      %899 = vmatpush1.bf16.msra.mxu0 0
      %900 = vmatprep.subr.bf16.mxu0 0
      %901 = vmatpush1.bf16.msra.mxu0 0
      %902 = vmatprep.subr.bf16.mxu0 0
      %903 = vmatpush1.bf16.msra.mxu0 0
      %904 = vmatprep.subr.bf16.mxu0 0
      %905 = vmatpush1.bf16.msra.mxu0 0
      %906 = vmatprep.subr.bf16.mxu0 0
      %907 = vmatpush1.bf16.msra.mxu0 0
      %908 = vmatprep.subr.bf16.mxu0 0
      %909 = vmatpush1.bf16.msra.mxu0 0
      %910 = vmatprep.mubr.bf16.mxu0 0
      %911 = vmatmul.mubr.bf16.gmra.mrb[0].mxu0 %v488
      %v912 = vpop.f32.mrb[0].mxu0
      %v913 = vadd.f32 %v705, %v912
      %v914 = vpop.f32.mrb[0].mxu0
      %v915 = vpop.f32.mrb[0].mxu0
      %v916 = vpop.f32.mrb[0].mxu0
      %917 = vdwg.mxu0
      %v922 = vlaneseq
      %v923 = vshrl.u32 %v922, 7
      %v924 = vsub.s32 0, %v923
      %v925 = vrot.slane %v440, %v924
      %v926 = vlaneseq
      %v927 = vshrl.u32 %v926, 7
      %v928 = vsub.s32 0, %v927
      %v929 = vrot.slane %v441, %v928
      %v930 = vlaneseq
      %v931 = vshrl.u32 %v930, 7
      %v932 = vsub.s32 0, %v931
      %v933 = vrot.slane %v442, %v932
      %v934 = vlaneseq
      %v935 = vshrl.u32 %v934, 7
      %v936 = vsub.s32 0, %v935
      %v937 = vrot.slane %v443, %v936
      %v946 = vunpack.c.l.b16 %v416
      %v947 = vunpack.c.l.b16 %v417
      %v948 = vunpack.c.l.b16 %v418
      %v949 = vunpack.c.l.b16 %v419
      %v950 = vpack.c.b16 %v947, %v946
      %v951 = vpack.c.b16 %v949, %v948
      %954 = vmatprep.subr.bf16.mxu0 0
      %955 = vmatpush1.bf16.msra.mxu0 %v950
      %956 = vmatprep.subr.bf16.mxu0 0
      %957 = vmatpush1.bf16.msra.mxu0 %v951
      %958 = vmatprep.subr.bf16.mxu0 0
      %959 = vmatpush1.bf16.msra.mxu0 0
      %960 = vmatprep.subr.bf16.mxu0 0
      %961 = vmatpush1.bf16.msra.mxu0 0
      %962 = vmatprep.subr.bf16.mxu0 0
      %963 = vmatpush1.bf16.msra.mxu0 0
      %964 = vmatprep.subr.bf16.mxu0 0
      %965 = vmatpush1.bf16.msra.mxu0 0
      %966 = vmatprep.subr.bf16.mxu0 0
      %967 = vmatpush1.bf16.msra.mxu0 0
      %968 = vmatprep.subr.bf16.mxu0 0
      %969 = vmatpush1.bf16.msra.mxu0 0
      %970 = vmatprep.subr.bf16.mxu0 0
      %971 = vmatpush1.bf16.msra.mxu0 0
      %972 = vmatprep.subr.bf16.mxu0 0
      %973 = vmatpush1.bf16.msra.mxu0 0
      %974 = vmatprep.subr.bf16.mxu0 0
      %975 = vmatpush1.bf16.msra.mxu0 0
      %976 = vmatprep.subr.bf16.mxu0 0
      %977 = vmatpush1.bf16.msra.mxu0 0
      %978 = vmatprep.subr.bf16.mxu0 0
      %979 = vmatpush1.bf16.msra.mxu0 0
      %980 = vmatprep.subr.bf16.mxu0 0
      %981 = vmatpush1.bf16.msra.mxu0 0
      %982 = vmatprep.subr.bf16.mxu0 0
      %983 = vmatpush1.bf16.msra.mxu0 0
      %984 = vmatprep.subr.bf16.mxu0 0
      %985 = vmatpush1.bf16.msra.mxu0 0
      %986 = vmatprep.mubr.bf16.mxu0 0
      %987 = vmatmul.mubr.bf16.gmra.mrb[0].mxu0 %v488
      %v988 = vpop.f32.mrb[0].mxu0
      %v989 = vadd.f32 %v925, %v988
      %v990 = vpop.f32.mrb[0].mxu0
      %v991 = vpop.f32.mrb[0].mxu0
      %v992 = vpop.f32.mrb[0].mxu0
      %993 = vdwg.mxu0
      %v998 = vunpack.c.l.b16 %v420
      %v999 = vunpack.c.l.b16 %v421
      %v1000 = vunpack.c.l.b16 %v422
      %v1001 = vunpack.c.l.b16 %v423
      %v1002 = vpack.c.b16 %v999, %v998
      %v1003 = vpack.c.b16 %v1001, %v1000
      %1006 = vmatprep.subr.bf16.mxu0 0
      %1007 = vmatpush1.bf16.msra.mxu0 %v1002
      %1008 = vmatprep.subr.bf16.mxu0 0
      %1009 = vmatpush1.bf16.msra.mxu0 %v1003
      %1010 = vmatprep.subr.bf16.mxu0 0
      %1011 = vmatpush1.bf16.msra.mxu0 0
      %1012 = vmatprep.subr.bf16.mxu0 0
      %1013 = vmatpush1.bf16.msra.mxu0 0
      %1014 = vmatprep.subr.bf16.mxu0 0
      %1015 = vmatpush1.bf16.msra.mxu0 0
      %1016 = vmatprep.subr.bf16.mxu0 0
      %1017 = vmatpush1.bf16.msra.mxu0 0
      %1018 = vmatprep.subr.bf16.mxu0 0
      %1019 = vmatpush1.bf16.msra.mxu0 0
      %1020 = vmatprep.subr.bf16.mxu0 0
      %1021 = vmatpush1.bf16.msra.mxu0 0
      %1022 = vmatprep.subr.bf16.mxu0 0
      %1023 = vmatpush1.bf16.msra.mxu0 0
      %1024 = vmatprep.subr.bf16.mxu0 0
      %1025 = vmatpush1.bf16.msra.mxu0 0
      %1026 = vmatprep.subr.bf16.mxu0 0
      %1027 = vmatpush1.bf16.msra.mxu0 0
      %1028 = vmatprep.subr.bf16.mxu0 0
      %1029 = vmatpush1.bf16.msra.mxu0 0
      %1030 = vmatprep.subr.bf16.mxu0 0
      %1031 = vmatpush1.bf16.msra.mxu0 0
      %1032 = vmatprep.subr.bf16.mxu0 0
      %1033 = vmatpush1.bf16.msra.mxu0 0
      %1034 = vmatprep.subr.bf16.mxu0 0
      %1035 = vmatpush1.bf16.msra.mxu0 0
      %1036 = vmatprep.subr.bf16.mxu0 0
      %1037 = vmatpush1.bf16.msra.mxu0 0
      %1038 = vmatprep.mubr.bf16.mxu0 0
      %1039 = vmatmul.mubr.bf16.gmra.mrb[0].mxu0 %v488
      %v1040 = vpop.f32.mrb[0].mxu0
      %v1041 = vadd.f32 %v929, %v1040
      %v1042 = vpop.f32.mrb[0].mxu0
      %v1043 = vpop.f32.mrb[0].mxu0
      %v1044 = vpop.f32.mrb[0].mxu0
      %1045 = vdwg.mxu0
      %v1050 = vunpack.c.l.b16 %v424
      %v1051 = vunpack.c.l.b16 %v425
      %v1052 = vunpack.c.l.b16 %v426
      %v1053 = vunpack.c.l.b16 %v427
      %v1054 = vpack.c.b16 %v1051, %v1050
      %v1055 = vpack.c.b16 %v1053, %v1052
      %1058 = vmatprep.subr.bf16.mxu0 0
      %1059 = vmatpush1.bf16.msra.mxu0 %v1054
      %1060 = vmatprep.subr.bf16.mxu0 0
      %1061 = vmatpush1.bf16.msra.mxu0 %v1055
      %1062 = vmatprep.subr.bf16.mxu0 0
      %1063 = vmatpush1.bf16.msra.mxu0 0
      %1064 = vmatprep.subr.bf16.mxu0 0
      %1065 = vmatpush1.bf16.msra.mxu0 0
      %1066 = vmatprep.subr.bf16.mxu0 0
      %1067 = vmatpush1.bf16.msra.mxu0 0
      %1068 = vmatprep.subr.bf16.mxu0 0
      %1069 = vmatpush1.bf16.msra.mxu0 0
      %1070 = vmatprep.subr.bf16.mxu0 0
      %1071 = vmatpush1.bf16.msra.mxu0 0
      %1072 = vmatprep.subr.bf16.mxu0 0
      %1073 = vmatpush1.bf16.msra.mxu0 0
      %1074 = vmatprep.subr.bf16.mxu0 0
      %1075 = vmatpush1.bf16.msra.mxu0 0
      %1076 = vmatprep.subr.bf16.mxu0 0
      %1077 = vmatpush1.bf16.msra.mxu0 0
      %1078 = vmatprep.subr.bf16.mxu0 0
      %1079 = vmatpush1.bf16.msra.mxu0 0
      %1080 = vmatprep.subr.bf16.mxu0 0
      %1081 = vmatpush1.bf16.msra.mxu0 0
      %1082 = vmatprep.subr.bf16.mxu0 0
      %1083 = vmatpush1.bf16.msra.mxu0 0
      %1084 = vmatprep.subr.bf16.mxu0 0
      %1085 = vmatpush1.bf16.msra.mxu0 0
      %1086 = vmatprep.subr.bf16.mxu0 0
      %1087 = vmatpush1.bf16.msra.mxu0 0
      %1088 = vmatprep.subr.bf16.mxu0 0
      %1089 = vmatpush1.bf16.msra.mxu0 0
      %1090 = vmatprep.mubr.bf16.mxu0 0
      %1091 = vmatmul.mubr.bf16.gmra.mrb[0].mxu0 %v488
      %v1092 = vpop.f32.mrb[0].mxu0
      %v1093 = vadd.f32 %v933, %v1092
      %v1094 = vpop.f32.mrb[0].mxu0
      %v1095 = vpop.f32.mrb[0].mxu0
      %v1096 = vpop.f32.mrb[0].mxu0
      %1097 = vdwg.mxu0
      %v1102 = vunpack.c.l.b16 %v428
      %v1103 = vunpack.c.l.b16 %v429
      %v1104 = vunpack.c.l.b16 %v430
      %v1105 = vunpack.c.l.b16 %v431
      %v1106 = vpack.c.b16 %v1103, %v1102
      %v1107 = vpack.c.b16 %v1105, %v1104
      %1110 = vmatprep.subr.bf16.mxu0 0
      %1111 = vmatpush1.bf16.msra.mxu0 %v1106
      %1112 = vmatprep.subr.bf16.mxu0 0
      %1113 = vmatpush1.bf16.msra.mxu0 %v1107
      %1114 = vmatprep.subr.bf16.mxu0 0
      %1115 = vmatpush1.bf16.msra.mxu0 0
      %1116 = vmatprep.subr.bf16.mxu0 0
      %1117 = vmatpush1.bf16.msra.mxu0 0
      %1118 = vmatprep.subr.bf16.mxu0 0
      %1119 = vmatpush1.bf16.msra.mxu0 0
      %1120 = vmatprep.subr.bf16.mxu0 0
      %1121 = vmatpush1.bf16.msra.mxu0 0
      %1122 = vmatprep.subr.bf16.mxu0 0
      %1123 = vmatpush1.bf16.msra.mxu0 0
      %1124 = vmatprep.subr.bf16.mxu0 0
      %1125 = vmatpush1.bf16.msra.mxu0 0
      %1126 = vmatprep.subr.bf16.mxu0 0
      %1127 = vmatpush1.bf16.msra.mxu0 0
      %1128 = vmatprep.subr.bf16.mxu0 0
      %1129 = vmatpush1.bf16.msra.mxu0 0
      %1130 = vmatprep.subr.bf16.mxu0 0
      %1131 = vmatpush1.bf16.msra.mxu0 0
      %1132 = vmatprep.subr.bf16.mxu0 0
      %1133 = vmatpush1.bf16.msra.mxu0 0
      %1134 = vmatprep.subr.bf16.mxu0 0
      %1135 = vmatpush1.bf16.msra.mxu0 0
      %1136 = vmatprep.subr.bf16.mxu0 0
      %1137 = vmatpush1.bf16.msra.mxu0 0
      %1138 = vmatprep.subr.bf16.mxu0 0
      %1139 = vmatpush1.bf16.msra.mxu0 0
      %1140 = vmatprep.subr.bf16.mxu0 0
      %1141 = vmatpush1.bf16.msra.mxu0 0
      %1142 = vmatprep.mubr.bf16.mxu0 0
      %1143 = vmatmul.mubr.bf16.gmra.mrb[0].mxu0 %v488
      %v1144 = vpop.f32.mrb[0].mxu0
      %v1145 = vadd.f32 %v937, %v1144
      %v1146 = vpop.f32.mrb[0].mxu0
      %v1147 = vpop.f32.mrb[0].mxu0
      %v1148 = vpop.f32.mrb[0].mxu0
      %1149 = vdwg.mxu0
      %v1150 = vmul.f32 %v525, 0.35355338
      %v1151 = vmul.f32 %v577, 0.35355338
      %v1152 = vmul.f32 %v629, 0.35355338
      %v1153 = vmul.f32 %v681, 0.35355338
      %v1154 = vpack.c.bf16 %v1150, %v1150
      %v1155 = vpack.c.bf16 %v1151, %v1151
      %v1156 = vpack.c.bf16 %v1152, %v1152
      %v1157 = vpack.c.bf16 %v1153, %v1153
      %v1158 = vpack.c.bf16 %v757, %v757
      %v1159 = vpack.c.bf16 %v809, %v809
      %v1160 = vpack.c.bf16 %v861, %v861
      %v1161 = vpack.c.bf16 %v913, %v913
      %vm1162 = vcmask 64512
      %v1164 = vsel %vm1162, %v1154, 0
      %v1167 = vsel %vm1162, %v1158, 0
      %1169 = vmatprep.subr.bf16.mxu0 0
      %1170 = vmatpush1.bf16.xpose.msra.mxu0 %v1167
      %1171 = vmatprep.subr.bf16.mxu0 0
      %1172 = vmatpush1.bf16.xpose.msra.mxu0 0
      %1173 = vmatprep.subr.bf16.mxu0 0
      %1174 = vmatpush1.bf16.xpose.msra.mxu0 0
      %1175 = vmatprep.subr.bf16.mxu0 0
      %1176 = vmatpush1.bf16.xpose.msra.mxu0 0
      %1177 = vmatprep.subr.bf16.mxu0 0
      %1178 = vmatpush1.bf16.xpose.msra.mxu0 0
      %1179 = vmatprep.subr.bf16.mxu0 0
      %1180 = vmatpush1.bf16.xpose.msra.mxu0 0
      %1181 = vmatprep.subr.bf16.mxu0 0
      %1182 = vmatpush1.bf16.xpose.msra.mxu0 0
      %1183 = vmatprep.subr.bf16.mxu0 0
      %1184 = vmatpush1.bf16.xpose.msra.mxu0 0
      %1185 = vmatprep.subr.bf16.mxu0 0
      %1186 = vmatpush1.bf16.xpose.msra.mxu0 0
      %1187 = vmatprep.subr.bf16.mxu0 0
      %1188 = vmatpush1.bf16.xpose.msra.mxu0 0
      %1189 = vmatprep.subr.bf16.mxu0 0
      %1190 = vmatpush1.bf16.xpose.msra.mxu0 0
      %1191 = vmatprep.subr.bf16.mxu0 0
      %1192 = vmatpush1.bf16.xpose.msra.mxu0 0
      %1193 = vmatprep.subr.bf16.mxu0 0
      %1194 = vmatpush1.bf16.xpose.msra.mxu0 0
      %1195 = vmatprep.subr.bf16.mxu0 0
      %1196 = vmatpush1.bf16.xpose.msra.mxu0 0
      %1197 = vmatprep.subr.bf16.mxu0 0
      %1198 = vmatpush1.bf16.xpose.msra.mxu0 0
      %1199 = vmatprep.subr.bf16.mxu0 0
      %1200 = vmatpush1.bf16.xpose.msra.mxu0 0
      %1201 = vmatprep.mubr.bf16.mxu0 0
      %1202 = vmatmul.mubr.bf16.gmra.mrb[0].mxu0 %v1164
      %v1203 = vpop.f32.mrb[0].mxu0
      %v1204 = vadd.f32 0.0, %v1203
      %v1205 = vpop.f32.mrb[0].mxu0
      %v1206 = vpop.f32.mrb[0].mxu0
      %v1207 = vpop.f32.mrb[0].mxu0
      %1208 = vdwg.mxu0
      %v1210 = vsel %vm1162, %v1155, 0
      %v1213 = vsel %vm1162, %v1159, 0
      %1215 = vmatprep.subr.bf16.mxu0 0
      %1216 = vmatpush1.bf16.xpose.msra.mxu0 %v1213
      %1217 = vmatprep.subr.bf16.mxu0 0
      %1218 = vmatpush1.bf16.xpose.msra.mxu0 0
      %1219 = vmatprep.subr.bf16.mxu0 0
      %1220 = vmatpush1.bf16.xpose.msra.mxu0 0
      %1221 = vmatprep.subr.bf16.mxu0 0
      %1222 = vmatpush1.bf16.xpose.msra.mxu0 0
      %1223 = vmatprep.subr.bf16.mxu0 0
      %1224 = vmatpush1.bf16.xpose.msra.mxu0 0
      %1225 = vmatprep.subr.bf16.mxu0 0
      %1226 = vmatpush1.bf16.xpose.msra.mxu0 0
      %1227 = vmatprep.subr.bf16.mxu0 0
      %1228 = vmatpush1.bf16.xpose.msra.mxu0 0
      %1229 = vmatprep.subr.bf16.mxu0 0
      %1230 = vmatpush1.bf16.xpose.msra.mxu0 0
      %1231 = vmatprep.subr.bf16.mxu0 0
      %1232 = vmatpush1.bf16.xpose.msra.mxu0 0
      %1233 = vmatprep.subr.bf16.mxu0 0
      %1234 = vmatpush1.bf16.xpose.msra.mxu0 0
      %1235 = vmatprep.subr.bf16.mxu0 0
      %1236 = vmatpush1.bf16.xpose.msra.mxu0 0
      %1237 = vmatprep.subr.bf16.mxu0 0
      %1238 = vmatpush1.bf16.xpose.msra.mxu0 0
      %1239 = vmatprep.subr.bf16.mxu0 0
      %1240 = vmatpush1.bf16.xpose.msra.mxu0 0
      %1241 = vmatprep.subr.bf16.mxu0 0
      %1242 = vmatpush1.bf16.xpose.msra.mxu0 0
      %1243 = vmatprep.subr.bf16.mxu0 0
      %1244 = vmatpush1.bf16.xpose.msra.mxu0 0
      %1245 = vmatprep.subr.bf16.mxu0 0
      %1246 = vmatpush1.bf16.xpose.msra.mxu0 0
      %1247 = vmatprep.mubr.bf16.mxu0 0
      %1248 = vmatmul.mubr.bf16.gmra.mrb[0].mxu0 %v1210
      %v1249 = vpop.f32.mrb[0].mxu0
      %v1250 = vadd.f32 0.0, %v1249
      %v1251 = vpop.f32.mrb[0].mxu0
      %v1252 = vpop.f32.mrb[0].mxu0
      %v1253 = vpop.f32.mrb[0].mxu0
      %1254 = vdwg.mxu0
      %v1256 = vsel %vm1162, %v1156, 0
      %v1259 = vsel %vm1162, %v1160, 0
      %1261 = vmatprep.subr.bf16.mxu0 0
      %1262 = vmatpush1.bf16.xpose.msra.mxu0 %v1259
      %1263 = vmatprep.subr.bf16.mxu0 0
      %1264 = vmatpush1.bf16.xpose.msra.mxu0 0
      %1265 = vmatprep.subr.bf16.mxu0 0
      %1266 = vmatpush1.bf16.xpose.msra.mxu0 0
      %1267 = vmatprep.subr.bf16.mxu0 0
      %1268 = vmatpush1.bf16.xpose.msra.mxu0 0
      %1269 = vmatprep.subr.bf16.mxu0 0
      %1270 = vmatpush1.bf16.xpose.msra.mxu0 0
      %1271 = vmatprep.subr.bf16.mxu0 0
      %1272 = vmatpush1.bf16.xpose.msra.mxu0 0
      %1273 = vmatprep.subr.bf16.mxu0 0
      %1274 = vmatpush1.bf16.xpose.msra.mxu0 0
      %1275 = vmatprep.subr.bf16.mxu0 0
      %1276 = vmatpush1.bf16.xpose.msra.mxu0 0
      %1277 = vmatprep.subr.bf16.mxu0 0
      %1278 = vmatpush1.bf16.xpose.msra.mxu0 0
      %1279 = vmatprep.subr.bf16.mxu0 0
      %1280 = vmatpush1.bf16.xpose.msra.mxu0 0
      %1281 = vmatprep.subr.bf16.mxu0 0
      %1282 = vmatpush1.bf16.xpose.msra.mxu0 0
      %1283 = vmatprep.subr.bf16.mxu0 0
      %1284 = vmatpush1.bf16.xpose.msra.mxu0 0
      %1285 = vmatprep.subr.bf16.mxu0 0
      %1286 = vmatpush1.bf16.xpose.msra.mxu0 0
      %1287 = vmatprep.subr.bf16.mxu0 0
      %1288 = vmatpush1.bf16.xpose.msra.mxu0 0
      %1289 = vmatprep.subr.bf16.mxu0 0
      %1290 = vmatpush1.bf16.xpose.msra.mxu0 0
      %1291 = vmatprep.subr.bf16.mxu0 0
      %1292 = vmatpush1.bf16.xpose.msra.mxu0 0
      %1293 = vmatprep.mubr.bf16.mxu0 0
      %1294 = vmatmul.mubr.bf16.gmra.mrb[0].mxu0 %v1256
      %v1295 = vpop.f32.mrb[0].mxu0
      %v1296 = vadd.f32 0.0, %v1295
      %v1297 = vpop.f32.mrb[0].mxu0
      %v1298 = vpop.f32.mrb[0].mxu0
      %v1299 = vpop.f32.mrb[0].mxu0
      %1300 = vdwg.mxu0
      %v1302 = vsel %vm1162, %v1157, 0
      %v1305 = vsel %vm1162, %v1161, 0
      %1307 = vmatprep.subr.bf16.mxu0 0
      %1308 = vmatpush1.bf16.xpose.msra.mxu0 %v1305
      %1309 = vmatprep.subr.bf16.mxu0 0
      %1310 = vmatpush1.bf16.xpose.msra.mxu0 0
      %1311 = vmatprep.subr.bf16.mxu0 0
      %1312 = vmatpush1.bf16.xpose.msra.mxu0 0
      %1313 = vmatprep.subr.bf16.mxu0 0
      %1314 = vmatpush1.bf16.xpose.msra.mxu0 0
      %1315 = vmatprep.subr.bf16.mxu0 0
      %1316 = vmatpush1.bf16.xpose.msra.mxu0 0
      %1317 = vmatprep.subr.bf16.mxu0 0
      %1318 = vmatpush1.bf16.xpose.msra.mxu0 0
      %1319 = vmatprep.subr.bf16.mxu0 0
      %1320 = vmatpush1.bf16.xpose.msra.mxu0 0
      %1321 = vmatprep.subr.bf16.mxu0 0
      %1322 = vmatpush1.bf16.xpose.msra.mxu0 0
      %1323 = vmatprep.subr.bf16.mxu0 0
      %1324 = vmatpush1.bf16.xpose.msra.mxu0 0
      %1325 = vmatprep.subr.bf16.mxu0 0
      %1326 = vmatpush1.bf16.xpose.msra.mxu0 0
      %1327 = vmatprep.subr.bf16.mxu0 0
      %1328 = vmatpush1.bf16.xpose.msra.mxu0 0
      %1329 = vmatprep.subr.bf16.mxu0 0
      %1330 = vmatpush1.bf16.xpose.msra.mxu0 0
      %1331 = vmatprep.subr.bf16.mxu0 0
      %1332 = vmatpush1.bf16.xpose.msra.mxu0 0
      %1333 = vmatprep.subr.bf16.mxu0 0
      %1334 = vmatpush1.bf16.xpose.msra.mxu0 0
      %1335 = vmatprep.subr.bf16.mxu0 0
      %1336 = vmatpush1.bf16.xpose.msra.mxu0 0
      %1337 = vmatprep.subr.bf16.mxu0 0
      %1338 = vmatpush1.bf16.xpose.msra.mxu0 0
      %1339 = vmatprep.mubr.bf16.mxu0 0
      %1340 = vmatmul.mubr.bf16.gmra.mrb[0].mxu0 %v1302
      %v1341 = vpop.f32.mrb[0].mxu0
      %v1342 = vadd.f32 0.0, %v1341
      %v1343 = vpop.f32.mrb[0].mxu0
      %v1344 = vpop.f32.mrb[0].mxu0
      %v1345 = vpop.f32.mrb[0].mxu0
      %1346 = vdwg.mxu0
      %v1347 = vsel %vm1162, %v1204, -inf
      %1348 = vmax.xlane.f32.xlu0 %v1347
      %v1349 = vpop.xlane.xlu0 %1348
      %v1350 = vsel %vm1162, %v1250, -inf
      %1351 = vmax.xlane.f32.xlu0 %v1350
      %v1352 = vpop.xlane.xlu0 %1351
      %v1353 = vsel %vm1162, %v1296, -inf
      %1354 = vmax.xlane.f32.xlu0 %v1353
      %v1355 = vpop.xlane.xlu0 %1354
      %v1356 = vsel %vm1162, %v1342, -inf
      %1357 = vmax.xlane.f32.xlu0 %v1356
      %v1358 = vpop.xlane.xlu0 %1357
      %v1359 = vsub.f32 %v1204, %v1349
      %v1360 = vsub.f32 %v1250, %v1352
      %v1361 = vsub.f32 %v1296, %v1355
      %v1362 = vsub.f32 %v1342, %v1358
      %v1363 = vmul.f32 %v1359, 1.442695
      %v1364 = vpow.pop %v1363
      %v1365 = vmul.f32 %v1360, 1.442695
      %v1366 = vpow.pop %v1365
      %v1367 = vmul.f32 %v1361, 1.442695
      %v1368 = vpow.pop %v1367
      %v1369 = vmul.f32 %v1362, 1.442695
      %v1370 = vpow.pop %v1369
      %v1371 = vsel %vm1162, %v1364, 0.0
      %1372 = vadd.xlane.f32.xlu0 %v1371
      %v1373 = vpop.xlane.xlu0 %1372
      %v1374 = vsel %vm1162, %v1366, 0.0
      %1375 = vadd.xlane.f32.xlu0 %v1374
      %v1376 = vpop.xlane.xlu0 %1375
      %v1377 = vsel %vm1162, %v1368, 0.0
      %1378 = vadd.xlane.f32.xlu0 %v1377
      %v1379 = vpop.xlane.xlu0 %1378
      %v1380 = vsel %vm1162, %v1370, 0.0
      %1381 = vadd.xlane.f32.xlu0 %v1380
      %v1382 = vpop.xlane.xlu0 %1381
      %v1383 = vrcp.pop %v1373
      %v1384 = vrcp.pop %v1376
      %v1385 = vrcp.pop %v1379
      %v1386 = vrcp.pop %v1382
      %v1387 = vmul.f32 %v1364, %v1383
      %v1388 = vmul.f32 %v1366, %v1384
      %v1389 = vmul.f32 %v1368, %v1385
      %v1390 = vmul.f32 %v1370, %v1386
      %v1391 = vpack.c.bf16 %v1387, %v1387
      %v1392 = vpack.c.bf16 %v1388, %v1388
      %v1393 = vpack.c.bf16 %v1389, %v1389
      %v1394 = vpack.c.bf16 %v1390, %v1390
      %v1395 = vpack.c.bf16 %v989, %v989
      %v1396 = vpack.c.bf16 %v1041, %v1041
      %v1397 = vpack.c.bf16 %v1093, %v1093
      %v1398 = vpack.c.bf16 %v1145, %v1145
      %v1400 = vsel %vm1162, %v1391, 0
      %vm1402 = vcmask 1043456
      %v1404 = vsel %vm1402, %v1395, 0
      %1406 = vmatprep.subr.bf16.mxu0 0
      %1407 = vmatpush1.bf16.msra.mxu0 %v1404
      %1408 = vmatprep.subr.bf16.mxu0 0
      %1409 = vmatpush1.bf16.msra.mxu0 0
      %1410 = vmatprep.subr.bf16.mxu0 0
      %1411 = vmatpush1.bf16.msra.mxu0 0
      %1412 = vmatprep.subr.bf16.mxu0 0
      %1413 = vmatpush1.bf16.msra.mxu0 0
      %1414 = vmatprep.subr.bf16.mxu0 0
      %1415 = vmatpush1.bf16.msra.mxu0 0
      %1416 = vmatprep.subr.bf16.mxu0 0
      %1417 = vmatpush1.bf16.msra.mxu0 0
      %1418 = vmatprep.subr.bf16.mxu0 0
      %1419 = vmatpush1.bf16.msra.mxu0 0
      %1420 = vmatprep.subr.bf16.mxu0 0
      %1421 = vmatpush1.bf16.msra.mxu0 0
      %1422 = vmatprep.subr.bf16.mxu0 0
      %1423 = vmatpush1.bf16.msra.mxu0 0
      %1424 = vmatprep.subr.bf16.mxu0 0
      %1425 = vmatpush1.bf16.msra.mxu0 0
      %1426 = vmatprep.subr.bf16.mxu0 0
      %1427 = vmatpush1.bf16.msra.mxu0 0
      %1428 = vmatprep.subr.bf16.mxu0 0
      %1429 = vmatpush1.bf16.msra.mxu0 0
      %1430 = vmatprep.subr.bf16.mxu0 0
      %1431 = vmatpush1.bf16.msra.mxu0 0
      %1432 = vmatprep.subr.bf16.mxu0 0
      %1433 = vmatpush1.bf16.msra.mxu0 0
      %1434 = vmatprep.subr.bf16.mxu0 0
      %1435 = vmatpush1.bf16.msra.mxu0 0
      %1436 = vmatprep.subr.bf16.mxu0 0
      %1437 = vmatpush1.bf16.msra.mxu0 0
      %1438 = vmatprep.mubr.bf16.mxu0 0
      %1439 = vmatmul.mubr.bf16.gmra.mrb[0].mxu0 %v1400
      %v1440 = vpop.f32.mrb[0].mxu0
      %v1441 = vadd.f32 0.0, %v1440
      %v1442 = vpop.f32.mrb[0].mxu0
      %v1443 = vpop.f32.mrb[0].mxu0
      %v1444 = vpop.f32.mrb[0].mxu0
      %1445 = vdwg.mxu0
      %v1447 = vsel %vm1162, %v1392, 0
      %v1450 = vsel %vm1402, %v1396, 0
      %1452 = vmatprep.subr.bf16.mxu0 0
      %1453 = vmatpush1.bf16.msra.mxu0 %v1450
      %1454 = vmatprep.subr.bf16.mxu0 0
      %1455 = vmatpush1.bf16.msra.mxu0 0
      %1456 = vmatprep.subr.bf16.mxu0 0
      %1457 = vmatpush1.bf16.msra.mxu0 0
      %1458 = vmatprep.subr.bf16.mxu0 0
      %1459 = vmatpush1.bf16.msra.mxu0 0
      %1460 = vmatprep.subr.bf16.mxu0 0
      %1461 = vmatpush1.bf16.msra.mxu0 0
      %1462 = vmatprep.subr.bf16.mxu0 0
      %1463 = vmatpush1.bf16.msra.mxu0 0
      %1464 = vmatprep.subr.bf16.mxu0 0
      %1465 = vmatpush1.bf16.msra.mxu0 0
      %1466 = vmatprep.subr.bf16.mxu0 0
      %1467 = vmatpush1.bf16.msra.mxu0 0
      %1468 = vmatprep.subr.bf16.mxu0 0
      %1469 = vmatpush1.bf16.msra.mxu0 0
      %1470 = vmatprep.subr.bf16.mxu0 0
      %1471 = vmatpush1.bf16.msra.mxu0 0
      %1472 = vmatprep.subr.bf16.mxu0 0
      %1473 = vmatpush1.bf16.msra.mxu0 0
      %1474 = vmatprep.subr.bf16.mxu0 0
      %1475 = vmatpush1.bf16.msra.mxu0 0
      %1476 = vmatprep.subr.bf16.mxu0 0
      %1477 = vmatpush1.bf16.msra.mxu0 0
      %1478 = vmatprep.subr.bf16.mxu0 0
      %1479 = vmatpush1.bf16.msra.mxu0 0
      %1480 = vmatprep.subr.bf16.mxu0 0
      %1481 = vmatpush1.bf16.msra.mxu0 0
      %1482 = vmatprep.subr.bf16.mxu0 0
      %1483 = vmatpush1.bf16.msra.mxu0 0
      %1484 = vmatprep.mubr.bf16.mxu0 0
      %1485 = vmatmul.mubr.bf16.gmra.mrb[0].mxu0 %v1447
      %v1486 = vpop.f32.mrb[0].mxu0
      %v1487 = vadd.f32 0.0, %v1486
      %v1488 = vpop.f32.mrb[0].mxu0
      %v1489 = vpop.f32.mrb[0].mxu0
      %v1490 = vpop.f32.mrb[0].mxu0
      %1491 = vdwg.mxu0
      %v1493 = vsel %vm1162, %v1393, 0
      %v1496 = vsel %vm1402, %v1397, 0
      %1498 = vmatprep.subr.bf16.mxu0 0
      %1499 = vmatpush1.bf16.msra.mxu0 %v1496
      %1500 = vmatprep.subr.bf16.mxu0 0
      %1501 = vmatpush1.bf16.msra.mxu0 0
      %1502 = vmatprep.subr.bf16.mxu0 0
      %1503 = vmatpush1.bf16.msra.mxu0 0
      %1504 = vmatprep.subr.bf16.mxu0 0
      %1505 = vmatpush1.bf16.msra.mxu0 0
      %1506 = vmatprep.subr.bf16.mxu0 0
      %1507 = vmatpush1.bf16.msra.mxu0 0
      %1508 = vmatprep.subr.bf16.mxu0 0
      %1509 = vmatpush1.bf16.msra.mxu0 0
      %1510 = vmatprep.subr.bf16.mxu0 0
      %1511 = vmatpush1.bf16.msra.mxu0 0
      %1512 = vmatprep.subr.bf16.mxu0 0
      %1513 = vmatpush1.bf16.msra.mxu0 0
      %1514 = vmatprep.subr.bf16.mxu0 0
      %1515 = vmatpush1.bf16.msra.mxu0 0
      %1516 = vmatprep.subr.bf16.mxu0 0
      %1517 = vmatpush1.bf16.msra.mxu0 0
      %1518 = vmatprep.subr.bf16.mxu0 0
      %1519 = vmatpush1.bf16.msra.mxu0 0
      %1520 = vmatprep.subr.bf16.mxu0 0
      %1521 = vmatpush1.bf16.msra.mxu0 0
      %1522 = vmatprep.subr.bf16.mxu0 0
      %1523 = vmatpush1.bf16.msra.mxu0 0
      %1524 = vmatprep.subr.bf16.mxu0 0
      %1525 = vmatpush1.bf16.msra.mxu0 0
      %1526 = vmatprep.subr.bf16.mxu0 0
      %1527 = vmatpush1.bf16.msra.mxu0 0
      %1528 = vmatprep.subr.bf16.mxu0 0
      %1529 = vmatpush1.bf16.msra.mxu0 0
      %1530 = vmatprep.mubr.bf16.mxu0 0
      %1531 = vmatmul.mubr.bf16.gmra.mrb[0].mxu0 %v1493
      %v1532 = vpop.f32.mrb[0].mxu0
      %v1533 = vadd.f32 0.0, %v1532
      %v1534 = vpop.f32.mrb[0].mxu0
      %v1535 = vpop.f32.mrb[0].mxu0
      %v1536 = vpop.f32.mrb[0].mxu0
      %1537 = vdwg.mxu0
      %v1539 = vsel %vm1162, %v1394, 0
      %v1542 = vsel %vm1402, %v1398, 0
      %1544 = vmatprep.subr.bf16.mxu0 0
      %1545 = vmatpush1.bf16.msra.mxu0 %v1542
      %1546 = vmatprep.subr.bf16.mxu0 0
      %1547 = vmatpush1.bf16.msra.mxu0 0
      %1548 = vmatprep.subr.bf16.mxu0 0
      %1549 = vmatpush1.bf16.msra.mxu0 0
      %1550 = vmatprep.subr.bf16.mxu0 0
      %1551 = vmatpush1.bf16.msra.mxu0 0
      %1552 = vmatprep.subr.bf16.mxu0 0
      %1553 = vmatpush1.bf16.msra.mxu0 0
      %1554 = vmatprep.subr.bf16.mxu0 0
      %1555 = vmatpush1.bf16.msra.mxu0 0
      %1556 = vmatprep.subr.bf16.mxu0 0
      %1557 = vmatpush1.bf16.msra.mxu0 0
      %1558 = vmatprep.subr.bf16.mxu0 0
      %1559 = vmatpush1.bf16.msra.mxu0 0
      %1560 = vmatprep.subr.bf16.mxu0 0
      %1561 = vmatpush1.bf16.msra.mxu0 0
      %1562 = vmatprep.subr.bf16.mxu0 0
      %1563 = vmatpush1.bf16.msra.mxu0 0
      %1564 = vmatprep.subr.bf16.mxu0 0
      %1565 = vmatpush1.bf16.msra.mxu0 0
      %1566 = vmatprep.subr.bf16.mxu0 0
      %1567 = vmatpush1.bf16.msra.mxu0 0
      %1568 = vmatprep.subr.bf16.mxu0 0
      %1569 = vmatpush1.bf16.msra.mxu0 0
      %1570 = vmatprep.subr.bf16.mxu0 0
      %1571 = vmatpush1.bf16.msra.mxu0 0
      %1572 = vmatprep.subr.bf16.mxu0 0
      %1573 = vmatpush1.bf16.msra.mxu0 0
      %1574 = vmatprep.subr.bf16.mxu0 0
      %1575 = vmatpush1.bf16.msra.mxu0 0
      %1576 = vmatprep.mubr.bf16.mxu0 0
      %1577 = vmatmul.mubr.bf16.gmra.mrb[0].mxu0 %v1539
      %v1578 = vpop.f32.mrb[0].mxu0
      %v1579 = vadd.f32 0.0, %v1578
      %v1580 = vpop.f32.mrb[0].mxu0
      %v1581 = vpop.f32.mrb[0].mxu0
      %v1582 = vpop.f32.mrb[0].mxu0
      %1583 = vdwg.mxu0
      %v1584 = vpack.c.bf16 %v1441, %v1441
      %v1585 = vpack.c.bf16 %v1487, %v1487
      %v1586 = vpack.c.bf16 %v1533, %v1533
      %v1587 = vpack.c.bf16 %v1579, %v1579
      %v1589 = vsel %vm1162, %v1584, 0
      %v1592 = vsel %vm1402, %v444, 0
      %1594 = vmatprep.subr.bf16.mxu0 0
      %1595 = vmatpush1.bf16.msra.mxu0 %v1592
      %1596 = vmatprep.subr.bf16.mxu0 0
      %1597 = vmatpush1.bf16.msra.mxu0 0
      %1598 = vmatprep.subr.bf16.mxu0 0
      %1599 = vmatpush1.bf16.msra.mxu0 0
      %1600 = vmatprep.subr.bf16.mxu0 0
      %1601 = vmatpush1.bf16.msra.mxu0 0
      %1602 = vmatprep.subr.bf16.mxu0 0
      %1603 = vmatpush1.bf16.msra.mxu0 0
      %1604 = vmatprep.subr.bf16.mxu0 0
      %1605 = vmatpush1.bf16.msra.mxu0 0
      %1606 = vmatprep.subr.bf16.mxu0 0
      %1607 = vmatpush1.bf16.msra.mxu0 0
      %1608 = vmatprep.subr.bf16.mxu0 0
      %1609 = vmatpush1.bf16.msra.mxu0 0
      %1610 = vmatprep.subr.bf16.mxu0 0
      %1611 = vmatpush1.bf16.msra.mxu0 0
      %1612 = vmatprep.subr.bf16.mxu0 0
      %1613 = vmatpush1.bf16.msra.mxu0 0
      %1614 = vmatprep.subr.bf16.mxu0 0
      %1615 = vmatpush1.bf16.msra.mxu0 0
      %1616 = vmatprep.subr.bf16.mxu0 0
      %1617 = vmatpush1.bf16.msra.mxu0 0
      %1618 = vmatprep.subr.bf16.mxu0 0
      %1619 = vmatpush1.bf16.msra.mxu0 0
      %1620 = vmatprep.subr.bf16.mxu0 0
      %1621 = vmatpush1.bf16.msra.mxu0 0
      %1622 = vmatprep.subr.bf16.mxu0 0
      %1623 = vmatpush1.bf16.msra.mxu0 0
      %1624 = vmatprep.subr.bf16.mxu0 0
      %1625 = vmatpush1.bf16.msra.mxu0 0
      %1626 = vmatprep.mubr.bf16.mxu0 0
      %1627 = vmatmul.mubr.bf16.gmra.mrb[0].mxu0 %v1589
      %v1628 = vpop.f32.mrb[0].mxu0
      %v1629 = vadd.f32 0.0, %v1628
      %v1630 = vpop.f32.mrb[0].mxu0
      %v1631 = vpop.f32.mrb[0].mxu0
      %v1632 = vpop.f32.mrb[0].mxu0
      %1633 = vdwg.mxu0
      %v1635 = vsel %vm1162, %v1585, 0
      %v1638 = vsel %vm1402, %v445, 0
      %1640 = vmatprep.subr.bf16.mxu0 0
      %1641 = vmatpush1.bf16.msra.mxu0 %v1638
      %1642 = vmatprep.subr.bf16.mxu0 0
      %1643 = vmatpush1.bf16.msra.mxu0 0
      %1644 = vmatprep.subr.bf16.mxu0 0
      %1645 = vmatpush1.bf16.msra.mxu0 0
      %1646 = vmatprep.subr.bf16.mxu0 0
      %1647 = vmatpush1.bf16.msra.mxu0 0
      %1648 = vmatprep.subr.bf16.mxu0 0
      %1649 = vmatpush1.bf16.msra.mxu0 0
      %1650 = vmatprep.subr.bf16.mxu0 0
      %1651 = vmatpush1.bf16.msra.mxu0 0
      %1652 = vmatprep.subr.bf16.mxu0 0
      %1653 = vmatpush1.bf16.msra.mxu0 0
      %1654 = vmatprep.subr.bf16.mxu0 0
      %1655 = vmatpush1.bf16.msra.mxu0 0
      %1656 = vmatprep.subr.bf16.mxu0 0
      %1657 = vmatpush1.bf16.msra.mxu0 0
      %1658 = vmatprep.subr.bf16.mxu0 0
      %1659 = vmatpush1.bf16.msra.mxu0 0
      %1660 = vmatprep.subr.bf16.mxu0 0
      %1661 = vmatpush1.bf16.msra.mxu0 0
      %1662 = vmatprep.subr.bf16.mxu0 0
      %1663 = vmatpush1.bf16.msra.mxu0 0
      %1664 = vmatprep.subr.bf16.mxu0 0
      %1665 = vmatpush1.bf16.msra.mxu0 0
      %1666 = vmatprep.subr.bf16.mxu0 0
      %1667 = vmatpush1.bf16.msra.mxu0 0
      %1668 = vmatprep.subr.bf16.mxu0 0
      %1669 = vmatpush1.bf16.msra.mxu0 0
      %1670 = vmatprep.subr.bf16.mxu0 0
      %1671 = vmatpush1.bf16.msra.mxu0 0
      %1672 = vmatprep.mubr.bf16.mxu0 0
      %1673 = vmatmul.mubr.bf16.gmra.mrb[0].mxu0 %v1635
      %v1674 = vpop.f32.mrb[0].mxu0
      %v1675 = vadd.f32 0.0, %v1674
      %v1676 = vpop.f32.mrb[0].mxu0
      %v1677 = vpop.f32.mrb[0].mxu0
      %v1678 = vpop.f32.mrb[0].mxu0
      %1679 = vdwg.mxu0
      %v1681 = vsel %vm1162, %v1586, 0
      %v1684 = vsel %vm1402, %v446, 0
      %1686 = vmatprep.subr.bf16.mxu0 0
      %1687 = vmatpush1.bf16.msra.mxu0 %v1684
      %1688 = vmatprep.subr.bf16.mxu0 0
      %1689 = vmatpush1.bf16.msra.mxu0 0
      %1690 = vmatprep.subr.bf16.mxu0 0
      %1691 = vmatpush1.bf16.msra.mxu0 0
      %1692 = vmatprep.subr.bf16.mxu0 0
      %1693 = vmatpush1.bf16.msra.mxu0 0
      %1694 = vmatprep.subr.bf16.mxu0 0
      %1695 = vmatpush1.bf16.msra.mxu0 0
      %1696 = vmatprep.subr.bf16.mxu0 0
      %1697 = vmatpush1.bf16.msra.mxu0 0
      %1698 = vmatprep.subr.bf16.mxu0 0
      %1699 = vmatpush1.bf16.msra.mxu0 0
      %1700 = vmatprep.subr.bf16.mxu0 0
      %1701 = vmatpush1.bf16.msra.mxu0 0
      %1702 = vmatprep.subr.bf16.mxu0 0
      %1703 = vmatpush1.bf16.msra.mxu0 0
      %1704 = vmatprep.subr.bf16.mxu0 0
      %1705 = vmatpush1.bf16.msra.mxu0 0
      %1706 = vmatprep.subr.bf16.mxu0 0
      %1707 = vmatpush1.bf16.msra.mxu0 0
      %1708 = vmatprep.subr.bf16.mxu0 0
      %1709 = vmatpush1.bf16.msra.mxu0 0
      %1710 = vmatprep.subr.bf16.mxu0 0
      %1711 = vmatpush1.bf16.msra.mxu0 0
      %1712 = vmatprep.subr.bf16.mxu0 0
      %1713 = vmatpush1.bf16.msra.mxu0 0
      %1714 = vmatprep.subr.bf16.mxu0 0
      %1715 = vmatpush1.bf16.msra.mxu0 0
      %1716 = vmatprep.subr.bf16.mxu0 0
      %1717 = vmatpush1.bf16.msra.mxu0 0
      %1718 = vmatprep.mubr.bf16.mxu0 0
      %1719 = vmatmul.mubr.bf16.gmra.mrb[0].mxu0 %v1681
      %v1720 = vpop.f32.mrb[0].mxu0
      %v1721 = vadd.f32 0.0, %v1720
      %v1722 = vpop.f32.mrb[0].mxu0
      %v1723 = vpop.f32.mrb[0].mxu0
      %v1724 = vpop.f32.mrb[0].mxu0
      %1725 = vdwg.mxu0
      %v1727 = vsel %vm1162, %v1587, 0
      %v1730 = vsel %vm1402, %v447, 0
      %1732 = vmatprep.subr.bf16.mxu0 0
      %1733 = vmatpush1.bf16.msra.mxu0 %v1730
      %1734 = vmatprep.subr.bf16.mxu0 0
      %1735 = vmatpush1.bf16.msra.mxu0 0
      %1736 = vmatprep.subr.bf16.mxu0 0
      %1737 = vmatpush1.bf16.msra.mxu0 0
      %1738 = vmatprep.subr.bf16.mxu0 0
      %1739 = vmatpush1.bf16.msra.mxu0 0
      %1740 = vmatprep.subr.bf16.mxu0 0
      %1741 = vmatpush1.bf16.msra.mxu0 0
      %1742 = vmatprep.subr.bf16.mxu0 0
      %1743 = vmatpush1.bf16.msra.mxu0 0
      %1744 = vmatprep.subr.bf16.mxu0 0
      %1745 = vmatpush1.bf16.msra.mxu0 0
      %1746 = vmatprep.subr.bf16.mxu0 0
      %1747 = vmatpush1.bf16.msra.mxu0 0
      %1748 = vmatprep.subr.bf16.mxu0 0
      %1749 = vmatpush1.bf16.msra.mxu0 0
      %1750 = vmatprep.subr.bf16.mxu0 0
      %1751 = vmatpush1.bf16.msra.mxu0 0
      %1752 = vmatprep.subr.bf16.mxu0 0
      %1753 = vmatpush1.bf16.msra.mxu0 0
      %1754 = vmatprep.subr.bf16.mxu0 0
      %1755 = vmatpush1.bf16.msra.mxu0 0
      %1756 = vmatprep.subr.bf16.mxu0 0
      %1757 = vmatpush1.bf16.msra.mxu0 0
      %1758 = vmatprep.subr.bf16.mxu0 0
      %1759 = vmatpush1.bf16.msra.mxu0 0
      %1760 = vmatprep.subr.bf16.mxu0 0
      %1761 = vmatpush1.bf16.msra.mxu0 0
      %1762 = vmatprep.subr.bf16.mxu0 0
      %1763 = vmatpush1.bf16.msra.mxu0 0
      %1764 = vmatprep.mubr.bf16.mxu0 0
      %1765 = vmatmul.mubr.bf16.gmra.mrb[0].mxu0 %v1727
      %v1766 = vpop.f32.mrb[0].mxu0
      %v1767 = vadd.f32 0.0, %v1766
      %v1768 = vpop.f32.mrb[0].mxu0
      %v1769 = vpop.f32.mrb[0].mxu0
      %v1770 = vpop.f32.mrb[0].mxu0
      %1771 = vdwg.mxu0
      %v1772 = vsel %vm486, %v1629, 0.0
      %v1773 = vsel %vm486, %v1675, 0.0
      %v1774 = vadd.f32 %v1772, %v1773
      %v1775 = vsel %vm486, %v1721, 0.0
      %v1776 = vadd.f32 %v1774, %v1775
      %v1777 = vsel %vm486, %v1767, 0.0
      %v1778 = vadd.f32 %v1776, %v1777
      %v1780 = vlaneseq
      %v1781 = vshrl.u32 %v1780, 7
      %v1782 = vsub.s32 0, %v1781
      %v1783 = vrot.slane %v448, %v1782
      %v1785 = vadd.f32 %v1778, %v1783
      %v1786 = vadd.f32 %v383, %v1785
      %v1787 = vld [vmem:[%s9] sm:$0x1]
      %v1788 = vld [vmem:[%s10] sm:$0x1]
      %v1789 = vsel %vm486, %v1786, 0.0
      %1790 = vadd.xlane.f32.xlu0 %v1789
      %v1791 = vpop.xlane.xlu0 %1790
      %v1792 = vrcp.pop 32.0
      %v1793 = vmul.f32 %v1791, %v1792
      %v1794 = vsub.f32 %v1786, %v1793
      %v1795 = vmul.f32 %v1794, %v1794
      %v1796 = vsel %vm486, %v1795, 0.0
      %1797 = vadd.xlane.f32.xlu0 %v1796
      %v1798 = vpop.xlane.xlu0 %1797
      %v1799 = vmul.f32 %v1798, %v1792
      %v1800 = vadd.f32 %v1799, 1e-05
      %v1801 = vrsqrt.pop %v1800
      %v1802 = vmul.f32 %v1794, %v1801
      %v1803 = vlaneseq
      %v1804 = vshrl.u32 %v1803, 7
      %v1805 = vsub.s32 0, %v1804
      %v1806 = vrot.slane %v1787, %v1805
      %v1807 = vmul.f32 %v1802, %v1806
      %v1808 = vlaneseq
      %v1809 = vshrl.u32 %v1808, 7
      %v1810 = vsub.s32 0, %v1809
      %v1811 = vrot.slane %v1788, %v1810
      %v1812 = vadd.f32 %v1807, %v1811
      %v1813 = vld [vmem:[%s5] sm:$0xf]
      %v1814 = vld [vmem:[%s5 + $0x4] sm:$0xf]
      %v1815 = vld [vmem:[%s5 + $0x8] sm:$0xf]
      %v1816 = vld [vmem:[%s5 + $0xc] sm:$0xf]
      %v1817 = vld [vmem:[%s6] sm:$0x1]
      %v1818 = vld [vmem:[%s7] sm:$0xf]
      %v1819 = vld [vmem:[%s7 + $0x4] sm:$0xf]
      %v1820 = vld [vmem:[%s7 + $0x8] sm:$0xf]
      %v1821 = vld [vmem:[%s7 + $0xc] sm:$0xf]
      %v1822 = vld [vmem:[%s7 + $0x10] sm:$0xf]
      %v1823 = vld [vmem:[%s7 + $0x14] sm:$0xf]
      %v1824 = vld [vmem:[%s7 + $0x18] sm:$0xf]
      %v1825 = vld [vmem:[%s7 + $0x1c] sm:$0xf]
      %v1826 = vld [vmem:[%s8] sm:$0x1]
      %v1827 = vpack.c.bf16 %v1812, %v1812
      %v1829 = vlaneseq
      %v1830 = vshrl.u32 %v1829, 7
      %v1831 = vsub.s32 0, %v1830
      %v1832 = vrot.slane %v1817, %v1831
      %v1838 = vunpack.c.l.b16 %v1813
      %v1839 = vunpack.c.l.b16 %v1814
      %v1840 = vunpack.c.l.b16 %v1815
      %v1841 = vunpack.c.l.b16 %v1816
      %v1842 = vpack.c.b16 %v1839, %v1838
      %v1843 = vpack.c.b16 %v1841, %v1840
      %v1847 = vsel %vm486, %v1827, 0
      %1849 = vmatprep.subr.bf16.mxu0 0
      %1850 = vmatpush1.bf16.msra.mxu0 %v1842
      %1851 = vmatprep.subr.bf16.mxu0 0
      %1852 = vmatpush1.bf16.msra.mxu0 %v1843
      %1853 = vmatprep.subr.bf16.mxu0 0
      %1854 = vmatpush1.bf16.msra.mxu0 0
      %1855 = vmatprep.subr.bf16.mxu0 0
      %1856 = vmatpush1.bf16.msra.mxu0 0
      %1857 = vmatprep.subr.bf16.mxu0 0
      %1858 = vmatpush1.bf16.msra.mxu0 0
      %1859 = vmatprep.subr.bf16.mxu0 0
      %1860 = vmatpush1.bf16.msra.mxu0 0
      %1861 = vmatprep.subr.bf16.mxu0 0
      %1862 = vmatpush1.bf16.msra.mxu0 0
      %1863 = vmatprep.subr.bf16.mxu0 0
      %1864 = vmatpush1.bf16.msra.mxu0 0
      %1865 = vmatprep.subr.bf16.mxu0 0
      %1866 = vmatpush1.bf16.msra.mxu0 0
      %1867 = vmatprep.subr.bf16.mxu0 0
      %1868 = vmatpush1.bf16.msra.mxu0 0
      %1869 = vmatprep.subr.bf16.mxu0 0
      %1870 = vmatpush1.bf16.msra.mxu0 0
      %1871 = vmatprep.subr.bf16.mxu0 0
      %1872 = vmatpush1.bf16.msra.mxu0 0
      %1873 = vmatprep.subr.bf16.mxu0 0
      %1874 = vmatpush1.bf16.msra.mxu0 0
      %1875 = vmatprep.subr.bf16.mxu0 0
      %1876 = vmatpush1.bf16.msra.mxu0 0
      %1877 = vmatprep.subr.bf16.mxu0 0
      %1878 = vmatpush1.bf16.msra.mxu0 0
      %1879 = vmatprep.subr.bf16.mxu0 0
      %1880 = vmatpush1.bf16.msra.mxu0 0
      %1881 = vmatprep.mubr.bf16.mxu0 0
      %1882 = vmatmul.mubr.bf16.gmra.mrb[0].mxu0 %v1847
      %v1883 = vpop.f32.mrb[0].mxu0
      %v1884 = vadd.f32 %v1832, %v1883
      %v1885 = vpop.f32.mrb[0].mxu0
      %v1886 = vpop.f32.mrb[0].mxu0
      %v1887 = vpop.f32.mrb[0].mxu0
      %1888 = vdwg.mxu0
      %v1889 = vmax.f32 %v1884, 0.0
      %v1890 = vpack.c.bf16 %v1889, %v1889
      %v1892 = vlaneseq
      %v1893 = vshrl.u32 %v1892, 7
      %v1894 = vsub.s32 0, %v1893
      %v1895 = vrot.slane %v1826, %v1894
      %v1905 = vunpack.c.l.b16 %v1818
      %v1906 = vunpack.c.l.b16 %v1819
      %v1907 = vunpack.c.l.b16 %v1820
      %v1908 = vunpack.c.l.b16 %v1821
      %v1909 = vunpack.c.l.b16 %v1822
      %v1910 = vunpack.c.l.b16 %v1823
      %v1911 = vunpack.c.l.b16 %v1824
      %v1912 = vunpack.c.l.b16 %v1825
      %v1913 = vpack.c.b16 %v1906, %v1905
      %v1914 = vpack.c.b16 %v1908, %v1907
      %v1915 = vpack.c.b16 %v1910, %v1909
      %v1916 = vpack.c.b16 %v1912, %v1911
      %vm1921 = vcmask 523264
      %v1923 = vsel %vm1921, %v1890, 0
      %1925 = vmatprep.subr.bf16.mxu0 0
      %1926 = vmatpush1.bf16.msra.mxu0 %v1913
      %1927 = vmatprep.subr.bf16.mxu0 0
      %1928 = vmatpush1.bf16.msra.mxu0 %v1914
      %1929 = vmatprep.subr.bf16.mxu0 0
      %1930 = vmatpush1.bf16.msra.mxu0 %v1915
      %1931 = vmatprep.subr.bf16.mxu0 0
      %1932 = vmatpush1.bf16.msra.mxu0 %v1916
      %1933 = vmatprep.subr.bf16.mxu0 0
      %1934 = vmatpush1.bf16.msra.mxu0 0
      %1935 = vmatprep.subr.bf16.mxu0 0
      %1936 = vmatpush1.bf16.msra.mxu0 0
      %1937 = vmatprep.subr.bf16.mxu0 0
      %1938 = vmatpush1.bf16.msra.mxu0 0
      %1939 = vmatprep.subr.bf16.mxu0 0
      %1940 = vmatpush1.bf16.msra.mxu0 0
      %1941 = vmatprep.subr.bf16.mxu0 0
      %1942 = vmatpush1.bf16.msra.mxu0 0
      %1943 = vmatprep.subr.bf16.mxu0 0
      %1944 = vmatpush1.bf16.msra.mxu0 0
      %1945 = vmatprep.subr.bf16.mxu0 0
      %1946 = vmatpush1.bf16.msra.mxu0 0
      %1947 = vmatprep.subr.bf16.mxu0 0
      %1948 = vmatpush1.bf16.msra.mxu0 0
      %1949 = vmatprep.subr.bf16.mxu0 0
      %1950 = vmatpush1.bf16.msra.mxu0 0
      %1951 = vmatprep.subr.bf16.mxu0 0
      %1952 = vmatpush1.bf16.msra.mxu0 0
      %1953 = vmatprep.subr.bf16.mxu0 0
      %1954 = vmatpush1.bf16.msra.mxu0 0
      %1955 = vmatprep.subr.bf16.mxu0 0
      %1956 = vmatpush1.bf16.msra.mxu0 0
      %1957 = vmatprep.mubr.bf16.mxu0 0
      %1958 = vmatmul.mubr.bf16.gmra.mrb[0].mxu0 %v1923
      %v1959 = vpop.f32.mrb[0].mxu0
      %v1960 = vadd.f32 %v1895, %v1959
      %v1961 = vpop.f32.mrb[0].mxu0
      %v1962 = vpop.f32.mrb[0].mxu0
      %v1963 = vpop.f32.mrb[0].mxu0
      %1964 = vdwg.mxu0
      %v1965 = vadd.f32 %v1812, %v1960
      %v1966 = vld [vmem:[%s9 + $0x1] sm:$0x1]
      %v1967 = vld [vmem:[%s10 + $0x1] sm:$0x1]
      %v1968 = vsel %vm486, %v1965, 0.0
      %1969 = vadd.xlane.f32.xlu0 %v1968
      %v1970 = vpop.xlane.xlu0 %1969
      %v1971 = vmul.f32 %v1970, %v1792
      %v1972 = vsub.f32 %v1965, %v1971
      %v1973 = vmul.f32 %v1972, %v1972
      %v1974 = vsel %vm486, %v1973, 0.0
      %1975 = vadd.xlane.f32.xlu0 %v1974
      %v1976 = vpop.xlane.xlu0 %1975
      %v1977 = vmul.f32 %v1976, %v1792
      %v1978 = vadd.f32 %v1977, 1e-05
      %v1979 = vrsqrt.pop %v1978
      %v1980 = vmul.f32 %v1972, %v1979
      %v1981 = vlaneseq
      %v1982 = vshrl.u32 %v1981, 7
      %v1983 = vsub.s32 0, %v1982
      %v1984 = vrot.slane %v1966, %v1983
      %v1985 = vmul.f32 %v1980, %v1984
      %v1986 = vlaneseq
      %v1987 = vshrl.u32 %v1986, 7
      %v1988 = vsub.s32 0, %v1987
      %v1989 = vrot.slane %v1967, %v1988
      %v1990 = vadd.f32 %v1985, %v1989
      %1991 = vst.msk [vmem:[%s381] sm:$0xff] %vm486, %v1990
      %p1992 = scmp.lt.s32.totalorder %s22, 1
      %s1993 = scalar_select %p1992, %s22, 1
      %s1994 = smul.addr %s1993, 8
      %s1995 = scalar_lea.vmem %s11, %s1994
      // Predicated region
      $region65: #{transformer_forward.5} parent=63 // pred_check
        %p1996 = pneg %p276
      $region66: #{transformer_forward.5} parent=63 // pred_check_branch
        %1998 = sbr.rel (%p1996) target = $region68
      $region67: #{transformer_forward.5} parent=63 // pred_region
        _
      $region68: #{transformer_forward.5} parent=63 // pred_fallthru
        _
    $region64: #{transformer_forward.5} parent=5 // pred_fallthru
      _
    %p1999 = scmp.le.s32.totalorder 2, %s17
    // Predicated region
    $region69: #{transformer_forward.5} parent=5 // pred_check
      %p2000 = pneg %p1999
    $region70: #{transformer_forward.5} parent=5 // pred_check_branch
      %2002 = sbr.rel (%p2000) target = $region72
    $region71: #{transformer_forward.5} parent=5 // pred_region
      %s2003 = ssub.s32 %s17, 2
      // Predicated region
      $region73: #{transformer_forward.5} parent=71 // pred_check
        %p2004 = pneg %p282
      $region74: #{transformer_forward.5} parent=71 // pred_check_branch
        %2006 = sbr.rel (%p2004) target = $region76
      $region75: #{transformer_forward.5} parent=71 // pred_region
        %p2007 = scmp.lt.s32.totalorder %s23, 1
        %s2008 = scalar_select %p2007, %s23, 1
        %s2009 = smul.addr %s2008, 8
        %s2010 = scalar_lea.vmem %s11, %s2009
      $region76: #{transformer_forward.5} parent=71 // pred_fallthru
        _
    $region72: #{transformer_forward.5} parent=5 // pred_fallthru
      _
  $region6: #{transformer_forward.5} parent=0 // loop_footer
    %s21 = sadd.s32 1, %s17
  $region7: #{transformer_forward.5} parent=0 // loop_footer_branch
    %16 = sbr.rel target = $region3
  $region8: #{transformer_forward.5} parent=0 // loop_exit
    _

// kernel: transformer_forward.7
$region0: #{transformer_forward.7}
  #allocation0 [shape = 'u32[]', space=smem, size = 0x4, offset = 0x4, fixed_abs, tag = 'smem constant byte address 0x4 - core index']
  #allocation1 [shape = 'u32[144,128]{1,0:T(1,128)}', space=vmem, size = 0x12000, scoped, tag = 'internal scratch']
  %s0 = inlined_call_operand.vmem [shape: f32[2,8,32], index: 0, kind: input, shape index: {}]
  %s1 = inlined_call_operand.vmem [shape: f32[2,8,32], index: 1, kind: input, shape index: {}]
  %s2 = inlined_call_operand.vmem [shape: bf16[3,4,32,8], index: 2, kind: input, shape index: {}]
  %s3 = inlined_call_operand.vmem [shape: f32[3,4,1,8], index: 3, kind: input, shape index: {}]
  %s4 = inlined_call_operand.vmem [shape: bf16[4,8,32], index: 4, kind: input, shape index: {}]
  %s5 = inlined_call_operand.vmem [shape: f32[1,32], index: 5, kind: input, shape index: {}]
  %s6 = inlined_call_operand.vmem [shape: bf16[3,4,32,8], index: 6, kind: input, shape index: {}]
  %s7 = inlined_call_operand.vmem [shape: f32[3,4,1,8], index: 7, kind: input, shape index: {}]
  %s8 = inlined_call_operand.vmem [shape: bf16[4,8,32], index: 8, kind: input, shape index: {}]
  %s9 = inlined_call_operand.vmem [shape: f32[1,32], index: 9, kind: input, shape index: {}]
  %s10 = inlined_call_operand.vmem [shape: bf16[32,64], index: 10, kind: input, shape index: {}]
  %s11 = inlined_call_operand.vmem [shape: f32[1,64], index: 11, kind: input, shape index: {}]
  %s12 = inlined_call_operand.vmem [shape: bf16[64,32], index: 12, kind: input, shape index: {}]
  %s13 = inlined_call_operand.vmem [shape: f32[1,32], index: 13, kind: input, shape index: {}]
  %s14 = inlined_call_operand.vmem [shape: f32[3,32], index: 14, kind: input, shape index: {}]
  %s15 = inlined_call_operand.vmem [shape: f32[3,32], index: 15, kind: input, shape index: {}]
  %s16 = inlined_call_operand.vmem [shape: f32[2,8,32], index: 16, kind: output, shape index: {}]
  %s17 = sld [smem:[#allocation0]]
  $region97: #{transformer_forward.7} parent=0
    _
  %s19 = ssub.s32 1, %s17
  %s20 = scalar_select 0, %s19, %s17
  loop: start=0, step=1, limit=4
  $region2: #{transformer_forward.7} parent=0 // loop_pre_header
    _
  $region3: #{transformer_forward.7} parent=0 // loop_header
    %s22 = sphi 0, %s26
    %p23 = scmp.ge.s32.totalorder %s22, 4
    %s32 = sphi 0, %s34
    %s35 = sphi 0, %s32
    %s36 = sphi 0, %s35
    %s52 = sphi 0, %s36
    %s58 = sphi 0, %s60
    %s61 = sphi 0, %s58
    %s62 = sphi 0, %s61
    %s78 = sphi 0, %s62
    %s82 = sphi 0, %s82
    %s84 = sphi 0, %s82
    %s85 = sphi 0, %s84
    %s99 = sphi 0, %s85
    %s103 = sphi 0, %s103
    %s105 = sphi 0, %s103
    %s106 = sphi 0, %s105
    %s120 = sphi 0, %s106
    %s124 = sphi 0, %s124
    %s126 = sphi 0, %s124
    %s127 = sphi 0, %s126
    %s141 = sphi 0, %s127
    %s145 = sphi 0, %s145
    %s147 = sphi 0, %s145
    %s148 = sphi 0, %s147
    %s162 = sphi 0, %s148
    %s166 = sphi 0, %s166
    %s168 = sphi 0, %s166
    %s169 = sphi 0, %s168
    %s183 = sphi 0, %s169
    %s187 = sphi 0, %s187
    %s189 = sphi 0, %s187
    %s190 = sphi 0, %s189
    %s204 = sphi 0, %s190
    %s208 = sphi 0, %s208
    %s210 = sphi 0, %s208
    %s211 = sphi 0, %s210
    %s225 = sphi 0, %s211
    %s229 = sphi 0, %s229
    %s231 = sphi 0, %s229
    %s232 = sphi 0, %s231
    %s246 = sphi 0, %s232
    %s250 = sphi 0, %s250
    %s252 = sphi 0, %s250
    %s253 = sphi 0, %s252
    %s267 = sphi 0, %s253
    %s271 = sphi 0, %s271
    %s273 = sphi 0, %s271
    %s274 = sphi 0, %s273
    %s288 = sphi 0, %s274
    %s292 = sphi 0, %s292
    %s294 = sphi 0, %s292
    %s295 = sphi 0, %s294
    %s309 = sphi 0, %s295
    %s313 = sphi 0, %s313
    %s315 = sphi 0, %s313
    %s316 = sphi 0, %s315
    %s330 = sphi 0, %s316
    %s334 = sphi 0, %s334
    %s336 = sphi 0, %s334
    %s337 = sphi 0, %s336
    %s351 = sphi 0, %s337
    %s355 = sphi 0, %s355
    %s357 = sphi 0, %s355
    %s358 = sphi 0, %s357
    %s372 = sphi 0, %s358
    %s378 = sphi 0, %s380
    %s381 = sphi 0, %s378
    %s382 = sphi 0, %s381
    %s398 = sphi 0, %s382
  $region4: #{transformer_forward.7} parent=0 // loop_header_branch
    %25 = sbr.rel (%p23) target = $region8
  $region5: #{transformer_forward.7} parent=0 // loop_body
    %s27 = ssub.s32 %s22, 1
    %s28 = ssub.s32 %s22, 2
    %s29 = sadd.s32 %s22, 1
    %s30 = ssub.s32 %s22, %s29
    %p31 = scmp.eq.s32.totalorder %s30, 0
    %s33 = sadd.s32 %s32, 1
    %s34 = scalar_select %p31, %s32, %s33
    %p37 = pneg %p31
    %p38 = scmp.eq.s32.totalorder %s22, 1
    %p39 = por %p37, %p38
    %p40 = scmp.ne.s32.totalorder %s32, %s35
    %p41 = scmp.eq.s32.totalorder %s22, 0
    %p42 = por %p40, %p41
    %p43 = scmp.ne.s32.totalorder %s32, %s35
    %p44 = scmp.eq.s32.totalorder %s27, 1
    %p45 = por %p43, %p44
    %p46 = scmp.ne.s32.totalorder %s35, %s36
    %p47 = scmp.eq.s32.totalorder %s27, 0
    %p48 = por %p46, %p47
    %p49 = scmp.ne.s32.totalorder %s35, %s36
    %p50 = scmp.eq.s32.totalorder %s28, 1
    %p51 = por %p49, %p50
    %p53 = scmp.ne.s32.totalorder %s36, %s52
    %p54 = scmp.eq.s32.totalorder %s28, 0
    %p55 = por %p53, %p54
    %s56 = ssub.s32 %s22, %s29
    %p57 = scmp.eq.s32.totalorder %s56, 0
    %s59 = sadd.s32 %s58, 1
    %s60 = scalar_select %p57, %s58, %s59
    %p63 = pneg %p57
    %p64 = scmp.eq.s32.totalorder %s22, 1
    %p65 = por %p63, %p64
    %p66 = scmp.ne.s32.totalorder %s58, %s61
    %p67 = scmp.eq.s32.totalorder %s22, 0
    %p68 = por %p66, %p67
    %p69 = scmp.ne.s32.totalorder %s58, %s61
    %p70 = scmp.eq.s32.totalorder %s27, 1
    %p71 = por %p69, %p70
    %p72 = scmp.ne.s32.totalorder %s61, %s62
    %p73 = scmp.eq.s32.totalorder %s27, 0
    %p74 = por %p72, %p73
    %p75 = scmp.ne.s32.totalorder %s61, %s62
    %p76 = scmp.eq.s32.totalorder %s28, 1
    %p77 = por %p75, %p76
    %p79 = scmp.ne.s32.totalorder %s62, %s78
    %p80 = scmp.eq.s32.totalorder %s28, 0
    %p81 = por %p79, %p80
    %s83 = sadd.s32 %s82, 1
    %p86 = scmp.eq.s32.totalorder %s22, 1
    %p87 = scmp.ne.s32.totalorder %s82, %s84
    %p88 = scmp.eq.s32.totalorder %s22, 0
    %p89 = por %p87, %p88
    %p90 = scmp.ne.s32.totalorder %s82, %s84
    %p91 = scmp.eq.s32.totalorder %s27, 1
    %p92 = por %p90, %p91
    %p93 = scmp.ne.s32.totalorder %s84, %s85
    %p94 = scmp.eq.s32.totalorder %s27, 0
    %p95 = por %p93, %p94
    %p96 = scmp.ne.s32.totalorder %s84, %s85
    %p97 = scmp.eq.s32.totalorder %s28, 1
    %p98 = por %p96, %p97
    %p100 = scmp.ne.s32.totalorder %s85, %s99
    %p101 = scmp.eq.s32.totalorder %s28, 0
    %p102 = por %p100, %p101
    %s104 = sadd.s32 %s103, 1
    %p107 = scmp.eq.s32.totalorder %s22, 1
    %p108 = scmp.ne.s32.totalorder %s103, %s105
    %p109 = scmp.eq.s32.totalorder %s22, 0
    %p110 = por %p108, %p109
    %p111 = scmp.ne.s32.totalorder %s103, %s105
    %p112 = scmp.eq.s32.totalorder %s27, 1
    %p113 = por %p111, %p112
    %p114 = scmp.ne.s32.totalorder %s105, %s106
    %p115 = scmp.eq.s32.totalorder %s27, 0
    %p116 = por %p114, %p115
    %p117 = scmp.ne.s32.totalorder %s105, %s106
    %p118 = scmp.eq.s32.totalorder %s28, 1
    %p119 = por %p117, %p118
    %p121 = scmp.ne.s32.totalorder %s106, %s120
    %p122 = scmp.eq.s32.totalorder %s28, 0
    %p123 = por %p121, %p122
    %s125 = sadd.s32 %s124, 1
    %p128 = scmp.eq.s32.totalorder %s22, 1
    %p129 = scmp.ne.s32.totalorder %s124, %s126
    %p130 = scmp.eq.s32.totalorder %s22, 0
    %p131 = por %p129, %p130
    %p132 = scmp.ne.s32.totalorder %s124, %s126
    %p133 = scmp.eq.s32.totalorder %s27, 1
    %p134 = por %p132, %p133
    %p135 = scmp.ne.s32.totalorder %s126, %s127
    %p136 = scmp.eq.s32.totalorder %s27, 0
    %p137 = por %p135, %p136
    %p138 = scmp.ne.s32.totalorder %s126, %s127
    %p139 = scmp.eq.s32.totalorder %s28, 1
    %p140 = por %p138, %p139
    %p142 = scmp.ne.s32.totalorder %s127, %s141
    %p143 = scmp.eq.s32.totalorder %s28, 0
    %p144 = por %p142, %p143
    %s146 = sadd.s32 %s145, 1
    %p149 = scmp.eq.s32.totalorder %s22, 1
    %p150 = scmp.ne.s32.totalorder %s145, %s147
    %p151 = scmp.eq.s32.totalorder %s22, 0
    %p152 = por %p150, %p151
    %p153 = scmp.ne.s32.totalorder %s145, %s147
    %p154 = scmp.eq.s32.totalorder %s27, 1
    %p155 = por %p153, %p154
    %p156 = scmp.ne.s32.totalorder %s147, %s148
    %p157 = scmp.eq.s32.totalorder %s27, 0
    %p158 = por %p156, %p157
    %p159 = scmp.ne.s32.totalorder %s147, %s148
    %p160 = scmp.eq.s32.totalorder %s28, 1
    %p161 = por %p159, %p160
    %p163 = scmp.ne.s32.totalorder %s148, %s162
    %p164 = scmp.eq.s32.totalorder %s28, 0
    %p165 = por %p163, %p164
    %s167 = sadd.s32 %s166, 1
    %p170 = scmp.eq.s32.totalorder %s22, 1
    %p171 = scmp.ne.s32.totalorder %s166, %s168
    %p172 = scmp.eq.s32.totalorder %s22, 0
    %p173 = por %p171, %p172
    %p174 = scmp.ne.s32.totalorder %s166, %s168
    %p175 = scmp.eq.s32.totalorder %s27, 1
    %p176 = por %p174, %p175
    %p177 = scmp.ne.s32.totalorder %s168, %s169
    %p178 = scmp.eq.s32.totalorder %s27, 0
    %p179 = por %p177, %p178
    %p180 = scmp.ne.s32.totalorder %s168, %s169
    %p181 = scmp.eq.s32.totalorder %s28, 1
    %p182 = por %p180, %p181
    %p184 = scmp.ne.s32.totalorder %s169, %s183
    %p185 = scmp.eq.s32.totalorder %s28, 0
    %p186 = por %p184, %p185
    %s188 = sadd.s32 %s187, 1
    %p191 = scmp.eq.s32.totalorder %s22, 1
    %p192 = scmp.ne.s32.totalorder %s187, %s189
    %p193 = scmp.eq.s32.totalorder %s22, 0
    %p194 = por %p192, %p193
    %p195 = scmp.ne.s32.totalorder %s187, %s189
    %p196 = scmp.eq.s32.totalorder %s27, 1
    %p197 = por %p195, %p196
    %p198 = scmp.ne.s32.totalorder %s189, %s190
    %p199 = scmp.eq.s32.totalorder %s27, 0
    %p200 = por %p198, %p199
    %p201 = scmp.ne.s32.totalorder %s189, %s190
    %p202 = scmp.eq.s32.totalorder %s28, 1
    %p203 = por %p201, %p202
    %p205 = scmp.ne.s32.totalorder %s190, %s204
    %p206 = scmp.eq.s32.totalorder %s28, 0
    %p207 = por %p205, %p206
    %s209 = sadd.s32 %s208, 1
    %p212 = scmp.eq.s32.totalorder %s22, 1
    %p213 = scmp.ne.s32.totalorder %s208, %s210
    %p214 = scmp.eq.s32.totalorder %s22, 0
    %p215 = por %p213, %p214
    %p216 = scmp.ne.s32.totalorder %s208, %s210
    %p217 = scmp.eq.s32.totalorder %s27, 1
    %p218 = por %p216, %p217
    %p219 = scmp.ne.s32.totalorder %s210, %s211
    %p220 = scmp.eq.s32.totalorder %s27, 0
    %p221 = por %p219, %p220
    %p222 = scmp.ne.s32.totalorder %s210, %s211
    %p223 = scmp.eq.s32.totalorder %s28, 1
    %p224 = por %p222, %p223
    %p226 = scmp.ne.s32.totalorder %s211, %s225
    %p227 = scmp.eq.s32.totalorder %s28, 0
    %p228 = por %p226, %p227
    %s230 = sadd.s32 %s229, 1
    %p233 = scmp.eq.s32.totalorder %s22, 1
    %p234 = scmp.ne.s32.totalorder %s229, %s231
    %p235 = scmp.eq.s32.totalorder %s22, 0
    %p236 = por %p234, %p235
    %p237 = scmp.ne.s32.totalorder %s229, %s231
    %p238 = scmp.eq.s32.totalorder %s27, 1
    %p239 = por %p237, %p238
    %p240 = scmp.ne.s32.totalorder %s231, %s232
    %p241 = scmp.eq.s32.totalorder %s27, 0
    %p242 = por %p240, %p241
    %p243 = scmp.ne.s32.totalorder %s231, %s232
    %p244 = scmp.eq.s32.totalorder %s28, 1
    %p245 = por %p243, %p244
    %p247 = scmp.ne.s32.totalorder %s232, %s246
    %p248 = scmp.eq.s32.totalorder %s28, 0
    %p249 = por %p247, %p248
    %s251 = sadd.s32 %s250, 1
    %p254 = scmp.eq.s32.totalorder %s22, 1
    %p255 = scmp.ne.s32.totalorder %s250, %s252
    %p256 = scmp.eq.s32.totalorder %s22, 0
    %p257 = por %p255, %p256
    %p258 = scmp.ne.s32.totalorder %s250, %s252
    %p259 = scmp.eq.s32.totalorder %s27, 1
    %p260 = por %p258, %p259
    %p261 = scmp.ne.s32.totalorder %s252, %s253
    %p262 = scmp.eq.s32.totalorder %s27, 0
    %p263 = por %p261, %p262
    %p264 = scmp.ne.s32.totalorder %s252, %s253
    %p265 = scmp.eq.s32.totalorder %s28, 1
    %p266 = por %p264, %p265
    %p268 = scmp.ne.s32.totalorder %s253, %s267
    %p269 = scmp.eq.s32.totalorder %s28, 0
    %p270 = por %p268, %p269
    %s272 = sadd.s32 %s271, 1
    %p275 = scmp.eq.s32.totalorder %s22, 1
    %p276 = scmp.ne.s32.totalorder %s271, %s273
    %p277 = scmp.eq.s32.totalorder %s22, 0
    %p278 = por %p276, %p277
    %p279 = scmp.ne.s32.totalorder %s271, %s273
    %p280 = scmp.eq.s32.totalorder %s27, 1
    %p281 = por %p279, %p280
    %p282 = scmp.ne.s32.totalorder %s273, %s274
    %p283 = scmp.eq.s32.totalorder %s27, 0
    %p284 = por %p282, %p283
    %p285 = scmp.ne.s32.totalorder %s273, %s274
    %p286 = scmp.eq.s32.totalorder %s28, 1
    %p287 = por %p285, %p286
    %p289 = scmp.ne.s32.totalorder %s274, %s288
    %p290 = scmp.eq.s32.totalorder %s28, 0
    %p291 = por %p289, %p290
    %s293 = sadd.s32 %s292, 1
    %p296 = scmp.eq.s32.totalorder %s22, 1
    %p297 = scmp.ne.s32.totalorder %s292, %s294
    %p298 = scmp.eq.s32.totalorder %s22, 0
    %p299 = por %p297, %p298
    %p300 = scmp.ne.s32.totalorder %s292, %s294
    %p301 = scmp.eq.s32.totalorder %s27, 1
    %p302 = por %p300, %p301
    %p303 = scmp.ne.s32.totalorder %s294, %s295
    %p304 = scmp.eq.s32.totalorder %s27, 0
    %p305 = por %p303, %p304
    %p306 = scmp.ne.s32.totalorder %s294, %s295
    %p307 = scmp.eq.s32.totalorder %s28, 1
    %p308 = por %p306, %p307
    %p310 = scmp.ne.s32.totalorder %s295, %s309
    %p311 = scmp.eq.s32.totalorder %s28, 0
    %p312 = por %p310, %p311
    %s314 = sadd.s32 %s313, 1
    %p317 = scmp.eq.s32.totalorder %s22, 1
    %p318 = scmp.ne.s32.totalorder %s313, %s315
    %p319 = scmp.eq.s32.totalorder %s22, 0
    %p320 = por %p318, %p319
    %p321 = scmp.ne.s32.totalorder %s313, %s315
    %p322 = scmp.eq.s32.totalorder %s27, 1
    %p323 = por %p321, %p322
    %p324 = scmp.ne.s32.totalorder %s315, %s316
    %p325 = scmp.eq.s32.totalorder %s27, 0
    %p326 = por %p324, %p325
    %p327 = scmp.ne.s32.totalorder %s315, %s316
    %p328 = scmp.eq.s32.totalorder %s28, 1
    %p329 = por %p327, %p328
    %p331 = scmp.ne.s32.totalorder %s316, %s330
    %p332 = scmp.eq.s32.totalorder %s28, 0
    %p333 = por %p331, %p332
    %s335 = sadd.s32 %s334, 1
    %p338 = scmp.eq.s32.totalorder %s22, 1
    %p339 = scmp.ne.s32.totalorder %s334, %s336
    %p340 = scmp.eq.s32.totalorder %s22, 0
    %p341 = por %p339, %p340
    %p342 = scmp.ne.s32.totalorder %s334, %s336
    %p343 = scmp.eq.s32.totalorder %s27, 1
    %p344 = por %p342, %p343
    %p345 = scmp.ne.s32.totalorder %s336, %s337
    %p346 = scmp.eq.s32.totalorder %s27, 0
    %p347 = por %p345, %p346
    %p348 = scmp.ne.s32.totalorder %s336, %s337
    %p349 = scmp.eq.s32.totalorder %s28, 1
    %p350 = por %p348, %p349
    %p352 = scmp.ne.s32.totalorder %s337, %s351
    %p353 = scmp.eq.s32.totalorder %s28, 0
    %p354 = por %p352, %p353
    %s356 = sadd.s32 %s355, 1
    %p359 = scmp.eq.s32.totalorder %s22, 1
    %p360 = scmp.ne.s32.totalorder %s355, %s357
    %p361 = scmp.eq.s32.totalorder %s22, 0
    %p362 = por %p360, %p361
    %p363 = scmp.ne.s32.totalorder %s355, %s357
    %p364 = scmp.eq.s32.totalorder %s27, 1
    %p365 = por %p363, %p364
    %p366 = scmp.ne.s32.totalorder %s357, %s358
    %p367 = scmp.eq.s32.totalorder %s27, 0
    %p368 = por %p366, %p367
    %p369 = scmp.ne.s32.totalorder %s357, %s358
    %p370 = scmp.eq.s32.totalorder %s28, 1
    %p371 = por %p369, %p370
    %p373 = scmp.ne.s32.totalorder %s358, %s372
    %p374 = scmp.eq.s32.totalorder %s28, 0
    %p375 = por %p373, %p374
    %s376 = ssub.s32 %s22, %s29
    %p377 = scmp.eq.s32.totalorder %s376, 0
    %s379 = sadd.s32 %s378, 1
    %s380 = scalar_select %p377, %s378, %s379
    %p383 = pneg %p377
    %p384 = scmp.eq.s32.totalorder %s22, 1
    %p385 = por %p383, %p384
    %p386 = scmp.ne.s32.totalorder %s378, %s381
    %p387 = scmp.eq.s32.totalorder %s22, 0
    %p388 = por %p386, %p387
    %p389 = scmp.ne.s32.totalorder %s378, %s381
    %p390 = scmp.eq.s32.totalorder %s27, 1
    %p391 = por %p389, %p390
    %p392 = scmp.ne.s32.totalorder %s381, %s382
    %p393 = scmp.eq.s32.totalorder %s27, 0
    %p394 = por %p392, %p393
    %p395 = scmp.ne.s32.totalorder %s381, %s382
    %p396 = scmp.eq.s32.totalorder %s28, 1
    %p397 = por %p395, %p396
    %p399 = scmp.ne.s32.totalorder %s382, %s398
    %p400 = scmp.eq.s32.totalorder %s28, 0
    %p401 = por %p399, %p400
    %p402 = scmp.le.s32.totalorder 1, %s22
    %p403 = scmp.lt.s32.totalorder %s22, 3
    %p404 = pnand %p402, %p403
    %p405 = pneg %p404
    // Predicated region
    $region9: #{transformer_forward.7} parent=5 // pred_check
      _
    $region10: #{transformer_forward.7} parent=5 // pred_check_branch
      %407 = sbr.rel (%p404) target = $region12
    $region11: #{transformer_forward.7} parent=5 // pred_region
      %s408 = ssub.s32 %s22, 1
      // Predicated region
      $region13: #{transformer_forward.7} parent=11 // pred_check
        %p409 = pneg %p95
      $region14: #{transformer_forward.7} parent=11 // pred_check_branch
        %411 = sbr.rel (%p409) target = $region16
      $region15: #{transformer_forward.7} parent=11 // pred_region
        _
      $region16: #{transformer_forward.7} parent=11 // pred_fallthru
        _
      // Predicated region
      $region17: #{transformer_forward.7} parent=11 // pred_check
        %p412 = pneg %p116
      $region18: #{transformer_forward.7} parent=11 // pred_check_branch
        %414 = sbr.rel (%p412) target = $region20
      $region19: #{transformer_forward.7} parent=11 // pred_region
        _
      $region20: #{transformer_forward.7} parent=11 // pred_fallthru
        _
      // Predicated region
      $region21: #{transformer_forward.7} parent=11 // pred_check
        %p415 = pneg %p137
      $region22: #{transformer_forward.7} parent=11 // pred_check_branch
        %417 = sbr.rel (%p415) target = $region24
      $region23: #{transformer_forward.7} parent=11 // pred_region
        _
      $region24: #{transformer_forward.7} parent=11 // pred_fallthru
        _
      // Predicated region
      $region25: #{transformer_forward.7} parent=11 // pred_check
        %p418 = pneg %p158
      $region26: #{transformer_forward.7} parent=11 // pred_check_branch
        %420 = sbr.rel (%p418) target = $region28
      $region27: #{transformer_forward.7} parent=11 // pred_region
        _
      $region28: #{transformer_forward.7} parent=11 // pred_fallthru
        _
      // Predicated region
      $region29: #{transformer_forward.7} parent=11 // pred_check
        %p421 = pneg %p179
      $region30: #{transformer_forward.7} parent=11 // pred_check_branch
        %423 = sbr.rel (%p421) target = $region32
      $region31: #{transformer_forward.7} parent=11 // pred_region
        _
      $region32: #{transformer_forward.7} parent=11 // pred_fallthru
        _
      // Predicated region
      $region33: #{transformer_forward.7} parent=11 // pred_check
        %p424 = pneg %p200
      $region34: #{transformer_forward.7} parent=11 // pred_check_branch
        %426 = sbr.rel (%p424) target = $region36
      $region35: #{transformer_forward.7} parent=11 // pred_region
        _
      $region36: #{transformer_forward.7} parent=11 // pred_fallthru
        _
      // Predicated region
      $region37: #{transformer_forward.7} parent=11 // pred_check
        %p427 = pneg %p221
      $region38: #{transformer_forward.7} parent=11 // pred_check_branch
        %429 = sbr.rel (%p427) target = $region40
      $region39: #{transformer_forward.7} parent=11 // pred_region
        _
      $region40: #{transformer_forward.7} parent=11 // pred_fallthru
        _
      // Predicated region
      $region41: #{transformer_forward.7} parent=11 // pred_check
        %p430 = pneg %p242
      $region42: #{transformer_forward.7} parent=11 // pred_check_branch
        %432 = sbr.rel (%p430) target = $region44
      $region43: #{transformer_forward.7} parent=11 // pred_region
        _
      $region44: #{transformer_forward.7} parent=11 // pred_fallthru
        _
      // Predicated region
      $region45: #{transformer_forward.7} parent=11 // pred_check
        %p433 = pneg %p263
      $region46: #{transformer_forward.7} parent=11 // pred_check_branch
        %435 = sbr.rel (%p433) target = $region48
      $region47: #{transformer_forward.7} parent=11 // pred_region
        _
      $region48: #{transformer_forward.7} parent=11 // pred_fallthru
        _
      // Predicated region
      $region49: #{transformer_forward.7} parent=11 // pred_check
        %p436 = pneg %p284
      $region50: #{transformer_forward.7} parent=11 // pred_check_branch
        %438 = sbr.rel (%p436) target = $region52
      $region51: #{transformer_forward.7} parent=11 // pred_region
        _
      $region52: #{transformer_forward.7} parent=11 // pred_fallthru
        _
      // Predicated region
      $region53: #{transformer_forward.7} parent=11 // pred_check
        %p439 = pneg %p305
      $region54: #{transformer_forward.7} parent=11 // pred_check_branch
        %441 = sbr.rel (%p439) target = $region56
      $region55: #{transformer_forward.7} parent=11 // pred_region
        _
      $region56: #{transformer_forward.7} parent=11 // pred_fallthru
        _
      // Predicated region
      $region57: #{transformer_forward.7} parent=11 // pred_check
        %p442 = pneg %p326
      $region58: #{transformer_forward.7} parent=11 // pred_check_branch
        %444 = sbr.rel (%p442) target = $region60
      $region59: #{transformer_forward.7} parent=11 // pred_region
        _
      $region60: #{transformer_forward.7} parent=11 // pred_fallthru
        _
      // Predicated region
      $region61: #{transformer_forward.7} parent=11 // pred_check
        %p445 = pneg %p347
      $region62: #{transformer_forward.7} parent=11 // pred_check_branch
        %447 = sbr.rel (%p445) target = $region64
      $region63: #{transformer_forward.7} parent=11 // pred_region
        _
      $region64: #{transformer_forward.7} parent=11 // pred_fallthru
        _
      // Predicated region
      $region65: #{transformer_forward.7} parent=11 // pred_check
        %p448 = pneg %p368
      $region66: #{transformer_forward.7} parent=11 // pred_check_branch
        %450 = sbr.rel (%p448) target = $region68
      $region67: #{transformer_forward.7} parent=11 // pred_region
        _
      $region68: #{transformer_forward.7} parent=11 // pred_fallthru
        _
    $region12: #{transformer_forward.7} parent=5 // pred_fallthru
      _
    %p451 = scmp.lt.s32.totalorder %s22, 2
    // Predicated region
    $region69: #{transformer_forward.7} parent=5 // pred_check
      %p452 = pneg %p451
    $region70: #{transformer_forward.7} parent=5 // pred_check_branch
      %454 = sbr.rel (%p452) target = $region72
    $region71: #{transformer_forward.7} parent=5 // pred_region
      // Predicated region
      $region73: #{transformer_forward.7} parent=71 // pred_check
        %p455 = pneg %p42
      $region74: #{transformer_forward.7} parent=71 // pred_check_branch
        %457 = sbr.rel (%p455) target = $region76
      $region75: #{transformer_forward.7} parent=71 // pred_region
        %p458 = scmp.lt.s32.totalorder %s22, 1
        %s459 = scalar_select %p458, %s22, 1
        %s460 = smul.addr %s459, 8
        %s461 = scalar_lea.vmem %s0, %s460
      $region76: #{transformer_forward.7} parent=71 // pred_fallthru
        _
      // Predicated region
      $region77: #{transformer_forward.7} parent=71 // pred_check
        %p462 = pneg %p68
      $region78: #{transformer_forward.7} parent=71 // pred_check_branch
        %464 = sbr.rel (%p462) target = $region80
      $region79: #{transformer_forward.7} parent=71 // pred_region
        %p465 = scmp.lt.s32.totalorder %s22, 1
        %s466 = scalar_select %p465, %s22, 1
        %s467 = smul.addr %s466, 8
        %s468 = scalar_lea.vmem %s1, %s467
      $region80: #{transformer_forward.7} parent=71 // pred_fallthru
        _
    $region72: #{transformer_forward.7} parent=5 // pred_fallthru
      _
    %p469 = scmp.le.s32.totalorder 1, %s22
    %p470 = scmp.lt.s32.totalorder %s22, 3
    %p471 = pnand %p469, %p470
    %p472 = pneg %p471
    // Predicated region
    $region81: #{transformer_forward.7} parent=5 // pred_check
      _
    $region82: #{transformer_forward.7} parent=5 // pred_check_branch
      %474 = sbr.rel (%p471) target = $region84
    $region83: #{transformer_forward.7} parent=5 // pred_region
      %s475 = ssub.s32 %s22, 1
      %p476 = scmp.lt.s32.totalorder %s27, 1
      %s477 = scalar_select %p476, %s27, 1
      %s478 = smul.addr %s477, 8
      %s479 = scalar_lea.vmem %s0, %s478
      %p480 = pneg %p48
      %p481 = pneg %p45
      %p482 = scmp.lt.s32.totalorder %s27, 1
      %s483 = scalar_select %p482, %s27, 1
      %s484 = smul.addr %s483, 8
      %s485 = scalar_lea.vmem %s1, %s484
      %p486 = pneg %p74
      %p487 = pneg %p71
      %p488 = pneg %p95
      %p489 = pneg %p92
      %p490 = pneg %p116
      %p491 = pneg %p113
      %p492 = pneg %p137
      %p493 = pneg %p134
      %p494 = pneg %p158
      %p495 = pneg %p155
      %p496 = pneg %p179
      %p497 = pneg %p176
      %p498 = pneg %p200
      %p499 = pneg %p197
      %p500 = pneg %p221
      %p501 = pneg %p218
      %p502 = pneg %p242
      %p503 = pneg %p239
      %p504 = pneg %p263
      %p505 = pneg %p260
      %p506 = pneg %p284
      %p507 = pneg %p281
      %p508 = pneg %p305
      %p509 = pneg %p302
      %p510 = pneg %p326
      %p511 = pneg %p323
      %p512 = pneg %p347
      %p513 = pneg %p344
      %p514 = pneg %p368
      %p515 = pneg %p365
      %p516 = pneg %p394
      %p517 = pneg %p391
      %p518 = scmp.lt.s32.totalorder %s27, 1
      %s519 = scalar_select %p518, %s27, 1
      %s520 = smul.addr %s519, 8
      %s521 = scalar_lea.vmem %s16, %s520
      %p522 = scmp.lt.s32.totalorder %s27, 1
      %s523 = scalar_select %p522, %s27, 1
      %s524 = smul.addr %s523, 8
      %s525 = scalar_lea.vmem %s0, %s524
      %p526 = scmp.lt.s32.totalorder %s27, 1
      %s527 = scalar_select %p526, %s27, 1
      %s528 = smul.addr %s527, 8
      %s529 = scalar_lea.vmem %s1, %s528
      %p530 = scmp.lt.s32.totalorder %s27, 1
      %s531 = scalar_select %p530, %s27, 1
      %s532 = smul.addr %s531, 8
      %s533 = scalar_lea.vmem %s16, %s532
      %v535 = vld [vmem:[%s525] sm:$0xff]
      %v536 = vld [vmem:[%s529] sm:$0xff]
      %v537 = vld [vmem:[%s2] sm:$0xf]
      %v538 = vld [vmem:[%s2 + $0x4] sm:$0xf]
      %v539 = vld [vmem:[%s2 + $0x8] sm:$0xf]
      %v540 = vld [vmem:[%s2 + $0xc] sm:$0xf]
      %v541 = vld [vmem:[%s2 + $0x10] sm:$0xf]
      %v542 = vld [vmem:[%s2 + $0x14] sm:$0xf]
      %v543 = vld [vmem:[%s2 + $0x18] sm:$0xf]
      %v544 = vld [vmem:[%s2 + $0x1c] sm:$0xf]
      %v545 = vld [vmem:[%s2 + $0x20] sm:$0xf]
      %v546 = vld [vmem:[%s2 + $0x24] sm:$0xf]
      %v547 = vld [vmem:[%s2 + $0x28] sm:$0xf]
      %v548 = vld [vmem:[%s2 + $0x2c] sm:$0xf]
      %v549 = vld [vmem:[%s2 + $0x30] sm:$0xf]
      %v550 = vld [vmem:[%s2 + $0x34] sm:$0xf]
      %v551 = vld [vmem:[%s2 + $0x38] sm:$0xf]
      %v552 = vld [vmem:[%s2 + $0x3c] sm:$0xf]
      %v553 = vld [vmem:[%s2 + $0x40] sm:$0xf]
      %v554 = vld [vmem:[%s2 + $0x44] sm:$0xf]
      %v555 = vld [vmem:[%s2 + $0x48] sm:$0xf]
      %v556 = vld [vmem:[%s2 + $0x4c] sm:$0xf]
      %v557 = vld [vmem:[%s2 + $0x50] sm:$0xf]
      %v558 = vld [vmem:[%s2 + $0x54] sm:$0xf]
      %v559 = vld [vmem:[%s2 + $0x58] sm:$0xf]
      %v560 = vld [vmem:[%s2 + $0x5c] sm:$0xf]
      %v561 = vld [vmem:[%s2 + $0x60] sm:$0xf]
      %v562 = vld [vmem:[%s2 + $0x64] sm:$0xf]
      %v563 = vld [vmem:[%s2 + $0x68] sm:$0xf]
      %v564 = vld [vmem:[%s2 + $0x6c] sm:$0xf]
      %v565 = vld [vmem:[%s2 + $0x70] sm:$0xf]
      %v566 = vld [vmem:[%s2 + $0x74] sm:$0xf]
      %v567 = vld [vmem:[%s2 + $0x78] sm:$0xf]
      %v568 = vld [vmem:[%s2 + $0x7c] sm:$0xf]
      %v569 = vld [vmem:[%s2 + $0x80] sm:$0xf]
      %v570 = vld [vmem:[%s2 + $0x84] sm:$0xf]
      %v571 = vld [vmem:[%s2 + $0x88] sm:$0xf]
      %v572 = vld [vmem:[%s2 + $0x8c] sm:$0xf]
      %v573 = vld [vmem:[%s2 + $0x90] sm:$0xf]
      %v574 = vld [vmem:[%s2 + $0x94] sm:$0xf]
      %v575 = vld [vmem:[%s2 + $0x98] sm:$0xf]
      %v576 = vld [vmem:[%s2 + $0x9c] sm:$0xf]
      %v577 = vld [vmem:[%s2 + $0xa0] sm:$0xf]
      %v578 = vld [vmem:[%s2 + $0xa4] sm:$0xf]
      %v579 = vld [vmem:[%s2 + $0xa8] sm:$0xf]
      %v580 = vld [vmem:[%s2 + $0xac] sm:$0xf]
      %v581 = vld [vmem:[%s2 + $0xb0] sm:$0xf]
      %v582 = vld [vmem:[%s2 + $0xb4] sm:$0xf]
      %v583 = vld [vmem:[%s2 + $0xb8] sm:$0xf]
      %v584 = vld [vmem:[%s2 + $0xbc] sm:$0xf]
      %v585 = vld [vmem:[%s3] sm:$0x1]
      %v586 = vld [vmem:[%s3 + $0x1] sm:$0x1]
      %v587 = vld [vmem:[%s3 + $0x2] sm:$0x1]
      %v588 = vld [vmem:[%s3 + $0x3] sm:$0x1]
      %v589 = vld [vmem:[%s3 + $0x4] sm:$0x1]
      %v590 = vld [vmem:[%s3 + $0x5] sm:$0x1]
      %v591 = vld [vmem:[%s3 + $0x6] sm:$0x1]
      %v592 = vld [vmem:[%s3 + $0x7] sm:$0x1]
      %v593 = vld [vmem:[%s3 + $0x8] sm:$0x1]
      %v594 = vld [vmem:[%s3 + $0x9] sm:$0x1]
      %v595 = vld [vmem:[%s3 + $0xa] sm:$0x1]
      %v596 = vld [vmem:[%s3 + $0xb] sm:$0x1]
      %v597 = vld [vmem:[%s4] sm:$0xf]
      %v598 = vld [vmem:[%s4 + $0x4] sm:$0xf]
      %v599 = vld [vmem:[%s4 + $0x8] sm:$0xf]
      %v600 = vld [vmem:[%s4 + $0xc] sm:$0xf]
      %v601 = vld [vmem:[%s5] sm:$0x1]
      %v602 = vpack.c.bf16 %v535, %v535
      %v607 = vlaneseq
      %v608 = vshrl.u32 %v607, 7
      %v609 = vsub.s32 0, %v608
      %v610 = vrot.slane %v585, %v609
      %v611 = vlaneseq
      %v612 = vshrl.u32 %v611, 7
      %v613 = vsub.s32 0, %v612
      %v614 = vrot.slane %v586, %v613
      %v615 = vlaneseq
      %v616 = vshrl.u32 %v615, 7
      %v617 = vsub.s32 0, %v616
      %v618 = vrot.slane %v587, %v617
      %v619 = vlaneseq
      %v620 = vshrl.u32 %v619, 7
      %v621 = vsub.s32 0, %v620
      %v622 = vrot.slane %v588, %v621
      %v631 = vunpack.c.l.b16 %v537
      %v632 = vunpack.c.l.b16 %v538
      %v633 = vunpack.c.l.b16 %v539
      %v634 = vunpack.c.l.b16 %v540
      %v635 = vpack.c.b16 %v632, %v631
      %v636 = vpack.c.b16 %v634, %v633
      %vm639 = vcmask 261120
      %v641 = vsel %vm639, %v602, 0
      %643 = vmatprep.subr.bf16.mxu0 0
      %644 = vmatpush1.bf16.msra.mxu0 %v635
      %645 = vmatprep.subr.bf16.mxu0 0
      %646 = vmatpush1.bf16.msra.mxu0 %v636
      %647 = vmatprep.subr.bf16.mxu0 0
      %648 = vmatpush1.bf16.msra.mxu0 0
      %649 = vmatprep.subr.bf16.mxu0 0
      %650 = vmatpush1.bf16.msra.mxu0 0
      %651 = vmatprep.subr.bf16.mxu0 0
      %652 = vmatpush1.bf16.msra.mxu0 0
      %653 = vmatprep.subr.bf16.mxu0 0
      %654 = vmatpush1.bf16.msra.mxu0 0
      %655 = vmatprep.subr.bf16.mxu0 0
      %656 = vmatpush1.bf16.msra.mxu0 0
      %657 = vmatprep.subr.bf16.mxu0 0
      %658 = vmatpush1.bf16.msra.mxu0 0
      %659 = vmatprep.subr.bf16.mxu0 0
      %660 = vmatpush1.bf16.msra.mxu0 0
      %661 = vmatprep.subr.bf16.mxu0 0
      %662 = vmatpush1.bf16.msra.mxu0 0
      %663 = vmatprep.subr.bf16.mxu0 0
      %664 = vmatpush1.bf16.msra.mxu0 0
      %665 = vmatprep.subr.bf16.mxu0 0
      %666 = vmatpush1.bf16.msra.mxu0 0
      %667 = vmatprep.subr.bf16.mxu0 0
      %668 = vmatpush1.bf16.msra.mxu0 0
      %669 = vmatprep.subr.bf16.mxu0 0
      %670 = vmatpush1.bf16.msra.mxu0 0
      %671 = vmatprep.subr.bf16.mxu0 0
      %672 = vmatpush1.bf16.msra.mxu0 0
      %673 = vmatprep.subr.bf16.mxu0 0
      %674 = vmatpush1.bf16.msra.mxu0 0
      %675 = vmatprep.mubr.bf16.mxu0 0
      %676 = vmatmul.mubr.bf16.gmra.mrb[0].mxu0 %v641
      %v677 = vpop.f32.mrb[0].mxu0
      %v678 = vadd.f32 %v610, %v677
      %v679 = vpop.f32.mrb[0].mxu0
      %v680 = vpop.f32.mrb[0].mxu0
      %v681 = vpop.f32.mrb[0].mxu0
      %682 = vdwg.mxu0
      %v687 = vunpack.c.l.b16 %v541
      %v688 = vunpack.c.l.b16 %v542
      %v689 = vunpack.c.l.b16 %v543
      %v690 = vunpack.c.l.b16 %v544
      %v691 = vpack.c.b16 %v688, %v687
      %v692 = vpack.c.b16 %v690, %v689
      %695 = vmatprep.subr.bf16.mxu0 0
      %696 = vmatpush1.bf16.msra.mxu0 %v691
      %697 = vmatprep.subr.bf16.mxu0 0
      %698 = vmatpush1.bf16.msra.mxu0 %v692
      %699 = vmatprep.subr.bf16.mxu0 0
      %700 = vmatpush1.bf16.msra.mxu0 0
      %701 = vmatprep.subr.bf16.mxu0 0
      %702 = vmatpush1.bf16.msra.mxu0 0
      %703 = vmatprep.subr.bf16.mxu0 0
      %704 = vmatpush1.bf16.msra.mxu0 0
      %705 = vmatprep.subr.bf16.mxu0 0
      %706 = vmatpush1.bf16.msra.mxu0 0
      %707 = vmatprep.subr.bf16.mxu0 0
      %708 = vmatpush1.bf16.msra.mxu0 0
      %709 = vmatprep.subr.bf16.mxu0 0
      %710 = vmatpush1.bf16.msra.mxu0 0
      %711 = vmatprep.subr.bf16.mxu0 0
      %712 = vmatpush1.bf16.msra.mxu0 0
      %713 = vmatprep.subr.bf16.mxu0 0
      %714 = vmatpush1.bf16.msra.mxu0 0
      %715 = vmatprep.subr.bf16.mxu0 0
      %716 = vmatpush1.bf16.msra.mxu0 0
      %717 = vmatprep.subr.bf16.mxu0 0
      %718 = vmatpush1.bf16.msra.mxu0 0
      %719 = vmatprep.subr.bf16.mxu0 0
      %720 = vmatpush1.bf16.msra.mxu0 0
      %721 = vmatprep.subr.bf16.mxu0 0
      %722 = vmatpush1.bf16.msra.mxu0 0
      %723 = vmatprep.subr.bf16.mxu0 0
      %724 = vmatpush1.bf16.msra.mxu0 0
      %725 = vmatprep.subr.bf16.mxu0 0
      %726 = vmatpush1.bf16.msra.mxu0 0
      %727 = vmatprep.mubr.bf16.mxu0 0
      %728 = vmatmul.mubr.bf16.gmra.mrb[0].mxu0 %v641
      %v729 = vpop.f32.mrb[0].mxu0
      %v730 = vadd.f32 %v614, %v729
      %v731 = vpop.f32.mrb[0].mxu0
      %v732 = vpop.f32.mrb[0].mxu0
      %v733 = vpop.f32.mrb[0].mxu0
      %734 = vdwg.mxu0
      %v739 = vunpack.c.l.b16 %v545
      %v740 = vunpack.c.l.b16 %v546
      %v741 = vunpack.c.l.b16 %v547
      %v742 = vunpack.c.l.b16 %v548
      %v743 = vpack.c.b16 %v740, %v739
      %v744 = vpack.c.b16 %v742, %v741
      %747 = vmatprep.subr.bf16.mxu0 0
      %748 = vmatpush1.bf16.msra.mxu0 %v743
      %749 = vmatprep.subr.bf16.mxu0 0
      %750 = vmatpush1.bf16.msra.mxu0 %v744
      %751 = vmatprep.subr.bf16.mxu0 0
      %752 = vmatpush1.bf16.msra.mxu0 0
      %753 = vmatprep.subr.bf16.mxu0 0
      %754 = vmatpush1.bf16.msra.mxu0 0
      %755 = vmatprep.subr.bf16.mxu0 0
      %756 = vmatpush1.bf16.msra.mxu0 0
      %757 = vmatprep.subr.bf16.mxu0 0
      %758 = vmatpush1.bf16.msra.mxu0 0
      %759 = vmatprep.subr.bf16.mxu0 0
      %760 = vmatpush1.bf16.msra.mxu0 0
      %761 = vmatprep.subr.bf16.mxu0 0
      %762 = vmatpush1.bf16.msra.mxu0 0
      %763 = vmatprep.subr.bf16.mxu0 0
      %764 = vmatpush1.bf16.msra.mxu0 0
      %765 = vmatprep.subr.bf16.mxu0 0
      %766 = vmatpush1.bf16.msra.mxu0 0
      %767 = vmatprep.subr.bf16.mxu0 0
      %768 = vmatpush1.bf16.msra.mxu0 0
      %769 = vmatprep.subr.bf16.mxu0 0
      %770 = vmatpush1.bf16.msra.mxu0 0
      %771 = vmatprep.subr.bf16.mxu0 0
      %772 = vmatpush1.bf16.msra.mxu0 0
      %773 = vmatprep.subr.bf16.mxu0 0
      %774 = vmatpush1.bf16.msra.mxu0 0
      %775 = vmatprep.subr.bf16.mxu0 0
      %776 = vmatpush1.bf16.msra.mxu0 0
      %777 = vmatprep.subr.bf16.mxu0 0
      %778 = vmatpush1.bf16.msra.mxu0 0
      %779 = vmatprep.mubr.bf16.mxu0 0
      %780 = vmatmul.mubr.bf16.gmra.mrb[0].mxu0 %v641
      %v781 = vpop.f32.mrb[0].mxu0
      %v782 = vadd.f32 %v618, %v781
      %v783 = vpop.f32.mrb[0].mxu0
      %v784 = vpop.f32.mrb[0].mxu0
      %v785 = vpop.f32.mrb[0].mxu0
      %786 = vdwg.mxu0
      %v791 = vunpack.c.l.b16 %v549
      %v792 = vunpack.c.l.b16 %v550
      %v793 = vunpack.c.l.b16 %v551
      %v794 = vunpack.c.l.b16 %v552
      %v795 = vpack.c.b16 %v792, %v791
      %v796 = vpack.c.b16 %v794, %v793
      %799 = vmatprep.subr.bf16.mxu0 0
      %800 = vmatpush1.bf16.msra.mxu0 %v795
      %801 = vmatprep.subr.bf16.mxu0 0
      %802 = vmatpush1.bf16.msra.mxu0 %v796
      %803 = vmatprep.subr.bf16.mxu0 0
      %804 = vmatpush1.bf16.msra.mxu0 0
      %805 = vmatprep.subr.bf16.mxu0 0
      %806 = vmatpush1.bf16.msra.mxu0 0
      %807 = vmatprep.subr.bf16.mxu0 0
      %808 = vmatpush1.bf16.msra.mxu0 0
      %809 = vmatprep.subr.bf16.mxu0 0
      %810 = vmatpush1.bf16.msra.mxu0 0
      %811 = vmatprep.subr.bf16.mxu0 0
      %812 = vmatpush1.bf16.msra.mxu0 0
      %813 = vmatprep.subr.bf16.mxu0 0
      %814 = vmatpush1.bf16.msra.mxu0 0
      %815 = vmatprep.subr.bf16.mxu0 0
      %816 = vmatpush1.bf16.msra.mxu0 0
      %817 = vmatprep.subr.bf16.mxu0 0
      %818 = vmatpush1.bf16.msra.mxu0 0
      %819 = vmatprep.subr.bf16.mxu0 0
      %820 = vmatpush1.bf16.msra.mxu0 0
      %821 = vmatprep.subr.bf16.mxu0 0
      %822 = vmatpush1.bf16.msra.mxu0 0
      %823 = vmatprep.subr.bf16.mxu0 0
      %824 = vmatpush1.bf16.msra.mxu0 0
      %825 = vmatprep.subr.bf16.mxu0 0
      %826 = vmatpush1.bf16.msra.mxu0 0
      %827 = vmatprep.subr.bf16.mxu0 0
      %828 = vmatpush1.bf16.msra.mxu0 0
      %829 = vmatprep.subr.bf16.mxu0 0
      %830 = vmatpush1.bf16.msra.mxu0 0
      %831 = vmatprep.mubr.bf16.mxu0 0
      %832 = vmatmul.mubr.bf16.gmra.mrb[0].mxu0 %v641
      %v833 = vpop.f32.mrb[0].mxu0
      %v834 = vadd.f32 %v622, %v833
      %v835 = vpop.f32.mrb[0].mxu0
      %v836 = vpop.f32.mrb[0].mxu0
      %v837 = vpop.f32.mrb[0].mxu0
      %838 = vdwg.mxu0
      %v843 = vlaneseq
      %v844 = vshrl.u32 %v843, 7
      %v845 = vsub.s32 0, %v844
      %v846 = vrot.slane %v589, %v845
      %v847 = vlaneseq
      %v848 = vshrl.u32 %v847, 7
      %v849 = vsub.s32 0, %v848
      %v850 = vrot.slane %v590, %v849
      %v851 = vlaneseq
      %v852 = vshrl.u32 %v851, 7
      %v853 = vsub.s32 0, %v852
      %v854 = vrot.slane %v591, %v853
      %v855 = vlaneseq
      %v856 = vshrl.u32 %v855, 7
      %v857 = vsub.s32 0, %v856
      %v858 = vrot.slane %v592, %v857
      %v867 = vunpack.c.l.b16 %v553
      %v868 = vunpack.c.l.b16 %v554
      %v869 = vunpack.c.l.b16 %v555
      %v870 = vunpack.c.l.b16 %v556
      %v871 = vpack.c.b16 %v868, %v867
      %v872 = vpack.c.b16 %v870, %v869
      %875 = vmatprep.subr.bf16.mxu0 0
      %876 = vmatpush1.bf16.msra.mxu0 %v871
      %877 = vmatprep.subr.bf16.mxu0 0
      %878 = vmatpush1.bf16.msra.mxu0 %v872
      %879 = vmatprep.subr.bf16.mxu0 0
      %880 = vmatpush1.bf16.msra.mxu0 0
      %881 = vmatprep.subr.bf16.mxu0 0
      %882 = vmatpush1.bf16.msra.mxu0 0
      %883 = vmatprep.subr.bf16.mxu0 0
      %884 = vmatpush1.bf16.msra.mxu0 0
      %885 = vmatprep.subr.bf16.mxu0 0
      %886 = vmatpush1.bf16.msra.mxu0 0
      %887 = vmatprep.subr.bf16.mxu0 0
      %888 = vmatpush1.bf16.msra.mxu0 0
      %889 = vmatprep.subr.bf16.mxu0 0
      %890 = vmatpush1.bf16.msra.mxu0 0
      %891 = vmatprep.subr.bf16.mxu0 0
      %892 = vmatpush1.bf16.msra.mxu0 0
      %893 = vmatprep.subr.bf16.mxu0 0
      %894 = vmatpush1.bf16.msra.mxu0 0
      %895 = vmatprep.subr.bf16.mxu0 0
      %896 = vmatpush1.bf16.msra.mxu0 0
      %897 = vmatprep.subr.bf16.mxu0 0
      %898 = vmatpush1.bf16.msra.mxu0 0
      %899 = vmatprep.subr.bf16.mxu0 0
      %900 = vmatpush1.bf16.msra.mxu0 0
      %901 = vmatprep.subr.bf16.mxu0 0
      %902 = vmatpush1.bf16.msra.mxu0 0
      %903 = vmatprep.subr.bf16.mxu0 0
      %904 = vmatpush1.bf16.msra.mxu0 0
      %905 = vmatprep.subr.bf16.mxu0 0
      %906 = vmatpush1.bf16.msra.mxu0 0
      %907 = vmatprep.mubr.bf16.mxu0 0
      %908 = vmatmul.mubr.bf16.gmra.mrb[0].mxu0 %v641
      %v909 = vpop.f32.mrb[0].mxu0
      %v910 = vadd.f32 %v846, %v909
      %v911 = vpop.f32.mrb[0].mxu0
      %v912 = vpop.f32.mrb[0].mxu0
      %v913 = vpop.f32.mrb[0].mxu0
      %914 = vdwg.mxu0
      %v919 = vunpack.c.l.b16 %v557
      %v920 = vunpack.c.l.b16 %v558
      %v921 = vunpack.c.l.b16 %v559
      %v922 = vunpack.c.l.b16 %v560
      %v923 = vpack.c.b16 %v920, %v919
      %v924 = vpack.c.b16 %v922, %v921
      %927 = vmatprep.subr.bf16.mxu0 0
      %928 = vmatpush1.bf16.msra.mxu0 %v923
      %929 = vmatprep.subr.bf16.mxu0 0
      %930 = vmatpush1.bf16.msra.mxu0 %v924
      %931 = vmatprep.subr.bf16.mxu0 0
      %932 = vmatpush1.bf16.msra.mxu0 0
      %933 = vmatprep.subr.bf16.mxu0 0
      %934 = vmatpush1.bf16.msra.mxu0 0
      %935 = vmatprep.subr.bf16.mxu0 0
      %936 = vmatpush1.bf16.msra.mxu0 0
      %937 = vmatprep.subr.bf16.mxu0 0
      %938 = vmatpush1.bf16.msra.mxu0 0
      %939 = vmatprep.subr.bf16.mxu0 0
      %940 = vmatpush1.bf16.msra.mxu0 0
      %941 = vmatprep.subr.bf16.mxu0 0
      %942 = vmatpush1.bf16.msra.mxu0 0
      %943 = vmatprep.subr.bf16.mxu0 0
      %944 = vmatpush1.bf16.msra.mxu0 0
      %945 = vmatprep.subr.bf16.mxu0 0
      %946 = vmatpush1.bf16.msra.mxu0 0
      %947 = vmatprep.subr.bf16.mxu0 0
      %948 = vmatpush1.bf16.msra.mxu0 0
      %949 = vmatprep.subr.bf16.mxu0 0
      %950 = vmatpush1.bf16.msra.mxu0 0
      %951 = vmatprep.subr.bf16.mxu0 0
      %952 = vmatpush1.bf16.msra.mxu0 0
      %953 = vmatprep.subr.bf16.mxu0 0
      %954 = vmatpush1.bf16.msra.mxu0 0
      %955 = vmatprep.subr.bf16.mxu0 0
      %956 = vmatpush1.bf16.msra.mxu0 0
      %957 = vmatprep.subr.bf16.mxu0 0
      %958 = vmatpush1.bf16.msra.mxu0 0
      %959 = vmatprep.mubr.bf16.mxu0 0
      %960 = vmatmul.mubr.bf16.gmra.mrb[0].mxu0 %v641
      %v961 = vpop.f32.mrb[0].mxu0
      %v962 = vadd.f32 %v850, %v961
      %v963 = vpop.f32.mrb[0].mxu0
      %v964 = vpop.f32.mrb[0].mxu0
      %v965 = vpop.f32.mrb[0].mxu0
      %966 = vdwg.mxu0
      %v971 = vunpack.c.l.b16 %v561
      %v972 = vunpack.c.l.b16 %v562
      %v973 = vunpack.c.l.b16 %v563
      %v974 = vunpack.c.l.b16 %v564
      %v975 = vpack.c.b16 %v972, %v971
      %v976 = vpack.c.b16 %v974, %v973
      %979 = vmatprep.subr.bf16.mxu0 0
      %980 = vmatpush1.bf16.msra.mxu0 %v975
      %981 = vmatprep.subr.bf16.mxu0 0
      %982 = vmatpush1.bf16.msra.mxu0 %v976
      %983 = vmatprep.subr.bf16.mxu0 0
      %984 = vmatpush1.bf16.msra.mxu0 0
      %985 = vmatprep.subr.bf16.mxu0 0
      %986 = vmatpush1.bf16.msra.mxu0 0
      %987 = vmatprep.subr.bf16.mxu0 0
      %988 = vmatpush1.bf16.msra.mxu0 0
      %989 = vmatprep.subr.bf16.mxu0 0
      %990 = vmatpush1.bf16.msra.mxu0 0
      %991 = vmatprep.subr.bf16.mxu0 0
      %992 = vmatpush1.bf16.msra.mxu0 0
      %993 = vmatprep.subr.bf16.mxu0 0
      %994 = vmatpush1.bf16.msra.mxu0 0
      %995 = vmatprep.subr.bf16.mxu0 0
      %996 = vmatpush1.bf16.msra.mxu0 0
      %997 = vmatprep.subr.bf16.mxu0 0
      %998 = vmatpush1.bf16.msra.mxu0 0
      %999 = vmatprep.subr.bf16.mxu0 0
      %1000 = vmatpush1.bf16.msra.mxu0 0
      %1001 = vmatprep.subr.bf16.mxu0 0
      %1002 = vmatpush1.bf16.msra.mxu0 0
      %1003 = vmatprep.subr.bf16.mxu0 0
      %1004 = vmatpush1.bf16.msra.mxu0 0
      %1005 = vmatprep.subr.bf16.mxu0 0
      %1006 = vmatpush1.bf16.msra.mxu0 0
      %1007 = vmatprep.subr.bf16.mxu0 0
      %1008 = vmatpush1.bf16.msra.mxu0 0
      %1009 = vmatprep.subr.bf16.mxu0 0
      %1010 = vmatpush1.bf16.msra.mxu0 0
      %1011 = vmatprep.mubr.bf16.mxu0 0
      %1012 = vmatmul.mubr.bf16.gmra.mrb[0].mxu0 %v641
      %v1013 = vpop.f32.mrb[0].mxu0
      %v1014 = vadd.f32 %v854, %v1013
      %v1015 = vpop.f32.mrb[0].mxu0
      %v1016 = vpop.f32.mrb[0].mxu0
      %v1017 = vpop.f32.mrb[0].mxu0
      %1018 = vdwg.mxu0
      %v1023 = vunpack.c.l.b16 %v565
      %v1024 = vunpack.c.l.b16 %v566
      %v1025 = vunpack.c.l.b16 %v567
      %v1026 = vunpack.c.l.b16 %v568
      %v1027 = vpack.c.b16 %v1024, %v1023
      %v1028 = vpack.c.b16 %v1026, %v1025
      %1031 = vmatprep.subr.bf16.mxu0 0
      %1032 = vmatpush1.bf16.msra.mxu0 %v1027
      %1033 = vmatprep.subr.bf16.mxu0 0
      %1034 = vmatpush1.bf16.msra.mxu0 %v1028
      %1035 = vmatprep.subr.bf16.mxu0 0
      %1036 = vmatpush1.bf16.msra.mxu0 0
      %1037 = vmatprep.subr.bf16.mxu0 0
      %1038 = vmatpush1.bf16.msra.mxu0 0
      %1039 = vmatprep.subr.bf16.mxu0 0
      %1040 = vmatpush1.bf16.msra.mxu0 0
      %1041 = vmatprep.subr.bf16.mxu0 0
      %1042 = vmatpush1.bf16.msra.mxu0 0
      %1043 = vmatprep.subr.bf16.mxu0 0
      %1044 = vmatpush1.bf16.msra.mxu0 0
      %1045 = vmatprep.subr.bf16.mxu0 0
      %1046 = vmatpush1.bf16.msra.mxu0 0
      %1047 = vmatprep.subr.bf16.mxu0 0
      %1048 = vmatpush1.bf16.msra.mxu0 0
      %1049 = vmatprep.subr.bf16.mxu0 0
      %1050 = vmatpush1.bf16.msra.mxu0 0
      %1051 = vmatprep.subr.bf16.mxu0 0
      %1052 = vmatpush1.bf16.msra.mxu0 0
      %1053 = vmatprep.subr.bf16.mxu0 0
      %1054 = vmatpush1.bf16.msra.mxu0 0
      %1055 = vmatprep.subr.bf16.mxu0 0
      %1056 = vmatpush1.bf16.msra.mxu0 0
      %1057 = vmatprep.subr.bf16.mxu0 0
      %1058 = vmatpush1.bf16.msra.mxu0 0
      %1059 = vmatprep.subr.bf16.mxu0 0
      %1060 = vmatpush1.bf16.msra.mxu0 0
      %1061 = vmatprep.subr.bf16.mxu0 0
      %1062 = vmatpush1.bf16.msra.mxu0 0
      %1063 = vmatprep.mubr.bf16.mxu0 0
      %1064 = vmatmul.mubr.bf16.gmra.mrb[0].mxu0 %v641
      %v1065 = vpop.f32.mrb[0].mxu0
      %v1066 = vadd.f32 %v858, %v1065
      %v1067 = vpop.f32.mrb[0].mxu0
      %v1068 = vpop.f32.mrb[0].mxu0
      %v1069 = vpop.f32.mrb[0].mxu0
      %1070 = vdwg.mxu0
      %v1075 = vlaneseq
      %v1076 = vshrl.u32 %v1075, 7
      %v1077 = vsub.s32 0, %v1076
      %v1078 = vrot.slane %v593, %v1077
      %v1079 = vlaneseq
      %v1080 = vshrl.u32 %v1079, 7
      %v1081 = vsub.s32 0, %v1080
      %v1082 = vrot.slane %v594, %v1081
      %v1083 = vlaneseq
      %v1084 = vshrl.u32 %v1083, 7
      %v1085 = vsub.s32 0, %v1084
      %v1086 = vrot.slane %v595, %v1085
      %v1087 = vlaneseq
      %v1088 = vshrl.u32 %v1087, 7
      %v1089 = vsub.s32 0, %v1088
      %v1090 = vrot.slane %v596, %v1089
      %v1099 = vunpack.c.l.b16 %v569
      %v1100 = vunpack.c.l.b16 %v570
      %v1101 = vunpack.c.l.b16 %v571
      %v1102 = vunpack.c.l.b16 %v572
      %v1103 = vpack.c.b16 %v1100, %v1099
      %v1104 = vpack.c.b16 %v1102, %v1101
      %1107 = vmatprep.subr.bf16.mxu0 0
      %1108 = vmatpush1.bf16.msra.mxu0 %v1103
      %1109 = vmatprep.subr.bf16.mxu0 0
      %1110 = vmatpush1.bf16.msra.mxu0 %v1104
      %1111 = vmatprep.subr.bf16.mxu0 0
      %1112 = vmatpush1.bf16.msra.mxu0 0
      %1113 = vmatprep.subr.bf16.mxu0 0
      %1114 = vmatpush1.bf16.msra.mxu0 0
      %1115 = vmatprep.subr.bf16.mxu0 0
      %1116 = vmatpush1.bf16.msra.mxu0 0
      %1117 = vmatprep.subr.bf16.mxu0 0
      %1118 = vmatpush1.bf16.msra.mxu0 0
      %1119 = vmatprep.subr.bf16.mxu0 0
      %1120 = vmatpush1.bf16.msra.mxu0 0
      %1121 = vmatprep.subr.bf16.mxu0 0
      %1122 = vmatpush1.bf16.msra.mxu0 0
      %1123 = vmatprep.subr.bf16.mxu0 0
      %1124 = vmatpush1.bf16.msra.mxu0 0
      %1125 = vmatprep.subr.bf16.mxu0 0
      %1126 = vmatpush1.bf16.msra.mxu0 0
      %1127 = vmatprep.subr.bf16.mxu0 0
      %1128 = vmatpush1.bf16.msra.mxu0 0
      %1129 = vmatprep.subr.bf16.mxu0 0
      %1130 = vmatpush1.bf16.msra.mxu0 0
      %1131 = vmatprep.subr.bf16.mxu0 0
      %1132 = vmatpush1.bf16.msra.mxu0 0
      %1133 = vmatprep.subr.bf16.mxu0 0
      %1134 = vmatpush1.bf16.msra.mxu0 0
      %1135 = vmatprep.subr.bf16.mxu0 0
      %1136 = vmatpush1.bf16.msra.mxu0 0
      %1137 = vmatprep.subr.bf16.mxu0 0
      %1138 = vmatpush1.bf16.msra.mxu0 0
      %1139 = vmatprep.mubr.bf16.mxu0 0
      %1140 = vmatmul.mubr.bf16.gmra.mrb[0].mxu0 %v641
      %v1141 = vpop.f32.mrb[0].mxu0
      %v1142 = vadd.f32 %v1078, %v1141
      %v1143 = vpop.f32.mrb[0].mxu0
      %v1144 = vpop.f32.mrb[0].mxu0
      %v1145 = vpop.f32.mrb[0].mxu0
      %1146 = vdwg.mxu0
      %v1151 = vunpack.c.l.b16 %v573
      %v1152 = vunpack.c.l.b16 %v574
      %v1153 = vunpack.c.l.b16 %v575
      %v1154 = vunpack.c.l.b16 %v576
      %v1155 = vpack.c.b16 %v1152, %v1151
      %v1156 = vpack.c.b16 %v1154, %v1153
      %1159 = vmatprep.subr.bf16.mxu0 0
      %1160 = vmatpush1.bf16.msra.mxu0 %v1155
      %1161 = vmatprep.subr.bf16.mxu0 0
      %1162 = vmatpush1.bf16.msra.mxu0 %v1156
      %1163 = vmatprep.subr.bf16.mxu0 0
      %1164 = vmatpush1.bf16.msra.mxu0 0
      %1165 = vmatprep.subr.bf16.mxu0 0
      %1166 = vmatpush1.bf16.msra.mxu0 0
      %1167 = vmatprep.subr.bf16.mxu0 0
      %1168 = vmatpush1.bf16.msra.mxu0 0
      %1169 = vmatprep.subr.bf16.mxu0 0
      %1170 = vmatpush1.bf16.msra.mxu0 0
      %1171 = vmatprep.subr.bf16.mxu0 0
      %1172 = vmatpush1.bf16.msra.mxu0 0
      %1173 = vmatprep.subr.bf16.mxu0 0
      %1174 = vmatpush1.bf16.msra.mxu0 0
      %1175 = vmatprep.subr.bf16.mxu0 0
      %1176 = vmatpush1.bf16.msra.mxu0 0
      %1177 = vmatprep.subr.bf16.mxu0 0
      %1178 = vmatpush1.bf16.msra.mxu0 0
      %1179 = vmatprep.subr.bf16.mxu0 0
      %1180 = vmatpush1.bf16.msra.mxu0 0
      %1181 = vmatprep.subr.bf16.mxu0 0
      %1182 = vmatpush1.bf16.msra.mxu0 0
      %1183 = vmatprep.subr.bf16.mxu0 0
      %1184 = vmatpush1.bf16.msra.mxu0 0
      %1185 = vmatprep.subr.bf16.mxu0 0
      %1186 = vmatpush1.bf16.msra.mxu0 0
      %1187 = vmatprep.subr.bf16.mxu0 0
      %1188 = vmatpush1.bf16.msra.mxu0 0
      %1189 = vmatprep.subr.bf16.mxu0 0
      %1190 = vmatpush1.bf16.msra.mxu0 0
      %1191 = vmatprep.mubr.bf16.mxu0 0
      %1192 = vmatmul.mubr.bf16.gmra.mrb[0].mxu0 %v641
      %v1193 = vpop.f32.mrb[0].mxu0
      %v1194 = vadd.f32 %v1082, %v1193
      %v1195 = vpop.f32.mrb[0].mxu0
      %v1196 = vpop.f32.mrb[0].mxu0
      %v1197 = vpop.f32.mrb[0].mxu0
      %1198 = vdwg.mxu0
      %v1203 = vunpack.c.l.b16 %v577
      %v1204 = vunpack.c.l.b16 %v578
      %v1205 = vunpack.c.l.b16 %v579
      %v1206 = vunpack.c.l.b16 %v580
      %v1207 = vpack.c.b16 %v1204, %v1203
      %v1208 = vpack.c.b16 %v1206, %v1205
      %1211 = vmatprep.subr.bf16.mxu0 0
      %1212 = vmatpush1.bf16.msra.mxu0 %v1207
      %1213 = vmatprep.subr.bf16.mxu0 0
      %1214 = vmatpush1.bf16.msra.mxu0 %v1208
      %1215 = vmatprep.subr.bf16.mxu0 0
      %1216 = vmatpush1.bf16.msra.mxu0 0
      %1217 = vmatprep.subr.bf16.mxu0 0
      %1218 = vmatpush1.bf16.msra.mxu0 0
      %1219 = vmatprep.subr.bf16.mxu0 0
      %1220 = vmatpush1.bf16.msra.mxu0 0
      %1221 = vmatprep.subr.bf16.mxu0 0
      %1222 = vmatpush1.bf16.msra.mxu0 0
      %1223 = vmatprep.subr.bf16.mxu0 0
      %1224 = vmatpush1.bf16.msra.mxu0 0
      %1225 = vmatprep.subr.bf16.mxu0 0
      %1226 = vmatpush1.bf16.msra.mxu0 0
      %1227 = vmatprep.subr.bf16.mxu0 0
      %1228 = vmatpush1.bf16.msra.mxu0 0
      %1229 = vmatprep.subr.bf16.mxu0 0
      %1230 = vmatpush1.bf16.msra.mxu0 0
      %1231 = vmatprep.subr.bf16.mxu0 0
      %1232 = vmatpush1.bf16.msra.mxu0 0
      %1233 = vmatprep.subr.bf16.mxu0 0
      %1234 = vmatpush1.bf16.msra.mxu0 0
      %1235 = vmatprep.subr.bf16.mxu0 0
      %1236 = vmatpush1.bf16.msra.mxu0 0
      %1237 = vmatprep.subr.bf16.mxu0 0
      %1238 = vmatpush1.bf16.msra.mxu0 0
      %1239 = vmatprep.subr.bf16.mxu0 0
      %1240 = vmatpush1.bf16.msra.mxu0 0
      %1241 = vmatprep.subr.bf16.mxu0 0
      %1242 = vmatpush1.bf16.msra.mxu0 0
      %1243 = vmatprep.mubr.bf16.mxu0 0
      %1244 = vmatmul.mubr.bf16.gmra.mrb[0].mxu0 %v641
      %v1245 = vpop.f32.mrb[0].mxu0
      %v1246 = vadd.f32 %v1086, %v1245
      %v1247 = vpop.f32.mrb[0].mxu0
      %v1248 = vpop.f32.mrb[0].mxu0
      %v1249 = vpop.f32.mrb[0].mxu0
      %1250 = vdwg.mxu0
      %v1255 = vunpack.c.l.b16 %v581
      %v1256 = vunpack.c.l.b16 %v582
      %v1257 = vunpack.c.l.b16 %v583
      %v1258 = vunpack.c.l.b16 %v584
      %v1259 = vpack.c.b16 %v1256, %v1255
      %v1260 = vpack.c.b16 %v1258, %v1257
      %1263 = vmatprep.subr.bf16.mxu0 0
      %1264 = vmatpush1.bf16.msra.mxu0 %v1259
      %1265 = vmatprep.subr.bf16.mxu0 0
      %1266 = vmatpush1.bf16.msra.mxu0 %v1260
      %1267 = vmatprep.subr.bf16.mxu0 0
      %1268 = vmatpush1.bf16.msra.mxu0 0
      %1269 = vmatprep.subr.bf16.mxu0 0
      %1270 = vmatpush1.bf16.msra.mxu0 0
      %1271 = vmatprep.subr.bf16.mxu0 0
      %1272 = vmatpush1.bf16.msra.mxu0 0
      %1273 = vmatprep.subr.bf16.mxu0 0
      %1274 = vmatpush1.bf16.msra.mxu0 0
      %1275 = vmatprep.subr.bf16.mxu0 0
      %1276 = vmatpush1.bf16.msra.mxu0 0
      %1277 = vmatprep.subr.bf16.mxu0 0
      %1278 = vmatpush1.bf16.msra.mxu0 0
      %1279 = vmatprep.subr.bf16.mxu0 0
      %1280 = vmatpush1.bf16.msra.mxu0 0
      %1281 = vmatprep.subr.bf16.mxu0 0
      %1282 = vmatpush1.bf16.msra.mxu0 0
      %1283 = vmatprep.subr.bf16.mxu0 0
      %1284 = vmatpush1.bf16.msra.mxu0 0
      %1285 = vmatprep.subr.bf16.mxu0 0
      %1286 = vmatpush1.bf16.msra.mxu0 0
      %1287 = vmatprep.subr.bf16.mxu0 0
      %1288 = vmatpush1.bf16.msra.mxu0 0
      %1289 = vmatprep.subr.bf16.mxu0 0
      %1290 = vmatpush1.bf16.msra.mxu0 0
      %1291 = vmatprep.subr.bf16.mxu0 0
      %1292 = vmatpush1.bf16.msra.mxu0 0
      %1293 = vmatprep.subr.bf16.mxu0 0
      %1294 = vmatpush1.bf16.msra.mxu0 0
      %1295 = vmatprep.mubr.bf16.mxu0 0
      %1296 = vmatmul.mubr.bf16.gmra.mrb[0].mxu0 %v641
      %v1297 = vpop.f32.mrb[0].mxu0
      %v1298 = vadd.f32 %v1090, %v1297
      %v1299 = vpop.f32.mrb[0].mxu0
      %v1300 = vpop.f32.mrb[0].mxu0
      %v1301 = vpop.f32.mrb[0].mxu0
      %1302 = vdwg.mxu0
      %v1303 = vmul.f32 %v678, 0.35355338
      %v1304 = vmul.f32 %v730, 0.35355338
      %v1305 = vmul.f32 %v782, 0.35355338
      %v1306 = vmul.f32 %v834, 0.35355338
      %v1307 = vpack.c.bf16 %v1303, %v1303
      %v1308 = vpack.c.bf16 %v1304, %v1304
      %v1309 = vpack.c.bf16 %v1305, %v1305
      %v1310 = vpack.c.bf16 %v1306, %v1306
      %v1311 = vpack.c.bf16 %v910, %v910
      %v1312 = vpack.c.bf16 %v962, %v962
      %v1313 = vpack.c.bf16 %v1014, %v1014
      %v1314 = vpack.c.bf16 %v1066, %v1066
      %vm1315 = vcmask 64512
      %v1317 = vsel %vm1315, %v1307, 0
      %v1320 = vsel %vm1315, %v1311, 0
      %1322 = vmatprep.subr.bf16.mxu0 0
      %1323 = vmatpush1.bf16.xpose.msra.mxu0 %v1320
      %1324 = vmatprep.subr.bf16.mxu0 0
      %1325 = vmatpush1.bf16.xpose.msra.mxu0 0
      %1326 = vmatprep.subr.bf16.mxu0 0
      %1327 = vmatpush1.bf16.xpose.msra.mxu0 0
      %1328 = vmatprep.subr.bf16.mxu0 0
      %1329 = vmatpush1.bf16.xpose.msra.mxu0 0
      %1330 = vmatprep.subr.bf16.mxu0 0
      %1331 = vmatpush1.bf16.xpose.msra.mxu0 0
      %1332 = vmatprep.subr.bf16.mxu0 0
      %1333 = vmatpush1.bf16.xpose.msra.mxu0 0
      %1334 = vmatprep.subr.bf16.mxu0 0
      %1335 = vmatpush1.bf16.xpose.msra.mxu0 0
      %1336 = vmatprep.subr.bf16.mxu0 0
      %1337 = vmatpush1.bf16.xpose.msra.mxu0 0
      %1338 = vmatprep.subr.bf16.mxu0 0
      %1339 = vmatpush1.bf16.xpose.msra.mxu0 0
      %1340 = vmatprep.subr.bf16.mxu0 0
      %1341 = vmatpush1.bf16.xpose.msra.mxu0 0
      %1342 = vmatprep.subr.bf16.mxu0 0
      %1343 = vmatpush1.bf16.xpose.msra.mxu0 0
      %1344 = vmatprep.subr.bf16.mxu0 0
      %1345 = vmatpush1.bf16.xpose.msra.mxu0 0
      %1346 = vmatprep.subr.bf16.mxu0 0
      %1347 = vmatpush1.bf16.xpose.msra.mxu0 0
      %1348 = vmatprep.subr.bf16.mxu0 0
      %1349 = vmatpush1.bf16.xpose.msra.mxu0 0
      %1350 = vmatprep.subr.bf16.mxu0 0
      %1351 = vmatpush1.bf16.xpose.msra.mxu0 0
      %1352 = vmatprep.subr.bf16.mxu0 0
      %1353 = vmatpush1.bf16.xpose.msra.mxu0 0
      %1354 = vmatprep.mubr.bf16.mxu0 0
      %1355 = vmatmul.mubr.bf16.gmra.mrb[0].mxu0 %v1317
      %v1356 = vpop.f32.mrb[0].mxu0
      %v1357 = vadd.f32 0.0, %v1356
      %v1358 = vpop.f32.mrb[0].mxu0
      %v1359 = vpop.f32.mrb[0].mxu0
      %v1360 = vpop.f32.mrb[0].mxu0
      %1361 = vdwg.mxu0
      %v1363 = vsel %vm1315, %v1308, 0
      %v1366 = vsel %vm1315, %v1312, 0
      %1368 = vmatprep.subr.bf16.mxu0 0
      %1369 = vmatpush1.bf16.xpose.msra.mxu0 %v1366
      %1370 = vmatprep.subr.bf16.mxu0 0
      %1371 = vmatpush1.bf16.xpose.msra.mxu0 0
      %1372 = vmatprep.subr.bf16.mxu0 0
      %1373 = vmatpush1.bf16.xpose.msra.mxu0 0
      %1374 = vmatprep.subr.bf16.mxu0 0
      %1375 = vmatpush1.bf16.xpose.msra.mxu0 0
      %1376 = vmatprep.subr.bf16.mxu0 0
      %1377 = vmatpush1.bf16.xpose.msra.mxu0 0
      %1378 = vmatprep.subr.bf16.mxu0 0
      %1379 = vmatpush1.bf16.xpose.msra.mxu0 0
      %1380 = vmatprep.subr.bf16.mxu0 0
      %1381 = vmatpush1.bf16.xpose.msra.mxu0 0
      %1382 = vmatprep.subr.bf16.mxu0 0
      %1383 = vmatpush1.bf16.xpose.msra.mxu0 0
      %1384 = vmatprep.subr.bf16.mxu0 0
      %1385 = vmatpush1.bf16.xpose.msra.mxu0 0
      %1386 = vmatprep.subr.bf16.mxu0 0
      %1387 = vmatpush1.bf16.xpose.msra.mxu0 0
      %1388 = vmatprep.subr.bf16.mxu0 0
      %1389 = vmatpush1.bf16.xpose.msra.mxu0 0
      %1390 = vmatprep.subr.bf16.mxu0 0
      %1391 = vmatpush1.bf16.xpose.msra.mxu0 0
      %1392 = vmatprep.subr.bf16.mxu0 0
      %1393 = vmatpush1.bf16.xpose.msra.mxu0 0
      %1394 = vmatprep.subr.bf16.mxu0 0
      %1395 = vmatpush1.bf16.xpose.msra.mxu0 0
      %1396 = vmatprep.subr.bf16.mxu0 0
      %1397 = vmatpush1.bf16.xpose.msra.mxu0 0
      %1398 = vmatprep.subr.bf16.mxu0 0
      %1399 = vmatpush1.bf16.xpose.msra.mxu0 0
      %1400 = vmatprep.mubr.bf16.mxu0 0
      %1401 = vmatmul.mubr.bf16.gmra.mrb[0].mxu0 %v1363
      %v1402 = vpop.f32.mrb[0].mxu0
      %v1403 = vadd.f32 0.0, %v1402
      %v1404 = vpop.f32.mrb[0].mxu0
      %v1405 = vpop.f32.mrb[0].mxu0
      %v1406 = vpop.f32.mrb[0].mxu0
      %1407 = vdwg.mxu0
      %v1409 = vsel %vm1315, %v1309, 0
      %v1412 = vsel %vm1315, %v1313, 0
      %1414 = vmatprep.subr.bf16.mxu0 0
      %1415 = vmatpush1.bf16.xpose.msra.mxu0 %v1412
      %1416 = vmatprep.subr.bf16.mxu0 0
      %1417 = vmatpush1.bf16.xpose.msra.mxu0 0
      %1418 = vmatprep.subr.bf16.mxu0 0
      %1419 = vmatpush1.bf16.xpose.msra.mxu0 0
      %1420 = vmatprep.subr.bf16.mxu0 0
      %1421 = vmatpush1.bf16.xpose.msra.mxu0 0
      %1422 = vmatprep.subr.bf16.mxu0 0
      %1423 = vmatpush1.bf16.xpose.msra.mxu0 0
      %1424 = vmatprep.subr.bf16.mxu0 0
      %1425 = vmatpush1.bf16.xpose.msra.mxu0 0
      %1426 = vmatprep.subr.bf16.mxu0 0
      %1427 = vmatpush1.bf16.xpose.msra.mxu0 0
      %1428 = vmatprep.subr.bf16.mxu0 0
      %1429 = vmatpush1.bf16.xpose.msra.mxu0 0
      %1430 = vmatprep.subr.bf16.mxu0 0
      %1431 = vmatpush1.bf16.xpose.msra.mxu0 0
      %1432 = vmatprep.subr.bf16.mxu0 0
      %1433 = vmatpush1.bf16.xpose.msra.mxu0 0
      %1434 = vmatprep.subr.bf16.mxu0 0
      %1435 = vmatpush1.bf16.xpose.msra.mxu0 0
      %1436 = vmatprep.subr.bf16.mxu0 0
      %1437 = vmatpush1.bf16.xpose.msra.mxu0 0
      %1438 = vmatprep.subr.bf16.mxu0 0
      %1439 = vmatpush1.bf16.xpose.msra.mxu0 0
      %1440 = vmatprep.subr.bf16.mxu0 0
      %1441 = vmatpush1.bf16.xpose.msra.mxu0 0
      %1442 = vmatprep.subr.bf16.mxu0 0
      %1443 = vmatpush1.bf16.xpose.msra.mxu0 0
      %1444 = vmatprep.subr.bf16.mxu0 0
      %1445 = vmatpush1.bf16.xpose.msra.mxu0 0
      %1446 = vmatprep.mubr.bf16.mxu0 0
      %1447 = vmatmul.mubr.bf16.gmra.mrb[0].mxu0 %v1409
      %v1448 = vpop.f32.mrb[0].mxu0
      %v1449 = vadd.f32 0.0, %v1448
      %v1450 = vpop.f32.mrb[0].mxu0
      %v1451 = vpop.f32.mrb[0].mxu0
      %v1452 = vpop.f32.mrb[0].mxu0
      %1453 = vdwg.mxu0
      %v1455 = vsel %vm1315, %v1310, 0
      %v1458 = vsel %vm1315, %v1314, 0
      %1460 = vmatprep.subr.bf16.mxu0 0
      %1461 = vmatpush1.bf16.xpose.msra.mxu0 %v1458
      %1462 = vmatprep.subr.bf16.mxu0 0
      %1463 = vmatpush1.bf16.xpose.msra.mxu0 0
      %1464 = vmatprep.subr.bf16.mxu0 0
      %1465 = vmatpush1.bf16.xpose.msra.mxu0 0
      %1466 = vmatprep.subr.bf16.mxu0 0
      %1467 = vmatpush1.bf16.xpose.msra.mxu0 0
      %1468 = vmatprep.subr.bf16.mxu0 0
      %1469 = vmatpush1.bf16.xpose.msra.mxu0 0
      %1470 = vmatprep.subr.bf16.mxu0 0
      %1471 = vmatpush1.bf16.xpose.msra.mxu0 0
      %1472 = vmatprep.subr.bf16.mxu0 0
      %1473 = vmatpush1.bf16.xpose.msra.mxu0 0
      %1474 = vmatprep.subr.bf16.mxu0 0
      %1475 = vmatpush1.bf16.xpose.msra.mxu0 0
      %1476 = vmatprep.subr.bf16.mxu0 0
      %1477 = vmatpush1.bf16.xpose.msra.mxu0 0
      %1478 = vmatprep.subr.bf16.mxu0 0
      %1479 = vmatpush1.bf16.xpose.msra.mxu0 0
      %1480 = vmatprep.subr.bf16.mxu0 0
      %1481 = vmatpush1.bf16.xpose.msra.mxu0 0
      %1482 = vmatprep.subr.bf16.mxu0 0
      %1483 = vmatpush1.bf16.xpose.msra.mxu0 0
      %1484 = vmatprep.subr.bf16.mxu0 0
      %1485 = vmatpush1.bf16.xpose.msra.mxu0 0
      %1486 = vmatprep.subr.bf16.mxu0 0
      %1487 = vmatpush1.bf16.xpose.msra.mxu0 0
      %1488 = vmatprep.subr.bf16.mxu0 0
      %1489 = vmatpush1.bf16.xpose.msra.mxu0 0
      %1490 = vmatprep.subr.bf16.mxu0 0
      %1491 = vmatpush1.bf16.xpose.msra.mxu0 0
      %1492 = vmatprep.mubr.bf16.mxu0 0
      %1493 = vmatmul.mubr.bf16.gmra.mrb[0].mxu0 %v1455
      %v1494 = vpop.f32.mrb[0].mxu0
      %v1495 = vadd.f32 0.0, %v1494
      %v1496 = vpop.f32.mrb[0].mxu0
      %v1497 = vpop.f32.mrb[0].mxu0
      %v1498 = vpop.f32.mrb[0].mxu0
      %1499 = vdwg.mxu0
      %v1500 = vsel %vm1315, %v1357, -inf
      %1501 = vmax.xlane.f32.xlu0 %v1500
      %v1502 = vpop.xlane.xlu0 %1501
      %v1503 = vsel %vm1315, %v1403, -inf
      %1504 = vmax.xlane.f32.xlu0 %v1503
      %v1505 = vpop.xlane.xlu0 %1504
      %v1506 = vsel %vm1315, %v1449, -inf
      %1507 = vmax.xlane.f32.xlu0 %v1506
      %v1508 = vpop.xlane.xlu0 %1507
      %v1509 = vsel %vm1315, %v1495, -inf
      %1510 = vmax.xlane.f32.xlu0 %v1509
      %v1511 = vpop.xlane.xlu0 %1510
      %v1512 = vsub.f32 %v1357, %v1502
      %v1513 = vsub.f32 %v1403, %v1505
      %v1514 = vsub.f32 %v1449, %v1508
      %v1515 = vsub.f32 %v1495, %v1511
      %v1516 = vmul.f32 %v1512, 1.442695
      %v1517 = vpow.pop %v1516
      %v1518 = vmul.f32 %v1513, 1.442695
      %v1519 = vpow.pop %v1518
      %v1520 = vmul.f32 %v1514, 1.442695
      %v1521 = vpow.pop %v1520
      %v1522 = vmul.f32 %v1515, 1.442695
      %v1523 = vpow.pop %v1522
      %v1524 = vsel %vm1315, %v1517, 0.0
      %1525 = vadd.xlane.f32.xlu0 %v1524
      %v1526 = vpop.xlane.xlu0 %1525
      %v1527 = vsel %vm1315, %v1519, 0.0
      %1528 = vadd.xlane.f32.xlu0 %v1527
      %v1529 = vpop.xlane.xlu0 %1528
      %v1530 = vsel %vm1315, %v1521, 0.0
      %1531 = vadd.xlane.f32.xlu0 %v1530
      %v1532 = vpop.xlane.xlu0 %1531
      %v1533 = vsel %vm1315, %v1523, 0.0
      %1534 = vadd.xlane.f32.xlu0 %v1533
      %v1535 = vpop.xlane.xlu0 %1534
      %v1536 = vrcp.pop %v1526
      %v1537 = vrcp.pop %v1529
      %v1538 = vrcp.pop %v1532
      %v1539 = vrcp.pop %v1535
      %v1540 = vmul.f32 %v1517, %v1536
      %v1541 = vmul.f32 %v1519, %v1537
      %v1542 = vmul.f32 %v1521, %v1538
      %v1543 = vmul.f32 %v1523, %v1539
      %v1544 = vpack.c.bf16 %v1540, %v1540
      %v1545 = vpack.c.bf16 %v1541, %v1541
      %v1546 = vpack.c.bf16 %v1542, %v1542
      %v1547 = vpack.c.bf16 %v1543, %v1543
      %v1548 = vpack.c.bf16 %v1142, %v1142
      %v1549 = vpack.c.bf16 %v1194, %v1194
      %v1550 = vpack.c.bf16 %v1246, %v1246
      %v1551 = vpack.c.bf16 %v1298, %v1298
      %v1553 = vsel %vm1315, %v1544, 0
      %vm1555 = vcmask 1043456
      %v1557 = vsel %vm1555, %v1548, 0
      %1559 = vmatprep.subr.bf16.mxu0 0
      %1560 = vmatpush1.bf16.msra.mxu0 %v1557
      %1561 = vmatprep.subr.bf16.mxu0 0
      %1562 = vmatpush1.bf16.msra.mxu0 0
      %1563 = vmatprep.subr.bf16.mxu0 0
      %1564 = vmatpush1.bf16.msra.mxu0 0
      %1565 = vmatprep.subr.bf16.mxu0 0
      %1566 = vmatpush1.bf16.msra.mxu0 0
      %1567 = vmatprep.subr.bf16.mxu0 0
      %1568 = vmatpush1.bf16.msra.mxu0 0
      %1569 = vmatprep.subr.bf16.mxu0 0
      %1570 = vmatpush1.bf16.msra.mxu0 0
      %1571 = vmatprep.subr.bf16.mxu0 0
      %1572 = vmatpush1.bf16.msra.mxu0 0
      %1573 = vmatprep.subr.bf16.mxu0 0
      %1574 = vmatpush1.bf16.msra.mxu0 0
      %1575 = vmatprep.subr.bf16.mxu0 0
      %1576 = vmatpush1.bf16.msra.mxu0 0
      %1577 = vmatprep.subr.bf16.mxu0 0
      %1578 = vmatpush1.bf16.msra.mxu0 0
      %1579 = vmatprep.subr.bf16.mxu0 0
      %1580 = vmatpush1.bf16.msra.mxu0 0
      %1581 = vmatprep.subr.bf16.mxu0 0
      %1582 = vmatpush1.bf16.msra.mxu0 0
      %1583 = vmatprep.subr.bf16.mxu0 0
      %1584 = vmatpush1.bf16.msra.mxu0 0
      %1585 = vmatprep.subr.bf16.mxu0 0
      %1586 = vmatpush1.bf16.msra.mxu0 0
      %1587 = vmatprep.subr.bf16.mxu0 0
      %1588 = vmatpush1.bf16.msra.mxu0 0
      %1589 = vmatprep.subr.bf16.mxu0 0
      %1590 = vmatpush1.bf16.msra.mxu0 0
      %1591 = vmatprep.mubr.bf16.mxu0 0
      %1592 = vmatmul.mubr.bf16.gmra.mrb[0].mxu0 %v1553
      %v1593 = vpop.f32.mrb[0].mxu0
      %v1594 = vadd.f32 0.0, %v1593
      %v1595 = vpop.f32.mrb[0].mxu0
      %v1596 = vpop.f32.mrb[0].mxu0
      %v1597 = vpop.f32.mrb[0].mxu0
      %1598 = vdwg.mxu0
      %v1600 = vsel %vm1315, %v1545, 0
      %v1603 = vsel %vm1555, %v1549, 0
      %1605 = vmatprep.subr.bf16.mxu0 0
      %1606 = vmatpush1.bf16.msra.mxu0 %v1603
      %1607 = vmatprep.subr.bf16.mxu0 0
      %1608 = vmatpush1.bf16.msra.mxu0 0
      %1609 = vmatprep.subr.bf16.mxu0 0
      %1610 = vmatpush1.bf16.msra.mxu0 0
      %1611 = vmatprep.subr.bf16.mxu0 0
      %1612 = vmatpush1.bf16.msra.mxu0 0
      %1613 = vmatprep.subr.bf16.mxu0 0
      %1614 = vmatpush1.bf16.msra.mxu0 0
      %1615 = vmatprep.subr.bf16.mxu0 0
      %1616 = vmatpush1.bf16.msra.mxu0 0
      %1617 = vmatprep.subr.bf16.mxu0 0
      %1618 = vmatpush1.bf16.msra.mxu0 0
      %1619 = vmatprep.subr.bf16.mxu0 0
      %1620 = vmatpush1.bf16.msra.mxu0 0
      %1621 = vmatprep.subr.bf16.mxu0 0
      %1622 = vmatpush1.bf16.msra.mxu0 0
      %1623 = vmatprep.subr.bf16.mxu0 0
      %1624 = vmatpush1.bf16.msra.mxu0 0
      %1625 = vmatprep.subr.bf16.mxu0 0
      %1626 = vmatpush1.bf16.msra.mxu0 0
      %1627 = vmatprep.subr.bf16.mxu0 0
      %1628 = vmatpush1.bf16.msra.mxu0 0
      %1629 = vmatprep.subr.bf16.mxu0 0
      %1630 = vmatpush1.bf16.msra.mxu0 0
      %1631 = vmatprep.subr.bf16.mxu0 0
      %1632 = vmatpush1.bf16.msra.mxu0 0
      %1633 = vmatprep.subr.bf16.mxu0 0
      %1634 = vmatpush1.bf16.msra.mxu0 0
      %1635 = vmatprep.subr.bf16.mxu0 0
      %1636 = vmatpush1.bf16.msra.mxu0 0
      %1637 = vmatprep.mubr.bf16.mxu0 0
      %1638 = vmatmul.mubr.bf16.gmra.mrb[0].mxu0 %v1600
      %v1639 = vpop.f32.mrb[0].mxu0
      %v1640 = vadd.f32 0.0, %v1639
      %v1641 = vpop.f32.mrb[0].mxu0
      %v1642 = vpop.f32.mrb[0].mxu0
      %v1643 = vpop.f32.mrb[0].mxu0
      %1644 = vdwg.mxu0
      %v1646 = vsel %vm1315, %v1546, 0
      %v1649 = vsel %vm1555, %v1550, 0
      %1651 = vmatprep.subr.bf16.mxu0 0
      %1652 = vmatpush1.bf16.msra.mxu0 %v1649
      %1653 = vmatprep.subr.bf16.mxu0 0
      %1654 = vmatpush1.bf16.msra.mxu0 0
      %1655 = vmatprep.subr.bf16.mxu0 0
      %1656 = vmatpush1.bf16.msra.mxu0 0
      %1657 = vmatprep.subr.bf16.mxu0 0
      %1658 = vmatpush1.bf16.msra.mxu0 0
      %1659 = vmatprep.subr.bf16.mxu0 0
      %1660 = vmatpush1.bf16.msra.mxu0 0
      %1661 = vmatprep.subr.bf16.mxu0 0
      %1662 = vmatpush1.bf16.msra.mxu0 0
      %1663 = vmatprep.subr.bf16.mxu0 0
      %1664 = vmatpush1.bf16.msra.mxu0 0
      %1665 = vmatprep.subr.bf16.mxu0 0
      %1666 = vmatpush1.bf16.msra.mxu0 0
      %1667 = vmatprep.subr.bf16.mxu0 0
      %1668 = vmatpush1.bf16.msra.mxu0 0
      %1669 = vmatprep.subr.bf16.mxu0 0
      %1670 = vmatpush1.bf16.msra.mxu0 0
      %1671 = vmatprep.subr.bf16.mxu0 0
      %1672 = vmatpush1.bf16.msra.mxu0 0
      %1673 = vmatprep.subr.bf16.mxu0 0
      %1674 = vmatpush1.bf16.msra.mxu0 0
      %1675 = vmatprep.subr.bf16.mxu0 0
      %1676 = vmatpush1.bf16.msra.mxu0 0
      %1677 = vmatprep.subr.bf16.mxu0 0
      %1678 = vmatpush1.bf16.msra.mxu0 0
      %1679 = vmatprep.subr.bf16.mxu0 0
      %1680 = vmatpush1.bf16.msra.mxu0 0
      %1681 = vmatprep.subr.bf16.mxu0 0
      %1682 = vmatpush1.bf16.msra.mxu0 0
      %1683 = vmatprep.mubr.bf16.mxu0 0
      %1684 = vmatmul.mubr.bf16.gmra.mrb[0].mxu0 %v1646
      %v1685 = vpop.f32.mrb[0].mxu0
      %v1686 = vadd.f32 0.0, %v1685
      %v1687 = vpop.f32.mrb[0].mxu0
      %v1688 = vpop.f32.mrb[0].mxu0
      %v1689 = vpop.f32.mrb[0].mxu0
      %1690 = vdwg.mxu0
      %v1692 = vsel %vm1315, %v1547, 0
      %v1695 = vsel %vm1555, %v1551, 0
      %1697 = vmatprep.subr.bf16.mxu0 0
      %1698 = vmatpush1.bf16.msra.mxu0 %v1695
      %1699 = vmatprep.subr.bf16.mxu0 0
      %1700 = vmatpush1.bf16.msra.mxu0 0
      %1701 = vmatprep.subr.bf16.mxu0 0
      %1702 = vmatpush1.bf16.msra.mxu0 0
      %1703 = vmatprep.subr.bf16.mxu0 0
      %1704 = vmatpush1.bf16.msra.mxu0 0
      %1705 = vmatprep.subr.bf16.mxu0 0
      %1706 = vmatpush1.bf16.msra.mxu0 0
      %1707 = vmatprep.subr.bf16.mxu0 0
      %1708 = vmatpush1.bf16.msra.mxu0 0
      %1709 = vmatprep.subr.bf16.mxu0 0
      %1710 = vmatpush1.bf16.msra.mxu0 0
      %1711 = vmatprep.subr.bf16.mxu0 0
      %1712 = vmatpush1.bf16.msra.mxu0 0
      %1713 = vmatprep.subr.bf16.mxu0 0
      %1714 = vmatpush1.bf16.msra.mxu0 0
      %1715 = vmatprep.subr.bf16.mxu0 0
      %1716 = vmatpush1.bf16.msra.mxu0 0
      %1717 = vmatprep.subr.bf16.mxu0 0
      %1718 = vmatpush1.bf16.msra.mxu0 0
      %1719 = vmatprep.subr.bf16.mxu0 0
      %1720 = vmatpush1.bf16.msra.mxu0 0
      %1721 = vmatprep.subr.bf16.mxu0 0
      %1722 = vmatpush1.bf16.msra.mxu0 0
      %1723 = vmatprep.subr.bf16.mxu0 0
      %1724 = vmatpush1.bf16.msra.mxu0 0
      %1725 = vmatprep.subr.bf16.mxu0 0
      %1726 = vmatpush1.bf16.msra.mxu0 0
      %1727 = vmatprep.subr.bf16.mxu0 0
      %1728 = vmatpush1.bf16.msra.mxu0 0
      %1729 = vmatprep.mubr.bf16.mxu0 0
      %1730 = vmatmul.mubr.bf16.gmra.mrb[0].mxu0 %v1692
      %v1731 = vpop.f32.mrb[0].mxu0
      %v1732 = vadd.f32 0.0, %v1731
      %v1733 = vpop.f32.mrb[0].mxu0
      %v1734 = vpop.f32.mrb[0].mxu0
      %v1735 = vpop.f32.mrb[0].mxu0
      %1736 = vdwg.mxu0
      %v1737 = vpack.c.bf16 %v1594, %v1594
      %v1738 = vpack.c.bf16 %v1640, %v1640
      %v1739 = vpack.c.bf16 %v1686, %v1686
      %v1740 = vpack.c.bf16 %v1732, %v1732
      %v1742 = vsel %vm1315, %v1737, 0
      %v1745 = vsel %vm1555, %v597, 0
      %1747 = vmatprep.subr.bf16.mxu0 0
      %1748 = vmatpush1.bf16.msra.mxu0 %v1745
      %1749 = vmatprep.subr.bf16.mxu0 0
      %1750 = vmatpush1.bf16.msra.mxu0 0
      %1751 = vmatprep.subr.bf16.mxu0 0
      %1752 = vmatpush1.bf16.msra.mxu0 0
      %1753 = vmatprep.subr.bf16.mxu0 0
      %1754 = vmatpush1.bf16.msra.mxu0 0
      %1755 = vmatprep.subr.bf16.mxu0 0
      %1756 = vmatpush1.bf16.msra.mxu0 0
      %1757 = vmatprep.subr.bf16.mxu0 0
      %1758 = vmatpush1.bf16.msra.mxu0 0
      %1759 = vmatprep.subr.bf16.mxu0 0
      %1760 = vmatpush1.bf16.msra.mxu0 0
      %1761 = vmatprep.subr.bf16.mxu0 0
      %1762 = vmatpush1.bf16.msra.mxu0 0
      %1763 = vmatprep.subr.bf16.mxu0 0
      %1764 = vmatpush1.bf16.msra.mxu0 0
      %1765 = vmatprep.subr.bf16.mxu0 0
      %1766 = vmatpush1.bf16.msra.mxu0 0
      %1767 = vmatprep.subr.bf16.mxu0 0
      %1768 = vmatpush1.bf16.msra.mxu0 0
      %1769 = vmatprep.subr.bf16.mxu0 0
      %1770 = vmatpush1.bf16.msra.mxu0 0
      %1771 = vmatprep.subr.bf16.mxu0 0
      %1772 = vmatpush1.bf16.msra.mxu0 0
      %1773 = vmatprep.subr.bf16.mxu0 0
      %1774 = vmatpush1.bf16.msra.mxu0 0
      %1775 = vmatprep.subr.bf16.mxu0 0
      %1776 = vmatpush1.bf16.msra.mxu0 0
      %1777 = vmatprep.subr.bf16.mxu0 0
      %1778 = vmatpush1.bf16.msra.mxu0 0
      %1779 = vmatprep.mubr.bf16.mxu0 0
      %1780 = vmatmul.mubr.bf16.gmra.mrb[0].mxu0 %v1742
      %v1781 = vpop.f32.mrb[0].mxu0
      %v1782 = vadd.f32 0.0, %v1781
      %v1783 = vpop.f32.mrb[0].mxu0
      %v1784 = vpop.f32.mrb[0].mxu0
      %v1785 = vpop.f32.mrb[0].mxu0
      %1786 = vdwg.mxu0
      %v1788 = vsel %vm1315, %v1738, 0
      %v1791 = vsel %vm1555, %v598, 0
      %1793 = vmatprep.subr.bf16.mxu0 0
      %1794 = vmatpush1.bf16.msra.mxu0 %v1791
      %1795 = vmatprep.subr.bf16.mxu0 0
      %1796 = vmatpush1.bf16.msra.mxu0 0
      %1797 = vmatprep.subr.bf16.mxu0 0
      %1798 = vmatpush1.bf16.msra.mxu0 0
      %1799 = vmatprep.subr.bf16.mxu0 0
      %1800 = vmatpush1.bf16.msra.mxu0 0
      %1801 = vmatprep.subr.bf16.mxu0 0
      %1802 = vmatpush1.bf16.msra.mxu0 0
      %1803 = vmatprep.subr.bf16.mxu0 0
      %1804 = vmatpush1.bf16.msra.mxu0 0
      %1805 = vmatprep.subr.bf16.mxu0 0
      %1806 = vmatpush1.bf16.msra.mxu0 0
      %1807 = vmatprep.subr.bf16.mxu0 0
      %1808 = vmatpush1.bf16.msra.mxu0 0
      %1809 = vmatprep.subr.bf16.mxu0 0
      %1810 = vmatpush1.bf16.msra.mxu0 0
      %1811 = vmatprep.subr.bf16.mxu0 0
      %1812 = vmatpush1.bf16.msra.mxu0 0
      %1813 = vmatprep.subr.bf16.mxu0 0
      %1814 = vmatpush1.bf16.msra.mxu0 0
      %1815 = vmatprep.subr.bf16.mxu0 0
      %1816 = vmatpush1.bf16.msra.mxu0 0
      %1817 = vmatprep.subr.bf16.mxu0 0
      %1818 = vmatpush1.bf16.msra.mxu0 0
      %1819 = vmatprep.subr.bf16.mxu0 0
      %1820 = vmatpush1.bf16.msra.mxu0 0
      %1821 = vmatprep.subr.bf16.mxu0 0
      %1822 = vmatpush1.bf16.msra.mxu0 0
      %1823 = vmatprep.subr.bf16.mxu0 0
      %1824 = vmatpush1.bf16.msra.mxu0 0
      %1825 = vmatprep.mubr.bf16.mxu0 0
      %1826 = vmatmul.mubr.bf16.gmra.mrb[0].mxu0 %v1788
      %v1827 = vpop.f32.mrb[0].mxu0
      %v1828 = vadd.f32 0.0, %v1827
      %v1829 = vpop.f32.mrb[0].mxu0
      %v1830 = vpop.f32.mrb[0].mxu0
      %v1831 = vpop.f32.mrb[0].mxu0
      %1832 = vdwg.mxu0
      %v1834 = vsel %vm1315, %v1739, 0
      %v1837 = vsel %vm1555, %v599, 0
      %1839 = vmatprep.subr.bf16.mxu0 0
      %1840 = vmatpush1.bf16.msra.mxu0 %v1837
      %1841 = vmatprep.subr.bf16.mxu0 0
      %1842 = vmatpush1.bf16.msra.mxu0 0
      %1843 = vmatprep.subr.bf16.mxu0 0
      %1844 = vmatpush1.bf16.msra.mxu0 0
      %1845 = vmatprep.subr.bf16.mxu0 0
      %1846 = vmatpush1.bf16.msra.mxu0 0
      %1847 = vmatprep.subr.bf16.mxu0 0
      %1848 = vmatpush1.bf16.msra.mxu0 0
      %1849 = vmatprep.subr.bf16.mxu0 0
      %1850 = vmatpush1.bf16.msra.mxu0 0
      %1851 = vmatprep.subr.bf16.mxu0 0
      %1852 = vmatpush1.bf16.msra.mxu0 0
      %1853 = vmatprep.subr.bf16.mxu0 0
      %1854 = vmatpush1.bf16.msra.mxu0 0
      %1855 = vmatprep.subr.bf16.mxu0 0
      %1856 = vmatpush1.bf16.msra.mxu0 0
      %1857 = vmatprep.subr.bf16.mxu0 0
      %1858 = vmatpush1.bf16.msra.mxu0 0
      %1859 = vmatprep.subr.bf16.mxu0 0
      %1860 = vmatpush1.bf16.msra.mxu0 0
      %1861 = vmatprep.subr.bf16.mxu0 0
      %1862 = vmatpush1.bf16.msra.mxu0 0
      %1863 = vmatprep.subr.bf16.mxu0 0
      %1864 = vmatpush1.bf16.msra.mxu0 0
      %1865 = vmatprep.subr.bf16.mxu0 0
      %1866 = vmatpush1.bf16.msra.mxu0 0
      %1867 = vmatprep.subr.bf16.mxu0 0
      %1868 = vmatpush1.bf16.msra.mxu0 0
      %1869 = vmatprep.subr.bf16.mxu0 0
      %1870 = vmatpush1.bf16.msra.mxu0 0
      %1871 = vmatprep.mubr.bf16.mxu0 0
      %1872 = vmatmul.mubr.bf16.gmra.mrb[0].mxu0 %v1834
      %v1873 = vpop.f32.mrb[0].mxu0
      %v1874 = vadd.f32 0.0, %v1873
      %v1875 = vpop.f32.mrb[0].mxu0
      %v1876 = vpop.f32.mrb[0].mxu0
      %v1877 = vpop.f32.mrb[0].mxu0
      %1878 = vdwg.mxu0
      %v1880 = vsel %vm1315, %v1740, 0
      %v1883 = vsel %vm1555, %v600, 0
      %1885 = vmatprep.subr.bf16.mxu0 0
      %1886 = vmatpush1.bf16.msra.mxu0 %v1883
      %1887 = vmatprep.subr.bf16.mxu0 0
      %1888 = vmatpush1.bf16.msra.mxu0 0
      %1889 = vmatprep.subr.bf16.mxu0 0
      %1890 = vmatpush1.bf16.msra.mxu0 0
      %1891 = vmatprep.subr.bf16.mxu0 0
      %1892 = vmatpush1.bf16.msra.mxu0 0
      %1893 = vmatprep.subr.bf16.mxu0 0
      %1894 = vmatpush1.bf16.msra.mxu0 0
      %1895 = vmatprep.subr.bf16.mxu0 0
      %1896 = vmatpush1.bf16.msra.mxu0 0
      %1897 = vmatprep.subr.bf16.mxu0 0
      %1898 = vmatpush1.bf16.msra.mxu0 0
      %1899 = vmatprep.subr.bf16.mxu0 0
      %1900 = vmatpush1.bf16.msra.mxu0 0
      %1901 = vmatprep.subr.bf16.mxu0 0
      %1902 = vmatpush1.bf16.msra.mxu0 0
      %1903 = vmatprep.subr.bf16.mxu0 0
      %1904 = vmatpush1.bf16.msra.mxu0 0
      %1905 = vmatprep.subr.bf16.mxu0 0
      %1906 = vmatpush1.bf16.msra.mxu0 0
      %1907 = vmatprep.subr.bf16.mxu0 0
      %1908 = vmatpush1.bf16.msra.mxu0 0
      %1909 = vmatprep.subr.bf16.mxu0 0
      %1910 = vmatpush1.bf16.msra.mxu0 0
      %1911 = vmatprep.subr.bf16.mxu0 0
      %1912 = vmatpush1.bf16.msra.mxu0 0
      %1913 = vmatprep.subr.bf16.mxu0 0
      %1914 = vmatpush1.bf16.msra.mxu0 0
      %1915 = vmatprep.subr.bf16.mxu0 0
      %1916 = vmatpush1.bf16.msra.mxu0 0
      %1917 = vmatprep.mubr.bf16.mxu0 0
      %1918 = vmatmul.mubr.bf16.gmra.mrb[0].mxu0 %v1880
      %v1919 = vpop.f32.mrb[0].mxu0
      %v1920 = vadd.f32 0.0, %v1919
      %v1921 = vpop.f32.mrb[0].mxu0
      %v1922 = vpop.f32.mrb[0].mxu0
      %v1923 = vpop.f32.mrb[0].mxu0
      %1924 = vdwg.mxu0
      %v1925 = vsel %vm639, %v1782, 0.0
      %v1926 = vsel %vm639, %v1828, 0.0
      %v1927 = vadd.f32 %v1925, %v1926
      %v1928 = vsel %vm639, %v1874, 0.0
      %v1929 = vadd.f32 %v1927, %v1928
      %v1930 = vsel %vm639, %v1920, 0.0
      %v1931 = vadd.f32 %v1929, %v1930
      %v1933 = vlaneseq
      %v1934 = vshrl.u32 %v1933, 7
      %v1935 = vsub.s32 0, %v1934
      %v1936 = vrot.slane %v601, %v1935
      %v1938 = vadd.f32 %v1931, %v1936
      %v1939 = vadd.f32 %v535, %v1938
      %v1940 = vld [vmem:[%s14] sm:$0x1]
      %v1941 = vld [vmem:[%s15] sm:$0x1]
      %v1942 = vsel %vm639, %v1939, 0.0
      %1943 = vadd.xlane.f32.xlu0 %v1942
      %v1944 = vpop.xlane.xlu0 %1943
      %v1945 = vrcp.pop 32.0
      %v1946 = vmul.f32 %v1944, %v1945
      %v1947 = vsub.f32 %v1939, %v1946
      %v1948 = vmul.f32 %v1947, %v1947
      %v1949 = vsel %vm639, %v1948, 0.0
      %1950 = vadd.xlane.f32.xlu0 %v1949
      %v1951 = vpop.xlane.xlu0 %1950
      %v1952 = vmul.f32 %v1951, %v1945
      %v1953 = vadd.f32 %v1952, 1e-05
      %v1954 = vrsqrt.pop %v1953
      %v1955 = vmul.f32 %v1947, %v1954
      %v1956 = vlaneseq
      %v1957 = vshrl.u32 %v1956, 7
      %v1958 = vsub.s32 0, %v1957
      %v1959 = vrot.slane %v1940, %v1958
      %v1960 = vmul.f32 %v1955, %v1959
      %v1961 = vlaneseq
      %v1962 = vshrl.u32 %v1961, 7
      %v1963 = vsub.s32 0, %v1962
      %v1964 = vrot.slane %v1941, %v1963
      %v1965 = vadd.f32 %v1960, %v1964
      %v1966 = vld [vmem:[%s6] sm:$0xf]
      %v1967 = vld [vmem:[%s6 + $0x4] sm:$0xf]
      %v1968 = vld [vmem:[%s6 + $0x8] sm:$0xf]
      %v1969 = vld [vmem:[%s6 + $0xc] sm:$0xf]
      %v1970 = vld [vmem:[%s6 + $0x10] sm:$0xf]
      %v1971 = vld [vmem:[%s6 + $0x14] sm:$0xf]
      %v1972 = vld [vmem:[%s6 + $0x18] sm:$0xf]
      %v1973 = vld [vmem:[%s6 + $0x1c] sm:$0xf]
      %v1974 = vld [vmem:[%s6 + $0x20] sm:$0xf]
      %v1975 = vld [vmem:[%s6 + $0x24] sm:$0xf]
      %v1976 = vld [vmem:[%s6 + $0x28] sm:$0xf]
      %v1977 = vld [vmem:[%s6 + $0x2c] sm:$0xf]
      %v1978 = vld [vmem:[%s6 + $0x30] sm:$0xf]
      %v1979 = vld [vmem:[%s6 + $0x34] sm:$0xf]
      %v1980 = vld [vmem:[%s6 + $0x38] sm:$0xf]
      %v1981 = vld [vmem:[%s6 + $0x3c] sm:$0xf]
      %v1982 = vld [vmem:[%s6 + $0x40] sm:$0xf]
      %v1983 = vld [vmem:[%s6 + $0x44] sm:$0xf]
      %v1984 = vld [vmem:[%s6 + $0x48] sm:$0xf]
      %v1985 = vld [vmem:[%s6 + $0x4c] sm:$0xf]
      %v1986 = vld [vmem:[%s6 + $0x50] sm:$0xf]
      %v1987 = vld [vmem:[%s6 + $0x54] sm:$0xf]
      %v1988 = vld [vmem:[%s6 + $0x58] sm:$0xf]
      %v1989 = vld [vmem:[%s6 + $0x5c] sm:$0xf]
      %v1990 = vld [vmem:[%s6 + $0x60] sm:$0xf]
      %v1991 = vld [vmem:[%s6 + $0x64] sm:$0xf]
      %v1992 = vld [vmem:[%s6 + $0x68] sm:$0xf]
      %v1993 = vld [vmem:[%s6 + $0x6c] sm:$0xf]
      %v1994 = vld [vmem:[%s6 + $0x70] sm:$0xf]
      %v1995 = vld [vmem:[%s6 + $0x74] sm:$0xf]
      %v1996 = vld [vmem:[%s6 + $0x78] sm:$0xf]
      %v1997 = vld [vmem:[%s6 + $0x7c] sm:$0xf]
      %v1998 = vld [vmem:[%s6 + $0x80] sm:$0xf]
      %v1999 = vld [vmem:[%s6 + $0x84] sm:$0xf]
      %v2000 = vld [vmem:[%s6 + $0x88] sm:$0xf]
      %v2001 = vld [vmem:[%s6 + $0x8c] sm:$0xf]
      %v2002 = vld [vmem:[%s6 + $0x90] sm:$0xf]
      %v2003 = vld [vmem:[%s6 + $0x94] sm:$0xf]
      %v2004 = vld [vmem:[%s6 + $0x98] sm:$0xf]
      %v2005 = vld [vmem:[%s6 + $0x9c] sm:$0xf]
      %v2006 = vld [vmem:[%s6 + $0xa0] sm:$0xf]
      %v2007 = vld [vmem:[%s6 + $0xa4] sm:$0xf]
      %v2008 = vld [vmem:[%s6 + $0xa8] sm:$0xf]
      %v2009 = vld [vmem:[%s6 + $0xac] sm:$0xf]
      %v2010 = vld [vmem:[%s6 + $0xb0] sm:$0xf]
      %v2011 = vld [vmem:[%s6 + $0xb4] sm:$0xf]
      %v2012 = vld [vmem:[%s6 + $0xb8] sm:$0xf]
      %v2013 = vld [vmem:[%s6 + $0xbc] sm:$0xf]
      %v2014 = vld [vmem:[%s7] sm:$0x1]
      %v2015 = vld [vmem:[%s7 + $0x1] sm:$0x1]
      %v2016 = vld [vmem:[%s7 + $0x2] sm:$0x1]
      %v2017 = vld [vmem:[%s7 + $0x3] sm:$0x1]
      %v2018 = vld [vmem:[%s7 + $0x4] sm:$0x1]
      %v2019 = vld [vmem:[%s7 + $0x5] sm:$0x1]
      %v2020 = vld [vmem:[%s7 + $0x6] sm:$0x1]
      %v2021 = vld [vmem:[%s7 + $0x7] sm:$0x1]
      %v2022 = vld [vmem:[%s7 + $0x8] sm:$0x1]
      %v2023 = vld [vmem:[%s7 + $0x9] sm:$0x1]
      %v2024 = vld [vmem:[%s7 + $0xa] sm:$0x1]
      %v2025 = vld [vmem:[%s7 + $0xb] sm:$0x1]
      %v2026 = vld [vmem:[%s8] sm:$0xf]
      %v2027 = vld [vmem:[%s8 + $0x4] sm:$0xf]
      %v2028 = vld [vmem:[%s8 + $0x8] sm:$0xf]
      %v2029 = vld [vmem:[%s8 + $0xc] sm:$0xf]
      %v2030 = vld [vmem:[%s9] sm:$0x1]
      %v2031 = vpack.c.bf16 %v1965, %v1965
      %v2032 = vpack.c.bf16 %v536, %v536
      %v2037 = vlaneseq
      %v2038 = vshrl.u32 %v2037, 7
      %v2039 = vsub.s32 0, %v2038
      %v2040 = vrot.slane %v2014, %v2039
      %v2041 = vlaneseq
      %v2042 = vshrl.u32 %v2041, 7
      %v2043 = vsub.s32 0, %v2042
      %v2044 = vrot.slane %v2015, %v2043
      %v2045 = vlaneseq
      %v2046 = vshrl.u32 %v2045, 7
      %v2047 = vsub.s32 0, %v2046
      %v2048 = vrot.slane %v2016, %v2047
      %v2049 = vlaneseq
      %v2050 = vshrl.u32 %v2049, 7
      %v2051 = vsub.s32 0, %v2050
      %v2052 = vrot.slane %v2017, %v2051
      %v2061 = vunpack.c.l.b16 %v1966
      %v2062 = vunpack.c.l.b16 %v1967
      %v2063 = vunpack.c.l.b16 %v1968
      %v2064 = vunpack.c.l.b16 %v1969
      %v2065 = vpack.c.b16 %v2062, %v2061
      %v2066 = vpack.c.b16 %v2064, %v2063
      %v2070 = vsel %vm639, %v2031, 0
      %2072 = vmatprep.subr.bf16.mxu0 0
      %2073 = vmatpush1.bf16.msra.mxu0 %v2065
      %2074 = vmatprep.subr.bf16.mxu0 0
      %2075 = vmatpush1.bf16.msra.mxu0 %v2066
      %2076 = vmatprep.subr.bf16.mxu0 0
      %2077 = vmatpush1.bf16.msra.mxu0 0
      %2078 = vmatprep.subr.bf16.mxu0 0
      %2079 = vmatpush1.bf16.msra.mxu0 0
      %2080 = vmatprep.subr.bf16.mxu0 0
      %2081 = vmatpush1.bf16.msra.mxu0 0
      %2082 = vmatprep.subr.bf16.mxu0 0
      %2083 = vmatpush1.bf16.msra.mxu0 0
      %2084 = vmatprep.subr.bf16.mxu0 0
      %2085 = vmatpush1.bf16.msra.mxu0 0
      %2086 = vmatprep.subr.bf16.mxu0 0
      %2087 = vmatpush1.bf16.msra.mxu0 0
      %2088 = vmatprep.subr.bf16.mxu0 0
      %2089 = vmatpush1.bf16.msra.mxu0 0
      %2090 = vmatprep.subr.bf16.mxu0 0
      %2091 = vmatpush1.bf16.msra.mxu0 0
      %2092 = vmatprep.subr.bf16.mxu0 0
      %2093 = vmatpush1.bf16.msra.mxu0 0
      %2094 = vmatprep.subr.bf16.mxu0 0
      %2095 = vmatpush1.bf16.msra.mxu0 0
      %2096 = vmatprep.subr.bf16.mxu0 0
      %2097 = vmatpush1.bf16.msra.mxu0 0
      %2098 = vmatprep.subr.bf16.mxu0 0
      %2099 = vmatpush1.bf16.msra.mxu0 0
      %2100 = vmatprep.subr.bf16.mxu0 0
      %2101 = vmatpush1.bf16.msra.mxu0 0
      %2102 = vmatprep.subr.bf16.mxu0 0
      %2103 = vmatpush1.bf16.msra.mxu0 0
      %2104 = vmatprep.mubr.bf16.mxu0 0
      %2105 = vmatmul.mubr.bf16.gmra.mrb[0].mxu0 %v2070
      %v2106 = vpop.f32.mrb[0].mxu0
      %v2107 = vadd.f32 %v2040, %v2106
      %v2108 = vpop.f32.mrb[0].mxu0
      %v2109 = vpop.f32.mrb[0].mxu0
      %v2110 = vpop.f32.mrb[0].mxu0
      %2111 = vdwg.mxu0
      %v2116 = vunpack.c.l.b16 %v1970
      %v2117 = vunpack.c.l.b16 %v1971
      %v2118 = vunpack.c.l.b16 %v1972
      %v2119 = vunpack.c.l.b16 %v1973
      %v2120 = vpack.c.b16 %v2117, %v2116
      %v2121 = vpack.c.b16 %v2119, %v2118
      %2124 = vmatprep.subr.bf16.mxu0 0
      %2125 = vmatpush1.bf16.msra.mxu0 %v2120
      %2126 = vmatprep.subr.bf16.mxu0 0
      %2127 = vmatpush1.bf16.msra.mxu0 %v2121
      %2128 = vmatprep.subr.bf16.mxu0 0
      %2129 = vmatpush1.bf16.msra.mxu0 0
      %2130 = vmatprep.subr.bf16.mxu0 0
      %2131 = vmatpush1.bf16.msra.mxu0 0
      %2132 = vmatprep.subr.bf16.mxu0 0
      %2133 = vmatpush1.bf16.msra.mxu0 0
      %2134 = vmatprep.subr.bf16.mxu0 0
      %2135 = vmatpush1.bf16.msra.mxu0 0
      %2136 = vmatprep.subr.bf16.mxu0 0
      %2137 = vmatpush1.bf16.msra.mxu0 0
      %2138 = vmatprep.subr.bf16.mxu0 0
      %2139 = vmatpush1.bf16.msra.mxu0 0
      %2140 = vmatprep.subr.bf16.mxu0 0
      %2141 = vmatpush1.bf16.msra.mxu0 0
      %2142 = vmatprep.subr.bf16.mxu0 0
      %2143 = vmatpush1.bf16.msra.mxu0 0
      %2144 = vmatprep.subr.bf16.mxu0 0
      %2145 = vmatpush1.bf16.msra.mxu0 0
      %2146 = vmatprep.subr.bf16.mxu0 0
      %2147 = vmatpush1.bf16.msra.mxu0 0
      %2148 = vmatprep.subr.bf16.mxu0 0
      %2149 = vmatpush1.bf16.msra.mxu0 0
      %2150 = vmatprep.subr.bf16.mxu0 0
      %2151 = vmatpush1.bf16.msra.mxu0 0
      %2152 = vmatprep.subr.bf16.mxu0 0
      %2153 = vmatpush1.bf16.msra.mxu0 0
      %2154 = vmatprep.subr.bf16.mxu0 0
      %2155 = vmatpush1.bf16.msra.mxu0 0
      %2156 = vmatprep.mubr.bf16.mxu0 0
      %2157 = vmatmul.mubr.bf16.gmra.mrb[0].mxu0 %v2070
      %v2158 = vpop.f32.mrb[0].mxu0
      %v2159 = vadd.f32 %v2044, %v2158
      %v2160 = vpop.f32.mrb[0].mxu0
      %v2161 = vpop.f32.mrb[0].mxu0
      %v2162 = vpop.f32.mrb[0].mxu0
      %2163 = vdwg.mxu0
      %v2168 = vunpack.c.l.b16 %v1974
      %v2169 = vunpack.c.l.b16 %v1975
      %v2170 = vunpack.c.l.b16 %v1976
      %v2171 = vunpack.c.l.b16 %v1977
      %v2172 = vpack.c.b16 %v2169, %v2168
      %v2173 = vpack.c.b16 %v2171, %v2170
      %2176 = vmatprep.subr.bf16.mxu0 0
      %2177 = vmatpush1.bf16.msra.mxu0 %v2172
      %2178 = vmatprep.subr.bf16.mxu0 0
      %2179 = vmatpush1.bf16.msra.mxu0 %v2173
      %2180 = vmatprep.subr.bf16.mxu0 0
      %2181 = vmatpush1.bf16.msra.mxu0 0
      %2182 = vmatprep.subr.bf16.mxu0 0
      %2183 = vmatpush1.bf16.msra.mxu0 0
      %2184 = vmatprep.subr.bf16.mxu0 0
      %2185 = vmatpush1.bf16.msra.mxu0 0
      %2186 = vmatprep.subr.bf16.mxu0 0
      %2187 = vmatpush1.bf16.msra.mxu0 0
      %2188 = vmatprep.subr.bf16.mxu0 0
      %2189 = vmatpush1.bf16.msra.mxu0 0
      %2190 = vmatprep.subr.bf16.mxu0 0
      %2191 = vmatpush1.bf16.msra.mxu0 0
      %2192 = vmatprep.subr.bf16.mxu0 0
      %2193 = vmatpush1.bf16.msra.mxu0 0
      %2194 = vmatprep.subr.bf16.mxu0 0
      %2195 = vmatpush1.bf16.msra.mxu0 0
      %2196 = vmatprep.subr.bf16.mxu0 0
      %2197 = vmatpush1.bf16.msra.mxu0 0
      %2198 = vmatprep.subr.bf16.mxu0 0
      %2199 = vmatpush1.bf16.msra.mxu0 0
      %2200 = vmatprep.subr.bf16.mxu0 0
      %2201 = vmatpush1.bf16.msra.mxu0 0
      %2202 = vmatprep.subr.bf16.mxu0 0
      %2203 = vmatpush1.bf16.msra.mxu0 0
      %2204 = vmatprep.subr.bf16.mxu0 0
      %2205 = vmatpush1.bf16.msra.mxu0 0
      %2206 = vmatprep.subr.bf16.mxu0 0
      %2207 = vmatpush1.bf16.msra.mxu0 0
      %2208 = vmatprep.mubr.bf16.mxu0 0
      %2209 = vmatmul.mubr.bf16.gmra.mrb[0].mxu0 %v2070
      %v2210 = vpop.f32.mrb[0].mxu0
      %v2211 = vadd.f32 %v2048, %v2210
      %v2212 = vpop.f32.mrb[0].mxu0
      %v2213 = vpop.f32.mrb[0].mxu0
      %v2214 = vpop.f32.mrb[0].mxu0
      %2215 = vdwg.mxu0
      %v2220 = vunpack.c.l.b16 %v1978
      %v2221 = vunpack.c.l.b16 %v1979
      %v2222 = vunpack.c.l.b16 %v1980
      %v2223 = vunpack.c.l.b16 %v1981
      %v2224 = vpack.c.b16 %v2221, %v2220
      %v2225 = vpack.c.b16 %v2223, %v2222
      %2228 = vmatprep.subr.bf16.mxu0 0
      %2229 = vmatpush1.bf16.msra.mxu0 %v2224
      %2230 = vmatprep.subr.bf16.mxu0 0
      %2231 = vmatpush1.bf16.msra.mxu0 %v2225
      %2232 = vmatprep.subr.bf16.mxu0 0
      %2233 = vmatpush1.bf16.msra.mxu0 0
      %2234 = vmatprep.subr.bf16.mxu0 0
      %2235 = vmatpush1.bf16.msra.mxu0 0
      %2236 = vmatprep.subr.bf16.mxu0 0
      %2237 = vmatpush1.bf16.msra.mxu0 0
      %2238 = vmatprep.subr.bf16.mxu0 0
      %2239 = vmatpush1.bf16.msra.mxu0 0
      %2240 = vmatprep.subr.bf16.mxu0 0
      %2241 = vmatpush1.bf16.msra.mxu0 0
      %2242 = vmatprep.subr.bf16.mxu0 0
      %2243 = vmatpush1.bf16.msra.mxu0 0
      %2244 = vmatprep.subr.bf16.mxu0 0
      %2245 = vmatpush1.bf16.msra.mxu0 0
      %2246 = vmatprep.subr.bf16.mxu0 0
      %2247 = vmatpush1.bf16.msra.mxu0 0
      %2248 = vmatprep.subr.bf16.mxu0 0
      %2249 = vmatpush1.bf16.msra.mxu0 0
      %2250 = vmatprep.subr.bf16.mxu0 0
      %2251 = vmatpush1.bf16.msra.mxu0 0
      %2252 = vmatprep.subr.bf16.mxu0 0
      %2253 = vmatpush1.bf16.msra.mxu0 0
      %2254 = vmatprep.subr.bf16.mxu0 0
      %2255 = vmatpush1.bf16.msra.mxu0 0
      %2256 = vmatprep.subr.bf16.mxu0 0
      %2257 = vmatpush1.bf16.msra.mxu0 0
      %2258 = vmatprep.subr.bf16.mxu0 0
      %2259 = vmatpush1.bf16.msra.mxu0 0
      %2260 = vmatprep.mubr.bf16.mxu0 0
      %2261 = vmatmul.mubr.bf16.gmra.mrb[0].mxu0 %v2070
      %v2262 = vpop.f32.mrb[0].mxu0
      %v2263 = vadd.f32 %v2052, %v2262
      %v2264 = vpop.f32.mrb[0].mxu0
      %v2265 = vpop.f32.mrb[0].mxu0
      %v2266 = vpop.f32.mrb[0].mxu0
      %2267 = vdwg.mxu0
      %v2272 = vlaneseq
      %v2273 = vshrl.u32 %v2272, 7
      %v2274 = vsub.s32 0, %v2273
      %v2275 = vrot.slane %v2018, %v2274
      %v2276 = vlaneseq
      %v2277 = vshrl.u32 %v2276, 7
      %v2278 = vsub.s32 0, %v2277
      %v2279 = vrot.slane %v2019, %v2278
      %v2280 = vlaneseq
      %v2281 = vshrl.u32 %v2280, 7
      %v2282 = vsub.s32 0, %v2281
      %v2283 = vrot.slane %v2020, %v2282
      %v2284 = vlaneseq
      %v2285 = vshrl.u32 %v2284, 7
      %v2286 = vsub.s32 0, %v2285
      %v2287 = vrot.slane %v2021, %v2286
      %v2296 = vunpack.c.l.b16 %v1982
      %v2297 = vunpack.c.l.b16 %v1983
      %v2298 = vunpack.c.l.b16 %v1984
      %v2299 = vunpack.c.l.b16 %v1985
      %v2300 = vpack.c.b16 %v2297, %v2296
      %v2301 = vpack.c.b16 %v2299, %v2298
      %v2305 = vsel %vm639, %v2032, 0
      %2307 = vmatprep.subr.bf16.mxu0 0
      %2308 = vmatpush1.bf16.msra.mxu0 %v2300
      %2309 = vmatprep.subr.bf16.mxu0 0
      %2310 = vmatpush1.bf16.msra.mxu0 %v2301
      %2311 = vmatprep.subr.bf16.mxu0 0
      %2312 = vmatpush1.bf16.msra.mxu0 0
      %2313 = vmatprep.subr.bf16.mxu0 0
      %2314 = vmatpush1.bf16.msra.mxu0 0
      %2315 = vmatprep.subr.bf16.mxu0 0
      %2316 = vmatpush1.bf16.msra.mxu0 0
      %2317 = vmatprep.subr.bf16.mxu0 0
      %2318 = vmatpush1.bf16.msra.mxu0 0
      %2319 = vmatprep.subr.bf16.mxu0 0
      %2320 = vmatpush1.bf16.msra.mxu0 0
      %2321 = vmatprep.subr.bf16.mxu0 0
      %2322 = vmatpush1.bf16.msra.mxu0 0
      %2323 = vmatprep.subr.bf16.mxu0 0
      %2324 = vmatpush1.bf16.msra.mxu0 0
      %2325 = vmatprep.subr.bf16.mxu0 0
      %2326 = vmatpush1.bf16.msra.mxu0 0
      %2327 = vmatprep.subr.bf16.mxu0 0
      %2328 = vmatpush1.bf16.msra.mxu0 0
      %2329 = vmatprep.subr.bf16.mxu0 0
      %2330 = vmatpush1.bf16.msra.mxu0 0
      %2331 = vmatprep.subr.bf16.mxu0 0
      %2332 = vmatpush1.bf16.msra.mxu0 0
      %2333 = vmatprep.subr.bf16.mxu0 0
      %2334 = vmatpush1.bf16.msra.mxu0 0
      %2335 = vmatprep.subr.bf16.mxu0 0
      %2336 = vmatpush1.bf16.msra.mxu0 0
      %2337 = vmatprep.subr.bf16.mxu0 0
      %2338 = vmatpush1.bf16.msra.mxu0 0
      %2339 = vmatprep.mubr.bf16.mxu0 0
      %2340 = vmatmul.mubr.bf16.gmra.mrb[0].mxu0 %v2305
      %v2341 = vpop.f32.mrb[0].mxu0
      %v2342 = vadd.f32 %v2275, %v2341
      %v2343 = vpop.f32.mrb[0].mxu0
      %v2344 = vpop.f32.mrb[0].mxu0
      %v2345 = vpop.f32.mrb[0].mxu0
      %2346 = vdwg.mxu0
      %v2351 = vunpack.c.l.b16 %v1986
      %v2352 = vunpack.c.l.b16 %v1987
      %v2353 = vunpack.c.l.b16 %v1988
      %v2354 = vunpack.c.l.b16 %v1989
      %v2355 = vpack.c.b16 %v2352, %v2351
      %v2356 = vpack.c.b16 %v2354, %v2353
      %2359 = vmatprep.subr.bf16.mxu0 0
      %2360 = vmatpush1.bf16.msra.mxu0 %v2355
      %2361 = vmatprep.subr.bf16.mxu0 0
      %2362 = vmatpush1.bf16.msra.mxu0 %v2356
      %2363 = vmatprep.subr.bf16.mxu0 0
      %2364 = vmatpush1.bf16.msra.mxu0 0
      %2365 = vmatprep.subr.bf16.mxu0 0
      %2366 = vmatpush1.bf16.msra.mxu0 0
      %2367 = vmatprep.subr.bf16.mxu0 0
      %2368 = vmatpush1.bf16.msra.mxu0 0
      %2369 = vmatprep.subr.bf16.mxu0 0
      %2370 = vmatpush1.bf16.msra.mxu0 0
      %2371 = vmatprep.subr.bf16.mxu0 0
      %2372 = vmatpush1.bf16.msra.mxu0 0
      %2373 = vmatprep.subr.bf16.mxu0 0
      %2374 = vmatpush1.bf16.msra.mxu0 0
      %2375 = vmatprep.subr.bf16.mxu0 0
      %2376 = vmatpush1.bf16.msra.mxu0 0
      %2377 = vmatprep.subr.bf16.mxu0 0
      %2378 = vmatpush1.bf16.msra.mxu0 0
      %2379 = vmatprep.subr.bf16.mxu0 0
      %2380 = vmatpush1.bf16.msra.mxu0 0
      %2381 = vmatprep.subr.bf16.mxu0 0
      %2382 = vmatpush1.bf16.msra.mxu0 0
      %2383 = vmatprep.subr.bf16.mxu0 0
      %2384 = vmatpush1.bf16.msra.mxu0 0
      %2385 = vmatprep.subr.bf16.mxu0 0
      %2386 = vmatpush1.bf16.msra.mxu0 0
      %2387 = vmatprep.subr.bf16.mxu0 0
      %2388 = vmatpush1.bf16.msra.mxu0 0
      %2389 = vmatprep.subr.bf16.mxu0 0
      %2390 = vmatpush1.bf16.msra.mxu0 0
      %2391 = vmatprep.mubr.bf16.mxu0 0
      %2392 = vmatmul.mubr.bf16.gmra.mrb[0].mxu0 %v2305
      %v2393 = vpop.f32.mrb[0].mxu0
      %v2394 = vadd.f32 %v2279, %v2393
      %v2395 = vpop.f32.mrb[0].mxu0
      %v2396 = vpop.f32.mrb[0].mxu0
      %v2397 = vpop.f32.mrb[0].mxu0
      %2398 = vdwg.mxu0
      %v2403 = vunpack.c.l.b16 %v1990
      %v2404 = vunpack.c.l.b16 %v1991
      %v2405 = vunpack.c.l.b16 %v1992
      %v2406 = vunpack.c.l.b16 %v1993
      %v2407 = vpack.c.b16 %v2404, %v2403
      %v2408 = vpack.c.b16 %v2406, %v2405
      %2411 = vmatprep.subr.bf16.mxu0 0
      %2412 = vmatpush1.bf16.msra.mxu0 %v2407
      %2413 = vmatprep.subr.bf16.mxu0 0
      %2414 = vmatpush1.bf16.msra.mxu0 %v2408
      %2415 = vmatprep.subr.bf16.mxu0 0
      %2416 = vmatpush1.bf16.msra.mxu0 0
      %2417 = vmatprep.subr.bf16.mxu0 0
      %2418 = vmatpush1.bf16.msra.mxu0 0
      %2419 = vmatprep.subr.bf16.mxu0 0
      %2420 = vmatpush1.bf16.msra.mxu0 0
      %2421 = vmatprep.subr.bf16.mxu0 0
      %2422 = vmatpush1.bf16.msra.mxu0 0
      %2423 = vmatprep.subr.bf16.mxu0 0
      %2424 = vmatpush1.bf16.msra.mxu0 0
      %2425 = vmatprep.subr.bf16.mxu0 0
      %2426 = vmatpush1.bf16.msra.mxu0 0
      %2427 = vmatprep.subr.bf16.mxu0 0
      %2428 = vmatpush1.bf16.msra.mxu0 0
      %2429 = vmatprep.subr.bf16.mxu0 0
      %2430 = vmatpush1.bf16.msra.mxu0 0
      %2431 = vmatprep.subr.bf16.mxu0 0
      %2432 = vmatpush1.bf16.msra.mxu0 0
      %2433 = vmatprep.subr.bf16.mxu0 0
      %2434 = vmatpush1.bf16.msra.mxu0 0
      %2435 = vmatprep.subr.bf16.mxu0 0
      %2436 = vmatpush1.bf16.msra.mxu0 0
      %2437 = vmatprep.subr.bf16.mxu0 0
      %2438 = vmatpush1.bf16.msra.mxu0 0
      %2439 = vmatprep.subr.bf16.mxu0 0
      %2440 = vmatpush1.bf16.msra.mxu0 0
      %2441 = vmatprep.subr.bf16.mxu0 0
      %2442 = vmatpush1.bf16.msra.mxu0 0
      %2443 = vmatprep.mubr.bf16.mxu0 0
      %2444 = vmatmul.mubr.bf16.gmra.mrb[0].mxu0 %v2305
      %v2445 = vpop.f32.mrb[0].mxu0
      %v2446 = vadd.f32 %v2283, %v2445
      %v2447 = vpop.f32.mrb[0].mxu0
      %v2448 = vpop.f32.mrb[0].mxu0
      %v2449 = vpop.f32.mrb[0].mxu0
      %2450 = vdwg.mxu0
      %v2455 = vunpack.c.l.b16 %v1994
      %v2456 = vunpack.c.l.b16 %v1995
      %v2457 = vunpack.c.l.b16 %v1996
      %v2458 = vunpack.c.l.b16 %v1997
      %v2459 = vpack.c.b16 %v2456, %v2455
      %v2460 = vpack.c.b16 %v2458, %v2457
      %2463 = vmatprep.subr.bf16.mxu0 0
      %2464 = vmatpush1.bf16.msra.mxu0 %v2459
      %2465 = vmatprep.subr.bf16.mxu0 0
      %2466 = vmatpush1.bf16.msra.mxu0 %v2460
      %2467 = vmatprep.subr.bf16.mxu0 0
      %2468 = vmatpush1.bf16.msra.mxu0 0
      %2469 = vmatprep.subr.bf16.mxu0 0
      %2470 = vmatpush1.bf16.msra.mxu0 0
      %2471 = vmatprep.subr.bf16.mxu0 0
      %2472 = vmatpush1.bf16.msra.mxu0 0
      %2473 = vmatprep.subr.bf16.mxu0 0
      %2474 = vmatpush1.bf16.msra.mxu0 0
      %2475 = vmatprep.subr.bf16.mxu0 0
      %2476 = vmatpush1.bf16.msra.mxu0 0
      %2477 = vmatprep.subr.bf16.mxu0 0
      %2478 = vmatpush1.bf16.msra.mxu0 0
      %2479 = vmatprep.subr.bf16.mxu0 0
      %2480 = vmatpush1.bf16.msra.mxu0 0
      %2481 = vmatprep.subr.bf16.mxu0 0
      %2482 = vmatpush1.bf16.msra.mxu0 0
      %2483 = vmatprep.subr.bf16.mxu0 0
      %2484 = vmatpush1.bf16.msra.mxu0 0
      %2485 = vmatprep.subr.bf16.mxu0 0
      %2486 = vmatpush1.bf16.msra.mxu0 0
      %2487 = vmatprep.subr.bf16.mxu0 0
      %2488 = vmatpush1.bf16.msra.mxu0 0
      %2489 = vmatprep.subr.bf16.mxu0 0
      %2490 = vmatpush1.bf16.msra.mxu0 0
      %2491 = vmatprep.subr.bf16.mxu0 0
      %2492 = vmatpush1.bf16.msra.mxu0 0
      %2493 = vmatprep.subr.bf16.mxu0 0
      %2494 = vmatpush1.bf16.msra.mxu0 0
      %2495 = vmatprep.mubr.bf16.mxu0 0
      %2496 = vmatmul.mubr.bf16.gmra.mrb[0].mxu0 %v2305
      %v2497 = vpop.f32.mrb[0].mxu0
      %v2498 = vadd.f32 %v2287, %v2497
      %v2499 = vpop.f32.mrb[0].mxu0
      %v2500 = vpop.f32.mrb[0].mxu0
      %v2501 = vpop.f32.mrb[0].mxu0
      %2502 = vdwg.mxu0
      %v2507 = vlaneseq
      %v2508 = vshrl.u32 %v2507, 7
      %v2509 = vsub.s32 0, %v2508
      %v2510 = vrot.slane %v2022, %v2509
      %v2511 = vlaneseq
      %v2512 = vshrl.u32 %v2511, 7
      %v2513 = vsub.s32 0, %v2512
      %v2514 = vrot.slane %v2023, %v2513
      %v2515 = vlaneseq
      %v2516 = vshrl.u32 %v2515, 7
      %v2517 = vsub.s32 0, %v2516
      %v2518 = vrot.slane %v2024, %v2517
      %v2519 = vlaneseq
      %v2520 = vshrl.u32 %v2519, 7
      %v2521 = vsub.s32 0, %v2520
      %v2522 = vrot.slane %v2025, %v2521
      %v2531 = vunpack.c.l.b16 %v1998
      %v2532 = vunpack.c.l.b16 %v1999
      %v2533 = vunpack.c.l.b16 %v2000
      %v2534 = vunpack.c.l.b16 %v2001
      %v2535 = vpack.c.b16 %v2532, %v2531
      %v2536 = vpack.c.b16 %v2534, %v2533
      %2539 = vmatprep.subr.bf16.mxu0 0
      %2540 = vmatpush1.bf16.msra.mxu0 %v2535
      %2541 = vmatprep.subr.bf16.mxu0 0
      %2542 = vmatpush1.bf16.msra.mxu0 %v2536
      %2543 = vmatprep.subr.bf16.mxu0 0
      %2544 = vmatpush1.bf16.msra.mxu0 0
      %2545 = vmatprep.subr.bf16.mxu0 0
      %2546 = vmatpush1.bf16.msra.mxu0 0
      %2547 = vmatprep.subr.bf16.mxu0 0
      %2548 = vmatpush1.bf16.msra.mxu0 0
      %2549 = vmatprep.subr.bf16.mxu0 0
      %2550 = vmatpush1.bf16.msra.mxu0 0
      %2551 = vmatprep.subr.bf16.mxu0 0
      %2552 = vmatpush1.bf16.msra.mxu0 0
      %2553 = vmatprep.subr.bf16.mxu0 0
      %2554 = vmatpush1.bf16.msra.mxu0 0
      %2555 = vmatprep.subr.bf16.mxu0 0
      %2556 = vmatpush1.bf16.msra.mxu0 0
      %2557 = vmatprep.subr.bf16.mxu0 0
      %2558 = vmatpush1.bf16.msra.mxu0 0
      %2559 = vmatprep.subr.bf16.mxu0 0
      %2560 = vmatpush1.bf16.msra.mxu0 0
      %2561 = vmatprep.subr.bf16.mxu0 0
      %2562 = vmatpush1.bf16.msra.mxu0 0
      %2563 = vmatprep.subr.bf16.mxu0 0
      %2564 = vmatpush1.bf16.msra.mxu0 0
      %2565 = vmatprep.subr.bf16.mxu0 0
      %2566 = vmatpush1.bf16.msra.mxu0 0
      %2567 = vmatprep.subr.bf16.mxu0 0
      %2568 = vmatpush1.bf16.msra.mxu0 0
      %2569 = vmatprep.subr.bf16.mxu0 0
      %2570 = vmatpush1.bf16.msra.mxu0 0
      %2571 = vmatprep.mubr.bf16.mxu0 0
      %2572 = vmatmul.mubr.bf16.gmra.mrb[0].mxu0 %v2305
      %v2573 = vpop.f32.mrb[0].mxu0
      %v2574 = vadd.f32 %v2510, %v2573
      %v2575 = vpop.f32.mrb[0].mxu0
      %v2576 = vpop.f32.mrb[0].mxu0
      %v2577 = vpop.f32.mrb[0].mxu0
      %2578 = vdwg.mxu0
      %v2583 = vunpack.c.l.b16 %v2002
      %v2584 = vunpack.c.l.b16 %v2003
      %v2585 = vunpack.c.l.b16 %v2004
      %v2586 = vunpack.c.l.b16 %v2005
      %v2587 = vpack.c.b16 %v2584, %v2583
      %v2588 = vpack.c.b16 %v2586, %v2585
      %2591 = vmatprep.subr.bf16.mxu0 0
      %2592 = vmatpush1.bf16.msra.mxu0 %v2587
      %2593 = vmatprep.subr.bf16.mxu0 0
      %2594 = vmatpush1.bf16.msra.mxu0 %v2588
      %2595 = vmatprep.subr.bf16.mxu0 0
      %2596 = vmatpush1.bf16.msra.mxu0 0
      %2597 = vmatprep.subr.bf16.mxu0 0
      %2598 = vmatpush1.bf16.msra.mxu0 0
      %2599 = vmatprep.subr.bf16.mxu0 0
      %2600 = vmatpush1.bf16.msra.mxu0 0
      %2601 = vmatprep.subr.bf16.mxu0 0
      %2602 = vmatpush1.bf16.msra.mxu0 0
      %2603 = vmatprep.subr.bf16.mxu0 0
      %2604 = vmatpush1.bf16.msra.mxu0 0
      %2605 = vmatprep.subr.bf16.mxu0 0
      %2606 = vmatpush1.bf16.msra.mxu0 0
      %2607 = vmatprep.subr.bf16.mxu0 0
      %2608 = vmatpush1.bf16.msra.mxu0 0
      %2609 = vmatprep.subr.bf16.mxu0 0
      %2610 = vmatpush1.bf16.msra.mxu0 0
      %2611 = vmatprep.subr.bf16.mxu0 0
      %2612 = vmatpush1.bf16.msra.mxu0 0
      %2613 = vmatprep.subr.bf16.mxu0 0
      %2614 = vmatpush1.bf16.msra.mxu0 0
      %2615 = vmatprep.subr.bf16.mxu0 0
      %2616 = vmatpush1.bf16.msra.mxu0 0
      %2617 = vmatprep.subr.bf16.mxu0 0
      %2618 = vmatpush1.bf16.msra.mxu0 0
      %2619 = vmatprep.subr.bf16.mxu0 0
      %2620 = vmatpush1.bf16.msra.mxu0 0
      %2621 = vmatprep.subr.bf16.mxu0 0
      %2622 = vmatpush1.bf16.msra.mxu0 0
      %2623 = vmatprep.mubr.bf16.mxu0 0
      %2624 = vmatmul.mubr.bf16.gmra.mrb[0].mxu0 %v2305
      %v2625 = vpop.f32.mrb[0].mxu0
      %v2626 = vadd.f32 %v2514, %v2625
      %v2627 = vpop.f32.mrb[0].mxu0
      %v2628 = vpop.f32.mrb[0].mxu0
      %v2629 = vpop.f32.mrb[0].mxu0
      %2630 = vdwg.mxu0
      %v2635 = vunpack.c.l.b16 %v2006
      %v2636 = vunpack.c.l.b16 %v2007
      %v2637 = vunpack.c.l.b16 %v2008
      %v2638 = vunpack.c.l.b16 %v2009
      %v2639 = vpack.c.b16 %v2636, %v2635
      %v2640 = vpack.c.b16 %v2638, %v2637
      %2643 = vmatprep.subr.bf16.mxu0 0
      %2644 = vmatpush1.bf16.msra.mxu0 %v2639
      %2645 = vmatprep.subr.bf16.mxu0 0
      %2646 = vmatpush1.bf16.msra.mxu0 %v2640
      %2647 = vmatprep.subr.bf16.mxu0 0
      %2648 = vmatpush1.bf16.msra.mxu0 0
      %2649 = vmatprep.subr.bf16.mxu0 0
      %2650 = vmatpush1.bf16.msra.mxu0 0
      %2651 = vmatprep.subr.bf16.mxu0 0
      %2652 = vmatpush1.bf16.msra.mxu0 0
      %2653 = vmatprep.subr.bf16.mxu0 0
      %2654 = vmatpush1.bf16.msra.mxu0 0
      %2655 = vmatprep.subr.bf16.mxu0 0
      %2656 = vmatpush1.bf16.msra.mxu0 0
      %2657 = vmatprep.subr.bf16.mxu0 0
      %2658 = vmatpush1.bf16.msra.mxu0 0
      %2659 = vmatprep.subr.bf16.mxu0 0
      %2660 = vmatpush1.bf16.msra.mxu0 0
      %2661 = vmatprep.subr.bf16.mxu0 0
      %2662 = vmatpush1.bf16.msra.mxu0 0
      %2663 = vmatprep.subr.bf16.mxu0 0
      %2664 = vmatpush1.bf16.msra.mxu0 0
      %2665 = vmatprep.subr.bf16.mxu0 0
      %2666 = vmatpush1.bf16.msra.mxu0 0
      %2667 = vmatprep.subr.bf16.mxu0 0
      %2668 = vmatpush1.bf16.msra.mxu0 0
      %2669 = vmatprep.subr.bf16.mxu0 0
      %2670 = vmatpush1.bf16.msra.mxu0 0
      %2671 = vmatprep.subr.bf16.mxu0 0
      %2672 = vmatpush1.bf16.msra.mxu0 0
      %2673 = vmatprep.subr.bf16.mxu0 0
      %2674 = vmatpush1.bf16.msra.mxu0 0
      %2675 = vmatprep.mubr.bf16.mxu0 0
      %2676 = vmatmul.mubr.bf16.gmra.mrb[0].mxu0 %v2305
      %v2677 = vpop.f32.mrb[0].mxu0
      %v2678 = vadd.f32 %v2518, %v2677
      %v2679 = vpop.f32.mrb[0].mxu0
      %v2680 = vpop.f32.mrb[0].mxu0
      %v2681 = vpop.f32.mrb[0].mxu0
      %2682 = vdwg.mxu0
      %v2687 = vunpack.c.l.b16 %v2010
      %v2688 = vunpack.c.l.b16 %v2011
      %v2689 = vunpack.c.l.b16 %v2012
      %v2690 = vunpack.c.l.b16 %v2013
      %v2691 = vpack.c.b16 %v2688, %v2687
      %v2692 = vpack.c.b16 %v2690, %v2689
      %2695 = vmatprep.subr.bf16.mxu0 0
      %2696 = vmatpush1.bf16.msra.mxu0 %v2691
      %2697 = vmatprep.subr.bf16.mxu0 0
      %2698 = vmatpush1.bf16.msra.mxu0 %v2692
      %2699 = vmatprep.subr.bf16.mxu0 0
      %2700 = vmatpush1.bf16.msra.mxu0 0
      %2701 = vmatprep.subr.bf16.mxu0 0
      %2702 = vmatpush1.bf16.msra.mxu0 0
      %2703 = vmatprep.subr.bf16.mxu0 0
      %2704 = vmatpush1.bf16.msra.mxu0 0
      %2705 = vmatprep.subr.bf16.mxu0 0
      %2706 = vmatpush1.bf16.msra.mxu0 0
      %2707 = vmatprep.subr.bf16.mxu0 0
      %2708 = vmatpush1.bf16.msra.mxu0 0
      %2709 = vmatprep.subr.bf16.mxu0 0
      %2710 = vmatpush1.bf16.msra.mxu0 0
      %2711 = vmatprep.subr.bf16.mxu0 0
      %2712 = vmatpush1.bf16.msra.mxu0 0
      %2713 = vmatprep.subr.bf16.mxu0 0
      %2714 = vmatpush1.bf16.msra.mxu0 0
      %2715 = vmatprep.subr.bf16.mxu0 0
      %2716 = vmatpush1.bf16.msra.mxu0 0
      %2717 = vmatprep.subr.bf16.mxu0 0
      %2718 = vmatpush1.bf16.msra.mxu0 0
      %2719 = vmatprep.subr.bf16.mxu0 0
      %2720 = vmatpush1.bf16.msra.mxu0 0
      %2721 = vmatprep.subr.bf16.mxu0 0
      %2722 = vmatpush1.bf16.msra.mxu0 0
      %2723 = vmatprep.subr.bf16.mxu0 0
      %2724 = vmatpush1.bf16.msra.mxu0 0
      %2725 = vmatprep.subr.bf16.mxu0 0
      %2726 = vmatpush1.bf16.msra.mxu0 0
      %2727 = vmatprep.mubr.bf16.mxu0 0
      %2728 = vmatmul.mubr.bf16.gmra.mrb[0].mxu0 %v2305
      %v2729 = vpop.f32.mrb[0].mxu0
      %v2730 = vadd.f32 %v2522, %v2729
      %v2731 = vpop.f32.mrb[0].mxu0
      %v2732 = vpop.f32.mrb[0].mxu0
      %v2733 = vpop.f32.mrb[0].mxu0
      %2734 = vdwg.mxu0
      %v2735 = vmul.f32 %v2107, 0.35355338
      %v2736 = vmul.f32 %v2159, 0.35355338
      %v2737 = vmul.f32 %v2211, 0.35355338
      %v2738 = vmul.f32 %v2263, 0.35355338
      %v2739 = vpack.c.bf16 %v2735, %v2735
      %v2740 = vpack.c.bf16 %v2736, %v2736
      %v2741 = vpack.c.bf16 %v2737, %v2737
      %v2742 = vpack.c.bf16 %v2738, %v2738
      %v2743 = vpack.c.bf16 %v2342, %v2342
      %v2744 = vpack.c.bf16 %v2394, %v2394
      %v2745 = vpack.c.bf16 %v2446, %v2446
      %v2746 = vpack.c.bf16 %v2498, %v2498
      %v2748 = vsel %vm1315, %v2739, 0
      %v2751 = vsel %vm1315, %v2743, 0
      %2753 = vmatprep.subr.bf16.mxu0 0
      %2754 = vmatpush1.bf16.xpose.msra.mxu0 %v2751
      %2755 = vmatprep.subr.bf16.mxu0 0
      %2756 = vmatpush1.bf16.xpose.msra.mxu0 0
      %2757 = vmatprep.subr.bf16.mxu0 0
      %2758 = vmatpush1.bf16.xpose.msra.mxu0 0
      %2759 = vmatprep.subr.bf16.mxu0 0
      %2760 = vmatpush1.bf16.xpose.msra.mxu0 0
      %2761 = vmatprep.subr.bf16.mxu0 0
      %2762 = vmatpush1.bf16.xpose.msra.mxu0 0
      %2763 = vmatprep.subr.bf16.mxu0 0
      %2764 = vmatpush1.bf16.xpose.msra.mxu0 0
      %2765 = vmatprep.subr.bf16.mxu0 0
      %2766 = vmatpush1.bf16.xpose.msra.mxu0 0
      %2767 = vmatprep.subr.bf16.mxu0 0
      %2768 = vmatpush1.bf16.xpose.msra.mxu0 0
      %2769 = vmatprep.subr.bf16.mxu0 0
      %2770 = vmatpush1.bf16.xpose.msra.mxu0 0
      %2771 = vmatprep.subr.bf16.mxu0 0
      %2772 = vmatpush1.bf16.xpose.msra.mxu0 0
      %2773 = vmatprep.subr.bf16.mxu0 0
      %2774 = vmatpush1.bf16.xpose.msra.mxu0 0
      %2775 = vmatprep.subr.bf16.mxu0 0
      %2776 = vmatpush1.bf16.xpose.msra.mxu0 0
      %2777 = vmatprep.subr.bf16.mxu0 0
      %2778 = vmatpush1.bf16.xpose.msra.mxu0 0
      %2779 = vmatprep.subr.bf16.mxu0 0
      %2780 = vmatpush1.bf16.xpose.msra.mxu0 0
      %2781 = vmatprep.subr.bf16.mxu0 0
      %2782 = vmatpush1.bf16.xpose.msra.mxu0 0
      %2783 = vmatprep.subr.bf16.mxu0 0
      %2784 = vmatpush1.bf16.xpose.msra.mxu0 0
      %2785 = vmatprep.mubr.bf16.mxu0 0
      %2786 = vmatmul.mubr.bf16.gmra.mrb[0].mxu0 %v2748
      %v2787 = vpop.f32.mrb[0].mxu0
      %v2788 = vadd.f32 0.0, %v2787
      %v2789 = vpop.f32.mrb[0].mxu0
      %v2790 = vpop.f32.mrb[0].mxu0
      %v2791 = vpop.f32.mrb[0].mxu0
      %2792 = vdwg.mxu0
      %v2794 = vsel %vm1315, %v2740, 0
      %v2797 = vsel %vm1315, %v2744, 0
      %2799 = vmatprep.subr.bf16.mxu0 0
      %2800 = vmatpush1.bf16.xpose.msra.mxu0 %v2797
      %2801 = vmatprep.subr.bf16.mxu0 0
      %2802 = vmatpush1.bf16.xpose.msra.mxu0 0
      %2803 = vmatprep.subr.bf16.mxu0 0
      %2804 = vmatpush1.bf16.xpose.msra.mxu0 0
      %2805 = vmatprep.subr.bf16.mxu0 0
      %2806 = vmatpush1.bf16.xpose.msra.mxu0 0
      %2807 = vmatprep.subr.bf16.mxu0 0
      %2808 = vmatpush1.bf16.xpose.msra.mxu0 0
      %2809 = vmatprep.subr.bf16.mxu0 0
      %2810 = vmatpush1.bf16.xpose.msra.mxu0 0
      %2811 = vmatprep.subr.bf16.mxu0 0
      %2812 = vmatpush1.bf16.xpose.msra.mxu0 0
      %2813 = vmatprep.subr.bf16.mxu0 0
      %2814 = vmatpush1.bf16.xpose.msra.mxu0 0
      %2815 = vmatprep.subr.bf16.mxu0 0
      %2816 = vmatpush1.bf16.xpose.msra.mxu0 0
      %2817 = vmatprep.subr.bf16.mxu0 0
      %2818 = vmatpush1.bf16.xpose.msra.mxu0 0
      %2819 = vmatprep.subr.bf16.mxu0 0
      %2820 = vmatpush1.bf16.xpose.msra.mxu0 0
      %2821 = vmatprep.subr.bf16.mxu0 0
      %2822 = vmatpush1.bf16.xpose.msra.mxu0 0
      %2823 = vmatprep.subr.bf16.mxu0 0
      %2824 = vmatpush1.bf16.xpose.msra.mxu0 0
      %2825 = vmatprep.subr.bf16.mxu0 0
      %2826 = vmatpush1.bf16.xpose.msra.mxu0 0
      %2827 = vmatprep.subr.bf16.mxu0 0
      %2828 = vmatpush1.bf16.xpose.msra.mxu0 0
      %2829 = vmatprep.subr.bf16.mxu0 0
      %2830 = vmatpush1.bf16.xpose.msra.mxu0 0
      %2831 = vmatprep.mubr.bf16.mxu0 0
      %2832 = vmatmul.mubr.bf16.gmra.mrb[0].mxu0 %v2794
      %v2833 = vpop.f32.mrb[0].mxu0
      %v2834 = vadd.f32 0.0, %v2833
      %v2835 = vpop.f32.mrb[0].mxu0
      %v2836 = vpop.f32.mrb[0].mxu0
      %v2837 = vpop.f32.mrb[0].mxu0
      %2838 = vdwg.mxu0
      %v2840 = vsel %vm1315, %v2741, 0
      %v2843 = vsel %vm1315, %v2745, 0
      %2845 = vmatprep.subr.bf16.mxu0 0
      %2846 = vmatpush1.bf16.xpose.msra.mxu0 %v2843
      %2847 = vmatprep.subr.bf16.mxu0 0
      %2848 = vmatpush1.bf16.xpose.msra.mxu0 0
      %2849 = vmatprep.subr.bf16.mxu0 0
      %2850 = vmatpush1.bf16.xpose.msra.mxu0 0
      %2851 = vmatprep.subr.bf16.mxu0 0
      %2852 = vmatpush1.bf16.xpose.msra.mxu0 0
      %2853 = vmatprep.subr.bf16.mxu0 0
      %2854 = vmatpush1.bf16.xpose.msra.mxu0 0
      %2855 = vmatprep.subr.bf16.mxu0 0
      %2856 = vmatpush1.bf16.xpose.msra.mxu0 0
      %2857 = vmatprep.subr.bf16.mxu0 0
      %2858 = vmatpush1.bf16.xpose.msra.mxu0 0
      %2859 = vmatprep.subr.bf16.mxu0 0
      %2860 = vmatpush1.bf16.xpose.msra.mxu0 0
      %2861 = vmatprep.subr.bf16.mxu0 0
      %2862 = vmatpush1.bf16.xpose.msra.mxu0 0
      %2863 = vmatprep.subr.bf16.mxu0 0
      %2864 = vmatpush1.bf16.xpose.msra.mxu0 0
      %2865 = vmatprep.subr.bf16.mxu0 0
      %2866 = vmatpush1.bf16.xpose.msra.mxu0 0
      %2867 = vmatprep.subr.bf16.mxu0 0
      %2868 = vmatpush1.bf16.xpose.msra.mxu0 0
      %2869 = vmatprep.subr.bf16.mxu0 0
      %2870 = vmatpush1.bf16.xpose.msra.mxu0 0
      %2871 = vmatprep.subr.bf16.mxu0 0
      %2872 = vmatpush1.bf16.xpose.msra.mxu0 0
      %2873 = vmatprep.subr.bf16.mxu0 0
      %2874 = vmatpush1.bf16.xpose.msra.mxu0 0
      %2875 = vmatprep.subr.bf16.mxu0 0
      %2876 = vmatpush1.bf16.xpose.msra.mxu0 0
      %2877 = vmatprep.mubr.bf16.mxu0 0
      %2878 = vmatmul.mubr.bf16.gmra.mrb[0].mxu0 %v2840
      %v2879 = vpop.f32.mrb[0].mxu0
      %v2880 = vadd.f32 0.0, %v2879
      %v2881 = vpop.f32.mrb[0].mxu0
      %v2882 = vpop.f32.mrb[0].mxu0
      %v2883 = vpop.f32.mrb[0].mxu0
      %2884 = vdwg.mxu0
      %v2886 = vsel %vm1315, %v2742, 0
      %v2889 = vsel %vm1315, %v2746, 0
      %2891 = vmatprep.subr.bf16.mxu0 0
      %2892 = vmatpush1.bf16.xpose.msra.mxu0 %v2889
      %2893 = vmatprep.subr.bf16.mxu0 0
      %2894 = vmatpush1.bf16.xpose.msra.mxu0 0
      %2895 = vmatprep.subr.bf16.mxu0 0
      %2896 = vmatpush1.bf16.xpose.msra.mxu0 0
      %2897 = vmatprep.subr.bf16.mxu0 0
      %2898 = vmatpush1.bf16.xpose.msra.mxu0 0
      %2899 = vmatprep.subr.bf16.mxu0 0
      %2900 = vmatpush1.bf16.xpose.msra.mxu0 0
      %2901 = vmatprep.subr.bf16.mxu0 0
      %2902 = vmatpush1.bf16.xpose.msra.mxu0 0
      %2903 = vmatprep.subr.bf16.mxu0 0
      %2904 = vmatpush1.bf16.xpose.msra.mxu0 0
      %2905 = vmatprep.subr.bf16.mxu0 0
      %2906 = vmatpush1.bf16.xpose.msra.mxu0 0
      %2907 = vmatprep.subr.bf16.mxu0 0
      %2908 = vmatpush1.bf16.xpose.msra.mxu0 0
      %2909 = vmatprep.subr.bf16.mxu0 0
      %2910 = vmatpush1.bf16.xpose.msra.mxu0 0
      %2911 = vmatprep.subr.bf16.mxu0 0
      %2912 = vmatpush1.bf16.xpose.msra.mxu0 0
      %2913 = vmatprep.subr.bf16.mxu0 0
      %2914 = vmatpush1.bf16.xpose.msra.mxu0 0
      %2915 = vmatprep.subr.bf16.mxu0 0
      %2916 = vmatpush1.bf16.xpose.msra.mxu0 0
      %2917 = vmatprep.subr.bf16.mxu0 0
      %2918 = vmatpush1.bf16.xpose.msra.mxu0 0
      %2919 = vmatprep.subr.bf16.mxu0 0
      %2920 = vmatpush1.bf16.xpose.msra.mxu0 0
      %2921 = vmatprep.subr.bf16.mxu0 0
      %2922 = vmatpush1.bf16.xpose.msra.mxu0 0
      %2923 = vmatprep.mubr.bf16.mxu0 0
      %2924 = vmatmul.mubr.bf16.gmra.mrb[0].mxu0 %v2886
      %v2925 = vpop.f32.mrb[0].mxu0
      %v2926 = vadd.f32 0.0, %v2925
      %v2927 = vpop.f32.mrb[0].mxu0
      %v2928 = vpop.f32.mrb[0].mxu0
      %v2929 = vpop.f32.mrb[0].mxu0
      %2930 = vdwg.mxu0
      %v2931 = vsel %vm1315, %v2788, -inf
      %2932 = vmax.xlane.f32.xlu0 %v2931
      %v2933 = vpop.xlane.xlu0 %2932
      %v2934 = vsel %vm1315, %v2834, -inf
      %2935 = vmax.xlane.f32.xlu0 %v2934
      %v2936 = vpop.xlane.xlu0 %2935
      %v2937 = vsel %vm1315, %v2880, -inf
      %2938 = vmax.xlane.f32.xlu0 %v2937
      %v2939 = vpop.xlane.xlu0 %2938
      %v2940 = vsel %vm1315, %v2926, -inf
      %2941 = vmax.xlane.f32.xlu0 %v2940
      %v2942 = vpop.xlane.xlu0 %2941
      %v2943 = vsub.f32 %v2788, %v2933
      %v2944 = vsub.f32 %v2834, %v2936
      %v2945 = vsub.f32 %v2880, %v2939
      %v2946 = vsub.f32 %v2926, %v2942
      %v2947 = vmul.f32 %v2943, 1.442695
      %v2948 = vpow.pop %v2947
      %v2949 = vmul.f32 %v2944, 1.442695
      %v2950 = vpow.pop %v2949
      %v2951 = vmul.f32 %v2945, 1.442695
      %v2952 = vpow.pop %v2951
      %v2953 = vmul.f32 %v2946, 1.442695
      %v2954 = vpow.pop %v2953
      %v2955 = vsel %vm1315, %v2948, 0.0
      %2956 = vadd.xlane.f32.xlu0 %v2955
      %v2957 = vpop.xlane.xlu0 %2956
      %v2958 = vsel %vm1315, %v2950, 0.0
      %2959 = vadd.xlane.f32.xlu0 %v2958
      %v2960 = vpop.xlane.xlu0 %2959
      %v2961 = vsel %vm1315, %v2952, 0.0
      %2962 = vadd.xlane.f32.xlu0 %v2961
      %v2963 = vpop.xlane.xlu0 %2962
      %v2964 = vsel %vm1315, %v2954, 0.0
      %2965 = vadd.xlane.f32.xlu0 %v2964
      %v2966 = vpop.xlane.xlu0 %2965
      %v2967 = vrcp.pop %v2957
      %v2968 = vrcp.pop %v2960
      %v2969 = vrcp.pop %v2963
      %v2970 = vrcp.pop %v2966
      %v2971 = vmul.f32 %v2948, %v2967
      %v2972 = vmul.f32 %v2950, %v2968
      %v2973 = vmul.f32 %v2952, %v2969
      %v2974 = vmul.f32 %v2954, %v2970
      %v2975 = vpack.c.bf16 %v2971, %v2971
      %v2976 = vpack.c.bf16 %v2972, %v2972
      %v2977 = vpack.c.bf16 %v2973, %v2973
      %v2978 = vpack.c.bf16 %v2974, %v2974
      %v2979 = vpack.c.bf16 %v2574, %v2574
      %v2980 = vpack.c.bf16 %v2626, %v2626
      %v2981 = vpack.c.bf16 %v2678, %v2678
      %v2982 = vpack.c.bf16 %v2730, %v2730
      %v2984 = vsel %vm1315, %v2975, 0
      %v2987 = vsel %vm1555, %v2979, 0
      %2989 = vmatprep.subr.bf16.mxu0 0
      %2990 = vmatpush1.bf16.msra.mxu0 %v2987
      %2991 = vmatprep.subr.bf16.mxu0 0
      %2992 = vmatpush1.bf16.msra.mxu0 0
      %2993 = vmatprep.subr.bf16.mxu0 0
      %2994 = vmatpush1.bf16.msra.mxu0 0
      %2995 = vmatprep.subr.bf16.mxu0 0
      %2996 = vmatpush1.bf16.msra.mxu0 0
      %2997 = vmatprep.subr.bf16.mxu0 0
      %2998 = vmatpush1.bf16.msra.mxu0 0
      %2999 = vmatprep.subr.bf16.mxu0 0
      %3000 = vmatpush1.bf16.msra.mxu0 0
      %3001 = vmatprep.subr.bf16.mxu0 0
      %3002 = vmatpush1.bf16.msra.mxu0 0
      %3003 = vmatprep.subr.bf16.mxu0 0
      %3004 = vmatpush1.bf16.msra.mxu0 0
      %3005 = vmatprep.subr.bf16.mxu0 0
      %3006 = vmatpush1.bf16.msra.mxu0 0
      %3007 = vmatprep.subr.bf16.mxu0 0
      %3008 = vmatpush1.bf16.msra.mxu0 0
      %3009 = vmatprep.subr.bf16.mxu0 0
      %3010 = vmatpush1.bf16.msra.mxu0 0
      %3011 = vmatprep.subr.bf16.mxu0 0
      %3012 = vmatpush1.bf16.msra.mxu0 0
      %3013 = vmatprep.subr.bf16.mxu0 0
      %3014 = vmatpush1.bf16.msra.mxu0 0
      %3015 = vmatprep.subr.bf16.mxu0 0
      %3016 = vmatpush1.bf16.msra.mxu0 0
      %3017 = vmatprep.subr.bf16.mxu0 0
      %3018 = vmatpush1.bf16.msra.mxu0 0
      %3019 = vmatprep.subr.bf16.mxu0 0
      %3020 = vmatpush1.bf16.msra.mxu0 0
      %3021 = vmatprep.mubr.bf16.mxu0 0
      %3022 = vmatmul.mubr.bf16.gmra.mrb[0].mxu0 %v2984
      %v3023 = vpop.f32.mrb[0].mxu0
      %v3024 = vadd.f32 0.0, %v3023
      %v3025 = vpop.f32.mrb[0].mxu0
      %v3026 = vpop.f32.mrb[0].mxu0
      %v3027 = vpop.f32.mrb[0].mxu0
      %3028 = vdwg.mxu0
      %v3030 = vsel %vm1315, %v2976, 0
      %v3033 = vsel %vm1555, %v2980, 0
      %3035 = vmatprep.subr.bf16.mxu0 0
      %3036 = vmatpush1.bf16.msra.mxu0 %v3033
      %3037 = vmatprep.subr.bf16.mxu0 0
      %3038 = vmatpush1.bf16.msra.mxu0 0
      %3039 = vmatprep.subr.bf16.mxu0 0
      %3040 = vmatpush1.bf16.msra.mxu0 0
      %3041 = vmatprep.subr.bf16.mxu0 0
      %3042 = vmatpush1.bf16.msra.mxu0 0
      %3043 = vmatprep.subr.bf16.mxu0 0
      %3044 = vmatpush1.bf16.msra.mxu0 0
      %3045 = vmatprep.subr.bf16.mxu0 0
      %3046 = vmatpush1.bf16.msra.mxu0 0
      %3047 = vmatprep.subr.bf16.mxu0 0
      %3048 = vmatpush1.bf16.msra.mxu0 0
      %3049 = vmatprep.subr.bf16.mxu0 0
      %3050 = vmatpush1.bf16.msra.mxu0 0
      %3051 = vmatprep.subr.bf16.mxu0 0
      %3052 = vmatpush1.bf16.msra.mxu0 0
      %3053 = vmatprep.subr.bf16.mxu0 0
      %3054 = vmatpush1.bf16.msra.mxu0 0
      %3055 = vmatprep.subr.bf16.mxu0 0
      %3056 = vmatpush1.bf16.msra.mxu0 0
      %3057 = vmatprep.subr.bf16.mxu0 0
      %3058 = vmatpush1.bf16.msra.mxu0 0
      %3059 = vmatprep.subr.bf16.mxu0 0
      %3060 = vmatpush1.bf16.msra.mxu0 0
      %3061 = vmatprep.subr.bf16.mxu0 0
      %3062 = vmatpush1.bf16.msra.mxu0 0
      %3063 = vmatprep.subr.bf16.mxu0 0
      %3064 = vmatpush1.bf16.msra.mxu0 0
      %3065 = vmatprep.subr.bf16.mxu0 0
      %3066 = vmatpush1.bf16.msra.mxu0 0
      %3067 = vmatprep.mubr.bf16.mxu0 0
      %3068 = vmatmul.mubr.bf16.gmra.mrb[0].mxu0 %v3030
      %v3069 = vpop.f32.mrb[0].mxu0
      %v3070 = vadd.f32 0.0, %v3069
      %v3071 = vpop.f32.mrb[0].mxu0
      %v3072 = vpop.f32.mrb[0].mxu0
      %v3073 = vpop.f32.mrb[0].mxu0
      %3074 = vdwg.mxu0
      %v3076 = vsel %vm1315, %v2977, 0
      %v3079 = vsel %vm1555, %v2981, 0
      %3081 = vmatprep.subr.bf16.mxu0 0
      %3082 = vmatpush1.bf16.msra.mxu0 %v3079
      %3083 = vmatprep.subr.bf16.mxu0 0
      %3084 = vmatpush1.bf16.msra.mxu0 0
      %3085 = vmatprep.subr.bf16.mxu0 0
      %3086 = vmatpush1.bf16.msra.mxu0 0
      %3087 = vmatprep.subr.bf16.mxu0 0
      %3088 = vmatpush1.bf16.msra.mxu0 0
      %3089 = vmatprep.subr.bf16.mxu0 0
      %3090 = vmatpush1.bf16.msra.mxu0 0
      %3091 = vmatprep.subr.bf16.mxu0 0
      %3092 = vmatpush1.bf16.msra.mxu0 0
      %3093 = vmatprep.subr.bf16.mxu0 0
      %3094 = vmatpush1.bf16.msra.mxu0 0
      %3095 = vmatprep.subr.bf16.mxu0 0
      %3096 = vmatpush1.bf16.msra.mxu0 0
      %3097 = vmatprep.subr.bf16.mxu0 0
      %3098 = vmatpush1.bf16.msra.mxu0 0
      %3099 = vmatprep.subr.bf16.mxu0 0
      %3100 = vmatpush1.bf16.msra.mxu0 0
      %3101 = vmatprep.subr.bf16.mxu0 0
      %3102 = vmatpush1.bf16.msra.mxu0 0
      %3103 = vmatprep.subr.bf16.mxu0 0
      %3104 = vmatpush1.bf16.msra.mxu0 0
      %3105 = vmatprep.subr.bf16.mxu0 0
      %3106 = vmatpush1.bf16.msra.mxu0 0
      %3107 = vmatprep.subr.bf16.mxu0 0
      %3108 = vmatpush1.bf16.msra.mxu0 0
      %3109 = vmatprep.subr.bf16.mxu0 0
      %3110 = vmatpush1.bf16.msra.mxu0 0
      %3111 = vmatprep.subr.bf16.mxu0 0
      %3112 = vmatpush1.bf16.msra.mxu0 0
      %3113 = vmatprep.mubr.bf16.mxu0 0
      %3114 = vmatmul.mubr.bf16.gmra.mrb[0].mxu0 %v3076
      %v3115 = vpop.f32.mrb[0].mxu0
      %v3116 = vadd.f32 0.0, %v3115
      %v3117 = vpop.f32.mrb[0].mxu0
      %v3118 = vpop.f32.mrb[0].mxu0
      %v3119 = vpop.f32.mrb[0].mxu0
      %3120 = vdwg.mxu0
      %v3122 = vsel %vm1315, %v2978, 0
      %v3125 = vsel %vm1555, %v2982, 0
      %3127 = vmatprep.subr.bf16.mxu0 0
      %3128 = vmatpush1.bf16.msra.mxu0 %v3125
      %3129 = vmatprep.subr.bf16.mxu0 0
      %3130 = vmatpush1.bf16.msra.mxu0 0
      %3131 = vmatprep.subr.bf16.mxu0 0
      %3132 = vmatpush1.bf16.msra.mxu0 0
      %3133 = vmatprep.subr.bf16.mxu0 0
      %3134 = vmatpush1.bf16.msra.mxu0 0
      %3135 = vmatprep.subr.bf16.mxu0 0
      %3136 = vmatpush1.bf16.msra.mxu0 0
      %3137 = vmatprep.subr.bf16.mxu0 0
      %3138 = vmatpush1.bf16.msra.mxu0 0
      %3139 = vmatprep.subr.bf16.mxu0 0
      %3140 = vmatpush1.bf16.msra.mxu0 0
      %3141 = vmatprep.subr.bf16.mxu0 0
      %3142 = vmatpush1.bf16.msra.mxu0 0
      %3143 = vmatprep.subr.bf16.mxu0 0
      %3144 = vmatpush1.bf16.msra.mxu0 0
      %3145 = vmatprep.subr.bf16.mxu0 0
      %3146 = vmatpush1.bf16.msra.mxu0 0
      %3147 = vmatprep.subr.bf16.mxu0 0
      %3148 = vmatpush1.bf16.msra.mxu0 0
      %3149 = vmatprep.subr.bf16.mxu0 0
      %3150 = vmatpush1.bf16.msra.mxu0 0
      %3151 = vmatprep.subr.bf16.mxu0 0
      %3152 = vmatpush1.bf16.msra.mxu0 0
      %3153 = vmatprep.subr.bf16.mxu0 0
      %3154 = vmatpush1.bf16.msra.mxu0 0
      %3155 = vmatprep.subr.bf16.mxu0 0
      %3156 = vmatpush1.bf16.msra.mxu0 0
      %3157 = vmatprep.subr.bf16.mxu0 0
      %3158 = vmatpush1.bf16.msra.mxu0 0
      %3159 = vmatprep.mubr.bf16.mxu0 0
      %3160 = vmatmul.mubr.bf16.gmra.mrb[0].mxu0 %v3122
      %v3161 = vpop.f32.mrb[0].mxu0
      %v3162 = vadd.f32 0.0, %v3161
      %v3163 = vpop.f32.mrb[0].mxu0
      %v3164 = vpop.f32.mrb[0].mxu0
      %v3165 = vpop.f32.mrb[0].mxu0
      %3166 = vdwg.mxu0
      %v3167 = vpack.c.bf16 %v3024, %v3024
      %v3168 = vpack.c.bf16 %v3070, %v3070
      %v3169 = vpack.c.bf16 %v3116, %v3116
      %v3170 = vpack.c.bf16 %v3162, %v3162
      %v3172 = vsel %vm1315, %v3167, 0
      %v3175 = vsel %vm1555, %v2026, 0
      %3177 = vmatprep.subr.bf16.mxu0 0
      %3178 = vmatpush1.bf16.msra.mxu0 %v3175
      %3179 = vmatprep.subr.bf16.mxu0 0
      %3180 = vmatpush1.bf16.msra.mxu0 0
      %3181 = vmatprep.subr.bf16.mxu0 0
      %3182 = vmatpush1.bf16.msra.mxu0 0
      %3183 = vmatprep.subr.bf16.mxu0 0
      %3184 = vmatpush1.bf16.msra.mxu0 0
      %3185 = vmatprep.subr.bf16.mxu0 0
      %3186 = vmatpush1.bf16.msra.mxu0 0
      %3187 = vmatprep.subr.bf16.mxu0 0
      %3188 = vmatpush1.bf16.msra.mxu0 0
      %3189 = vmatprep.subr.bf16.mxu0 0
      %3190 = vmatpush1.bf16.msra.mxu0 0
      %3191 = vmatprep.subr.bf16.mxu0 0
      %3192 = vmatpush1.bf16.msra.mxu0 0
      %3193 = vmatprep.subr.bf16.mxu0 0
      %3194 = vmatpush1.bf16.msra.mxu0 0
      %3195 = vmatprep.subr.bf16.mxu0 0
      %3196 = vmatpush1.bf16.msra.mxu0 0
      %3197 = vmatprep.subr.bf16.mxu0 0
      %3198 = vmatpush1.bf16.msra.mxu0 0
      %3199 = vmatprep.subr.bf16.mxu0 0
      %3200 = vmatpush1.bf16.msra.mxu0 0
      %3201 = vmatprep.subr.bf16.mxu0 0
      %3202 = vmatpush1.bf16.msra.mxu0 0
      %3203 = vmatprep.subr.bf16.mxu0 0
      %3204 = vmatpush1.bf16.msra.mxu0 0
      %3205 = vmatprep.subr.bf16.mxu0 0
      %3206 = vmatpush1.bf16.msra.mxu0 0
      %3207 = vmatprep.subr.bf16.mxu0 0
      %3208 = vmatpush1.bf16.msra.mxu0 0
      %3209 = vmatprep.mubr.bf16.mxu0 0
      %3210 = vmatmul.mubr.bf16.gmra.mrb[0].mxu0 %v3172
      %v3211 = vpop.f32.mrb[0].mxu0
      %v3212 = vadd.f32 0.0, %v3211
      %v3213 = vpop.f32.mrb[0].mxu0
      %v3214 = vpop.f32.mrb[0].mxu0
      %v3215 = vpop.f32.mrb[0].mxu0
      %3216 = vdwg.mxu0
      %v3218 = vsel %vm1315, %v3168, 0
      %v3221 = vsel %vm1555, %v2027, 0
      %3223 = vmatprep.subr.bf16.mxu0 0
      %3224 = vmatpush1.bf16.msra.mxu0 %v3221
      %3225 = vmatprep.subr.bf16.mxu0 0
      %3226 = vmatpush1.bf16.msra.mxu0 0
      %3227 = vmatprep.subr.bf16.mxu0 0
      %3228 = vmatpush1.bf16.msra.mxu0 0
      %3229 = vmatprep.subr.bf16.mxu0 0
      %3230 = vmatpush1.bf16.msra.mxu0 0
      %3231 = vmatprep.subr.bf16.mxu0 0
      %3232 = vmatpush1.bf16.msra.mxu0 0
      %3233 = vmatprep.subr.bf16.mxu0 0
      %3234 = vmatpush1.bf16.msra.mxu0 0
      %3235 = vmatprep.subr.bf16.mxu0 0
      %3236 = vmatpush1.bf16.msra.mxu0 0
      %3237 = vmatprep.subr.bf16.mxu0 0
      %3238 = vmatpush1.bf16.msra.mxu0 0
      %3239 = vmatprep.subr.bf16.mxu0 0
      %3240 = vmatpush1.bf16.msra.mxu0 0
      %3241 = vmatprep.subr.bf16.mxu0 0
      %3242 = vmatpush1.bf16.msra.mxu0 0
      %3243 = vmatprep.subr.bf16.mxu0 0
      %3244 = vmatpush1.bf16.msra.mxu0 0
      %3245 = vmatprep.subr.bf16.mxu0 0
      %3246 = vmatpush1.bf16.msra.mxu0 0
      %3247 = vmatprep.subr.bf16.mxu0 0
      %3248 = vmatpush1.bf16.msra.mxu0 0
      %3249 = vmatprep.subr.bf16.mxu0 0
      %3250 = vmatpush1.bf16.msra.mxu0 0
      %3251 = vmatprep.subr.bf16.mxu0 0
      %3252 = vmatpush1.bf16.msra.mxu0 0
      %3253 = vmatprep.subr.bf16.mxu0 0
      %3254 = vmatpush1.bf16.msra.mxu0 0
      %3255 = vmatprep.mubr.bf16.mxu0 0
      %3256 = vmatmul.mubr.bf16.gmra.mrb[0].mxu0 %v3218
      %v3257 = vpop.f32.mrb[0].mxu0
      %v3258 = vadd.f32 0.0, %v3257
      %v3259 = vpop.f32.mrb[0].mxu0
      %v3260 = vpop.f32.mrb[0].mxu0
      %v3261 = vpop.f32.mrb[0].mxu0
      %3262 = vdwg.mxu0
      %v3264 = vsel %vm1315, %v3169, 0
      %v3267 = vsel %vm1555, %v2028, 0
      %3269 = vmatprep.subr.bf16.mxu0 0
      %3270 = vmatpush1.bf16.msra.mxu0 %v3267
      %3271 = vmatprep.subr.bf16.mxu0 0
      %3272 = vmatpush1.bf16.msra.mxu0 0
      %3273 = vmatprep.subr.bf16.mxu0 0
      %3274 = vmatpush1.bf16.msra.mxu0 0
      %3275 = vmatprep.subr.bf16.mxu0 0
      %3276 = vmatpush1.bf16.msra.mxu0 0
      %3277 = vmatprep.subr.bf16.mxu0 0
      %3278 = vmatpush1.bf16.msra.mxu0 0
      %3279 = vmatprep.subr.bf16.mxu0 0
      %3280 = vmatpush1.bf16.msra.mxu0 0
      %3281 = vmatprep.subr.bf16.mxu0 0
      %3282 = vmatpush1.bf16.msra.mxu0 0
      %3283 = vmatprep.subr.bf16.mxu0 0
      %3284 = vmatpush1.bf16.msra.mxu0 0
      %3285 = vmatprep.subr.bf16.mxu0 0
      %3286 = vmatpush1.bf16.msra.mxu0 0
      %3287 = vmatprep.subr.bf16.mxu0 0
      %3288 = vmatpush1.bf16.msra.mxu0 0
      %3289 = vmatprep.subr.bf16.mxu0 0
      %3290 = vmatpush1.bf16.msra.mxu0 0
      %3291 = vmatprep.subr.bf16.mxu0 0
      %3292 = vmatpush1.bf16.msra.mxu0 0
      %3293 = vmatprep.subr.bf16.mxu0 0
      %3294 = vmatpush1.bf16.msra.mxu0 0
      %3295 = vmatprep.subr.bf16.mxu0 0
      %3296 = vmatpush1.bf16.msra.mxu0 0
      %3297 = vmatprep.subr.bf16.mxu0 0
      %3298 = vmatpush1.bf16.msra.mxu0 0
      %3299 = vmatprep.subr.bf16.mxu0 0
      %3300 = vmatpush1.bf16.msra.mxu0 0
      %3301 = vmatprep.mubr.bf16.mxu0 0
      %3302 = vmatmul.mubr.bf16.gmra.mrb[0].mxu0 %v3264
      %v3303 = vpop.f32.mrb[0].mxu0
      %v3304 = vadd.f32 0.0, %v3303
      %v3305 = vpop.f32.mrb[0].mxu0
      %v3306 = vpop.f32.mrb[0].mxu0
      %v3307 = vpop.f32.mrb[0].mxu0
      %3308 = vdwg.mxu0
      %v3310 = vsel %vm1315, %v3170, 0
      %v3313 = vsel %vm1555, %v2029, 0
      %3315 = vmatprep.subr.bf16.mxu0 0
      %3316 = vmatpush1.bf16.msra.mxu0 %v3313
      %3317 = vmatprep.subr.bf16.mxu0 0
      %3318 = vmatpush1.bf16.msra.mxu0 0
      %3319 = vmatprep.subr.bf16.mxu0 0
      %3320 = vmatpush1.bf16.msra.mxu0 0
      %3321 = vmatprep.subr.bf16.mxu0 0
      %3322 = vmatpush1.bf16.msra.mxu0 0
      %3323 = vmatprep.subr.bf16.mxu0 0
      %3324 = vmatpush1.bf16.msra.mxu0 0
      %3325 = vmatprep.subr.bf16.mxu0 0
      %3326 = vmatpush1.bf16.msra.mxu0 0
      %3327 = vmatprep.subr.bf16.mxu0 0
      %3328 = vmatpush1.bf16.msra.mxu0 0
      %3329 = vmatprep.subr.bf16.mxu0 0
      %3330 = vmatpush1.bf16.msra.mxu0 0
      %3331 = vmatprep.subr.bf16.mxu0 0
      %3332 = vmatpush1.bf16.msra.mxu0 0
      %3333 = vmatprep.subr.bf16.mxu0 0
      %3334 = vmatpush1.bf16.msra.mxu0 0
      %3335 = vmatprep.subr.bf16.mxu0 0
      %3336 = vmatpush1.bf16.msra.mxu0 0
      %3337 = vmatprep.subr.bf16.mxu0 0
      %3338 = vmatpush1.bf16.msra.mxu0 0
      %3339 = vmatprep.subr.bf16.mxu0 0
      %3340 = vmatpush1.bf16.msra.mxu0 0
      %3341 = vmatprep.subr.bf16.mxu0 0
      %3342 = vmatpush1.bf16.msra.mxu0 0
      %3343 = vmatprep.subr.bf16.mxu0 0
      %3344 = vmatpush1.bf16.msra.mxu0 0
      %3345 = vmatprep.subr.bf16.mxu0 0
      %3346 = vmatpush1.bf16.msra.mxu0 0
      %3347 = vmatprep.mubr.bf16.mxu0 0
      %3348 = vmatmul.mubr.bf16.gmra.mrb[0].mxu0 %v3310
      %v3349 = vpop.f32.mrb[0].mxu0
      %v3350 = vadd.f32 0.0, %v3349
      %v3351 = vpop.f32.mrb[0].mxu0
      %v3352 = vpop.f32.mrb[0].mxu0
      %v3353 = vpop.f32.mrb[0].mxu0
      %3354 = vdwg.mxu0
      %v3355 = vsel %vm639, %v3212, 0.0
      %v3356 = vsel %vm639, %v3258, 0.0
      %v3357 = vadd.f32 %v3355, %v3356
      %v3358 = vsel %vm639, %v3304, 0.0
      %v3359 = vadd.f32 %v3357, %v3358
      %v3360 = vsel %vm639, %v3350, 0.0
      %v3361 = vadd.f32 %v3359, %v3360
      %v3363 = vlaneseq
      %v3364 = vshrl.u32 %v3363, 7
      %v3365 = vsub.s32 0, %v3364
      %v3366 = vrot.slane %v2030, %v3365
      %v3368 = vadd.f32 %v3361, %v3366
      %v3369 = vadd.f32 %v1965, %v3368
      %v3370 = vld [vmem:[%s14 + $0x1] sm:$0x1]
      %v3371 = vld [vmem:[%s15 + $0x1] sm:$0x1]
      %v3372 = vsel %vm639, %v3369, 0.0
      %3373 = vadd.xlane.f32.xlu0 %v3372
      %v3374 = vpop.xlane.xlu0 %3373
      %v3375 = vmul.f32 %v3374, %v1945
      %v3376 = vsub.f32 %v3369, %v3375
      %v3377 = vmul.f32 %v3376, %v3376
      %v3378 = vsel %vm639, %v3377, 0.0
      %3379 = vadd.xlane.f32.xlu0 %v3378
      %v3380 = vpop.xlane.xlu0 %3379
      %v3381 = vmul.f32 %v3380, %v1945
      %v3382 = vadd.f32 %v3381, 1e-05
      %v3383 = vrsqrt.pop %v3382
      %v3384 = vmul.f32 %v3376, %v3383
      %v3385 = vlaneseq
      %v3386 = vshrl.u32 %v3385, 7
      %v3387 = vsub.s32 0, %v3386
      %v3388 = vrot.slane %v3370, %v3387
      %v3389 = vmul.f32 %v3384, %v3388
      %v3390 = vlaneseq
      %v3391 = vshrl.u32 %v3390, 7
      %v3392 = vsub.s32 0, %v3391
      %v3393 = vrot.slane %v3371, %v3392
      %v3394 = vadd.f32 %v3389, %v3393
      %v3395 = vld [vmem:[%s10] sm:$0xf]
      %v3396 = vld [vmem:[%s10 + $0x4] sm:$0xf]
      %v3397 = vld [vmem:[%s10 + $0x8] sm:$0xf]
      %v3398 = vld [vmem:[%s10 + $0xc] sm:$0xf]
      %v3399 = vld [vmem:[%s11] sm:$0x1]
      %v3400 = vld [vmem:[%s12] sm:$0xf]
      %v3401 = vld [vmem:[%s12 + $0x4] sm:$0xf]
      %v3402 = vld [vmem:[%s12 + $0x8] sm:$0xf]
      %v3403 = vld [vmem:[%s12 + $0xc] sm:$0xf]
      %v3404 = vld [vmem:[%s12 + $0x10] sm:$0xf]
      %v3405 = vld [vmem:[%s12 + $0x14] sm:$0xf]
      %v3406 = vld [vmem:[%s12 + $0x18] sm:$0xf]
      %v3407 = vld [vmem:[%s12 + $0x1c] sm:$0xf]
      %v3408 = vld [vmem:[%s13] sm:$0x1]
      %v3409 = vpack.c.bf16 %v3394, %v3394
      %v3411 = vlaneseq
      %v3412 = vshrl.u32 %v3411, 7
      %v3413 = vsub.s32 0, %v3412
      %v3414 = vrot.slane %v3399, %v3413
      %v3420 = vunpack.c.l.b16 %v3395
      %v3421 = vunpack.c.l.b16 %v3396
      %v3422 = vunpack.c.l.b16 %v3397
      %v3423 = vunpack.c.l.b16 %v3398
      %v3424 = vpack.c.b16 %v3421, %v3420
      %v3425 = vpack.c.b16 %v3423, %v3422
      %v3429 = vsel %vm639, %v3409, 0
      %3431 = vmatprep.subr.bf16.mxu0 0
      %3432 = vmatpush1.bf16.msra.mxu0 %v3424
      %3433 = vmatprep.subr.bf16.mxu0 0
      %3434 = vmatpush1.bf16.msra.mxu0 %v3425
      %3435 = vmatprep.subr.bf16.mxu0 0
      %3436 = vmatpush1.bf16.msra.mxu0 0
      %3437 = vmatprep.subr.bf16.mxu0 0
      %3438 = vmatpush1.bf16.msra.mxu0 0
      %3439 = vmatprep.subr.bf16.mxu0 0
      %3440 = vmatpush1.bf16.msra.mxu0 0
      %3441 = vmatprep.subr.bf16.mxu0 0
      %3442 = vmatpush1.bf16.msra.mxu0 0
      %3443 = vmatprep.subr.bf16.mxu0 0
      %3444 = vmatpush1.bf16.msra.mxu0 0
      %3445 = vmatprep.subr.bf16.mxu0 0
      %3446 = vmatpush1.bf16.msra.mxu0 0
      %3447 = vmatprep.subr.bf16.mxu0 0
      %3448 = vmatpush1.bf16.msra.mxu0 0
      %3449 = vmatprep.subr.bf16.mxu0 0
      %3450 = vmatpush1.bf16.msra.mxu0 0
      %3451 = vmatprep.subr.bf16.mxu0 0
      %3452 = vmatpush1.bf16.msra.mxu0 0
      %3453 = vmatprep.subr.bf16.mxu0 0
      %3454 = vmatpush1.bf16.msra.mxu0 0
      %3455 = vmatprep.subr.bf16.mxu0 0
      %3456 = vmatpush1.bf16.msra.mxu0 0
      %3457 = vmatprep.subr.bf16.mxu0 0
      %3458 = vmatpush1.bf16.msra.mxu0 0
      %3459 = vmatprep.subr.bf16.mxu0 0
      %3460 = vmatpush1.bf16.msra.mxu0 0
      %3461 = vmatprep.subr.bf16.mxu0 0
      %3462 = vmatpush1.bf16.msra.mxu0 0
      %3463 = vmatprep.mubr.bf16.mxu0 0
      %3464 = vmatmul.mubr.bf16.gmra.mrb[0].mxu0 %v3429
      %v3465 = vpop.f32.mrb[0].mxu0
      %v3466 = vadd.f32 %v3414, %v3465
      %v3467 = vpop.f32.mrb[0].mxu0
      %v3468 = vpop.f32.mrb[0].mxu0
      %v3469 = vpop.f32.mrb[0].mxu0
      %3470 = vdwg.mxu0
      %v3471 = vmax.f32 %v3466, 0.0
      %v3472 = vpack.c.bf16 %v3471, %v3471
      %v3474 = vlaneseq
      %v3475 = vshrl.u32 %v3474, 7
      %v3476 = vsub.s32 0, %v3475
      %v3477 = vrot.slane %v3408, %v3476
      %v3487 = vunpack.c.l.b16 %v3400
      %v3488 = vunpack.c.l.b16 %v3401
      %v3489 = vunpack.c.l.b16 %v3402
      %v3490 = vunpack.c.l.b16 %v3403
      %v3491 = vunpack.c.l.b16 %v3404
      %v3492 = vunpack.c.l.b16 %v3405
      %v3493 = vunpack.c.l.b16 %v3406
      %v3494 = vunpack.c.l.b16 %v3407
      %v3495 = vpack.c.b16 %v3488, %v3487
      %v3496 = vpack.c.b16 %v3490, %v3489
      %v3497 = vpack.c.b16 %v3492, %v3491
      %v3498 = vpack.c.b16 %v3494, %v3493
      %vm3503 = vcmask 523264
      %v3505 = vsel %vm3503, %v3472, 0
      %3507 = vmatprep.subr.bf16.mxu0 0
      %3508 = vmatpush1.bf16.msra.mxu0 %v3495
      %3509 = vmatprep.subr.bf16.mxu0 0
      %3510 = vmatpush1.bf16.msra.mxu0 %v3496
      %3511 = vmatprep.subr.bf16.mxu0 0
      %3512 = vmatpush1.bf16.msra.mxu0 %v3497
      %3513 = vmatprep.subr.bf16.mxu0 0
      %3514 = vmatpush1.bf16.msra.mxu0 %v3498
      %3515 = vmatprep.subr.bf16.mxu0 0
      %3516 = vmatpush1.bf16.msra.mxu0 0
      %3517 = vmatprep.subr.bf16.mxu0 0
      %3518 = vmatpush1.bf16.msra.mxu0 0
      %3519 = vmatprep.subr.bf16.mxu0 0
      %3520 = vmatpush1.bf16.msra.mxu0 0
      %3521 = vmatprep.subr.bf16.mxu0 0
      %3522 = vmatpush1.bf16.msra.mxu0 0
      %3523 = vmatprep.subr.bf16.mxu0 0
      %3524 = vmatpush1.bf16.msra.mxu0 0
      %3525 = vmatprep.subr.bf16.mxu0 0
      %3526 = vmatpush1.bf16.msra.mxu0 0
      %3527 = vmatprep.subr.bf16.mxu0 0
      %3528 = vmatpush1.bf16.msra.mxu0 0
      %3529 = vmatprep.subr.bf16.mxu0 0
      %3530 = vmatpush1.bf16.msra.mxu0 0
      %3531 = vmatprep.subr.bf16.mxu0 0
      %3532 = vmatpush1.bf16.msra.mxu0 0
      %3533 = vmatprep.subr.bf16.mxu0 0
      %3534 = vmatpush1.bf16.msra.mxu0 0
      %3535 = vmatprep.subr.bf16.mxu0 0
      %3536 = vmatpush1.bf16.msra.mxu0 0
      %3537 = vmatprep.subr.bf16.mxu0 0
      %3538 = vmatpush1.bf16.msra.mxu0 0
      %3539 = vmatprep.mubr.bf16.mxu0 0
      %3540 = vmatmul.mubr.bf16.gmra.mrb[0].mxu0 %v3505
      %v3541 = vpop.f32.mrb[0].mxu0
      %v3542 = vadd.f32 %v3477, %v3541
      %v3543 = vpop.f32.mrb[0].mxu0
      %v3544 = vpop.f32.mrb[0].mxu0
      %v3545 = vpop.f32.mrb[0].mxu0
      %3546 = vdwg.mxu0
      %v3547 = vadd.f32 %v3394, %v3542
      %v3548 = vld [vmem:[%s14 + $0x2] sm:$0x1]
      %v3549 = vld [vmem:[%s15 + $0x2] sm:$0x1]
      %v3550 = vsel %vm639, %v3547, 0.0
      %3551 = vadd.xlane.f32.xlu0 %v3550
      %v3552 = vpop.xlane.xlu0 %3551
      %v3553 = vmul.f32 %v3552, %v1945
      %v3554 = vsub.f32 %v3547, %v3553
      %v3555 = vmul.f32 %v3554, %v3554
      %v3556 = vsel %vm639, %v3555, 0.0
      %3557 = vadd.xlane.f32.xlu0 %v3556
      %v3558 = vpop.xlane.xlu0 %3557
      %v3559 = vmul.f32 %v3558, %v1945
      %v3560 = vadd.f32 %v3559, 1e-05
      %v3561 = vrsqrt.pop %v3560
      %v3562 = vmul.f32 %v3554, %v3561
      %v3563 = vlaneseq
      %v3564 = vshrl.u32 %v3563, 7
      %v3565 = vsub.s32 0, %v3564
      %v3566 = vrot.slane %v3548, %v3565
      %v3567 = vmul.f32 %v3562, %v3566
      %v3568 = vlaneseq
      %v3569 = vshrl.u32 %v3568, 7
      %v3570 = vsub.s32 0, %v3569
      %v3571 = vrot.slane %v3549, %v3570
      %v3572 = vadd.f32 %v3567, %v3571
      %3573 = vst.msk [vmem:[%s533] sm:$0xff] %vm639, %v3572
      %p3574 = scmp.lt.s32.totalorder %s27, 1
      %s3575 = scalar_select %p3574, %s27, 1
      %s3576 = smul.addr %s3575, 8
      %s3577 = scalar_lea.vmem %s16, %s3576
      // Predicated region
      $region85: #{transformer_forward.7} parent=83 // pred_check
        %p3578 = pneg %p391
      $region86: #{transformer_forward.7} parent=83 // pred_check_branch
        %3580 = sbr.rel (%p3578) target = $region88
      $region87: #{transformer_forward.7} parent=83 // pred_region
        _
      $region88: #{transformer_forward.7} parent=83 // pred_fallthru
        _
    $region84: #{transformer_forward.7} parent=5 // pred_fallthru
      _
    %p3581 = scmp.le.s32.totalorder 2, %s22
    // Predicated region
    $region89: #{transformer_forward.7} parent=5 // pred_check
      %p3582 = pneg %p3581
    $region90: #{transformer_forward.7} parent=5 // pred_check_branch
      %3584 = sbr.rel (%p3582) target = $region92
    $region91: #{transformer_forward.7} parent=5 // pred_region
      %s3585 = ssub.s32 %s22, 2
      // Predicated region
      $region93: #{transformer_forward.7} parent=91 // pred_check
        %p3586 = pneg %p397
      $region94: #{transformer_forward.7} parent=91 // pred_check_branch
        %3588 = sbr.rel (%p3586) target = $region96
      $region95: #{transformer_forward.7} parent=91 // pred_region
        %p3589 = scmp.lt.s32.totalorder %s28, 1
        %s3590 = scalar_select %p3589, %s28, 1
        %s3591 = smul.addr %s3590, 8
        %s3592 = scalar_lea.vmem %s16, %s3591
      $region96: #{transformer_forward.7} parent=91 // pred_fallthru
        _
    $region92: #{transformer_forward.7} parent=5 // pred_fallthru
      _
  $region6: #{transformer_forward.7} parent=0 // loop_footer
    %s26 = sadd.s32 1, %s22
  $region7: #{transformer_forward.7} parent=0 // loop_footer_branch
    %21 = sbr.rel target = $region3
  $region8: #{transformer_forward.7} parent=0 // loop_exit
    _

</llo_original>
